<compile_context>
chip_gen: v6e
topology: v6e:2x2x1
jax: 0.10.0
libtpu: 0.0.40
codegen_flags: <defaults>
</compile_context>

<pallas_src>
import functools
import math

import jax
import jax.numpy as jnp
from jax.experimental import pallas as pl
from jax.experimental.pallas import tpu as pltpu

_EPS = 1e-7
_NB = 512          # targets per lane block (multiple of 128); ~3.3 MB double-buffered VMEM
_CH = 16           # mask sublane chunk rows (multiple of 16 => aligned bf16 tiles)


def _bce_with_logits(x, z):
    # PyTorch BCEWithLogitsLoss elementwise: max(x,0) - x*z + log(1 + exp(-|x|))
    return jnp.maximum(x, 0.0) - x * z + jnp.log(1.0 + jnp.exp(-jnp.abs(x)))


# ------------------------------------------------------------------------------ kernel ----
def _seg_loss_kernel(slab_ref, mask_ref, out_ref, *, cp, fpad, inv_cls, inv_mask, nb, ch):
    """One 128*NB-target lane block: CIoU + obj/cls/mask BCE, accumulated per-lane."""
    eps = _EPS

    @pl.when(pl.program_id(1) == 0)
    def _init():
        out_ref[...] = jnp.zeros_like(out_ref)

    g = slab_ref[0:16, :]                                # (16, NB) geometry rows
    px, py, pw, ph = g[0:1], g[1:2], g[2:3], g[3:4]      # pred box decoded as (cx,cy,w,h)
    tx, ty, tw, th = g[4:5], g[5:6], g[6:7], g[7:8]      # target box as given (module behavior)
    obj = g[8:9]
    datan = g[9:10]                                      # atan(pw/ph)-atan(tw/th), from wrapper
    valid = g[10:11]

    # ---- CIoU ----
    p_x_min, p_x_max = px - pw * 0.5, px + pw * 0.5
    p_y_min, p_y_max = py - ph * 0.5, py + ph * 0.5
    t_x_min, t_x_max = tx - tw * 0.5, tx + tw * 0.5
    t_y_min, t_y_max = ty - th * 0.5, ty + th * 0.5

    inter_w = jnp.maximum(jnp.minimum(p_x_max, t_x_max) - jnp.maximum(p_x_min, t_x_min), 0.0)
    inter_h = jnp.maximum(jnp.minimum(p_y_max, t_y_max) - jnp.maximum(p_y_min, t_y_min), 0.0)
    inter_area = inter_w * inter_h
    union = pw * ph + tw * th - inter_area + eps
    iou = inter_area / union

    enc_w = jnp.maximum(jnp.maximum(p_x_max, t_x_max) - jnp.minimum(p_x_min, t_x_min), 0.0)
    enc_h = jnp.maximum(jnp.maximum(p_y_max, t_y_max) - jnp.minimum(p_y_min, t_y_min), 0.0)
    c2 = enc_w * enc_w + enc_h * enc_h + eps
    rho2 = (px - tx) * (px - tx) + (py - ty) * (py - ty)

    v = (4.0 / (math.pi ** 2)) * datan * datan
    alpha = v / (v - iou + (1.0 + eps))
    ciou = 1.0 - iou + rho2 / c2 + v * alpha             # (1, NB)

    # ---- objectness BCE (target = 1) ----
    obj_elem = _bce_with_logits(obj, 1.0)                # (1, NB)

    # ---- class BCE (Cp sublane rows; padded logit rows are -30 -> contribute exactly 0) ----
    cls_elem = _bce_with_logits(slab_ref[16:16 + cp, :], slab_ref[16 + cp:16 + 2 * cp, :])
    cls_row = jnp.sum(cls_elem, axis=0, keepdims=True) * inv_cls       # (1, NB)

    # ---- mask BCE, chunked ref reads with a running (CH, NB) vreg accumulator so the
    #      (784, NB) intermediate never exists / spills.  Static slice starts keep the
    #      addressing fully static (equivalent to a fully unrolled fori_loop).
    macc = jnp.zeros((ch, nb), jnp.float32)
    for k in range(fpad // ch):
        r0 = k * ch
        lg = mask_ref[r0:r0 + ch, :].astype(jnp.float32)
        tg = mask_ref[fpad + r0:fpad + r0 + ch, :].astype(jnp.float32)
        macc = macc + _bce_with_logits(lg, tg)
    mask_row = jnp.sum(macc, axis=0, keepdims=True) * inv_mask          # (1, NB)

    # ---- per-lane vector accumulation (rows 0-3 = box/obj/cls/mask); cross-lane reduce
    #      happens once in the wrapper instead of every grid step.
    part = jnp.concatenate([ciou, obj_elem, cls_row, mask_row,
                            jnp.zeros((4, nb), jnp.float32)], axis=0)   # (8, NB)
    out_ref[...] += (part * valid)[None]


# ----------------------------------------------------------------------- host-side glue ----
def _bilinear_weights(start, size, out_dim, src_dim):
    """Per-target 1-D interpolation matrices matching F.interpolate(bilinear, align_corners=False).

    Returns (n, out_dim, src_dim) weights acting on the full GT mask axis, with the crop
    offset folded in: resized = Lw @ mask @ Rw^T.
    """
    size_f = size.astype(jnp.float32)[:, None]                          # (n, 1)
    dst = jnp.arange(out_dim, dtype=jnp.float32)[None, :]               # (1, D)
    src = jnp.maximum((dst + 0.5) * size_f / out_dim - 0.5, 0.0)        # (n, D)
    last = jnp.maximum(size[:, None] - 1, 0)
    i0 = jnp.clip(jnp.floor(src).astype(jnp.int32), 0, last)
    i1 = jnp.minimum(i0 + 1, last)
    w1 = src - i0.astype(jnp.float32)
    w0 = 1.0 - w1
    oh0 = jax.nn.one_hot(start[:, None] + i0, src_dim, dtype=jnp.float32)   # (n, D, src_dim)
    oh1 = jax.nn.one_hot(start[:, None] + i1, src_dim, dtype=jnp.float32)
    return w0[..., None] * oh0 + w1[..., None] * oh1


def _gather_targets(preds, targets, num_classes, mask_dim):
    """Vectorized version of the module's ragged per-target gather.

    Index selection / validity filtering stays in Python (the target list is ragged host
    data); the tensor work (grid-cell gathers, one-hot, crop+bilinear GT-mask resize) is
    batched JAX.
    """
    box_pred, obj_pred, cls_pred, mask_pred = preds
    B, _, H, W = box_pred.shape

    # TODO(synk): a fully in-kernel gather (scalar-prefetch of a (b,gy,gx,cls) table + pl.ANY
    # prediction refs) needs fixed-size target tensors upstream; the ragged list stays host-side.
    rows = []
    for t in targets:
        b = int(t[0])
        if b < 0 or b >= B:                 # same effect as the `t[0] == batch_idx` filter
            continue
        x1, y1, x2, y2 = float(t[2]), float(t[3]), float(t[4]), float(t[5])
        gx = int(((x1 + x2) / 2.0) * W)     # matches .long() truncation
        gy = int(((y1 + y2) / 2.0) * H)
        if gx >= W or gy >= H or gx < 0 or gy < 0:
            continue
        rows.append((b, int(t[1]), x1, y1, x2, y2, gx, gy, jnp.asarray(t[6], jnp.float32)))

    n = len(rows)
    if n == 0:
        return None

    b_idx = jnp.array([r[0] for r in rows], jnp.int32)
    cls_ids = jnp.array([r[1] for r in rows], jnp.int32)
    tgt_box = jnp.array([[r[2], r[3], r[4], r[5]] for r in rows], jnp.float32)
    gx = jnp.array([r[6] for r in rows], jnp.int32)
    gy = jnp.array([r[7] for r in rows], jnp.int32)

    pred_box = box_pred[b_idx, :, gy, gx].astype(jnp.float32)                     # (n, 4)
    obj_logit = obj_pred[b_idx, 0, gy, gx].astype(jnp.float32)                    # (n,)
    cls_logit = cls_pred[b_idx, :, gy, gx].astype(jnp.float32)                    # (n, C)
    mask_logit = mask_pred[b_idx, gy * W + gx].reshape(n, -1).astype(jnp.float32) # (n, D*D)
    cls_tgt = jax.nn.one_hot(cls_ids, num_classes, dtype=jnp.float32)             # (n, C)

    # GT masks: stack (zero-pad to common size), then batched crop + bilinear resize as two
    # small matmuls, matching F.interpolate(mode='bilinear', align_corners=False).
    gt_masks = [r[8] for r in rows]
    hm = max(m.shape[0] for m in gt_masks)
    wm = max(m.shape[1] for m in gt_masks)
    masks = jnp.stack([jnp.pad(m, ((0, hm - m.shape[0]), (0, wm - m.shape[1])))
                       for m in gt_masks])                                        # (n, hm, wm)

    bx1 = jnp.array([int(r[2] * W) for r in rows], jnp.int32)   # matches .int() truncation
    by1 = jnp.array([int(r[3] * H) for r in rows], jnp.int32)
    bx2 = jnp.array([int(r[4] * W) for r in rows], jnp.int32)
    by2 = jnp.array([int(r[5] * H) for r in rows], jnp.int32)

    lw = _bilinear_weights(by1, by2 - by1, mask_dim, hm)        # (n, D, hm)
    rw = _bilinear_weights(bx1, bx2 - bx1, mask_dim, wm)        # (n, D, wm)
    resized = jnp.einsum("nih,nhw,njw->nij", lw, masks, rw)     # (n, D, D)
    mask_tgt = (resized > 0.5).astype(jnp.float32).reshape(n, -1)

    return pred_box, tgt_box, obj_logit, cls_logit, cls_tgt, mask_logit, mask_tgt


def _padded_budget(n, step):
    """Fixed power-of-two padding budgets so shapes (and hence compilations) stay constant."""
    budget = step
    while budget < n:
        budget *= 2
    return budget


def segmentation_loss(preds, targets, num_classes, mask_dim=28):
    box_pred = preds[0]
    B = box_pred.shape[0]

    gathered = _gather_targets(preds, targets, num_classes, mask_dim)
    if gathered is None:
        z = jnp.float32(0.0)
        return z, {"box": z, "obj": z, "cls": z, "mask": z}

    pred_box, tgt_box, obj_logit, cls_logit, cls_tgt, mask_logit, mask_tgt = gathered
    n = pred_box.shape[0]
    n_pad = _padded_budget(n, 2 * _NB)          # multiple of 2*NB: even split across 2 cores

    # ---- slab0 (16 + 2*Cp, n_pad) f32: geometry rows + class logits/targets ----
    # jnp.arctan has no guaranteed Mosaic lowering; the CIoU atan difference is computed
    # here and passed in as a single feature row.
    datan = (jnp.arctan(pred_box[:, 2] / (pred_box[:, 3] + _EPS))
             - jnp.arctan(tgt_box[:, 2] / (tgt_box[:, 3] + _EPS)))
    geom = jnp.concatenate([pred_box.T, tgt_box.T, obj_logit[None, :],
                            datan[None, :], jnp.ones((1, n), jnp.float32)], axis=0)  # (11, n)
    geom = jnp.pad(geom, ((0, 16 - geom.shape[0]), (0, 0)))

    cp = max(8, -(-num_classes // 8) * 8)
    cls_logit_p = jnp.pad(cls_logit.T, ((0, cp - num_classes), (0, 0)), constant_values=-30.0)
    cls_tgt_p = jnp.pad(cls_tgt.T, ((0, cp - num_classes), (0, 0)))
    slab0 = jnp.concatenate([geom, cls_logit_p, cls_tgt_p], axis=0)
    slab0 = jnp.pad(slab0, ((0, 0), (0, n_pad - n)))                    # (16+2cp, n_pad)

    # ---- mask slab (2*Fp, n_pad) bf16: logits (transport-quantized) then exact 0/1 targets.
    # Padded logit rows use -30 -> BCE(-30, 0) == 0 exactly in f32.
    feat = mask_dim * mask_dim
    fpad = -(-feat // _CH) * _CH
    mlog = jnp.pad(mask_logit.astype(jnp.bfloat16).T, ((0, fpad - feat), (0, 0)),
                   constant_values=-30.0)
    mtgt = jnp.pad(mask_tgt.astype(jnp.bfloat16).T, ((0, fpad - feat), (0, 0)))
    mask_slab = jnp.pad(jnp.concatenate([mlog, mtgt], axis=0), ((0, 0), (0, n_pad - n)))

    grows = 16 + 2 * cp
    n_blocks = n_pad // _NB
    half = n_blocks // 2                        # lane blocks per "core" grid instance

    kernel = functools.partial(_seg_loss_kernel, cp=cp, fpad=fpad,
                               inv_cls=1.0 / num_classes, inv_mask=1.0 / feat,
                               nb=_NB, ch=_CH)

    acc = pl.pallas_call(
        kernel,
        out_shape=jax.ShapeDtypeStruct((2, 8, _NB), jnp.float32),
        grid=(2, half),
        in_specs=[pl.BlockSpec((grows, _NB), lambda c, i: (0, c * half + i)),
                  pl.BlockSpec((2 * fpad, _NB), lambda c, i: (0, c * half + i))],
        out_specs=pl.BlockSpec((1, 8, _NB), lambda c, i: (c, 0, 0)),
        compiler_params=pltpu.CompilerParams(
            dimension_semantics=("parallel", "arbitrary")),
    )(slab0, mask_slab)

    sums = jnp.sum(acc, axis=(0, 2))            # (8,) rows 0-3 = box/obj/cls/mask
    total_box, total_obj, total_cls, total_mask = sums[0], sums[1], sums[2], sums[3]
    total_loss = (total_box + total_obj + total_cls + total_mask) / B
    return total_loss, {"box": total_box / B, "obj": total_obj / B,
                        "cls": total_cls / B, "mask": total_mask / B}


def _reference_totals(pred_box, tgt_box, obj_logit, cls_logit, cls_tgt, mask_logit, mask_tgt):
    """Pure-JAX replica of the PyTorch forward (on the gathered rows), for sanity checking."""
    eps = _EPS
    p_xy, p_wh = pred_box[:, :2], pred_box[:, 2:4]
    t_xy, t_wh = tgt_box[:, :2], tgt_box[:, 2:4]
    i_min = jnp.maximum(p_xy - p_wh / 2, t_xy - t_wh / 2)
    i_max = jnp.minimum(p_xy + p_wh / 2, t_xy + t_wh / 2)
    i_wh = jnp.maximum(i_max - i_min, 0.0)
    inter = i_wh[:, 0] * i_wh[:, 1]
    union = p_wh[:, 0] * p_wh[:, 1] + t_wh[:, 0] * t_wh[:, 1] - inter + eps
    iou = inter / union
    e_min = jnp.minimum(p_xy - p_wh / 2, t_xy - t_wh / 2)
    e_max = jnp.maximum(p_xy + p_wh / 2, t_xy + t_wh / 2)
    e_wh = jnp.maximum(e_max - e_min, 0.0)
    c2 = e_wh[:, 0] ** 2 + e_wh[:, 1] ** 2 + eps
    rho2 = (p_xy[:, 0] - t_xy[:, 0]) ** 2 + (p_xy[:, 1] - t_xy[:, 1]) ** 2
    v = (4.0 / math.pi ** 2) * (jnp.arctan(p_wh[:, 0] / (p_wh[:, 1] + eps))
                                - jnp.arctan(t_wh[:, 0] / (t_wh[:, 1] + eps))) ** 2
    alpha = v / (v - iou + (1.0 + eps))
    box = jnp.sum(1.0 - iou + rho2 / c2 + v * alpha)
    obj = jnp.sum(_bce_with_logits(obj_logit, 1.0))
    cls = jnp.sum(jnp.mean(_bce_with_logits(cls_logit, cls_tgt), axis=1))
    msk = jnp.sum(jnp.mean(_bce_with_logits(mask_logit, mask_tgt), axis=1))
    return jnp.array([box, obj, cls, msk])


if __name__ == "__main__":
    key = jax.random.PRNGKey(0)
    B, C, H, W, D = 2, 4, 16, 16, 28

    k1, k2, k3, k4, k5 = jax.random.split(key, 5)
    box_pred = jax.random.normal(k1, (B, 4, H, W), jnp.float32)
    obj_pred = jax.random.normal(k2, (B, 1, H, W), jnp.float32)
    cls_pred = jax.random.normal(k3, (B, C, H, W), jnp.float32)
    mask_pred = jax.random.normal(k4, (B, H * W, D, D), jnp.float32)
    preds = (box_pred, obj_pred, cls_pred, mask_pred)

    boxes = [(0, 1, 0.10, 0.20, 0.50, 0.60),
             (0, 3, 0.30, 0.10, 0.90, 0.70),
             (1, 0, 0.20, 0.25, 0.80, 0.75)]
    mkeys = jax.random.split(k5, len(boxes))
    targets = []
    for (b, c, x1, y1, x2, y2), mk in zip(boxes, mkeys):
        gt_mask = (jax.random.uniform(mk, (H, W)) > 0.5).astype(jnp.float32)
        targets.append((b, c, x1, y1, x2, y2, gt_mask))

    total, parts = segmentation_loss(preds, targets, num_classes=C, mask_dim=D)
    jax.block_until_ready(total)

    # Sanity-check the kernel against a pure-JAX reference of the same forward.  The mask
    # logits go through the same bf16 transport quantization the kernel input uses, so the
    # check validates the kernel math (all in f32) on identical values.
    gathered = _gather_targets(preds, targets, C, D)
    pred_box, tgt_box, obj_logit, cls_logit, cls_tgt, mask_logit, mask_tgt = gathered
    mask_logit_q = mask_logit.astype(jnp.bfloat16).astype(jnp.float32)
    ref = _reference_totals(pred_box, tgt_box, obj_logit, cls_logit, cls_tgt,
                            mask_logit_q, mask_tgt) / B
    got = jnp.array([parts["box"], parts["obj"], parts["cls"], parts["mask"]])
    assert jnp.allclose(got, ref, rtol=1e-4, atol=1e-4), (got, ref)

    print("KERNEL_OK")
</pallas_src>

<mosaic_0001>
module attributes {stable_mosaic.version = 11 : i64} {
  func.func @_seg_loss_kernel(%arg0: i32, %arg1: i32, %arg2: memref<32x512xf32, #tpu.memory_space<vmem>>, %arg3: memref<1568x512xbf16, #tpu.memory_space<vmem>>, %arg4: memref<1x8x512xf32, #tpu.memory_space<vmem>>) attributes {dimension_semantics = [#tpu.dimension_semantics<parallel>, #tpu.dimension_semantics<arbitrary>], iteration_bounds = array<i64: 2, 1>, scalar_prefetch = 0 : i64, scratch_operands = 0 : i64, tpu.core_type = #tpu.core_type<tc>, window_params = [{transform_indices = @transform_0, window_bounds = array<i64: 32, 512>}, {transform_indices = @transform_1, window_bounds = array<i64: 1568, 512>}, {transform_indices = @transform_2, window_bounds = array<i64: 1, 8, 512>}]} {
    %c0_i32 = arith.constant 0 : i32
    %0 = arith.cmpi eq, %arg1, %c0_i32 : i32
    %1 = arith.extui %0 : i1 to i32
    %c0_i32_0 = arith.constant 0 : i32
    %2 = arith.cmpi ne, %1, %c0_i32_0 : i32
    scf.if %2 {
      %cst_286 = arith.constant 0.000000e+00 : f32
      %969 = vector.broadcast %cst_286 : f32 to vector<1x8x512xf32>
      %c0_287 = arith.constant 0 : index
      %c0_288 = arith.constant 0 : index
      %c0_289 = arith.constant 0 : index
      %970 = vector.load %arg4[%c0_287, %c0_288, %c0_289] : memref<1x8x512xf32, #tpu.memory_space<vmem>>, vector<1x8x512xf32>
      tpu.vector_store %arg4[%c0_287, %c0_288, %c0_289], %969 {strides = array<i32>} : memref<1x8x512xf32, #tpu.memory_space<vmem>>, vector<1x8x512xf32>,
    } else {
    }
    %c0 = arith.constant 0 : index
    %c0_1 = arith.constant 0 : index
    %3 = vector.load %arg2[%c0, %c0_1] : memref<32x512xf32, #tpu.memory_space<vmem>>, vector<16x512xf32>
    %4 = vector.extract_strided_slice %3 {offsets = [0, 0], sizes = [1, 512], strides = [1, 1]} : vector<16x512xf32> to vector<1x512xf32>
    %5 = vector.extract_strided_slice %3 {offsets = [1, 0], sizes = [1, 512], strides = [1, 1]} : vector<16x512xf32> to vector<1x512xf32>
    %6 = vector.extract_strided_slice %3 {offsets = [2, 0], sizes = [1, 512], strides = [1, 1]} : vector<16x512xf32> to vector<1x512xf32>
    %7 = vector.extract_strided_slice %3 {offsets = [3, 0], sizes = [1, 512], strides = [1, 1]} : vector<16x512xf32> to vector<1x512xf32>
    %8 = vector.extract_strided_slice %3 {offsets = [4, 0], sizes = [1, 512], strides = [1, 1]} : vector<16x512xf32> to vector<1x512xf32>
    %9 = vector.extract_strided_slice %3 {offsets = [5, 0], sizes = [1, 512], strides = [1, 1]} : vector<16x512xf32> to vector<1x512xf32>
    %10 = vector.extract_strided_slice %3 {offsets = [6, 0], sizes = [1, 512], strides = [1, 1]} : vector<16x512xf32> to vector<1x512xf32>
    %11 = vector.extract_strided_slice %3 {offsets = [7, 0], sizes = [1, 512], strides = [1, 1]} : vector<16x512xf32> to vector<1x512xf32>
    %12 = vector.extract_strided_slice %3 {offsets = [8, 0], sizes = [1, 512], strides = [1, 1]} : vector<16x512xf32> to vector<1x512xf32>
    %13 = vector.extract_strided_slice %3 {offsets = [9, 0], sizes = [1, 512], strides = [1, 1]} : vector<16x512xf32> to vector<1x512xf32>
    %14 = vector.extract_strided_slice %3 {offsets = [10, 0], sizes = [1, 512], strides = [1, 1]} : vector<16x512xf32> to vector<1x512xf32>
    %cst = arith.constant 5.000000e-01 : f32
    %15 = vector.broadcast %cst : f32 to vector<1x512xf32>
    %16 = arith.mulf %6, %15 : vector<1x512xf32>
    %17 = arith.subf %4, %16 : vector<1x512xf32>
    %cst_2 = arith.constant 5.000000e-01 : f32
    %18 = vector.broadcast %cst_2 : f32 to vector<1x512xf32>
    %19 = arith.mulf %6, %18 : vector<1x512xf32>
    %20 = arith.addf %4, %19 : vector<1x512xf32>
    %cst_3 = arith.constant 5.000000e-01 : f32
    %21 = vector.broadcast %cst_3 : f32 to vector<1x512xf32>
    %22 = arith.mulf %7, %21 : vector<1x512xf32>
    %23 = arith.subf %5, %22 : vector<1x512xf32>
    %cst_4 = arith.constant 5.000000e-01 : f32
    %24 = vector.broadcast %cst_4 : f32 to vector<1x512xf32>
    %25 = arith.mulf %7, %24 : vector<1x512xf32>
    %26 = arith.addf %5, %25 : vector<1x512xf32>
    %cst_5 = arith.constant 5.000000e-01 : f32
    %27 = vector.broadcast %cst_5 : f32 to vector<1x512xf32>
    %28 = arith.mulf %10, %27 : vector<1x512xf32>
    %29 = arith.subf %8, %28 : vector<1x512xf32>
    %cst_6 = arith.constant 5.000000e-01 : f32
    %30 = vector.broadcast %cst_6 : f32 to vector<1x512xf32>
    %31 = arith.mulf %10, %30 : vector<1x512xf32>
    %32 = arith.addf %8, %31 : vector<1x512xf32>
    %cst_7 = arith.constant 5.000000e-01 : f32
    %33 = vector.broadcast %cst_7 : f32 to vector<1x512xf32>
    %34 = arith.mulf %11, %33 : vector<1x512xf32>
    %35 = arith.subf %9, %34 : vector<1x512xf32>
    %cst_8 = arith.constant 5.000000e-01 : f32
    %36 = vector.broadcast %cst_8 : f32 to vector<1x512xf32>
    %37 = arith.mulf %11, %36 : vector<1x512xf32>
    %38 = arith.addf %9, %37 : vector<1x512xf32>
    %39 = arith.minimumf %20, %32 : vector<1x512xf32>
    %40 = arith.maximumf %17, %29 : vector<1x512xf32>
    %41 = arith.subf %39, %40 : vector<1x512xf32>
    %cst_9 = arith.constant 0.000000e+00 : f32
    %42 = vector.broadcast %cst_9 : f32 to vector<1x512xf32>
    %43 = arith.maximumf %41, %42 : vector<1x512xf32>
    %44 = arith.minimumf %26, %38 : vector<1x512xf32>
    %45 = arith.maximumf %23, %35 : vector<1x512xf32>
    %46 = arith.subf %44, %45 : vector<1x512xf32>
    %cst_10 = arith.constant 0.000000e+00 : f32
    %47 = vector.broadcast %cst_10 : f32 to vector<1x512xf32>
    %48 = arith.maximumf %46, %47 : vector<1x512xf32>
    %49 = arith.mulf %43, %48 : vector<1x512xf32>
    %50 = arith.mulf %6, %7 : vector<1x512xf32>
    %51 = arith.mulf %10, %11 : vector<1x512xf32>
    %52 = arith.addf %50, %51 : vector<1x512xf32>
    %53 = arith.subf %52, %49 : vector<1x512xf32>
    %cst_11 = arith.constant 1.000000e-07 : f32
    %54 = vector.broadcast %cst_11 : f32 to vector<1x512xf32>
    %55 = arith.addf %53, %54 : vector<1x512xf32>
    %56 = arith.divf %49, %55 : vector<1x512xf32>
    %57 = arith.maximumf %20, %32 : vector<1x512xf32>
    %58 = arith.minimumf %17, %29 : vector<1x512xf32>
    %59 = arith.subf %57, %58 : vector<1x512xf32>
    %cst_12 = arith.constant 0.000000e+00 : f32
    %60 = vector.broadcast %cst_12 : f32 to vector<1x512xf32>
    %61 = arith.maximumf %59, %60 : vector<1x512xf32>
    %62 = arith.maximumf %26, %38 : vector<1x512xf32>
    %63 = arith.minimumf %23, %35 : vector<1x512xf32>
    %64 = arith.subf %62, %63 : vector<1x512xf32>
    %cst_13 = arith.constant 0.000000e+00 : f32
    %65 = vector.broadcast %cst_13 : f32 to vector<1x512xf32>
    %66 = arith.maximumf %64, %65 : vector<1x512xf32>
    %67 = arith.mulf %61, %61 : vector<1x512xf32>
    %68 = arith.mulf %66, %66 : vector<1x512xf32>
    %69 = arith.addf %67, %68 : vector<1x512xf32>
    %cst_14 = arith.constant 1.000000e-07 : f32
    %70 = vector.broadcast %cst_14 : f32 to vector<1x512xf32>
    %71 = arith.addf %69, %70 : vector<1x512xf32>
    %72 = arith.subf %4, %8 : vector<1x512xf32>
    %73 = arith.subf %4, %8 : vector<1x512xf32>
    %74 = arith.mulf %72, %73 : vector<1x512xf32>
    %75 = arith.subf %5, %9 : vector<1x512xf32>
    %76 = arith.subf %5, %9 : vector<1x512xf32>
    %77 = arith.mulf %75, %76 : vector<1x512xf32>
    %78 = arith.addf %74, %77 : vector<1x512xf32>
    %cst_15 = arith.constant 0.405284733 : f32
    %79 = vector.broadcast %cst_15 : f32 to vector<1x512xf32>
    %80 = arith.mulf %79, %13 : vector<1x512xf32>
    %81 = arith.mulf %80, %13 : vector<1x512xf32>
    %82 = arith.subf %81, %56 : vector<1x512xf32>
    %cst_16 = arith.constant 1.00000012 : f32
    %83 = vector.broadcast %cst_16 : f32 to vector<1x512xf32>
    %84 = arith.addf %82, %83 : vector<1x512xf32>
    %85 = arith.divf %81, %84 : vector<1x512xf32>
    %cst_17 = arith.constant 1.000000e+00 : f32
    %86 = vector.broadcast %cst_17 : f32 to vector<1x512xf32>
    %87 = arith.subf %86, %56 : vector<1x512xf32>
    %88 = arith.divf %78, %71 : vector<1x512xf32>
    %89 = arith.addf %87, %88 : vector<1x512xf32>
    %90 = arith.mulf %81, %85 : vector<1x512xf32>
    %91 = arith.addf %89, %90 : vector<1x512xf32>
    %cst_18 = arith.constant 0.000000e+00 : f32
    %92 = vector.broadcast %cst_18 : f32 to vector<1x512xf32>
    %93 = arith.maximumf %12, %92 : vector<1x512xf32>
    %cst_19 = arith.constant 1.000000e+00 : f32
    %94 = vector.broadcast %cst_19 : f32 to vector<1x512xf32>
    %95 = arith.mulf %12, %94 : vector<1x512xf32>
    %96 = arith.subf %93, %95 : vector<1x512xf32>
    %97 = math.absf %12 : vector<1x512xf32>
    %cst_20 = arith.constant 0.000000e+00 : f32
    %98 = vector.broadcast %cst_20 : f32 to vector<1x512xf32>
    %99 = arith.subf %98, %97 : vector<1x512xf32>
    %100 = math.exp %99 : vector<1x512xf32>
    %cst_21 = arith.constant 1.000000e+00 : f32
    %101 = vector.broadcast %cst_21 : f32 to vector<1x512xf32>
    %102 = arith.addf %101, %100 : vector<1x512xf32>
    %103 = math.log %102 : vector<1x512xf32>
    %104 = arith.addf %96, %103 : vector<1x512xf32>
    %c16 = arith.constant 16 : index
    %c0_22 = arith.constant 0 : index
    %105 = vector.load %arg2[%c16, %c0_22] : memref<32x512xf32, #tpu.memory_space<vmem>>, vector<8x512xf32>
    %c24 = arith.constant 24 : index
    %c0_23 = arith.constant 0 : index
    %106 = vector.load %arg2[%c24, %c0_23] : memref<32x512xf32, #tpu.memory_space<vmem>>, vector<8x512xf32>
    %cst_24 = arith.constant 0.000000e+00 : f32
    %107 = vector.broadcast %cst_24 : f32 to vector<8x512xf32>
    %108 = arith.maximumf %105, %107 : vector<8x512xf32>
    %109 = arith.mulf %105, %106 : vector<8x512xf32>
    %110 = arith.subf %108, %109 : vector<8x512xf32>
    %111 = math.absf %105 : vector<8x512xf32>
    %cst_25 = arith.constant 0.000000e+00 : f32
    %112 = vector.broadcast %cst_25 : f32 to vector<8x512xf32>
    %113 = arith.subf %112, %111 : vector<8x512xf32>
    %114 = math.exp %113 : vector<8x512xf32>
    %cst_26 = arith.constant 1.000000e+00 : f32
    %115 = vector.broadcast %cst_26 : f32 to vector<8x512xf32>
    %116 = arith.addf %115, %114 : vector<8x512xf32>
    %117 = math.log %116 : vector<8x512xf32>
    %118 = arith.addf %110, %117 : vector<8x512xf32>
    %cst_27 = arith.constant dense<0.000000e+00> : vector<512xf32>
    %119 = vector.multi_reduction <add>, %118, %cst_27 [0] : vector<8x512xf32> to vector<512xf32>
    %120 = vector.shape_cast %119 : vector<512xf32> to vector<1x512xf32>
    %cst_28 = arith.constant 2.500000e-01 : f32
    %121 = vector.broadcast %cst_28 : f32 to vector<1x512xf32>
    %122 = arith.mulf %120, %121 : vector<1x512xf32>
    %cst_29 = arith.constant 0.000000e+00 : f32
    %123 = vector.broadcast %cst_29 : f32 to vector<16x512xf32>
    %c0_30 = arith.constant 0 : index
    %c0_31 = arith.constant 0 : index
    %124 = vector.load %arg3[%c0_30, %c0_31] : memref<1568x512xbf16, #tpu.memory_space<vmem>>, vector<16x512xbf16>
    %125 = arith.extf %124 : vector<16x512xbf16> to vector<16x512xf32>
    %c784 = arith.constant 784 : index
    %c0_32 = arith.constant 0 : index
    %126 = vector.load %arg3[%c784, %c0_32] : memref<1568x512xbf16, #tpu.memory_space<vmem>>, vector<16x512xbf16>
    %127 = arith.extf %126 : vector<16x512xbf16> to vector<16x512xf32>
    %cst_33 = arith.constant 0.000000e+00 : f32
    %128 = vector.broadcast %cst_33 : f32 to vector<16x512xf32>
    %129 = arith.maximumf %125, %128 : vector<16x512xf32>
    %130 = arith.mulf %125, %127 : vector<16x512xf32>
    %131 = arith.subf %129, %130 : vector<16x512xf32>
    %132 = math.absf %125 : vector<16x512xf32>
    %cst_34 = arith.constant 0.000000e+00 : f32
    %133 = vector.broadcast %cst_34 : f32 to vector<16x512xf32>
    %134 = arith.subf %133, %132 : vector<16x512xf32>
    %135 = math.exp %134 : vector<16x512xf32>
    %cst_35 = arith.constant 1.000000e+00 : f32
    %136 = vector.broadcast %cst_35 : f32 to vector<16x512xf32>
    %137 = arith.addf %136, %135 : vector<16x512xf32>
    %138 = math.log %137 : vector<16x512xf32>
    %139 = arith.addf %131, %138 : vector<16x512xf32>
    %140 = arith.addf %123, %139 : vector<16x512xf32>
    %c16_36 = arith.constant 16 : index
    %c0_37 = arith.constant 0 : index
    %141 = vector.load %arg3[%c16_36, %c0_37] : memref<1568x512xbf16, #tpu.memory_space<vmem>>, vector<16x512xbf16>
    %142 = arith.extf %141 : vector<16x512xbf16> to vector<16x512xf32>
    %c800 = arith.constant 800 : index
    %c0_38 = arith.constant 0 : index
    %143 = vector.load %arg3[%c800, %c0_38] : memref<1568x512xbf16, #tpu.memory_space<vmem>>, vector<16x512xbf16>
    %144 = arith.extf %143 : vector<16x512xbf16> to vector<16x512xf32>
    %cst_39 = arith.constant 0.000000e+00 : f32
    %145 = vector.broadcast %cst_39 : f32 to vector<16x512xf32>
    %146 = arith.maximumf %142, %145 : vector<16x512xf32>
    %147 = arith.mulf %142, %144 : vector<16x512xf32>
    %148 = arith.subf %146, %147 : vector<16x512xf32>
    %149 = math.absf %142 : vector<16x512xf32>
    %cst_40 = arith.constant 0.000000e+00 : f32
    %150 = vector.broadcast %cst_40 : f32 to vector<16x512xf32>
    %151 = arith.subf %150, %149 : vector<16x512xf32>
    %152 = math.exp %151 : vector<16x512xf32>
    %cst_41 = arith.constant 1.000000e+00 : f32
    %153 = vector.broadcast %cst_41 : f32 to vector<16x512xf32>
    %154 = arith.addf %153, %152 : vector<16x512xf32>
    %155 = math.log %154 : vector<16x512xf32>
    %156 = arith.addf %148, %155 : vector<16x512xf32>
    %157 = arith.addf %140, %156 : vector<16x512xf32>
    %c32 = arith.constant 32 : index
    %c0_42 = arith.constant 0 : index
    %158 = vector.load %arg3[%c32, %c0_42] : memref<1568x512xbf16, #tpu.memory_space<vmem>>, vector<16x512xbf16>
    %159 = arith.extf %158 : vector<16x512xbf16> to vector<16x512xf32>
    %c816 = arith.constant 816 : index
    %c0_43 = arith.constant 0 : index
    %160 = vector.load %arg3[%c816, %c0_43] : memref<1568x512xbf16, #tpu.memory_space<vmem>>, vector<16x512xbf16>
    %161 = arith.extf %160 : vector<16x512xbf16> to vector<16x512xf32>
    %cst_44 = arith.constant 0.000000e+00 : f32
    %162 = vector.broadcast %cst_44 : f32 to vector<16x512xf32>
    %163 = arith.maximumf %159, %162 : vector<16x512xf32>
    %164 = arith.mulf %159, %161 : vector<16x512xf32>
    %165 = arith.subf %163, %164 : vector<16x512xf32>
    %166 = math.absf %159 : vector<16x512xf32>
    %cst_45 = arith.constant 0.000000e+00 : f32
    %167 = vector.broadcast %cst_45 : f32 to vector<16x512xf32>
    %168 = arith.subf %167, %166 : vector<16x512xf32>
    %169 = math.exp %168 : vector<16x512xf32>
    %cst_46 = arith.constant 1.000000e+00 : f32
    %170 = vector.broadcast %cst_46 : f32 to vector<16x512xf32>
    %171 = arith.addf %170, %169 : vector<16x512xf32>
    %172 = math.log %171 : vector<16x512xf32>
    %173 = arith.addf %165, %172 : vector<16x512xf32>
    %174 = arith.addf %157, %173 : vector<16x512xf32>
    %c48 = arith.constant 48 : index
    %c0_47 = arith.constant 0 : index
    %175 = vector.load %arg3[%c48, %c0_47] : memref<1568x512xbf16, #tpu.memory_space<vmem>>, vector<16x512xbf16>
    %176 = arith.extf %175 : vector<16x512xbf16> to vector<16x512xf32>
    %c832 = arith.constant 832 : index
    %c0_48 = arith.constant 0 : index
    %177 = vector.load %arg3[%c832, %c0_48] : memref<1568x512xbf16, #tpu.memory_space<vmem>>, vector<16x512xbf16>
    %178 = arith.extf %177 : vector<16x512xbf16> to vector<16x512xf32>
    %cst_49 = arith.constant 0.000000e+00 : f32
    %179 = vector.broadcast %cst_49 : f32 to vector<16x512xf32>
    %180 = arith.maximumf %176, %179 : vector<16x512xf32>
    %181 = arith.mulf %176, %178 : vector<16x512xf32>
    %182 = arith.subf %180, %181 : vector<16x512xf32>
    %183 = math.absf %176 : vector<16x512xf32>
    %cst_50 = arith.constant 0.000000e+00 : f32
    %184 = vector.broadcast %cst_50 : f32 to vector<16x512xf32>
    %185 = arith.subf %184, %183 : vector<16x512xf32>
    %186 = math.exp %185 : vector<16x512xf32>
    %cst_51 = arith.constant 1.000000e+00 : f32
    %187 = vector.broadcast %cst_51 : f32 to vector<16x512xf32>
    %188 = arith.addf %187, %186 : vector<16x512xf32>
    %189 = math.log %188 : vector<16x512xf32>
    %190 = arith.addf %182, %189 : vector<16x512xf32>
    %191 = arith.addf %174, %190 : vector<16x512xf32>
    %c64 = arith.constant 64 : index
    %c0_52 = arith.constant 0 : index
    %192 = vector.load %arg3[%c64, %c0_52] : memref<1568x512xbf16, #tpu.memory_space<vmem>>, vector<16x512xbf16>
    %193 = arith.extf %192 : vector<16x512xbf16> to vector<16x512xf32>
    %c848 = arith.constant 848 : index
    %c0_53 = arith.constant 0 : index
    %194 = vector.load %arg3[%c848, %c0_53] : memref<1568x512xbf16, #tpu.memory_space<vmem>>, vector<16x512xbf16>
    %195 = arith.extf %194 : vector<16x512xbf16> to vector<16x512xf32>
    %cst_54 = arith.constant 0.000000e+00 : f32
    %196 = vector.broadcast %cst_54 : f32 to vector<16x512xf32>
    %197 = arith.maximumf %193, %196 : vector<16x512xf32>
    %198 = arith.mulf %193, %195 : vector<16x512xf32>
    %199 = arith.subf %197, %198 : vector<16x512xf32>
    %200 = math.absf %193 : vector<16x512xf32>
    %cst_55 = arith.constant 0.000000e+00 : f32
    %201 = vector.broadcast %cst_55 : f32 to vector<16x512xf32>
    %202 = arith.subf %201, %200 : vector<16x512xf32>
    %203 = math.exp %202 : vector<16x512xf32>
    %cst_56 = arith.constant 1.000000e+00 : f32
    %204 = vector.broadcast %cst_56 : f32 to vector<16x512xf32>
    %205 = arith.addf %204, %203 : vector<16x512xf32>
    %206 = math.log %205 : vector<16x512xf32>
    %207 = arith.addf %199, %206 : vector<16x512xf32>
    %208 = arith.addf %191, %207 : vector<16x512xf32>
    %c80 = arith.constant 80 : index
    %c0_57 = arith.constant 0 : index
    %209 = vector.load %arg3[%c80, %c0_57] : memref<1568x512xbf16, #tpu.memory_space<vmem>>, vector<16x512xbf16>
    %210 = arith.extf %209 : vector<16x512xbf16> to vector<16x512xf32>
    %c864 = arith.constant 864 : index
    %c0_58 = arith.constant 0 : index
    %211 = vector.load %arg3[%c864, %c0_58] : memref<1568x512xbf16, #tpu.memory_space<vmem>>, vector<16x512xbf16>
    %212 = arith.extf %211 : vector<16x512xbf16> to vector<16x512xf32>
    %cst_59 = arith.constant 0.000000e+00 : f32
    %213 = vector.broadcast %cst_59 : f32 to vector<16x512xf32>
    %214 = arith.maximumf %210, %213 : vector<16x512xf32>
    %215 = arith.mulf %210, %212 : vector<16x512xf32>
    %216 = arith.subf %214, %215 : vector<16x512xf32>
    %217 = math.absf %210 : vector<16x512xf32>
    %cst_60 = arith.constant 0.000000e+00 : f32
    %218 = vector.broadcast %cst_60 : f32 to vector<16x512xf32>
    %219 = arith.subf %218, %217 : vector<16x512xf32>
    %220 = math.exp %219 : vector<16x512xf32>
    %cst_61 = arith.constant 1.000000e+00 : f32
    %221 = vector.broadcast %cst_61 : f32 to vector<16x512xf32>
    %222 = arith.addf %221, %220 : vector<16x512xf32>
    %223 = math.log %222 : vector<16x512xf32>
    %224 = arith.addf %216, %223 : vector<16x512xf32>
    %225 = arith.addf %208, %224 : vector<16x512xf32>
    %c96 = arith.constant 96 : index
    %c0_62 = arith.constant 0 : index
    %226 = vector.load %arg3[%c96, %c0_62] : memref<1568x512xbf16, #tpu.memory_space<vmem>>, vector<16x512xbf16>
    %227 = arith.extf %226 : vector<16x512xbf16> to vector<16x512xf32>
    %c880 = arith.constant 880 : index
    %c0_63 = arith.constant 0 : index
    %228 = vector.load %arg3[%c880, %c0_63] : memref<1568x512xbf16, #tpu.memory_space<vmem>>, vector<16x512xbf16>
    %229 = arith.extf %228 : vector<16x512xbf16> to vector<16x512xf32>
    %cst_64 = arith.constant 0.000000e+00 : f32
    %230 = vector.broadcast %cst_64 : f32 to vector<16x512xf32>
    %231 = arith.maximumf %227, %230 : vector<16x512xf32>
    %232 = arith.mulf %227, %229 : vector<16x512xf32>
    %233 = arith.subf %231, %232 : vector<16x512xf32>
    %234 = math.absf %227 : vector<16x512xf32>
    %cst_65 = arith.constant 0.000000e+00 : f32
    %235 = vector.broadcast %cst_65 : f32 to vector<16x512xf32>
    %236 = arith.subf %235, %234 : vector<16x512xf32>
    %237 = math.exp %236 : vector<16x512xf32>
    %cst_66 = arith.constant 1.000000e+00 : f32
    %238 = vector.broadcast %cst_66 : f32 to vector<16x512xf32>
    %239 = arith.addf %238, %237 : vector<16x512xf32>
    %240 = math.log %239 : vector<16x512xf32>
    %241 = arith.addf %233, %240 : vector<16x512xf32>
    %242 = arith.addf %225, %241 : vector<16x512xf32>
    %c112 = arith.constant 112 : index
    %c0_67 = arith.constant 0 : index
    %243 = vector.load %arg3[%c112, %c0_67] : memref<1568x512xbf16, #tpu.memory_space<vmem>>, vector<16x512xbf16>
    %244 = arith.extf %243 : vector<16x512xbf16> to vector<16x512xf32>
    %c896 = arith.constant 896 : index
    %c0_68 = arith.constant 0 : index
    %245 = vector.load %arg3[%c896, %c0_68] : memref<1568x512xbf16, #tpu.memory_space<vmem>>, vector<16x512xbf16>
    %246 = arith.extf %245 : vector<16x512xbf16> to vector<16x512xf32>
    %cst_69 = arith.constant 0.000000e+00 : f32
    %247 = vector.broadcast %cst_69 : f32 to vector<16x512xf32>
    %248 = arith.maximumf %244, %247 : vector<16x512xf32>
    %249 = arith.mulf %244, %246 : vector<16x512xf32>
    %250 = arith.subf %248, %249 : vector<16x512xf32>
    %251 = math.absf %244 : vector<16x512xf32>
    %cst_70 = arith.constant 0.000000e+00 : f32
    %252 = vector.broadcast %cst_70 : f32 to vector<16x512xf32>
    %253 = arith.subf %252, %251 : vector<16x512xf32>
    %254 = math.exp %253 : vector<16x512xf32>
    %cst_71 = arith.constant 1.000000e+00 : f32
    %255 = vector.broadcast %cst_71 : f32 to vector<16x512xf32>
    %256 = arith.addf %255, %254 : vector<16x512xf32>
    %257 = math.log %256 : vector<16x512xf32>
    %258 = arith.addf %250, %257 : vector<16x512xf32>
    %259 = arith.addf %242, %258 : vector<16x512xf32>
    %c128 = arith.constant 128 : index
    %c0_72 = arith.constant 0 : index
    %260 = vector.load %arg3[%c128, %c0_72] : memref<1568x512xbf16, #tpu.memory_space<vmem>>, vector<16x512xbf16>
    %261 = arith.extf %260 : vector<16x512xbf16> to vector<16x512xf32>
    %c912 = arith.constant 912 : index
    %c0_73 = arith.constant 0 : index
    %262 = vector.load %arg3[%c912, %c0_73] : memref<1568x512xbf16, #tpu.memory_space<vmem>>, vector<16x512xbf16>
    %263 = arith.extf %262 : vector<16x512xbf16> to vector<16x512xf32>
    %cst_74 = arith.constant 0.000000e+00 : f32
    %264 = vector.broadcast %cst_74 : f32 to vector<16x512xf32>
    %265 = arith.maximumf %261, %264 : vector<16x512xf32>
    %266 = arith.mulf %261, %263 : vector<16x512xf32>
    %267 = arith.subf %265, %266 : vector<16x512xf32>
    %268 = math.absf %261 : vector<16x512xf32>
    %cst_75 = arith.constant 0.000000e+00 : f32
    %269 = vector.broadcast %cst_75 : f32 to vector<16x512xf32>
    %270 = arith.subf %269, %268 : vector<16x512xf32>
    %271 = math.exp %270 : vector<16x512xf32>
    %cst_76 = arith.constant 1.000000e+00 : f32
    %272 = vector.broadcast %cst_76 : f32 to vector<16x512xf32>
    %273 = arith.addf %272, %271 : vector<16x512xf32>
    %274 = math.log %273 : vector<16x512xf32>
    %275 = arith.addf %267, %274 : vector<16x512xf32>
    %276 = arith.addf %259, %275 : vector<16x512xf32>
    %c144 = arith.constant 144 : index
    %c0_77 = arith.constant 0 : index
    %277 = vector.load %arg3[%c144, %c0_77] : memref<1568x512xbf16, #tpu.memory_space<vmem>>, vector<16x512xbf16>
    %278 = arith.extf %277 : vector<16x512xbf16> to vector<16x512xf32>
    %c928 = arith.constant 928 : index
    %c0_78 = arith.constant 0 : index
    %279 = vector.load %arg3[%c928, %c0_78] : memref<1568x512xbf16, #tpu.memory_space<vmem>>, vector<16x512xbf16>
    %280 = arith.extf %279 : vector<16x512xbf16> to vector<16x512xf32>
    %cst_79 = arith.constant 0.000000e+00 : f32
    %281 = vector.broadcast %cst_79 : f32 to vector<16x512xf32>
    %282 = arith.maximumf %278, %281 : vector<16x512xf32>
    %283 = arith.mulf %278, %280 : vector<16x512xf32>
    %284 = arith.subf %282, %283 : vector<16x512xf32>
    %285 = math.absf %278 : vector<16x512xf32>
    %cst_80 = arith.constant 0.000000e+00 : f32
    %286 = vector.broadcast %cst_80 : f32 to vector<16x512xf32>
    %287 = arith.subf %286, %285 : vector<16x512xf32>
    %288 = math.exp %287 : vector<16x512xf32>
    %cst_81 = arith.constant 1.000000e+00 : f32
    %289 = vector.broadcast %cst_81 : f32 to vector<16x512xf32>
    %290 = arith.addf %289, %288 : vector<16x512xf32>
    %291 = math.log %290 : vector<16x512xf32>
    %292 = arith.addf %284, %291 : vector<16x512xf32>
    %293 = arith.addf %276, %292 : vector<16x512xf32>
    %c160 = arith.constant 160 : index
    %c0_82 = arith.constant 0 : index
    %294 = vector.load %arg3[%c160, %c0_82] : memref<1568x512xbf16, #tpu.memory_space<vmem>>, vector<16x512xbf16>
    %295 = arith.extf %294 : vector<16x512xbf16> to vector<16x512xf32>
    %c944 = arith.constant 944 : index
    %c0_83 = arith.constant 0 : index
    %296 = vector.load %arg3[%c944, %c0_83] : memref<1568x512xbf16, #tpu.memory_space<vmem>>, vector<16x512xbf16>
    %297 = arith.extf %296 : vector<16x512xbf16> to vector<16x512xf32>
    %cst_84 = arith.constant 0.000000e+00 : f32
    %298 = vector.broadcast %cst_84 : f32 to vector<16x512xf32>
    %299 = arith.maximumf %295, %298 : vector<16x512xf32>
    %300 = arith.mulf %295, %297 : vector<16x512xf32>
    %301 = arith.subf %299, %300 : vector<16x512xf32>
    %302 = math.absf %295 : vector<16x512xf32>
    %cst_85 = arith.constant 0.000000e+00 : f32
    %303 = vector.broadcast %cst_85 : f32 to vector<16x512xf32>
    %304 = arith.subf %303, %302 : vector<16x512xf32>
    %305 = math.exp %304 : vector<16x512xf32>
    %cst_86 = arith.constant 1.000000e+00 : f32
    %306 = vector.broadcast %cst_86 : f32 to vector<16x512xf32>
    %307 = arith.addf %306, %305 : vector<16x512xf32>
    %308 = math.log %307 : vector<16x512xf32>
    %309 = arith.addf %301, %308 : vector<16x512xf32>
    %310 = arith.addf %293, %309 : vector<16x512xf32>
    %c176 = arith.constant 176 : index
    %c0_87 = arith.constant 0 : index
    %311 = vector.load %arg3[%c176, %c0_87] : memref<1568x512xbf16, #tpu.memory_space<vmem>>, vector<16x512xbf16>
    %312 = arith.extf %311 : vector<16x512xbf16> to vector<16x512xf32>
    %c960 = arith.constant 960 : index
    %c0_88 = arith.constant 0 : index
    %313 = vector.load %arg3[%c960, %c0_88] : memref<1568x512xbf16, #tpu.memory_space<vmem>>, vector<16x512xbf16>
    %314 = arith.extf %313 : vector<16x512xbf16> to vector<16x512xf32>
    %cst_89 = arith.constant 0.000000e+00 : f32
    %315 = vector.broadcast %cst_89 : f32 to vector<16x512xf32>
    %316 = arith.maximumf %312, %315 : vector<16x512xf32>
    %317 = arith.mulf %312, %314 : vector<16x512xf32>
    %318 = arith.subf %316, %317 : vector<16x512xf32>
    %319 = math.absf %312 : vector<16x512xf32>
    %cst_90 = arith.constant 0.000000e+00 : f32
    %320 = vector.broadcast %cst_90 : f32 to vector<16x512xf32>
    %321 = arith.subf %320, %319 : vector<16x512xf32>
    %322 = math.exp %321 : vector<16x512xf32>
    %cst_91 = arith.constant 1.000000e+00 : f32
    %323 = vector.broadcast %cst_91 : f32 to vector<16x512xf32>
    %324 = arith.addf %323, %322 : vector<16x512xf32>
    %325 = math.log %324 : vector<16x512xf32>
    %326 = arith.addf %318, %325 : vector<16x512xf32>
    %327 = arith.addf %310, %326 : vector<16x512xf32>
    %c192 = arith.constant 192 : index
    %c0_92 = arith.constant 0 : index
    %328 = vector.load %arg3[%c192, %c0_92] : memref<1568x512xbf16, #tpu.memory_space<vmem>>, vector<16x512xbf16>
    %329 = arith.extf %328 : vector<16x512xbf16> to vector<16x512xf32>
    %c976 = arith.constant 976 : index
    %c0_93 = arith.constant 0 : index
    %330 = vector.load %arg3[%c976, %c0_93] : memref<1568x512xbf16, #tpu.memory_space<vmem>>, vector<16x512xbf16>
    %331 = arith.extf %330 : vector<16x512xbf16> to vector<16x512xf32>
    %cst_94 = arith.constant 0.000000e+00 : f32
    %332 = vector.broadcast %cst_94 : f32 to vector<16x512xf32>
    %333 = arith.maximumf %329, %332 : vector<16x512xf32>
    %334 = arith.mulf %329, %331 : vector<16x512xf32>
    %335 = arith.subf %333, %334 : vector<16x512xf32>
    %336 = math.absf %329 : vector<16x512xf32>
    %cst_95 = arith.constant 0.000000e+00 : f32
    %337 = vector.broadcast %cst_95 : f32 to vector<16x512xf32>
    %338 = arith.subf %337, %336 : vector<16x512xf32>
    %339 = math.exp %338 : vector<16x512xf32>
    %cst_96 = arith.constant 1.000000e+00 : f32
    %340 = vector.broadcast %cst_96 : f32 to vector<16x512xf32>
    %341 = arith.addf %340, %339 : vector<16x512xf32>
    %342 = math.log %341 : vector<16x512xf32>
    %343 = arith.addf %335, %342 : vector<16x512xf32>
    %344 = arith.addf %327, %343 : vector<16x512xf32>
    %c208 = arith.constant 208 : index
    %c0_97 = arith.constant 0 : index
    %345 = vector.load %arg3[%c208, %c0_97] : memref<1568x512xbf16, #tpu.memory_space<vmem>>, vector<16x512xbf16>
    %346 = arith.extf %345 : vector<16x512xbf16> to vector<16x512xf32>
    %c992 = arith.constant 992 : index
    %c0_98 = arith.constant 0 : index
    %347 = vector.load %arg3[%c992, %c0_98] : memref<1568x512xbf16, #tpu.memory_space<vmem>>, vector<16x512xbf16>
    %348 = arith.extf %347 : vector<16x512xbf16> to vector<16x512xf32>
    %cst_99 = arith.constant 0.000000e+00 : f32
    %349 = vector.broadcast %cst_99 : f32 to vector<16x512xf32>
    %350 = arith.maximumf %346, %349 : vector<16x512xf32>
    %351 = arith.mulf %346, %348 : vector<16x512xf32>
    %352 = arith.subf %350, %351 : vector<16x512xf32>
    %353 = math.absf %346 : vector<16x512xf32>
    %cst_100 = arith.constant 0.000000e+00 : f32
    %354 = vector.broadcast %cst_100 : f32 to vector<16x512xf32>
    %355 = arith.subf %354, %353 : vector<16x512xf32>
    %356 = math.exp %355 : vector<16x512xf32>
    %cst_101 = arith.constant 1.000000e+00 : f32
    %357 = vector.broadcast %cst_101 : f32 to vector<16x512xf32>
    %358 = arith.addf %357, %356 : vector<16x512xf32>
    %359 = math.log %358 : vector<16x512xf32>
    %360 = arith.addf %352, %359 : vector<16x512xf32>
    %361 = arith.addf %344, %360 : vector<16x512xf32>
    %c224 = arith.constant 224 : index
    %c0_102 = arith.constant 0 : index
    %362 = vector.load %arg3[%c224, %c0_102] : memref<1568x512xbf16, #tpu.memory_space<vmem>>, vector<16x512xbf16>
    %363 = arith.extf %362 : vector<16x512xbf16> to vector<16x512xf32>
    %c1008 = arith.constant 1008 : index
    %c0_103 = arith.constant 0 : index
    %364 = vector.load %arg3[%c1008, %c0_103] : memref<1568x512xbf16, #tpu.memory_space<vmem>>, vector<16x512xbf16>
    %365 = arith.extf %364 : vector<16x512xbf16> to vector<16x512xf32>
    %cst_104 = arith.constant 0.000000e+00 : f32
    %366 = vector.broadcast %cst_104 : f32 to vector<16x512xf32>
    %367 = arith.maximumf %363, %366 : vector<16x512xf32>
    %368 = arith.mulf %363, %365 : vector<16x512xf32>
    %369 = arith.subf %367, %368 : vector<16x512xf32>
    %370 = math.absf %363 : vector<16x512xf32>
    %cst_105 = arith.constant 0.000000e+00 : f32
    %371 = vector.broadcast %cst_105 : f32 to vector<16x512xf32>
    %372 = arith.subf %371, %370 : vector<16x512xf32>
    %373 = math.exp %372 : vector<16x512xf32>
    %cst_106 = arith.constant 1.000000e+00 : f32
    %374 = vector.broadcast %cst_106 : f32 to vector<16x512xf32>
    %375 = arith.addf %374, %373 : vector<16x512xf32>
    %376 = math.log %375 : vector<16x512xf32>
    %377 = arith.addf %369, %376 : vector<16x512xf32>
    %378 = arith.addf %361, %377 : vector<16x512xf32>
    %c240 = arith.constant 240 : index
    %c0_107 = arith.constant 0 : index
    %379 = vector.load %arg3[%c240, %c0_107] : memref<1568x512xbf16, #tpu.memory_space<vmem>>, vector<16x512xbf16>
    %380 = arith.extf %379 : vector<16x512xbf16> to vector<16x512xf32>
    %c1024 = arith.constant 1024 : index
    %c0_108 = arith.constant 0 : index
    %381 = vector.load %arg3[%c1024, %c0_108] : memref<1568x512xbf16, #tpu.memory_space<vmem>>, vector<16x512xbf16>
    %382 = arith.extf %381 : vector<16x512xbf16> to vector<16x512xf32>
    %cst_109 = arith.constant 0.000000e+00 : f32
    %383 = vector.broadcast %cst_109 : f32 to vector<16x512xf32>
    %384 = arith.maximumf %380, %383 : vector<16x512xf32>
    %385 = arith.mulf %380, %382 : vector<16x512xf32>
    %386 = arith.subf %384, %385 : vector<16x512xf32>
    %387 = math.absf %380 : vector<16x512xf32>
    %cst_110 = arith.constant 0.000000e+00 : f32
    %388 = vector.broadcast %cst_110 : f32 to vector<16x512xf32>
    %389 = arith.subf %388, %387 : vector<16x512xf32>
    %390 = math.exp %389 : vector<16x512xf32>
    %cst_111 = arith.constant 1.000000e+00 : f32
    %391 = vector.broadcast %cst_111 : f32 to vector<16x512xf32>
    %392 = arith.addf %391, %390 : vector<16x512xf32>
    %393 = math.log %392 : vector<16x512xf32>
    %394 = arith.addf %386, %393 : vector<16x512xf32>
    %395 = arith.addf %378, %394 : vector<16x512xf32>
    %c256 = arith.constant 256 : index
    %c0_112 = arith.constant 0 : index
    %396 = vector.load %arg3[%c256, %c0_112] : memref<1568x512xbf16, #tpu.memory_space<vmem>>, vector<16x512xbf16>
    %397 = arith.extf %396 : vector<16x512xbf16> to vector<16x512xf32>
    %c1040 = arith.constant 1040 : index
    %c0_113 = arith.constant 0 : index
    %398 = vector.load %arg3[%c1040, %c0_113] : memref<1568x512xbf16, #tpu.memory_space<vmem>>, vector<16x512xbf16>
    %399 = arith.extf %398 : vector<16x512xbf16> to vector<16x512xf32>
    %cst_114 = arith.constant 0.000000e+00 : f32
    %400 = vector.broadcast %cst_114 : f32 to vector<16x512xf32>
    %401 = arith.maximumf %397, %400 : vector<16x512xf32>
    %402 = arith.mulf %397, %399 : vector<16x512xf32>
    %403 = arith.subf %401, %402 : vector<16x512xf32>
    %404 = math.absf %397 : vector<16x512xf32>
    %cst_115 = arith.constant 0.000000e+00 : f32
    %405 = vector.broadcast %cst_115 : f32 to vector<16x512xf32>
    %406 = arith.subf %405, %404 : vector<16x512xf32>
    %407 = math.exp %406 : vector<16x512xf32>
    %cst_116 = arith.constant 1.000000e+00 : f32
    %408 = vector.broadcast %cst_116 : f32 to vector<16x512xf32>
    %409 = arith.addf %408, %407 : vector<16x512xf32>
    %410 = math.log %409 : vector<16x512xf32>
    %411 = arith.addf %403, %410 : vector<16x512xf32>
    %412 = arith.addf %395, %411 : vector<16x512xf32>
    %c272 = arith.constant 272 : index
    %c0_117 = arith.constant 0 : index
    %413 = vector.load %arg3[%c272, %c0_117] : memref<1568x512xbf16, #tpu.memory_space<vmem>>, vector<16x512xbf16>
    %414 = arith.extf %413 : vector<16x512xbf16> to vector<16x512xf32>
    %c1056 = arith.constant 1056 : index
    %c0_118 = arith.constant 0 : index
    %415 = vector.load %arg3[%c1056, %c0_118] : memref<1568x512xbf16, #tpu.memory_space<vmem>>, vector<16x512xbf16>
    %416 = arith.extf %415 : vector<16x512xbf16> to vector<16x512xf32>
    %cst_119 = arith.constant 0.000000e+00 : f32
    %417 = vector.broadcast %cst_119 : f32 to vector<16x512xf32>
    %418 = arith.maximumf %414, %417 : vector<16x512xf32>
    %419 = arith.mulf %414, %416 : vector<16x512xf32>
    %420 = arith.subf %418, %419 : vector<16x512xf32>
    %421 = math.absf %414 : vector<16x512xf32>
    %cst_120 = arith.constant 0.000000e+00 : f32
    %422 = vector.broadcast %cst_120 : f32 to vector<16x512xf32>
    %423 = arith.subf %422, %421 : vector<16x512xf32>
    %424 = math.exp %423 : vector<16x512xf32>
    %cst_121 = arith.constant 1.000000e+00 : f32
    %425 = vector.broadcast %cst_121 : f32 to vector<16x512xf32>
    %426 = arith.addf %425, %424 : vector<16x512xf32>
    %427 = math.log %426 : vector<16x512xf32>
    %428 = arith.addf %420, %427 : vector<16x512xf32>
    %429 = arith.addf %412, %428 : vector<16x512xf32>
    %c288 = arith.constant 288 : index
    %c0_122 = arith.constant 0 : index
    %430 = vector.load %arg3[%c288, %c0_122] : memref<1568x512xbf16, #tpu.memory_space<vmem>>, vector<16x512xbf16>
    %431 = arith.extf %430 : vector<16x512xbf16> to vector<16x512xf32>
    %c1072 = arith.constant 1072 : index
    %c0_123 = arith.constant 0 : index
    %432 = vector.load %arg3[%c1072, %c0_123] : memref<1568x512xbf16, #tpu.memory_space<vmem>>, vector<16x512xbf16>
    %433 = arith.extf %432 : vector<16x512xbf16> to vector<16x512xf32>
    %cst_124 = arith.constant 0.000000e+00 : f32
    %434 = vector.broadcast %cst_124 : f32 to vector<16x512xf32>
    %435 = arith.maximumf %431, %434 : vector<16x512xf32>
    %436 = arith.mulf %431, %433 : vector<16x512xf32>
    %437 = arith.subf %435, %436 : vector<16x512xf32>
    %438 = math.absf %431 : vector<16x512xf32>
    %cst_125 = arith.constant 0.000000e+00 : f32
    %439 = vector.broadcast %cst_125 : f32 to vector<16x512xf32>
    %440 = arith.subf %439, %438 : vector<16x512xf32>
    %441 = math.exp %440 : vector<16x512xf32>
    %cst_126 = arith.constant 1.000000e+00 : f32
    %442 = vector.broadcast %cst_126 : f32 to vector<16x512xf32>
    %443 = arith.addf %442, %441 : vector<16x512xf32>
    %444 = math.log %443 : vector<16x512xf32>
    %445 = arith.addf %437, %444 : vector<16x512xf32>
    %446 = arith.addf %429, %445 : vector<16x512xf32>
    %c304 = arith.constant 304 : index
    %c0_127 = arith.constant 0 : index
    %447 = vector.load %arg3[%c304, %c0_127] : memref<1568x512xbf16, #tpu.memory_space<vmem>>, vector<16x512xbf16>
    %448 = arith.extf %447 : vector<16x512xbf16> to vector<16x512xf32>
    %c1088 = arith.constant 1088 : index
    %c0_128 = arith.constant 0 : index
    %449 = vector.load %arg3[%c1088, %c0_128] : memref<1568x512xbf16, #tpu.memory_space<vmem>>, vector<16x512xbf16>
    %450 = arith.extf %449 : vector<16x512xbf16> to vector<16x512xf32>
    %cst_129 = arith.constant 0.000000e+00 : f32
    %451 = vector.broadcast %cst_129 : f32 to vector<16x512xf32>
    %452 = arith.maximumf %448, %451 : vector<16x512xf32>
    %453 = arith.mulf %448, %450 : vector<16x512xf32>
    %454 = arith.subf %452, %453 : vector<16x512xf32>
    %455 = math.absf %448 : vector<16x512xf32>
    %cst_130 = arith.constant 0.000000e+00 : f32
    %456 = vector.broadcast %cst_130 : f32 to vector<16x512xf32>
    %457 = arith.subf %456, %455 : vector<16x512xf32>
    %458 = math.exp %457 : vector<16x512xf32>
    %cst_131 = arith.constant 1.000000e+00 : f32
    %459 = vector.broadcast %cst_131 : f32 to vector<16x512xf32>
    %460 = arith.addf %459, %458 : vector<16x512xf32>
    %461 = math.log %460 : vector<16x512xf32>
    %462 = arith.addf %454, %461 : vector<16x512xf32>
    %463 = arith.addf %446, %462 : vector<16x512xf32>
    %c320 = arith.constant 320 : index
    %c0_132 = arith.constant 0 : index
    %464 = vector.load %arg3[%c320, %c0_132] : memref<1568x512xbf16, #tpu.memory_space<vmem>>, vector<16x512xbf16>
    %465 = arith.extf %464 : vector<16x512xbf16> to vector<16x512xf32>
    %c1104 = arith.constant 1104 : index
    %c0_133 = arith.constant 0 : index
    %466 = vector.load %arg3[%c1104, %c0_133] : memref<1568x512xbf16, #tpu.memory_space<vmem>>, vector<16x512xbf16>
    %467 = arith.extf %466 : vector<16x512xbf16> to vector<16x512xf32>
    %cst_134 = arith.constant 0.000000e+00 : f32
    %468 = vector.broadcast %cst_134 : f32 to vector<16x512xf32>
    %469 = arith.maximumf %465, %468 : vector<16x512xf32>
    %470 = arith.mulf %465, %467 : vector<16x512xf32>
    %471 = arith.subf %469, %470 : vector<16x512xf32>
    %472 = math.absf %465 : vector<16x512xf32>
    %cst_135 = arith.constant 0.000000e+00 : f32
    %473 = vector.broadcast %cst_135 : f32 to vector<16x512xf32>
    %474 = arith.subf %473, %472 : vector<16x512xf32>
    %475 = math.exp %474 : vector<16x512xf32>
    %cst_136 = arith.constant 1.000000e+00 : f32
    %476 = vector.broadcast %cst_136 : f32 to vector<16x512xf32>
    %477 = arith.addf %476, %475 : vector<16x512xf32>
    %478 = math.log %477 : vector<16x512xf32>
    %479 = arith.addf %471, %478 : vector<16x512xf32>
    %480 = arith.addf %463, %479 : vector<16x512xf32>
    %c336 = arith.constant 336 : index
    %c0_137 = arith.constant 0 : index
    %481 = vector.load %arg3[%c336, %c0_137] : memref<1568x512xbf16, #tpu.memory_space<vmem>>, vector<16x512xbf16>
    %482 = arith.extf %481 : vector<16x512xbf16> to vector<16x512xf32>
    %c1120 = arith.constant 1120 : index
    %c0_138 = arith.constant 0 : index
    %483 = vector.load %arg3[%c1120, %c0_138] : memref<1568x512xbf16, #tpu.memory_space<vmem>>, vector<16x512xbf16>
    %484 = arith.extf %483 : vector<16x512xbf16> to vector<16x512xf32>
    %cst_139 = arith.constant 0.000000e+00 : f32
    %485 = vector.broadcast %cst_139 : f32 to vector<16x512xf32>
    %486 = arith.maximumf %482, %485 : vector<16x512xf32>
    %487 = arith.mulf %482, %484 : vector<16x512xf32>
    %488 = arith.subf %486, %487 : vector<16x512xf32>
    %489 = math.absf %482 : vector<16x512xf32>
    %cst_140 = arith.constant 0.000000e+00 : f32
    %490 = vector.broadcast %cst_140 : f32 to vector<16x512xf32>
    %491 = arith.subf %490, %489 : vector<16x512xf32>
    %492 = math.exp %491 : vector<16x512xf32>
    %cst_141 = arith.constant 1.000000e+00 : f32
    %493 = vector.broadcast %cst_141 : f32 to vector<16x512xf32>
    %494 = arith.addf %493, %492 : vector<16x512xf32>
    %495 = math.log %494 : vector<16x512xf32>
    %496 = arith.addf %488, %495 : vector<16x512xf32>
    %497 = arith.addf %480, %496 : vector<16x512xf32>
    %c352 = arith.constant 352 : index
    %c0_142 = arith.constant 0 : index
    %498 = vector.load %arg3[%c352, %c0_142] : memref<1568x512xbf16, #tpu.memory_space<vmem>>, vector<16x512xbf16>
    %499 = arith.extf %498 : vector<16x512xbf16> to vector<16x512xf32>
    %c1136 = arith.constant 1136 : index
    %c0_143 = arith.constant 0 : index
    %500 = vector.load %arg3[%c1136, %c0_143] : memref<1568x512xbf16, #tpu.memory_space<vmem>>, vector<16x512xbf16>
    %501 = arith.extf %500 : vector<16x512xbf16> to vector<16x512xf32>
    %cst_144 = arith.constant 0.000000e+00 : f32
    %502 = vector.broadcast %cst_144 : f32 to vector<16x512xf32>
    %503 = arith.maximumf %499, %502 : vector<16x512xf32>
    %504 = arith.mulf %499, %501 : vector<16x512xf32>
    %505 = arith.subf %503, %504 : vector<16x512xf32>
    %506 = math.absf %499 : vector<16x512xf32>
    %cst_145 = arith.constant 0.000000e+00 : f32
    %507 = vector.broadcast %cst_145 : f32 to vector<16x512xf32>
    %508 = arith.subf %507, %506 : vector<16x512xf32>
    %509 = math.exp %508 : vector<16x512xf32>
    %cst_146 = arith.constant 1.000000e+00 : f32
    %510 = vector.broadcast %cst_146 : f32 to vector<16x512xf32>
    %511 = arith.addf %510, %509 : vector<16x512xf32>
    %512 = math.log %511 : vector<16x512xf32>
    %513 = arith.addf %505, %512 : vector<16x512xf32>
    %514 = arith.addf %497, %513 : vector<16x512xf32>
    %c368 = arith.constant 368 : index
    %c0_147 = arith.constant 0 : index
    %515 = vector.load %arg3[%c368, %c0_147] : memref<1568x512xbf16, #tpu.memory_space<vmem>>, vector<16x512xbf16>
    %516 = arith.extf %515 : vector<16x512xbf16> to vector<16x512xf32>
    %c1152 = arith.constant 1152 : index
    %c0_148 = arith.constant 0 : index
    %517 = vector.load %arg3[%c1152, %c0_148] : memref<1568x512xbf16, #tpu.memory_space<vmem>>, vector<16x512xbf16>
    %518 = arith.extf %517 : vector<16x512xbf16> to vector<16x512xf32>
    %cst_149 = arith.constant 0.000000e+00 : f32
    %519 = vector.broadcast %cst_149 : f32 to vector<16x512xf32>
    %520 = arith.maximumf %516, %519 : vector<16x512xf32>
    %521 = arith.mulf %516, %518 : vector<16x512xf32>
    %522 = arith.subf %520, %521 : vector<16x512xf32>
    %523 = math.absf %516 : vector<16x512xf32>
    %cst_150 = arith.constant 0.000000e+00 : f32
    %524 = vector.broadcast %cst_150 : f32 to vector<16x512xf32>
    %525 = arith.subf %524, %523 : vector<16x512xf32>
    %526 = math.exp %525 : vector<16x512xf32>
    %cst_151 = arith.constant 1.000000e+00 : f32
    %527 = vector.broadcast %cst_151 : f32 to vector<16x512xf32>
    %528 = arith.addf %527, %526 : vector<16x512xf32>
    %529 = math.log %528 : vector<16x512xf32>
    %530 = arith.addf %522, %529 : vector<16x512xf32>
    %531 = arith.addf %514, %530 : vector<16x512xf32>
    %c384 = arith.constant 384 : index
    %c0_152 = arith.constant 0 : index
    %532 = vector.load %arg3[%c384, %c0_152] : memref<1568x512xbf16, #tpu.memory_space<vmem>>, vector<16x512xbf16>
    %533 = arith.extf %532 : vector<16x512xbf16> to vector<16x512xf32>
    %c1168 = arith.constant 1168 : index
    %c0_153 = arith.constant 0 : index
    %534 = vector.load %arg3[%c1168, %c0_153] : memref<1568x512xbf16, #tpu.memory_space<vmem>>, vector<16x512xbf16>
    %535 = arith.extf %534 : vector<16x512xbf16> to vector<16x512xf32>
    %cst_154 = arith.constant 0.000000e+00 : f32
    %536 = vector.broadcast %cst_154 : f32 to vector<16x512xf32>
    %537 = arith.maximumf %533, %536 : vector<16x512xf32>
    %538 = arith.mulf %533, %535 : vector<16x512xf32>
    %539 = arith.subf %537, %538 : vector<16x512xf32>
    %540 = math.absf %533 : vector<16x512xf32>
    %cst_155 = arith.constant 0.000000e+00 : f32
    %541 = vector.broadcast %cst_155 : f32 to vector<16x512xf32>
    %542 = arith.subf %541, %540 : vector<16x512xf32>
    %543 = math.exp %542 : vector<16x512xf32>
    %cst_156 = arith.constant 1.000000e+00 : f32
    %544 = vector.broadcast %cst_156 : f32 to vector<16x512xf32>
    %545 = arith.addf %544, %543 : vector<16x512xf32>
    %546 = math.log %545 : vector<16x512xf32>
    %547 = arith.addf %539, %546 : vector<16x512xf32>
    %548 = arith.addf %531, %547 : vector<16x512xf32>
    %c400 = arith.constant 400 : index
    %c0_157 = arith.constant 0 : index
    %549 = vector.load %arg3[%c400, %c0_157] : memref<1568x512xbf16, #tpu.memory_space<vmem>>, vector<16x512xbf16>
    %550 = arith.extf %549 : vector<16x512xbf16> to vector<16x512xf32>
    %c1184 = arith.constant 1184 : index
    %c0_158 = arith.constant 0 : index
    %551 = vector.load %arg3[%c1184, %c0_158] : memref<1568x512xbf16, #tpu.memory_space<vmem>>, vector<16x512xbf16>
    %552 = arith.extf %551 : vector<16x512xbf16> to vector<16x512xf32>
    %cst_159 = arith.constant 0.000000e+00 : f32
    %553 = vector.broadcast %cst_159 : f32 to vector<16x512xf32>
    %554 = arith.maximumf %550, %553 : vector<16x512xf32>
    %555 = arith.mulf %550, %552 : vector<16x512xf32>
    %556 = arith.subf %554, %555 : vector<16x512xf32>
    %557 = math.absf %550 : vector<16x512xf32>
    %cst_160 = arith.constant 0.000000e+00 : f32
    %558 = vector.broadcast %cst_160 : f32 to vector<16x512xf32>
    %559 = arith.subf %558, %557 : vector<16x512xf32>
    %560 = math.exp %559 : vector<16x512xf32>
    %cst_161 = arith.constant 1.000000e+00 : f32
    %561 = vector.broadcast %cst_161 : f32 to vector<16x512xf32>
    %562 = arith.addf %561, %560 : vector<16x512xf32>
    %563 = math.log %562 : vector<16x512xf32>
    %564 = arith.addf %556, %563 : vector<16x512xf32>
    %565 = arith.addf %548, %564 : vector<16x512xf32>
    %c416 = arith.constant 416 : index
    %c0_162 = arith.constant 0 : index
    %566 = vector.load %arg3[%c416, %c0_162] : memref<1568x512xbf16, #tpu.memory_space<vmem>>, vector<16x512xbf16>
    %567 = arith.extf %566 : vector<16x512xbf16> to vector<16x512xf32>
    %c1200 = arith.constant 1200 : index
    %c0_163 = arith.constant 0 : index
    %568 = vector.load %arg3[%c1200, %c0_163] : memref<1568x512xbf16, #tpu.memory_space<vmem>>, vector<16x512xbf16>
    %569 = arith.extf %568 : vector<16x512xbf16> to vector<16x512xf32>
    %cst_164 = arith.constant 0.000000e+00 : f32
    %570 = vector.broadcast %cst_164 : f32 to vector<16x512xf32>
    %571 = arith.maximumf %567, %570 : vector<16x512xf32>
    %572 = arith.mulf %567, %569 : vector<16x512xf32>
    %573 = arith.subf %571, %572 : vector<16x512xf32>
    %574 = math.absf %567 : vector<16x512xf32>
    %cst_165 = arith.constant 0.000000e+00 : f32
    %575 = vector.broadcast %cst_165 : f32 to vector<16x512xf32>
    %576 = arith.subf %575, %574 : vector<16x512xf32>
    %577 = math.exp %576 : vector<16x512xf32>
    %cst_166 = arith.constant 1.000000e+00 : f32
    %578 = vector.broadcast %cst_166 : f32 to vector<16x512xf32>
    %579 = arith.addf %578, %577 : vector<16x512xf32>
    %580 = math.log %579 : vector<16x512xf32>
    %581 = arith.addf %573, %580 : vector<16x512xf32>
    %582 = arith.addf %565, %581 : vector<16x512xf32>
    %c432 = arith.constant 432 : index
    %c0_167 = arith.constant 0 : index
    %583 = vector.load %arg3[%c432, %c0_167] : memref<1568x512xbf16, #tpu.memory_space<vmem>>, vector<16x512xbf16>
    %584 = arith.extf %583 : vector<16x512xbf16> to vector<16x512xf32>
    %c1216 = arith.constant 1216 : index
    %c0_168 = arith.constant 0 : index
    %585 = vector.load %arg3[%c1216, %c0_168] : memref<1568x512xbf16, #tpu.memory_space<vmem>>, vector<16x512xbf16>
    %586 = arith.extf %585 : vector<16x512xbf16> to vector<16x512xf32>
    %cst_169 = arith.constant 0.000000e+00 : f32
    %587 = vector.broadcast %cst_169 : f32 to vector<16x512xf32>
    %588 = arith.maximumf %584, %587 : vector<16x512xf32>
    %589 = arith.mulf %584, %586 : vector<16x512xf32>
    %590 = arith.subf %588, %589 : vector<16x512xf32>
    %591 = math.absf %584 : vector<16x512xf32>
    %cst_170 = arith.constant 0.000000e+00 : f32
    %592 = vector.broadcast %cst_170 : f32 to vector<16x512xf32>
    %593 = arith.subf %592, %591 : vector<16x512xf32>
    %594 = math.exp %593 : vector<16x512xf32>
    %cst_171 = arith.constant 1.000000e+00 : f32
    %595 = vector.broadcast %cst_171 : f32 to vector<16x512xf32>
    %596 = arith.addf %595, %594 : vector<16x512xf32>
    %597 = math.log %596 : vector<16x512xf32>
    %598 = arith.addf %590, %597 : vector<16x512xf32>
    %599 = arith.addf %582, %598 : vector<16x512xf32>
    %c448 = arith.constant 448 : index
    %c0_172 = arith.constant 0 : index
    %600 = vector.load %arg3[%c448, %c0_172] : memref<1568x512xbf16, #tpu.memory_space<vmem>>, vector<16x512xbf16>
    %601 = arith.extf %600 : vector<16x512xbf16> to vector<16x512xf32>
    %c1232 = arith.constant 1232 : index
    %c0_173 = arith.constant 0 : index
    %602 = vector.load %arg3[%c1232, %c0_173] : memref<1568x512xbf16, #tpu.memory_space<vmem>>, vector<16x512xbf16>
    %603 = arith.extf %602 : vector<16x512xbf16> to vector<16x512xf32>
    %cst_174 = arith.constant 0.000000e+00 : f32
    %604 = vector.broadcast %cst_174 : f32 to vector<16x512xf32>
    %605 = arith.maximumf %601, %604 : vector<16x512xf32>
    %606 = arith.mulf %601, %603 : vector<16x512xf32>
    %607 = arith.subf %605, %606 : vector<16x512xf32>
    %608 = math.absf %601 : vector<16x512xf32>
    %cst_175 = arith.constant 0.000000e+00 : f32
    %609 = vector.broadcast %cst_175 : f32 to vector<16x512xf32>
    %610 = arith.subf %609, %608 : vector<16x512xf32>
    %611 = math.exp %610 : vector<16x512xf32>
    %cst_176 = arith.constant 1.000000e+00 : f32
    %612 = vector.broadcast %cst_176 : f32 to vector<16x512xf32>
    %613 = arith.addf %612, %611 : vector<16x512xf32>
    %614 = math.log %613 : vector<16x512xf32>
    %615 = arith.addf %607, %614 : vector<16x512xf32>
    %616 = arith.addf %599, %615 : vector<16x512xf32>
    %c464 = arith.constant 464 : index
    %c0_177 = arith.constant 0 : index
    %617 = vector.load %arg3[%c464, %c0_177] : memref<1568x512xbf16, #tpu.memory_space<vmem>>, vector<16x512xbf16>
    %618 = arith.extf %617 : vector<16x512xbf16> to vector<16x512xf32>
    %c1248 = arith.constant 1248 : index
    %c0_178 = arith.constant 0 : index
    %619 = vector.load %arg3[%c1248, %c0_178] : memref<1568x512xbf16, #tpu.memory_space<vmem>>, vector<16x512xbf16>
    %620 = arith.extf %619 : vector<16x512xbf16> to vector<16x512xf32>
    %cst_179 = arith.constant 0.000000e+00 : f32
    %621 = vector.broadcast %cst_179 : f32 to vector<16x512xf32>
    %622 = arith.maximumf %618, %621 : vector<16x512xf32>
    %623 = arith.mulf %618, %620 : vector<16x512xf32>
    %624 = arith.subf %622, %623 : vector<16x512xf32>
    %625 = math.absf %618 : vector<16x512xf32>
    %cst_180 = arith.constant 0.000000e+00 : f32
    %626 = vector.broadcast %cst_180 : f32 to vector<16x512xf32>
    %627 = arith.subf %626, %625 : vector<16x512xf32>
    %628 = math.exp %627 : vector<16x512xf32>
    %cst_181 = arith.constant 1.000000e+00 : f32
    %629 = vector.broadcast %cst_181 : f32 to vector<16x512xf32>
    %630 = arith.addf %629, %628 : vector<16x512xf32>
    %631 = math.log %630 : vector<16x512xf32>
    %632 = arith.addf %624, %631 : vector<16x512xf32>
    %633 = arith.addf %616, %632 : vector<16x512xf32>
    %c480 = arith.constant 480 : index
    %c0_182 = arith.constant 0 : index
    %634 = vector.load %arg3[%c480, %c0_182] : memref<1568x512xbf16, #tpu.memory_space<vmem>>, vector<16x512xbf16>
    %635 = arith.extf %634 : vector<16x512xbf16> to vector<16x512xf32>
    %c1264 = arith.constant 1264 : index
    %c0_183 = arith.constant 0 : index
    %636 = vector.load %arg3[%c1264, %c0_183] : memref<1568x512xbf16, #tpu.memory_space<vmem>>, vector<16x512xbf16>
    %637 = arith.extf %636 : vector<16x512xbf16> to vector<16x512xf32>
    %cst_184 = arith.constant 0.000000e+00 : f32
    %638 = vector.broadcast %cst_184 : f32 to vector<16x512xf32>
    %639 = arith.maximumf %635, %638 : vector<16x512xf32>
    %640 = arith.mulf %635, %637 : vector<16x512xf32>
    %641 = arith.subf %639, %640 : vector<16x512xf32>
    %642 = math.absf %635 : vector<16x512xf32>
    %cst_185 = arith.constant 0.000000e+00 : f32
    %643 = vector.broadcast %cst_185 : f32 to vector<16x512xf32>
    %644 = arith.subf %643, %642 : vector<16x512xf32>
    %645 = math.exp %644 : vector<16x512xf32>
    %cst_186 = arith.constant 1.000000e+00 : f32
    %646 = vector.broadcast %cst_186 : f32 to vector<16x512xf32>
    %647 = arith.addf %646, %645 : vector<16x512xf32>
    %648 = math.log %647 : vector<16x512xf32>
    %649 = arith.addf %641, %648 : vector<16x512xf32>
    %650 = arith.addf %633, %649 : vector<16x512xf32>
    %c496 = arith.constant 496 : index
    %c0_187 = arith.constant 0 : index
    %651 = vector.load %arg3[%c496, %c0_187] : memref<1568x512xbf16, #tpu.memory_space<vmem>>, vector<16x512xbf16>
    %652 = arith.extf %651 : vector<16x512xbf16> to vector<16x512xf32>
    %c1280 = arith.constant 1280 : index
    %c0_188 = arith.constant 0 : index
    %653 = vector.load %arg3[%c1280, %c0_188] : memref<1568x512xbf16, #tpu.memory_space<vmem>>, vector<16x512xbf16>
    %654 = arith.extf %653 : vector<16x512xbf16> to vector<16x512xf32>
    %cst_189 = arith.constant 0.000000e+00 : f32
    %655 = vector.broadcast %cst_189 : f32 to vector<16x512xf32>
    %656 = arith.maximumf %652, %655 : vector<16x512xf32>
    %657 = arith.mulf %652, %654 : vector<16x512xf32>
    %658 = arith.subf %656, %657 : vector<16x512xf32>
    %659 = math.absf %652 : vector<16x512xf32>
    %cst_190 = arith.constant 0.000000e+00 : f32
    %660 = vector.broadcast %cst_190 : f32 to vector<16x512xf32>
    %661 = arith.subf %660, %659 : vector<16x512xf32>
    %662 = math.exp %661 : vector<16x512xf32>
    %cst_191 = arith.constant 1.000000e+00 : f32
    %663 = vector.broadcast %cst_191 : f32 to vector<16x512xf32>
    %664 = arith.addf %663, %662 : vector<16x512xf32>
    %665 = math.log %664 : vector<16x512xf32>
    %666 = arith.addf %658, %665 : vector<16x512xf32>
    %667 = arith.addf %650, %666 : vector<16x512xf32>
    %c512 = arith.constant 512 : index
    %c0_192 = arith.constant 0 : index
    %668 = vector.load %arg3[%c512, %c0_192] : memref<1568x512xbf16, #tpu.memory_space<vmem>>, vector<16x512xbf16>
    %669 = arith.extf %668 : vector<16x512xbf16> to vector<16x512xf32>
    %c1296 = arith.constant 1296 : index
    %c0_193 = arith.constant 0 : index
    %670 = vector.load %arg3[%c1296, %c0_193] : memref<1568x512xbf16, #tpu.memory_space<vmem>>, vector<16x512xbf16>
    %671 = arith.extf %670 : vector<16x512xbf16> to vector<16x512xf32>
    %cst_194 = arith.constant 0.000000e+00 : f32
    %672 = vector.broadcast %cst_194 : f32 to vector<16x512xf32>
    %673 = arith.maximumf %669, %672 : vector<16x512xf32>
    %674 = arith.mulf %669, %671 : vector<16x512xf32>
    %675 = arith.subf %673, %674 : vector<16x512xf32>
    %676 = math.absf %669 : vector<16x512xf32>
    %cst_195 = arith.constant 0.000000e+00 : f32
    %677 = vector.broadcast %cst_195 : f32 to vector<16x512xf32>
    %678 = arith.subf %677, %676 : vector<16x512xf32>
    %679 = math.exp %678 : vector<16x512xf32>
    %cst_196 = arith.constant 1.000000e+00 : f32
    %680 = vector.broadcast %cst_196 : f32 to vector<16x512xf32>
    %681 = arith.addf %680, %679 : vector<16x512xf32>
    %682 = math.log %681 : vector<16x512xf32>
    %683 = arith.addf %675, %682 : vector<16x512xf32>
    %684 = arith.addf %667, %683 : vector<16x512xf32>
    %c528 = arith.constant 528 : index
    %c0_197 = arith.constant 0 : index
    %685 = vector.load %arg3[%c528, %c0_197] : memref<1568x512xbf16, #tpu.memory_space<vmem>>, vector<16x512xbf16>
    %686 = arith.extf %685 : vector<16x512xbf16> to vector<16x512xf32>
    %c1312 = arith.constant 1312 : index
    %c0_198 = arith.constant 0 : index
    %687 = vector.load %arg3[%c1312, %c0_198] : memref<1568x512xbf16, #tpu.memory_space<vmem>>, vector<16x512xbf16>
    %688 = arith.extf %687 : vector<16x512xbf16> to vector<16x512xf32>
    %cst_199 = arith.constant 0.000000e+00 : f32
    %689 = vector.broadcast %cst_199 : f32 to vector<16x512xf32>
    %690 = arith.maximumf %686, %689 : vector<16x512xf32>
    %691 = arith.mulf %686, %688 : vector<16x512xf32>
    %692 = arith.subf %690, %691 : vector<16x512xf32>
    %693 = math.absf %686 : vector<16x512xf32>
    %cst_200 = arith.constant 0.000000e+00 : f32
    %694 = vector.broadcast %cst_200 : f32 to vector<16x512xf32>
    %695 = arith.subf %694, %693 : vector<16x512xf32>
    %696 = math.exp %695 : vector<16x512xf32>
    %cst_201 = arith.constant 1.000000e+00 : f32
    %697 = vector.broadcast %cst_201 : f32 to vector<16x512xf32>
    %698 = arith.addf %697, %696 : vector<16x512xf32>
    %699 = math.log %698 : vector<16x512xf32>
    %700 = arith.addf %692, %699 : vector<16x512xf32>
    %701 = arith.addf %684, %700 : vector<16x512xf32>
    %c544 = arith.constant 544 : index
    %c0_202 = arith.constant 0 : index
    %702 = vector.load %arg3[%c544, %c0_202] : memref<1568x512xbf16, #tpu.memory_space<vmem>>, vector<16x512xbf16>
    %703 = arith.extf %702 : vector<16x512xbf16> to vector<16x512xf32>
    %c1328 = arith.constant 1328 : index
    %c0_203 = arith.constant 0 : index
    %704 = vector.load %arg3[%c1328, %c0_203] : memref<1568x512xbf16, #tpu.memory_space<vmem>>, vector<16x512xbf16>
    %705 = arith.extf %704 : vector<16x512xbf16> to vector<16x512xf32>
    %cst_204 = arith.constant 0.000000e+00 : f32
    %706 = vector.broadcast %cst_204 : f32 to vector<16x512xf32>
    %707 = arith.maximumf %703, %706 : vector<16x512xf32>
    %708 = arith.mulf %703, %705 : vector<16x512xf32>
    %709 = arith.subf %707, %708 : vector<16x512xf32>
    %710 = math.absf %703 : vector<16x512xf32>
    %cst_205 = arith.constant 0.000000e+00 : f32
    %711 = vector.broadcast %cst_205 : f32 to vector<16x512xf32>
    %712 = arith.subf %711, %710 : vector<16x512xf32>
    %713 = math.exp %712 : vector<16x512xf32>
    %cst_206 = arith.constant 1.000000e+00 : f32
    %714 = vector.broadcast %cst_206 : f32 to vector<16x512xf32>
    %715 = arith.addf %714, %713 : vector<16x512xf32>
    %716 = math.log %715 : vector<16x512xf32>
    %717 = arith.addf %709, %716 : vector<16x512xf32>
    %718 = arith.addf %701, %717 : vector<16x512xf32>
    %c560 = arith.constant 560 : index
    %c0_207 = arith.constant 0 : index
    %719 = vector.load %arg3[%c560, %c0_207] : memref<1568x512xbf16, #tpu.memory_space<vmem>>, vector<16x512xbf16>
    %720 = arith.extf %719 : vector<16x512xbf16> to vector<16x512xf32>
    %c1344 = arith.constant 1344 : index
    %c0_208 = arith.constant 0 : index
    %721 = vector.load %arg3[%c1344, %c0_208] : memref<1568x512xbf16, #tpu.memory_space<vmem>>, vector<16x512xbf16>
    %722 = arith.extf %721 : vector<16x512xbf16> to vector<16x512xf32>
    %cst_209 = arith.constant 0.000000e+00 : f32
    %723 = vector.broadcast %cst_209 : f32 to vector<16x512xf32>
    %724 = arith.maximumf %720, %723 : vector<16x512xf32>
    %725 = arith.mulf %720, %722 : vector<16x512xf32>
    %726 = arith.subf %724, %725 : vector<16x512xf32>
    %727 = math.absf %720 : vector<16x512xf32>
    %cst_210 = arith.constant 0.000000e+00 : f32
    %728 = vector.broadcast %cst_210 : f32 to vector<16x512xf32>
    %729 = arith.subf %728, %727 : vector<16x512xf32>
    %730 = math.exp %729 : vector<16x512xf32>
    %cst_211 = arith.constant 1.000000e+00 : f32
    %731 = vector.broadcast %cst_211 : f32 to vector<16x512xf32>
    %732 = arith.addf %731, %730 : vector<16x512xf32>
    %733 = math.log %732 : vector<16x512xf32>
    %734 = arith.addf %726, %733 : vector<16x512xf32>
    %735 = arith.addf %718, %734 : vector<16x512xf32>
    %c576 = arith.constant 576 : index
    %c0_212 = arith.constant 0 : index
    %736 = vector.load %arg3[%c576, %c0_212] : memref<1568x512xbf16, #tpu.memory_space<vmem>>, vector<16x512xbf16>
    %737 = arith.extf %736 : vector<16x512xbf16> to vector<16x512xf32>
    %c1360 = arith.constant 1360 : index
    %c0_213 = arith.constant 0 : index
    %738 = vector.load %arg3[%c1360, %c0_213] : memref<1568x512xbf16, #tpu.memory_space<vmem>>, vector<16x512xbf16>
    %739 = arith.extf %738 : vector<16x512xbf16> to vector<16x512xf32>
    %cst_214 = arith.constant 0.000000e+00 : f32
    %740 = vector.broadcast %cst_214 : f32 to vector<16x512xf32>
    %741 = arith.maximumf %737, %740 : vector<16x512xf32>
    %742 = arith.mulf %737, %739 : vector<16x512xf32>
    %743 = arith.subf %741, %742 : vector<16x512xf32>
    %744 = math.absf %737 : vector<16x512xf32>
    %cst_215 = arith.constant 0.000000e+00 : f32
    %745 = vector.broadcast %cst_215 : f32 to vector<16x512xf32>
    %746 = arith.subf %745, %744 : vector<16x512xf32>
    %747 = math.exp %746 : vector<16x512xf32>
    %cst_216 = arith.constant 1.000000e+00 : f32
    %748 = vector.broadcast %cst_216 : f32 to vector<16x512xf32>
    %749 = arith.addf %748, %747 : vector<16x512xf32>
    %750 = math.log %749 : vector<16x512xf32>
    %751 = arith.addf %743, %750 : vector<16x512xf32>
    %752 = arith.addf %735, %751 : vector<16x512xf32>
    %c592 = arith.constant 592 : index
    %c0_217 = arith.constant 0 : index
    %753 = vector.load %arg3[%c592, %c0_217] : memref<1568x512xbf16, #tpu.memory_space<vmem>>, vector<16x512xbf16>
    %754 = arith.extf %753 : vector<16x512xbf16> to vector<16x512xf32>
    %c1376 = arith.constant 1376 : index
    %c0_218 = arith.constant 0 : index
    %755 = vector.load %arg3[%c1376, %c0_218] : memref<1568x512xbf16, #tpu.memory_space<vmem>>, vector<16x512xbf16>
    %756 = arith.extf %755 : vector<16x512xbf16> to vector<16x512xf32>
    %cst_219 = arith.constant 0.000000e+00 : f32
    %757 = vector.broadcast %cst_219 : f32 to vector<16x512xf32>
    %758 = arith.maximumf %754, %757 : vector<16x512xf32>
    %759 = arith.mulf %754, %756 : vector<16x512xf32>
    %760 = arith.subf %758, %759 : vector<16x512xf32>
    %761 = math.absf %754 : vector<16x512xf32>
    %cst_220 = arith.constant 0.000000e+00 : f32
    %762 = vector.broadcast %cst_220 : f32 to vector<16x512xf32>
    %763 = arith.subf %762, %761 : vector<16x512xf32>
    %764 = math.exp %763 : vector<16x512xf32>
    %cst_221 = arith.constant 1.000000e+00 : f32
    %765 = vector.broadcast %cst_221 : f32 to vector<16x512xf32>
    %766 = arith.addf %765, %764 : vector<16x512xf32>
    %767 = math.log %766 : vector<16x512xf32>
    %768 = arith.addf %760, %767 : vector<16x512xf32>
    %769 = arith.addf %752, %768 : vector<16x512xf32>
    %c608 = arith.constant 608 : index
    %c0_222 = arith.constant 0 : index
    %770 = vector.load %arg3[%c608, %c0_222] : memref<1568x512xbf16, #tpu.memory_space<vmem>>, vector<16x512xbf16>
    %771 = arith.extf %770 : vector<16x512xbf16> to vector<16x512xf32>
    %c1392 = arith.constant 1392 : index
    %c0_223 = arith.constant 0 : index
    %772 = vector.load %arg3[%c1392, %c0_223] : memref<1568x512xbf16, #tpu.memory_space<vmem>>, vector<16x512xbf16>
    %773 = arith.extf %772 : vector<16x512xbf16> to vector<16x512xf32>
    %cst_224 = arith.constant 0.000000e+00 : f32
    %774 = vector.broadcast %cst_224 : f32 to vector<16x512xf32>
    %775 = arith.maximumf %771, %774 : vector<16x512xf32>
    %776 = arith.mulf %771, %773 : vector<16x512xf32>
    %777 = arith.subf %775, %776 : vector<16x512xf32>
    %778 = math.absf %771 : vector<16x512xf32>
    %cst_225 = arith.constant 0.000000e+00 : f32
    %779 = vector.broadcast %cst_225 : f32 to vector<16x512xf32>
    %780 = arith.subf %779, %778 : vector<16x512xf32>
    %781 = math.exp %780 : vector<16x512xf32>
    %cst_226 = arith.constant 1.000000e+00 : f32
    %782 = vector.broadcast %cst_226 : f32 to vector<16x512xf32>
    %783 = arith.addf %782, %781 : vector<16x512xf32>
    %784 = math.log %783 : vector<16x512xf32>
    %785 = arith.addf %777, %784 : vector<16x512xf32>
    %786 = arith.addf %769, %785 : vector<16x512xf32>
    %c624 = arith.constant 624 : index
    %c0_227 = arith.constant 0 : index
    %787 = vector.load %arg3[%c624, %c0_227] : memref<1568x512xbf16, #tpu.memory_space<vmem>>, vector<16x512xbf16>
    %788 = arith.extf %787 : vector<16x512xbf16> to vector<16x512xf32>
    %c1408 = arith.constant 1408 : index
    %c0_228 = arith.constant 0 : index
    %789 = vector.load %arg3[%c1408, %c0_228] : memref<1568x512xbf16, #tpu.memory_space<vmem>>, vector<16x512xbf16>
    %790 = arith.extf %789 : vector<16x512xbf16> to vector<16x512xf32>
    %cst_229 = arith.constant 0.000000e+00 : f32
    %791 = vector.broadcast %cst_229 : f32 to vector<16x512xf32>
    %792 = arith.maximumf %788, %791 : vector<16x512xf32>
    %793 = arith.mulf %788, %790 : vector<16x512xf32>
    %794 = arith.subf %792, %793 : vector<16x512xf32>
    %795 = math.absf %788 : vector<16x512xf32>
    %cst_230 = arith.constant 0.000000e+00 : f32
    %796 = vector.broadcast %cst_230 : f32 to vector<16x512xf32>
    %797 = arith.subf %796, %795 : vector<16x512xf32>
    %798 = math.exp %797 : vector<16x512xf32>
    %cst_231 = arith.constant 1.000000e+00 : f32
    %799 = vector.broadcast %cst_231 : f32 to vector<16x512xf32>
    %800 = arith.addf %799, %798 : vector<16x512xf32>
    %801 = math.log %800 : vector<16x512xf32>
    %802 = arith.addf %794, %801 : vector<16x512xf32>
    %803 = arith.addf %786, %802 : vector<16x512xf32>
    %c640 = arith.constant 640 : index
    %c0_232 = arith.constant 0 : index
    %804 = vector.load %arg3[%c640, %c0_232] : memref<1568x512xbf16, #tpu.memory_space<vmem>>, vector<16x512xbf16>
    %805 = arith.extf %804 : vector<16x512xbf16> to vector<16x512xf32>
    %c1424 = arith.constant 1424 : index
    %c0_233 = arith.constant 0 : index
    %806 = vector.load %arg3[%c1424, %c0_233] : memref<1568x512xbf16, #tpu.memory_space<vmem>>, vector<16x512xbf16>
    %807 = arith.extf %806 : vector<16x512xbf16> to vector<16x512xf32>
    %cst_234 = arith.constant 0.000000e+00 : f32
    %808 = vector.broadcast %cst_234 : f32 to vector<16x512xf32>
    %809 = arith.maximumf %805, %808 : vector<16x512xf32>
    %810 = arith.mulf %805, %807 : vector<16x512xf32>
    %811 = arith.subf %809, %810 : vector<16x512xf32>
    %812 = math.absf %805 : vector<16x512xf32>
    %cst_235 = arith.constant 0.000000e+00 : f32
    %813 = vector.broadcast %cst_235 : f32 to vector<16x512xf32>
    %814 = arith.subf %813, %812 : vector<16x512xf32>
    %815 = math.exp %814 : vector<16x512xf32>
    %cst_236 = arith.constant 1.000000e+00 : f32
    %816 = vector.broadcast %cst_236 : f32 to vector<16x512xf32>
    %817 = arith.addf %816, %815 : vector<16x512xf32>
    %818 = math.log %817 : vector<16x512xf32>
    %819 = arith.addf %811, %818 : vector<16x512xf32>
    %820 = arith.addf %803, %819 : vector<16x512xf32>
    %c656 = arith.constant 656 : index
    %c0_237 = arith.constant 0 : index
    %821 = vector.load %arg3[%c656, %c0_237] : memref<1568x512xbf16, #tpu.memory_space<vmem>>, vector<16x512xbf16>
    %822 = arith.extf %821 : vector<16x512xbf16> to vector<16x512xf32>
    %c1440 = arith.constant 1440 : index
    %c0_238 = arith.constant 0 : index
    %823 = vector.load %arg3[%c1440, %c0_238] : memref<1568x512xbf16, #tpu.memory_space<vmem>>, vector<16x512xbf16>
    %824 = arith.extf %823 : vector<16x512xbf16> to vector<16x512xf32>
    %cst_239 = arith.constant 0.000000e+00 : f32
    %825 = vector.broadcast %cst_239 : f32 to vector<16x512xf32>
    %826 = arith.maximumf %822, %825 : vector<16x512xf32>
    %827 = arith.mulf %822, %824 : vector<16x512xf32>
    %828 = arith.subf %826, %827 : vector<16x512xf32>
    %829 = math.absf %822 : vector<16x512xf32>
    %cst_240 = arith.constant 0.000000e+00 : f32
    %830 = vector.broadcast %cst_240 : f32 to vector<16x512xf32>
    %831 = arith.subf %830, %829 : vector<16x512xf32>
    %832 = math.exp %831 : vector<16x512xf32>
    %cst_241 = arith.constant 1.000000e+00 : f32
    %833 = vector.broadcast %cst_241 : f32 to vector<16x512xf32>
    %834 = arith.addf %833, %832 : vector<16x512xf32>
    %835 = math.log %834 : vector<16x512xf32>
    %836 = arith.addf %828, %835 : vector<16x512xf32>
    %837 = arith.addf %820, %836 : vector<16x512xf32>
    %c672 = arith.constant 672 : index
    %c0_242 = arith.constant 0 : index
    %838 = vector.load %arg3[%c672, %c0_242] : memref<1568x512xbf16, #tpu.memory_space<vmem>>, vector<16x512xbf16>
    %839 = arith.extf %838 : vector<16x512xbf16> to vector<16x512xf32>
    %c1456 = arith.constant 1456 : index
    %c0_243 = arith.constant 0 : index
    %840 = vector.load %arg3[%c1456, %c0_243] : memref<1568x512xbf16, #tpu.memory_space<vmem>>, vector<16x512xbf16>
    %841 = arith.extf %840 : vector<16x512xbf16> to vector<16x512xf32>
    %cst_244 = arith.constant 0.000000e+00 : f32
    %842 = vector.broadcast %cst_244 : f32 to vector<16x512xf32>
    %843 = arith.maximumf %839, %842 : vector<16x512xf32>
    %844 = arith.mulf %839, %841 : vector<16x512xf32>
    %845 = arith.subf %843, %844 : vector<16x512xf32>
    %846 = math.absf %839 : vector<16x512xf32>
    %cst_245 = arith.constant 0.000000e+00 : f32
    %847 = vector.broadcast %cst_245 : f32 to vector<16x512xf32>
    %848 = arith.subf %847, %846 : vector<16x512xf32>
    %849 = math.exp %848 : vector<16x512xf32>
    %cst_246 = arith.constant 1.000000e+00 : f32
    %850 = vector.broadcast %cst_246 : f32 to vector<16x512xf32>
    %851 = arith.addf %850, %849 : vector<16x512xf32>
    %852 = math.log %851 : vector<16x512xf32>
    %853 = arith.addf %845, %852 : vector<16x512xf32>
    %854 = arith.addf %837, %853 : vector<16x512xf32>
    %c688 = arith.constant 688 : index
    %c0_247 = arith.constant 0 : index
    %855 = vector.load %arg3[%c688, %c0_247] : memref<1568x512xbf16, #tpu.memory_space<vmem>>, vector<16x512xbf16>
    %856 = arith.extf %855 : vector<16x512xbf16> to vector<16x512xf32>
    %c1472 = arith.constant 1472 : index
    %c0_248 = arith.constant 0 : index
    %857 = vector.load %arg3[%c1472, %c0_248] : memref<1568x512xbf16, #tpu.memory_space<vmem>>, vector<16x512xbf16>
    %858 = arith.extf %857 : vector<16x512xbf16> to vector<16x512xf32>
    %cst_249 = arith.constant 0.000000e+00 : f32
    %859 = vector.broadcast %cst_249 : f32 to vector<16x512xf32>
    %860 = arith.maximumf %856, %859 : vector<16x512xf32>
    %861 = arith.mulf %856, %858 : vector<16x512xf32>
    %862 = arith.subf %860, %861 : vector<16x512xf32>
    %863 = math.absf %856 : vector<16x512xf32>
    %cst_250 = arith.constant 0.000000e+00 : f32
    %864 = vector.broadcast %cst_250 : f32 to vector<16x512xf32>
    %865 = arith.subf %864, %863 : vector<16x512xf32>
    %866 = math.exp %865 : vector<16x512xf32>
    %cst_251 = arith.constant 1.000000e+00 : f32
    %867 = vector.broadcast %cst_251 : f32 to vector<16x512xf32>
    %868 = arith.addf %867, %866 : vector<16x512xf32>
    %869 = math.log %868 : vector<16x512xf32>
    %870 = arith.addf %862, %869 : vector<16x512xf32>
    %871 = arith.addf %854, %870 : vector<16x512xf32>
    %c704 = arith.constant 704 : index
    %c0_252 = arith.constant 0 : index
    %872 = vector.load %arg3[%c704, %c0_252] : memref<1568x512xbf16, #tpu.memory_space<vmem>>, vector<16x512xbf16>
    %873 = arith.extf %872 : vector<16x512xbf16> to vector<16x512xf32>
    %c1488 = arith.constant 1488 : index
    %c0_253 = arith.constant 0 : index
    %874 = vector.load %arg3[%c1488, %c0_253] : memref<1568x512xbf16, #tpu.memory_space<vmem>>, vector<16x512xbf16>
    %875 = arith.extf %874 : vector<16x512xbf16> to vector<16x512xf32>
    %cst_254 = arith.constant 0.000000e+00 : f32
    %876 = vector.broadcast %cst_254 : f32 to vector<16x512xf32>
    %877 = arith.maximumf %873, %876 : vector<16x512xf32>
    %878 = arith.mulf %873, %875 : vector<16x512xf32>
    %879 = arith.subf %877, %878 : vector<16x512xf32>
    %880 = math.absf %873 : vector<16x512xf32>
    %cst_255 = arith.constant 0.000000e+00 : f32
    %881 = vector.broadcast %cst_255 : f32 to vector<16x512xf32>
    %882 = arith.subf %881, %880 : vector<16x512xf32>
    %883 = math.exp %882 : vector<16x512xf32>
    %cst_256 = arith.constant 1.000000e+00 : f32
    %884 = vector.broadcast %cst_256 : f32 to vector<16x512xf32>
    %885 = arith.addf %884, %883 : vector<16x512xf32>
    %886 = math.log %885 : vector<16x512xf32>
    %887 = arith.addf %879, %886 : vector<16x512xf32>
    %888 = arith.addf %871, %887 : vector<16x512xf32>
    %c720 = arith.constant 720 : index
    %c0_257 = arith.constant 0 : index
    %889 = vector.load %arg3[%c720, %c0_257] : memref<1568x512xbf16, #tpu.memory_space<vmem>>, vector<16x512xbf16>
    %890 = arith.extf %889 : vector<16x512xbf16> to vector<16x512xf32>
    %c1504 = arith.constant 1504 : index
    %c0_258 = arith.constant 0 : index
    %891 = vector.load %arg3[%c1504, %c0_258] : memref<1568x512xbf16, #tpu.memory_space<vmem>>, vector<16x512xbf16>
    %892 = arith.extf %891 : vector<16x512xbf16> to vector<16x512xf32>
    %cst_259 = arith.constant 0.000000e+00 : f32
    %893 = vector.broadcast %cst_259 : f32 to vector<16x512xf32>
    %894 = arith.maximumf %890, %893 : vector<16x512xf32>
    %895 = arith.mulf %890, %892 : vector<16x512xf32>
    %896 = arith.subf %894, %895 : vector<16x512xf32>
    %897 = math.absf %890 : vector<16x512xf32>
    %cst_260 = arith.constant 0.000000e+00 : f32
    %898 = vector.broadcast %cst_260 : f32 to vector<16x512xf32>
    %899 = arith.subf %898, %897 : vector<16x512xf32>
    %900 = math.exp %899 : vector<16x512xf32>
    %cst_261 = arith.constant 1.000000e+00 : f32
    %901 = vector.broadcast %cst_261 : f32 to vector<16x512xf32>
    %902 = arith.addf %901, %900 : vector<16x512xf32>
    %903 = math.log %902 : vector<16x512xf32>
    %904 = arith.addf %896, %903 : vector<16x512xf32>
    %905 = arith.addf %888, %904 : vector<16x512xf32>
    %c736 = arith.constant 736 : index
    %c0_262 = arith.constant 0 : index
    %906 = vector.load %arg3[%c736, %c0_262] : memref<1568x512xbf16, #tpu.memory_space<vmem>>, vector<16x512xbf16>
    %907 = arith.extf %906 : vector<16x512xbf16> to vector<16x512xf32>
    %c1520 = arith.constant 1520 : index
    %c0_263 = arith.constant 0 : index
    %908 = vector.load %arg3[%c1520, %c0_263] : memref<1568x512xbf16, #tpu.memory_space<vmem>>, vector<16x512xbf16>
    %909 = arith.extf %908 : vector<16x512xbf16> to vector<16x512xf32>
    %cst_264 = arith.constant 0.000000e+00 : f32
    %910 = vector.broadcast %cst_264 : f32 to vector<16x512xf32>
    %911 = arith.maximumf %907, %910 : vector<16x512xf32>
    %912 = arith.mulf %907, %909 : vector<16x512xf32>
    %913 = arith.subf %911, %912 : vector<16x512xf32>
    %914 = math.absf %907 : vector<16x512xf32>
    %cst_265 = arith.constant 0.000000e+00 : f32
    %915 = vector.broadcast %cst_265 : f32 to vector<16x512xf32>
    %916 = arith.subf %915, %914 : vector<16x512xf32>
    %917 = math.exp %916 : vector<16x512xf32>
    %cst_266 = arith.constant 1.000000e+00 : f32
    %918 = vector.broadcast %cst_266 : f32 to vector<16x512xf32>
    %919 = arith.addf %918, %917 : vector<16x512xf32>
    %920 = math.log %919 : vector<16x512xf32>
    %921 = arith.addf %913, %920 : vector<16x512xf32>
    %922 = arith.addf %905, %921 : vector<16x512xf32>
    %c752 = arith.constant 752 : index
    %c0_267 = arith.constant 0 : index
    %923 = vector.load %arg3[%c752, %c0_267] : memref<1568x512xbf16, #tpu.memory_space<vmem>>, vector<16x512xbf16>
    %924 = arith.extf %923 : vector<16x512xbf16> to vector<16x512xf32>
    %c1536 = arith.constant 1536 : index
    %c0_268 = arith.constant 0 : index
    %925 = vector.load %arg3[%c1536, %c0_268] : memref<1568x512xbf16, #tpu.memory_space<vmem>>, vector<16x512xbf16>
    %926 = arith.extf %925 : vector<16x512xbf16> to vector<16x512xf32>
    %cst_269 = arith.constant 0.000000e+00 : f32
    %927 = vector.broadcast %cst_269 : f32 to vector<16x512xf32>
    %928 = arith.maximumf %924, %927 : vector<16x512xf32>
    %929 = arith.mulf %924, %926 : vector<16x512xf32>
    %930 = arith.subf %928, %929 : vector<16x512xf32>
    %931 = math.absf %924 : vector<16x512xf32>
    %cst_270 = arith.constant 0.000000e+00 : f32
    %932 = vector.broadcast %cst_270 : f32 to vector<16x512xf32>
    %933 = arith.subf %932, %931 : vector<16x512xf32>
    %934 = math.exp %933 : vector<16x512xf32>
    %cst_271 = arith.constant 1.000000e+00 : f32
    %935 = vector.broadcast %cst_271 : f32 to vector<16x512xf32>
    %936 = arith.addf %935, %934 : vector<16x512xf32>
    %937 = math.log %936 : vector<16x512xf32>
    %938 = arith.addf %930, %937 : vector<16x512xf32>
    %939 = arith.addf %922, %938 : vector<16x512xf32>
    %c768 = arith.constant 768 : index
    %c0_272 = arith.constant 0 : index
    %940 = vector.load %arg3[%c768, %c0_272] : memref<1568x512xbf16, #tpu.memory_space<vmem>>, vector<16x512xbf16>
    %941 = arith.extf %940 : vector<16x512xbf16> to vector<16x512xf32>
    %c1552 = arith.constant 1552 : index
    %c0_273 = arith.constant 0 : index
    %942 = vector.load %arg3[%c1552, %c0_273] : memref<1568x512xbf16, #tpu.memory_space<vmem>>, vector<16x512xbf16>
    %943 = arith.extf %942 : vector<16x512xbf16> to vector<16x512xf32>
    %cst_274 = arith.constant 0.000000e+00 : f32
    %944 = vector.broadcast %cst_274 : f32 to vector<16x512xf32>
    %945 = arith.maximumf %941, %944 : vector<16x512xf32>
    %946 = arith.mulf %941, %943 : vector<16x512xf32>
    %947 = arith.subf %945, %946 : vector<16x512xf32>
    %948 = math.absf %941 : vector<16x512xf32>
    %cst_275 = arith.constant 0.000000e+00 : f32
    %949 = vector.broadcast %cst_275 : f32 to vector<16x512xf32>
    %950 = arith.subf %949, %948 : vector<16x512xf32>
    %951 = math.exp %950 : vector<16x512xf32>
    %cst_276 = arith.constant 1.000000e+00 : f32
    %952 = vector.broadcast %cst_276 : f32 to vector<16x512xf32>
    %953 = arith.addf %952, %951 : vector<16x512xf32>
    %954 = math.log %953 : vector<16x512xf32>
    %955 = arith.addf %947, %954 : vector<16x512xf32>
    %956 = arith.addf %939, %955 : vector<16x512xf32>
    %cst_277 = arith.constant dense<0.000000e+00> : vector<512xf32>
    %957 = vector.multi_reduction <add>, %956, %cst_277 [0] : vector<16x512xf32> to vector<512xf32>
    %958 = vector.shape_cast %957 : vector<512xf32> to vector<1x512xf32>
    %cst_278 = arith.constant 0.00127551018 : f32
    %959 = vector.broadcast %cst_278 : f32 to vector<1x512xf32>
    %960 = arith.mulf %958, %959 : vector<1x512xf32>
    %cst_279 = arith.constant 0.000000e+00 : f32
    %961 = vector.broadcast %cst_279 : f32 to vector<4x512xf32>
    %962 = tpu.concatenate %91, %104, %122, %960, %961 in 0 : vector<1x512xf32>, vector<1x512xf32>, vector<1x512xf32>, vector<1x512xf32>, vector<4x512xf32> -> vector<8x512xf32>
    %c0_280 = arith.constant 0 : index
    %c0_281 = arith.constant 0 : index
    %c0_282 = arith.constant 0 : index
    %963 = vector.load %arg4[%c0_280, %c0_281, %c0_282] : memref<1x8x512xf32, #tpu.memory_space<vmem>>, vector<1x8x512xf32>
    %964 = vector.broadcast %14 : vector<1x512xf32> to vector<8x512xf32>
    %965 = arith.mulf %962, %964 : vector<8x512xf32>
    %966 = vector.shape_cast %965 : vector<8x512xf32> to vector<1x8x512xf32>
    %967 = arith.addf %963, %966 : vector<1x8x512xf32>
    %c0_283 = arith.constant 0 : index
    %c0_284 = arith.constant 0 : index
    %c0_285 = arith.constant 0 : index
    %968 = vector.load %arg4[%c0_283, %c0_284, %c0_285] : memref<1x8x512xf32, #tpu.memory_space<vmem>>, vector<1x8x512xf32>
    tpu.vector_store %arg4[%c0_283, %c0_284, %c0_285], %967 {strides = array<i32>} : memref<1x8x512xf32, #tpu.memory_space<vmem>>, vector<1x8x512xf32>,
    return
  }
  func.func @transform_0(%arg0: i32, %arg1: i32) -> (i32, i32) {
    %c1_i32 = arith.constant 1 : i32
    %0 = arith.muli %arg0, %c1_i32 : i32
    %1 = arith.addi %0, %arg1 : i32
    %c0_i32 = arith.constant 0 : i32
    %c0_i32_0 = arith.constant 0 : i32
    return %c0_i32, %1 : i32, i32
  }
  func.func @transform_1(%arg0: i32, %arg1: i32) -> (i32, i32) {
    %c1_i32 = arith.constant 1 : i32
    %0 = arith.muli %arg0, %c1_i32 : i32
    %1 = arith.addi %0, %arg1 : i32
    %c0_i32 = arith.constant 0 : i32
    %c0_i32_0 = arith.constant 0 : i32
    return %c0_i32, %1 : i32, i32
  }
  func.func @transform_2(%arg0: i32, %arg1: i32) -> (i32, i32, i32) {
    %c0_i32 = arith.constant 0 : i32
    %c0_i32_0 = arith.constant 0 : i32
    %c0_i32_1 = arith.constant 0 : i32
    return %arg0, %c0_i32, %c0_i32_0 : i32, i32, i32
  }
}

</mosaic_0001>

<llo_original>
// kernel: tpu_custom_call.1
$region0: #{tpu_custom_call.1}
  #allocation0 [shape = 'u32[]', space=smem, size = 0x4, offset = 0x4, fixed_abs, tag = 'smem constant byte address 0x4 - core index']
  #allocation1 [shape = 'u32[144,128]{1,0:T(1,128)}', space=vmem, size = 0x12000, scoped, tag = 'internal scratch']
  %s0 = inlined_call_operand.hbm [shape: f32[32,1024], index: 0, kind: input, shape index: {}]
  %s1 = inlined_call_operand.hbm [shape: bf16[1568,1024], index: 1, kind: input, shape index: {}]
  %s2 = inlined_call_operand.hbm [shape: f32[2,8,512], index: 2, kind: output, shape index: {}]
  %s3 = sld [smem:[#allocation0]]
  $region53: #{tpu_custom_call.1} parent=0
    _
  %s5 = ssub.s32 1, %s3
  %s6 = scalar_select 0, %s5, %s3
  $region1: #{tpu_custom_call.1} parent=0
    #allocation2 [shape = 'u8[131072]{0}', space=vmem, size = 0x20000, scoped, tag = 'input window, operand 0']
    #allocation3 [shape = 's32[2]{0}', space=sflag, size = 0x8, scoped, tag = 'scoped memory for tpu_custom_call.1']
    #allocation4 [shape = 's32[2]{0}', space=sflag, size = 0x8, scoped, tag = 'scoped memory for tpu_custom_call.1']
    #allocation5 [shape = 'u8[3211264]{0}', space=vmem, size = 0x310000, scoped, tag = 'input window, operand 1']
    #allocation6 [shape = 's32[2]{0}', space=sflag, size = 0x8, scoped, tag = 'scoped memory for tpu_custom_call.1']
    #allocation7 [shape = 'u8[32768]{0}', space=vmem, size = 0x8000, scoped, tag = 'output window, operand 0']
    %7 = vsyncpa [#allocation3], 0
    %s8 = scalar_lea.sflag [#allocation3], 1
    %9 = vsyncpa %s8, 0
    %10 = vsyncpa [#allocation6], 0
    %s11 = scalar_lea.sflag [#allocation6], 1
    %12 = vsyncpa %s11, 0
    %13 = vsyncpa [#allocation4], 0
    %s14 = scalar_lea.sflag [#allocation4], 1
    %15 = vsyncpa %s14, 0
    loop: start=0, step=1, limit=4
    $region2: #{tpu_custom_call.1} parent=1 // loop_pre_header
      _
    $region3: #{tpu_custom_call.1} parent=1 // loop_header
      %s17 = sphi 0, %s21
      %p18 = scmp.ge.s32.totalorder %s17, 4
      %s24 = sphi 0, %s36
      %s25 = sphi 0, %s32
      %s26 = sphi 0, %s24
      %s27 = sphi 0, %s25
      %s28 = sphi 0, %s26
      %s29 = sphi 0, %s27
      %s41 = sphi 0, %s43
      %s44 = sphi 0, %s41
      %s45 = sphi 0, %s44
      %s61 = sphi 0, %s45
      %s69 = sphi 0, %s71
      %s72 = sphi 0, %s69
      %s73 = sphi 0, %s72
      %s89 = sphi 0, %s73
      %s95 = sphi 0, %s97
      %s98 = sphi 0, %s95
      %s99 = sphi 0, %s98
      %s115 = sphi 0, %s99
    $region4: #{tpu_custom_call.1} parent=1 // loop_header_branch
      %20 = sbr.rel (%p18) target = $region8
    $region5: #{tpu_custom_call.1} parent=1 // loop_body
      %s22 = ssub.s32 %s17, 1
      %s23 = ssub.s32 %s17, 2
      %s30 = sadd.s32 1, %s25
      %p31 = scmp.ge.s32.totalorder %s30, 1
      %s32 = scalar_select %p31, 0, %s30
      %s33 = sadd.s32 1, %s24
      %s34 = scalar_select %p31, %s33, %s24
      %p35 = scmp.ge.s32.totalorder %s34, 2
      %s36 = scalar_select %p35, 0, %s34
      %s37 = sadd.s32 %s24, %s25
      %s38 = sadd.s32 %s36, %s32
      %s39 = ssub.s32 %s37, %s38
      %p40 = scmp.eq.s32.totalorder %s39, 0
      %s42 = sadd.s32 %s41, 1
      %s43 = scalar_select %p40, %s41, %s42
      %p46 = pneg %p40
      %p47 = scmp.eq.s32.totalorder %s17, 1
      %p48 = por %p46, %p47
      %p49 = scmp.ne.s32.totalorder %s41, %s44
      %p50 = scmp.eq.s32.totalorder %s17, 0
      %p51 = por %p49, %p50
      %p52 = scmp.ne.s32.totalorder %s41, %s44
      %p53 = scmp.eq.s32.totalorder %s22, 1
      %p54 = por %p52, %p53
      %p55 = scmp.ne.s32.totalorder %s44, %s45
      %p56 = scmp.eq.s32.totalorder %s22, 0
      %p57 = por %p55, %p56
      %p58 = scmp.ne.s32.totalorder %s44, %s45
      %p59 = scmp.eq.s32.totalorder %s23, 1
      %p60 = por %p58, %p59
      %p62 = scmp.ne.s32.totalorder %s45, %s61
      %p63 = scmp.eq.s32.totalorder %s23, 0
      %p64 = por %p62, %p63
      %s65 = sadd.s32 %s24, %s25
      %s66 = sadd.s32 %s36, %s32
      %s67 = ssub.s32 %s65, %s66
      %p68 = scmp.eq.s32.totalorder %s67, 0
      %s70 = sadd.s32 %s69, 1
      %s71 = scalar_select %p68, %s69, %s70
      %p74 = pneg %p68
      %p75 = scmp.eq.s32.totalorder %s17, 1
      %p76 = por %p74, %p75
      %p77 = scmp.ne.s32.totalorder %s69, %s72
      %p78 = scmp.eq.s32.totalorder %s17, 0
      %p79 = por %p77, %p78
      %p80 = scmp.ne.s32.totalorder %s69, %s72
      %p81 = scmp.eq.s32.totalorder %s22, 1
      %p82 = por %p80, %p81
      %p83 = scmp.ne.s32.totalorder %s72, %s73
      %p84 = scmp.eq.s32.totalorder %s22, 0
      %p85 = por %p83, %p84
      %p86 = scmp.ne.s32.totalorder %s72, %s73
      %p87 = scmp.eq.s32.totalorder %s23, 1
      %p88 = por %p86, %p87
      %p90 = scmp.ne.s32.totalorder %s73, %s89
      %p91 = scmp.eq.s32.totalorder %s23, 0
      %p92 = por %p90, %p91
      %s93 = ssub.s32 %s24, %s36
      %p94 = scmp.eq.s32.totalorder %s93, 0
      %s96 = sadd.s32 %s95, 1
      %s97 = scalar_select %p94, %s95, %s96
      %p100 = pneg %p94
      %p101 = scmp.eq.s32.totalorder %s17, 1
      %p102 = por %p100, %p101
      %p103 = scmp.ne.s32.totalorder %s95, %s98
      %p104 = scmp.eq.s32.totalorder %s17, 0
      %p105 = por %p103, %p104
      %p106 = scmp.ne.s32.totalorder %s95, %s98
      %p107 = scmp.eq.s32.totalorder %s22, 1
      %p108 = por %p106, %p107
      %p109 = scmp.ne.s32.totalorder %s98, %s99
      %p110 = scmp.eq.s32.totalorder %s22, 0
      %p111 = por %p109, %p110
      %p112 = scmp.ne.s32.totalorder %s98, %s99
      %p113 = scmp.eq.s32.totalorder %s23, 1
      %p114 = por %p112, %p113
      %p116 = scmp.ne.s32.totalorder %s99, %s115
      %p117 = scmp.eq.s32.totalorder %s23, 0
      %p118 = por %p116, %p117
      %p119 = scmp.le.s32.totalorder 1, %s17
      %p120 = scmp.lt.s32.totalorder %s17, 3
      %p121 = pnand %p119, %p120
      %p122 = pneg %p121
      // Predicated region
      $region9: #{tpu_custom_call.1} parent=5 // pred_check
        _
      $region10: #{tpu_custom_call.1} parent=5 // pred_check_branch
        %124 = sbr.rel (%p121) target = $region12
      $region11: #{tpu_custom_call.1} parent=5 // pred_region
        %s125 = ssub.s32 %s17, 1
      $region12: #{tpu_custom_call.1} parent=5 // pred_fallthru
        _
      %p126 = scmp.lt.s32.totalorder %s17, 2
      // Predicated region
      $region13: #{tpu_custom_call.1} parent=5 // pred_check
        %p127 = pneg %p126
      $region14: #{tpu_custom_call.1} parent=5 // pred_check_branch
        %129 = sbr.rel (%p127) target = $region16
      $region15: #{tpu_custom_call.1} parent=5 // pred_region
        // Predicated region
        $region17: #{tpu_custom_call.1} parent=15 // pred_check
          %p130 = pneg %p51
        $region18: #{tpu_custom_call.1} parent=15 // pred_check_branch
          %132 = sbr.rel (%p130) target = $region20
        $region19: #{tpu_custom_call.1} parent=15 // pred_region
          %s133 = sand.u32 %s41, 1
          %s134 = scalar_lea.sflag [#allocation3], %s133
          %s135 = sand.u32 %s41, 1
          %s136 = smul.addr %s135, 128
          %s137 = scalar_lea.vmem [#allocation2], %s136
          %s138 = sadd.s32 %s24, %s25
          %s139 = smul.u32 4, %s138
          %s141 = ssub.s32 2048, 2048
          %142 = vsyncadd %s134, %s141
          %s143 = smul.addr %s139, 128
          %s144 = scalar_lea.hbm %s0, %s143
          %s145 = sshll.u32 %s137, 4
          %s146 = int_to_ptr.vmem [resolvable:$true] %s145
          %151 = dma.hbm_to_vmem [thread:$0]  %s144, 2048, %s146, %s134, 1024, 512, 32
        $region20: #{tpu_custom_call.1} parent=15 // pred_fallthru
          _
        // Predicated region
        $region21: #{tpu_custom_call.1} parent=15 // pred_check
          %p152 = pneg %p79
        $region22: #{tpu_custom_call.1} parent=15 // pred_check_branch
          %154 = sbr.rel (%p152) target = $region24
        $region23: #{tpu_custom_call.1} parent=15 // pred_region
          %s155 = sand.u32 %s69, 1
          %s156 = scalar_lea.sflag [#allocation6], %s155
          %s157 = sand.u32 %s69, 1
          %s158 = smul.addr %s157, 3136
          %s159 = scalar_lea.vmem [#allocation5], %s158
          %s160 = sadd.s32 %s24, %s25
          %s161 = smul.u32 4, %s160
          %s163 = ssub.s32 50176, 50176
          %164 = vsyncadd %s156, %s163
          %s165 = smul.addr %s161, 64
          %s166 = scalar_lea.hbm %s1, %s165
          %s167 = sshll.u32 %s159, 4
          %s168 = int_to_ptr.vmem [resolvable:$true] %s167
          %173 = dma.hbm_to_vmem [thread:$0]  %s166, 50176, %s168, %s156, 512, 256, 16
        $region24: #{tpu_custom_call.1} parent=15 // pred_fallthru
          _
      $region16: #{tpu_custom_call.1} parent=5 // pred_fallthru
        _
      %p174 = scmp.le.s32.totalorder 1, %s17
      %p175 = scmp.lt.s32.totalorder %s17, 3
      %p176 = pnand %p174, %p175
      %p177 = pneg %p176
      // Predicated region
      $region25: #{tpu_custom_call.1} parent=5 // pred_check
        _
      $region26: #{tpu_custom_call.1} parent=5 // pred_check_branch
        %179 = sbr.rel (%p176) target = $region28
      $region27: #{tpu_custom_call.1} parent=5 // pred_region
        %s180 = ssub.s32 %s17, 1
        %s181 = sand.u32 %s44, 1
        %s182 = scalar_lea.sflag [#allocation3], %s181
        %s183 = sand.u32 %s44, 1
        %s184 = smul.addr %s183, 128
        %s185 = scalar_lea.vmem [#allocation2], %s184
        // Predicated region
        $region29: #{tpu_custom_call.1} parent=27 // pred_check
          %p186 = pneg %p57
        $region30: #{tpu_custom_call.1} parent=27 // pred_check_branch
          %188 = sbr.rel (%p186) target = $region32
        $region31: #{tpu_custom_call.1} parent=27 // pred_region
          %189 = dma.done %s182, 2048
        $region32: #{tpu_custom_call.1} parent=27 // pred_fallthru
          _
        %s190 = sand.u32 %s72, 1
        %s191 = scalar_lea.sflag [#allocation6], %s190
        %s192 = sand.u32 %s72, 1
        %s193 = smul.addr %s192, 3136
        %s194 = scalar_lea.vmem [#allocation5], %s193
        // Predicated region
        $region33: #{tpu_custom_call.1} parent=27 // pred_check
          %p195 = pneg %p85
        $region34: #{tpu_custom_call.1} parent=27 // pred_check_branch
          %197 = sbr.rel (%p195) target = $region36
        $region35: #{tpu_custom_call.1} parent=27 // pred_region
          %198 = dma.done %s191, 50176
        $region36: #{tpu_custom_call.1} parent=27 // pred_fallthru
          _
        %s199 = sand.u32 %s44, 1
        %s200 = scalar_lea.sflag [#allocation3], %s199
        %s201 = sand.u32 %s44, 1
        %s202 = smul.addr %s201, 128
        %s203 = scalar_lea.vmem [#allocation2], %s202
        %p204 = pneg %p57
        %p205 = pneg %p54
        %s206 = sand.u32 %s72, 1
        %s207 = scalar_lea.sflag [#allocation6], %s206
        %s208 = sand.u32 %s72, 1
        %s209 = smul.addr %s208, 3136
        %s210 = scalar_lea.vmem [#allocation5], %s209
        %p211 = pneg %p85
        %p212 = pneg %p82
        %p213 = pneg %p111
        %p214 = pneg %p108
        %s215 = sand.u32 %s98, 1
        %s216 = scalar_lea.sflag [#allocation4], %s215
        %s217 = sand.u32 %s98, 1
        %s218 = smul.addr %s217, 32
        %s219 = scalar_lea.vmem [#allocation7], %s218
        %s220 = sadd.s32 %s26, %s27
        %s221 = smul.u32 4, %s220
        %s222 = sadd.s32 %s26, %s27
        %s223 = smul.u32 4, %s222
        %p224 = scmp.eq.s32.totalorder %s27, 0
        // Predicated region
        $region37: #{tpu_custom_call.1} parent=27 // pred_check
          %p225 = pneg %p224
        $region38: #{tpu_custom_call.1} parent=27 // pred_check_branch
          %227 = sbr.rel (%p225) target = $region40
        $region39: #{tpu_custom_call.1} parent=27 // pred_region
          %228 = vst [vmem:[%s219] sm:$0xff] 0.0
          %229 = vst [vmem:[%s219 + $0x8] sm:$0xff] 0.0
          %230 = vst [vmem:[%s219 + $0x10] sm:$0xff] 0.0
          %231 = vst [vmem:[%s219 + $0x18] sm:$0xff] 0.0
        $region40: #{tpu_custom_call.1} parent=27 // pred_fallthru
          _
        %v232 = vld [vmem:[%s185] sm:$0xff]
        %v233 = vld [vmem:[%s185 + $0x8] sm:$0xff]
        %v234 = vld [vmem:[%s185 + $0x10] sm:$0xff]
        %v235 = vld [vmem:[%s185 + $0x18] sm:$0xff]
        %v236 = vld [vmem:[%s185 + $0x20] sm:$0xff]
        %v237 = vld [vmem:[%s185 + $0x28] sm:$0xff]
        %v238 = vld [vmem:[%s185 + $0x30] sm:$0xff]
        %v239 = vld [vmem:[%s185 + $0x38] sm:$0xff]
        %v240 = vmul.f32 %v232, 0.5
        %v241 = vmul.f32 %v233, 0.5
        %v242 = vmul.f32 %v234, 0.5
        %v243 = vmul.f32 %v235, 0.5
        %v248 = vrot.slane %v240, 2
        %v249 = vrot.slane %v241, 2
        %v250 = vrot.slane %v242, 2
        %v251 = vrot.slane %v243, 2
        %v256 = vsub.f32 %v232, %v248
        %v257 = vsub.f32 %v233, %v249
        %v258 = vsub.f32 %v234, %v250
        %v259 = vsub.f32 %v235, %v251
        %v260 = vadd.f32 %v232, %v248
        %v261 = vadd.f32 %v233, %v249
        %v262 = vadd.f32 %v234, %v250
        %v263 = vadd.f32 %v235, %v251
        %v268 = vrot.slane %v260, 4
        %v269 = vrot.slane %v261, 4
        %v270 = vrot.slane %v262, 4
        %v271 = vrot.slane %v263, 4
        %v276 = vmin.f32 %v260, %v268
        %v277 = vmin.f32 %v261, %v269
        %v278 = vmin.f32 %v262, %v270
        %v279 = vmin.f32 %v263, %v271
        %v284 = vrot.slane %v256, 4
        %v285 = vrot.slane %v257, 4
        %v286 = vrot.slane %v258, 4
        %v287 = vrot.slane %v259, 4
        %v292 = vmax.f32 %v256, %v284
        %v293 = vmax.f32 %v257, %v285
        %v294 = vmax.f32 %v258, %v286
        %v295 = vmax.f32 %v259, %v287
        %v296 = vsub.f32 %v276, %v292
        %v297 = vsub.f32 %v277, %v293
        %v298 = vsub.f32 %v278, %v294
        %v299 = vsub.f32 %v279, %v295
        %v300 = vmax.f32 %v296, 0.0
        %v301 = vmax.f32 %v297, 0.0
        %v302 = vmax.f32 %v298, 0.0
        %v303 = vmax.f32 %v299, 0.0
        %v308 = vrot.slane %v300, 1
        %v309 = vrot.slane %v301, 1
        %v310 = vrot.slane %v302, 1
        %v311 = vrot.slane %v303, 1
        %v316 = vmul.f32 %v300, %v308
        %v317 = vmul.f32 %v301, %v309
        %v318 = vmul.f32 %v302, %v310
        %v319 = vmul.f32 %v303, %v311
        %v324 = vrot.slane %v232, 1
        %v325 = vrot.slane %v233, 1
        %v326 = vrot.slane %v234, 1
        %v327 = vrot.slane %v235, 1
        %v332 = vmul.f32 %v232, %v324
        %v333 = vmul.f32 %v233, %v325
        %v334 = vmul.f32 %v234, %v326
        %v335 = vmul.f32 %v235, %v327
        %v340 = vrot.slane %v332, 4
        %v341 = vrot.slane %v333, 4
        %v342 = vrot.slane %v334, 4
        %v343 = vrot.slane %v335, 4
        %v348 = vadd.f32 %v332, %v340
        %v349 = vadd.f32 %v333, %v341
        %v350 = vadd.f32 %v334, %v342
        %v351 = vadd.f32 %v335, %v343
        %v356 = vrot.slane %v316, 6
        %v357 = vrot.slane %v317, 6
        %v358 = vrot.slane %v318, 6
        %v359 = vrot.slane %v319, 6
        %v364 = vsub.f32 %v348, %v356
        %v365 = vsub.f32 %v349, %v357
        %v366 = vsub.f32 %v350, %v358
        %v367 = vsub.f32 %v351, %v359
        %v368 = vadd.f32 %v364, 1e-07
        %v369 = vadd.f32 %v365, 1e-07
        %v370 = vadd.f32 %v366, 1e-07
        %v371 = vadd.f32 %v367, 1e-07
        %v376 = vrot.slane %v368, 2
        %v377 = vrot.slane %v369, 2
        %v378 = vrot.slane %v370, 2
        %v379 = vrot.slane %v371, 2
        %v384 = vrcp.pop %v376
        %v385 = vmul.f32 %v316, %v384
        %v386 = vrcp.pop %v377
        %v387 = vmul.f32 %v317, %v386
        %v388 = vrcp.pop %v378
        %v389 = vmul.f32 %v318, %v388
        %v390 = vrcp.pop %v379
        %v391 = vmul.f32 %v319, %v390
        %v392 = vmax.f32 %v260, %v268
        %v393 = vmax.f32 %v261, %v269
        %v394 = vmax.f32 %v262, %v270
        %v395 = vmax.f32 %v263, %v271
        %v396 = vmin.f32 %v256, %v284
        %v397 = vmin.f32 %v257, %v285
        %v398 = vmin.f32 %v258, %v286
        %v399 = vmin.f32 %v259, %v287
        %v400 = vsub.f32 %v392, %v396
        %v401 = vsub.f32 %v393, %v397
        %v402 = vsub.f32 %v394, %v398
        %v403 = vsub.f32 %v395, %v399
        %v404 = vmax.f32 %v400, 0.0
        %v405 = vmax.f32 %v401, 0.0
        %v406 = vmax.f32 %v402, 0.0
        %v407 = vmax.f32 %v403, 0.0
        %v408 = vmul.f32 %v404, %v404
        %v409 = vmul.f32 %v405, %v405
        %v410 = vmul.f32 %v406, %v406
        %v411 = vmul.f32 %v407, %v407
        %v416 = vrot.slane %v408, 1
        %v417 = vrot.slane %v409, 1
        %v418 = vrot.slane %v410, 1
        %v419 = vrot.slane %v411, 1
        %v424 = vadd.f32 %v408, %v416
        %v425 = vadd.f32 %v409, %v417
        %v426 = vadd.f32 %v410, %v418
        %v427 = vadd.f32 %v411, %v419
        %v428 = vadd.f32 %v424, 1e-07
        %v429 = vadd.f32 %v425, 1e-07
        %v430 = vadd.f32 %v426, 1e-07
        %v431 = vadd.f32 %v427, 1e-07
        %v432 = vrot.slane %v232, 4
        %v433 = vrot.slane %v233, 4
        %v434 = vrot.slane %v234, 4
        %v435 = vrot.slane %v235, 4
        %v440 = vsub.f32 %v232, %v432
        %v441 = vsub.f32 %v233, %v433
        %v442 = vsub.f32 %v234, %v434
        %v443 = vsub.f32 %v235, %v435
        %v444 = vmul.f32 %v440, %v440
        %v445 = vmul.f32 %v441, %v441
        %v446 = vmul.f32 %v442, %v442
        %v447 = vmul.f32 %v443, %v443
        %v452 = vrot.slane %v444, 1
        %v453 = vrot.slane %v445, 1
        %v454 = vrot.slane %v446, 1
        %v455 = vrot.slane %v447, 1
        %v460 = vadd.f32 %v444, %v452
        %v461 = vadd.f32 %v445, %v453
        %v462 = vadd.f32 %v446, %v454
        %v463 = vadd.f32 %v447, %v455
        %v464 = vmul.f32 %v236, 0.40528473
        %v465 = vmul.f32 %v237, 0.40528473
        %v466 = vmul.f32 %v238, 0.40528473
        %v467 = vmul.f32 %v239, 0.40528473
        %v468 = vmul.f32 %v464, %v236
        %v469 = vmul.f32 %v465, %v237
        %v470 = vmul.f32 %v466, %v238
        %v471 = vmul.f32 %v467, %v239
        %v476 = vrot.slane %v385, 7
        %v477 = vrot.slane %v387, 7
        %v478 = vrot.slane %v389, 7
        %v479 = vrot.slane %v391, 7
        %v484 = vsub.f32 %v468, %v476
        %v485 = vsub.f32 %v469, %v477
        %v486 = vsub.f32 %v470, %v478
        %v487 = vsub.f32 %v471, %v479
        %v488 = vadd.f32 %v484, 1.0000001
        %v489 = vadd.f32 %v485, 1.0000001
        %v490 = vadd.f32 %v486, 1.0000001
        %v491 = vadd.f32 %v487, 1.0000001
        %v492 = vrcp.pop %v488
        %v493 = vmul.f32 %v468, %v492
        %v494 = vrcp.pop %v489
        %v495 = vmul.f32 %v469, %v494
        %v496 = vrcp.pop %v490
        %v497 = vmul.f32 %v470, %v496
        %v498 = vrcp.pop %v491
        %v499 = vmul.f32 %v471, %v498
        %v500 = vsub.f32 1.0, %v385
        %v501 = vsub.f32 1.0, %v387
        %v502 = vsub.f32 1.0, %v389
        %v503 = vsub.f32 1.0, %v391
        %v504 = vrcp.pop %v428
        %v505 = vmul.f32 %v460, %v504
        %v506 = vrcp.pop %v429
        %v507 = vmul.f32 %v461, %v506
        %v508 = vrcp.pop %v430
        %v509 = vmul.f32 %v462, %v508
        %v510 = vrcp.pop %v431
        %v511 = vmul.f32 %v463, %v510
        %v512 = vadd.f32 %v500, %v505
        %v513 = vadd.f32 %v501, %v507
        %v514 = vadd.f32 %v502, %v509
        %v515 = vadd.f32 %v503, %v511
        %v516 = vmul.f32 %v468, %v493
        %v517 = vmul.f32 %v469, %v495
        %v518 = vmul.f32 %v470, %v497
        %v519 = vmul.f32 %v471, %v499
        %v524 = vrot.slane %v516, 1
        %v525 = vrot.slane %v517, 1
        %v526 = vrot.slane %v518, 1
        %v527 = vrot.slane %v519, 1
        %v532 = vadd.f32 %v512, %v524
        %v533 = vadd.f32 %v513, %v525
        %v534 = vadd.f32 %v514, %v526
        %v535 = vadd.f32 %v515, %v527
        %v536 = vmax.f32 %v236, 0.0
        %v537 = vmax.f32 %v237, 0.0
        %v538 = vmax.f32 %v238, 0.0
        %v539 = vmax.f32 %v239, 0.0
        %v540 = vsub.f32 %v536, %v236
        %v541 = vsub.f32 %v537, %v237
        %v542 = vsub.f32 %v538, %v238
        %v543 = vsub.f32 %v539, %v239
        %v544 = vand.u32 2147483647, %v236
        %v545 = vand.u32 2147483647, %v237
        %v546 = vand.u32 2147483647, %v238
        %v547 = vand.u32 2147483647, %v239
        %v548 = vsub.f32 0.0, %v544
        %v549 = vsub.f32 0.0, %v545
        %v550 = vsub.f32 0.0, %v546
        %v551 = vsub.f32 0.0, %v547
        %v552 = vmul.f32 %v548, 1.442695
        %v553 = vpow.pop %v552
        %v554 = vmul.f32 %v549, 1.442695
        %v555 = vpow.pop %v554
        %v556 = vmul.f32 %v550, 1.442695
        %v557 = vpow.pop %v556
        %v558 = vmul.f32 %v551, 1.442695
        %v559 = vpow.pop %v558
        %v560 = vadd.f32 %v553, 1.0
        %v561 = vadd.f32 %v555, 1.0
        %v562 = vadd.f32 %v557, 1.0
        %v563 = vadd.f32 %v559, 1.0
        %v564 = vlog2.pop %v560
        %v565 = vmul.f32 %v564, 0.6931472
        %v566 = vlog2.pop %v561
        %v567 = vmul.f32 %v566, 0.6931472
        %v568 = vlog2.pop %v562
        %v569 = vmul.f32 %v568, 0.6931472
        %v570 = vlog2.pop %v563
        %v571 = vmul.f32 %v570, 0.6931472
        %v572 = vadd.f32 %v540, %v565
        %v573 = vadd.f32 %v541, %v567
        %v574 = vadd.f32 %v542, %v569
        %v575 = vadd.f32 %v543, %v571
        %v576 = vld [vmem:[%s185 + $0x40] sm:$0xff]
        %v577 = vld [vmem:[%s185 + $0x48] sm:$0xff]
        %v578 = vld [vmem:[%s185 + $0x50] sm:$0xff]
        %v579 = vld [vmem:[%s185 + $0x58] sm:$0xff]
        %v580 = vld [vmem:[%s185 + $0x60] sm:$0xff]
        %v581 = vld [vmem:[%s185 + $0x68] sm:$0xff]
        %v582 = vld [vmem:[%s185 + $0x70] sm:$0xff]
        %v583 = vld [vmem:[%s185 + $0x78] sm:$0xff]
        %v584 = vmax.f32 %v576, 0.0
        %v585 = vmax.f32 %v577, 0.0
        %v586 = vmax.f32 %v578, 0.0
        %v587 = vmax.f32 %v579, 0.0
        %v588 = vmul.f32 %v576, %v580
        %v589 = vmul.f32 %v577, %v581
        %v590 = vmul.f32 %v578, %v582
        %v591 = vmul.f32 %v579, %v583
        %v592 = vsub.f32 %v584, %v588
        %v593 = vsub.f32 %v585, %v589
        %v594 = vsub.f32 %v586, %v590
        %v595 = vsub.f32 %v587, %v591
        %v596 = vand.u32 2147483647, %v576
        %v597 = vand.u32 2147483647, %v577
        %v598 = vand.u32 2147483647, %v578
        %v599 = vand.u32 2147483647, %v579
        %v600 = vsub.f32 0.0, %v596
        %v601 = vsub.f32 0.0, %v597
        %v602 = vsub.f32 0.0, %v598
        %v603 = vsub.f32 0.0, %v599
        %v604 = vmul.f32 %v600, 1.442695
        %v605 = vpow.pop %v604
        %v606 = vmul.f32 %v601, 1.442695
        %v607 = vpow.pop %v606
        %v608 = vmul.f32 %v602, 1.442695
        %v609 = vpow.pop %v608
        %v610 = vmul.f32 %v603, 1.442695
        %v611 = vpow.pop %v610
        %v612 = vadd.f32 %v605, 1.0
        %v613 = vadd.f32 %v607, 1.0
        %v614 = vadd.f32 %v609, 1.0
        %v615 = vadd.f32 %v611, 1.0
        %v616 = vlog2.pop %v612
        %v617 = vmul.f32 %v616, 0.6931472
        %v618 = vlog2.pop %v613
        %v619 = vmul.f32 %v618, 0.6931472
        %v620 = vlog2.pop %v614
        %v621 = vmul.f32 %v620, 0.6931472
        %v622 = vlog2.pop %v615
        %v623 = vmul.f32 %v622, 0.6931472
        %v624 = vadd.f32 %v592, %v617
        %v625 = vadd.f32 %v593, %v619
        %v626 = vadd.f32 %v594, %v621
        %v627 = vadd.f32 %v595, %v623
        %v628 = vrot.slane %v624, 4
        %v629 = vadd.f32 %v624, %v628
        %v630 = vrot.slane %v629, 2
        %v631 = vadd.f32 %v629, %v630
        %v632 = vrot.slane %v631, 1
        %v633 = vadd.f32 %v631, %v632
        %v634 = vrot.slane %v625, 4
        %v635 = vadd.f32 %v625, %v634
        %v636 = vrot.slane %v635, 2
        %v637 = vadd.f32 %v635, %v636
        %v638 = vrot.slane %v637, 1
        %v639 = vadd.f32 %v637, %v638
        %v640 = vrot.slane %v626, 4
        %v641 = vadd.f32 %v626, %v640
        %v642 = vrot.slane %v641, 2
        %v643 = vadd.f32 %v641, %v642
        %v644 = vrot.slane %v643, 1
        %v645 = vadd.f32 %v643, %v644
        %v646 = vrot.slane %v627, 4
        %v647 = vadd.f32 %v627, %v646
        %v648 = vrot.slane %v647, 2
        %v649 = vadd.f32 %v647, %v648
        %v650 = vrot.slane %v649, 1
        %v651 = vadd.f32 %v649, %v650
        %v652 = vmul.f32 %v633, 0.25
        %v653 = vmul.f32 %v639, 0.25
        %v654 = vmul.f32 %v645, 0.25
        %v655 = vmul.f32 %v651, 0.25
        %v656 = vld [vmem:[%s194] sm:$0xff]
        %v657 = vld [vmem:[%s194 + $0x8] sm:$0xff]
        %v658 = vld [vmem:[%s194 + $0x10] sm:$0xff]
        %v659 = vld [vmem:[%s194 + $0x18] sm:$0xff]
        %v660 = vunpack.c.l.bf16 %v656
        %v661 = vunpack.c.h.bf16 %v656
        %v662 = vunpack.c.l.bf16 %v657
        %v663 = vunpack.c.h.bf16 %v657
        %v664 = vunpack.c.l.bf16 %v658
        %v665 = vunpack.c.h.bf16 %v658
        %v666 = vunpack.c.l.bf16 %v659
        %v667 = vunpack.c.h.bf16 %v659
        %v668 = vld [vmem:[%s194 + $0x620] sm:$0xff]
        %v669 = vld [vmem:[%s194 + $0x628] sm:$0xff]
        %v670 = vld [vmem:[%s194 + $0x630] sm:$0xff]
        %v671 = vld [vmem:[%s194 + $0x638] sm:$0xff]
        %v672 = vunpack.c.l.bf16 %v668
        %v673 = vunpack.c.h.bf16 %v668
        %v674 = vunpack.c.l.bf16 %v669
        %v675 = vunpack.c.h.bf16 %v669
        %v676 = vunpack.c.l.bf16 %v670
        %v677 = vunpack.c.h.bf16 %v670
        %v678 = vunpack.c.l.bf16 %v671
        %v679 = vunpack.c.h.bf16 %v671
        %v680 = vmax.f32 %v660, 0.0
        %v681 = vmax.f32 %v661, 0.0
        %v682 = vmax.f32 %v662, 0.0
        %v683 = vmax.f32 %v663, 0.0
        %v684 = vmax.f32 %v664, 0.0
        %v685 = vmax.f32 %v665, 0.0
        %v686 = vmax.f32 %v666, 0.0
        %v687 = vmax.f32 %v667, 0.0
        %v688 = vmul.f32 %v660, %v672
        %v689 = vmul.f32 %v661, %v673
        %v690 = vmul.f32 %v662, %v674
        %v691 = vmul.f32 %v663, %v675
        %v692 = vmul.f32 %v664, %v676
        %v693 = vmul.f32 %v665, %v677
        %v694 = vmul.f32 %v666, %v678
        %v695 = vmul.f32 %v667, %v679
        %v696 = vsub.f32 %v680, %v688
        %v697 = vsub.f32 %v681, %v689
        %v698 = vsub.f32 %v682, %v690
        %v699 = vsub.f32 %v683, %v691
        %v700 = vsub.f32 %v684, %v692
        %v701 = vsub.f32 %v685, %v693
        %v702 = vsub.f32 %v686, %v694
        %v703 = vsub.f32 %v687, %v695
        %v704 = vand.u32 2147483647, %v660
        %v705 = vand.u32 2147483647, %v661
        %v706 = vand.u32 2147483647, %v662
        %v707 = vand.u32 2147483647, %v663
        %v708 = vand.u32 2147483647, %v664
        %v709 = vand.u32 2147483647, %v665
        %v710 = vand.u32 2147483647, %v666
        %v711 = vand.u32 2147483647, %v667
        %v712 = vsub.f32 0.0, %v704
        %v713 = vsub.f32 0.0, %v705
        %v714 = vsub.f32 0.0, %v706
        %v715 = vsub.f32 0.0, %v707
        %v716 = vsub.f32 0.0, %v708
        %v717 = vsub.f32 0.0, %v709
        %v718 = vsub.f32 0.0, %v710
        %v719 = vsub.f32 0.0, %v711
        %v720 = vmul.f32 %v712, 1.442695
        %v721 = vpow.pop %v720
        %v722 = vmul.f32 %v713, 1.442695
        %v723 = vpow.pop %v722
        %v724 = vmul.f32 %v714, 1.442695
        %v725 = vpow.pop %v724
        %v726 = vmul.f32 %v715, 1.442695
        %v727 = vpow.pop %v726
        %v728 = vmul.f32 %v716, 1.442695
        %v729 = vpow.pop %v728
        %v730 = vmul.f32 %v717, 1.442695
        %v731 = vpow.pop %v730
        %v732 = vmul.f32 %v718, 1.442695
        %v733 = vpow.pop %v732
        %v734 = vmul.f32 %v719, 1.442695
        %v735 = vpow.pop %v734
        %v736 = vadd.f32 %v721, 1.0
        %v737 = vadd.f32 %v723, 1.0
        %v738 = vadd.f32 %v725, 1.0
        %v739 = vadd.f32 %v727, 1.0
        %v740 = vadd.f32 %v729, 1.0
        %v741 = vadd.f32 %v731, 1.0
        %v742 = vadd.f32 %v733, 1.0
        %v743 = vadd.f32 %v735, 1.0
        %v744 = vlog2.pop %v736
        %v745 = vmul.f32 %v744, 0.6931472
        %v746 = vlog2.pop %v737
        %v747 = vmul.f32 %v746, 0.6931472
        %v748 = vlog2.pop %v738
        %v749 = vmul.f32 %v748, 0.6931472
        %v750 = vlog2.pop %v739
        %v751 = vmul.f32 %v750, 0.6931472
        %v752 = vlog2.pop %v740
        %v753 = vmul.f32 %v752, 0.6931472
        %v754 = vlog2.pop %v741
        %v755 = vmul.f32 %v754, 0.6931472
        %v756 = vlog2.pop %v742
        %v757 = vmul.f32 %v756, 0.6931472
        %v758 = vlog2.pop %v743
        %v759 = vmul.f32 %v758, 0.6931472
        %v760 = vadd.f32 %v696, %v745
        %v761 = vadd.f32 %v697, %v747
        %v762 = vadd.f32 %v698, %v749
        %v763 = vadd.f32 %v699, %v751
        %v764 = vadd.f32 %v700, %v753
        %v765 = vadd.f32 %v701, %v755
        %v766 = vadd.f32 %v702, %v757
        %v767 = vadd.f32 %v703, %v759
        %v768 = vadd.f32 %v760, 0.0
        %v769 = vadd.f32 %v761, 0.0
        %v770 = vadd.f32 %v762, 0.0
        %v771 = vadd.f32 %v763, 0.0
        %v772 = vadd.f32 %v764, 0.0
        %v773 = vadd.f32 %v765, 0.0
        %v774 = vadd.f32 %v766, 0.0
        %v775 = vadd.f32 %v767, 0.0
        %v776 = vld [vmem:[%s194 + $0x20] sm:$0xff]
        %v777 = vld [vmem:[%s194 + $0x28] sm:$0xff]
        %v778 = vld [vmem:[%s194 + $0x30] sm:$0xff]
        %v779 = vld [vmem:[%s194 + $0x38] sm:$0xff]
        %v780 = vunpack.c.l.bf16 %v776
        %v781 = vunpack.c.h.bf16 %v776
        %v782 = vunpack.c.l.bf16 %v777
        %v783 = vunpack.c.h.bf16 %v777
        %v784 = vunpack.c.l.bf16 %v778
        %v785 = vunpack.c.h.bf16 %v778
        %v786 = vunpack.c.l.bf16 %v779
        %v787 = vunpack.c.h.bf16 %v779
        %v788 = vld [vmem:[%s194 + $0x640] sm:$0xff]
        %v789 = vld [vmem:[%s194 + $0x648] sm:$0xff]
        %v790 = vld [vmem:[%s194 + $0x650] sm:$0xff]
        %v791 = vld [vmem:[%s194 + $0x658] sm:$0xff]
        %v792 = vunpack.c.l.bf16 %v788
        %v793 = vunpack.c.h.bf16 %v788
        %v794 = vunpack.c.l.bf16 %v789
        %v795 = vunpack.c.h.bf16 %v789
        %v796 = vunpack.c.l.bf16 %v790
        %v797 = vunpack.c.h.bf16 %v790
        %v798 = vunpack.c.l.bf16 %v791
        %v799 = vunpack.c.h.bf16 %v791
        %v800 = vmax.f32 %v780, 0.0
        %v801 = vmax.f32 %v781, 0.0
        %v802 = vmax.f32 %v782, 0.0
        %v803 = vmax.f32 %v783, 0.0
        %v804 = vmax.f32 %v784, 0.0
        %v805 = vmax.f32 %v785, 0.0
        %v806 = vmax.f32 %v786, 0.0
        %v807 = vmax.f32 %v787, 0.0
        %v808 = vmul.f32 %v780, %v792
        %v809 = vmul.f32 %v781, %v793
        %v810 = vmul.f32 %v782, %v794
        %v811 = vmul.f32 %v783, %v795
        %v812 = vmul.f32 %v784, %v796
        %v813 = vmul.f32 %v785, %v797
        %v814 = vmul.f32 %v786, %v798
        %v815 = vmul.f32 %v787, %v799
        %v816 = vsub.f32 %v800, %v808
        %v817 = vsub.f32 %v801, %v809
        %v818 = vsub.f32 %v802, %v810
        %v819 = vsub.f32 %v803, %v811
        %v820 = vsub.f32 %v804, %v812
        %v821 = vsub.f32 %v805, %v813
        %v822 = vsub.f32 %v806, %v814
        %v823 = vsub.f32 %v807, %v815
        %v824 = vand.u32 2147483647, %v780
        %v825 = vand.u32 2147483647, %v781
        %v826 = vand.u32 2147483647, %v782
        %v827 = vand.u32 2147483647, %v783
        %v828 = vand.u32 2147483647, %v784
        %v829 = vand.u32 2147483647, %v785
        %v830 = vand.u32 2147483647, %v786
        %v831 = vand.u32 2147483647, %v787
        %v832 = vsub.f32 0.0, %v824
        %v833 = vsub.f32 0.0, %v825
        %v834 = vsub.f32 0.0, %v826
        %v835 = vsub.f32 0.0, %v827
        %v836 = vsub.f32 0.0, %v828
        %v837 = vsub.f32 0.0, %v829
        %v838 = vsub.f32 0.0, %v830
        %v839 = vsub.f32 0.0, %v831
        %v840 = vmul.f32 %v832, 1.442695
        %v841 = vpow.pop %v840
        %v842 = vmul.f32 %v833, 1.442695
        %v843 = vpow.pop %v842
        %v844 = vmul.f32 %v834, 1.442695
        %v845 = vpow.pop %v844
        %v846 = vmul.f32 %v835, 1.442695
        %v847 = vpow.pop %v846
        %v848 = vmul.f32 %v836, 1.442695
        %v849 = vpow.pop %v848
        %v850 = vmul.f32 %v837, 1.442695
        %v851 = vpow.pop %v850
        %v852 = vmul.f32 %v838, 1.442695
        %v853 = vpow.pop %v852
        %v854 = vmul.f32 %v839, 1.442695
        %v855 = vpow.pop %v854
        %v856 = vadd.f32 %v841, 1.0
        %v857 = vadd.f32 %v843, 1.0
        %v858 = vadd.f32 %v845, 1.0
        %v859 = vadd.f32 %v847, 1.0
        %v860 = vadd.f32 %v849, 1.0
        %v861 = vadd.f32 %v851, 1.0
        %v862 = vadd.f32 %v853, 1.0
        %v863 = vadd.f32 %v855, 1.0
        %v864 = vlog2.pop %v856
        %v865 = vmul.f32 %v864, 0.6931472
        %v866 = vlog2.pop %v857
        %v867 = vmul.f32 %v866, 0.6931472
        %v868 = vlog2.pop %v858
        %v869 = vmul.f32 %v868, 0.6931472
        %v870 = vlog2.pop %v859
        %v871 = vmul.f32 %v870, 0.6931472
        %v872 = vlog2.pop %v860
        %v873 = vmul.f32 %v872, 0.6931472
        %v874 = vlog2.pop %v861
        %v875 = vmul.f32 %v874, 0.6931472
        %v876 = vlog2.pop %v862
        %v877 = vmul.f32 %v876, 0.6931472
        %v878 = vlog2.pop %v863
        %v879 = vmul.f32 %v878, 0.6931472
        %v880 = vadd.f32 %v816, %v865
        %v881 = vadd.f32 %v817, %v867
        %v882 = vadd.f32 %v818, %v869
        %v883 = vadd.f32 %v819, %v871
        %v884 = vadd.f32 %v820, %v873
        %v885 = vadd.f32 %v821, %v875
        %v886 = vadd.f32 %v822, %v877
        %v887 = vadd.f32 %v823, %v879
        %v888 = vadd.f32 %v768, %v880
        %v889 = vadd.f32 %v769, %v881
        %v890 = vadd.f32 %v770, %v882
        %v891 = vadd.f32 %v771, %v883
        %v892 = vadd.f32 %v772, %v884
        %v893 = vadd.f32 %v773, %v885
        %v894 = vadd.f32 %v774, %v886
        %v895 = vadd.f32 %v775, %v887
        %v896 = vld [vmem:[%s194 + $0x40] sm:$0xff]
        %v897 = vld [vmem:[%s194 + $0x48] sm:$0xff]
        %v898 = vld [vmem:[%s194 + $0x50] sm:$0xff]
        %v899 = vld [vmem:[%s194 + $0x58] sm:$0xff]
        %v900 = vunpack.c.l.bf16 %v896
        %v901 = vunpack.c.h.bf16 %v896
        %v902 = vunpack.c.l.bf16 %v897
        %v903 = vunpack.c.h.bf16 %v897
        %v904 = vunpack.c.l.bf16 %v898
        %v905 = vunpack.c.h.bf16 %v898
        %v906 = vunpack.c.l.bf16 %v899
        %v907 = vunpack.c.h.bf16 %v899
        %v908 = vld [vmem:[%s194 + $0x660] sm:$0xff]
        %v909 = vld [vmem:[%s194 + $0x668] sm:$0xff]
        %v910 = vld [vmem:[%s194 + $0x670] sm:$0xff]
        %v911 = vld [vmem:[%s194 + $0x678] sm:$0xff]
        %v912 = vunpack.c.l.bf16 %v908
        %v913 = vunpack.c.h.bf16 %v908
        %v914 = vunpack.c.l.bf16 %v909
        %v915 = vunpack.c.h.bf16 %v909
        %v916 = vunpack.c.l.bf16 %v910
        %v917 = vunpack.c.h.bf16 %v910
        %v918 = vunpack.c.l.bf16 %v911
        %v919 = vunpack.c.h.bf16 %v911
        %v920 = vmax.f32 %v900, 0.0
        %v921 = vmax.f32 %v901, 0.0
        %v922 = vmax.f32 %v902, 0.0
        %v923 = vmax.f32 %v903, 0.0
        %v924 = vmax.f32 %v904, 0.0
        %v925 = vmax.f32 %v905, 0.0
        %v926 = vmax.f32 %v906, 0.0
        %v927 = vmax.f32 %v907, 0.0
        %v928 = vmul.f32 %v900, %v912
        %v929 = vmul.f32 %v901, %v913
        %v930 = vmul.f32 %v902, %v914
        %v931 = vmul.f32 %v903, %v915
        %v932 = vmul.f32 %v904, %v916
        %v933 = vmul.f32 %v905, %v917
        %v934 = vmul.f32 %v906, %v918
        %v935 = vmul.f32 %v907, %v919
        %v936 = vsub.f32 %v920, %v928
        %v937 = vsub.f32 %v921, %v929
        %v938 = vsub.f32 %v922, %v930
        %v939 = vsub.f32 %v923, %v931
        %v940 = vsub.f32 %v924, %v932
        %v941 = vsub.f32 %v925, %v933
        %v942 = vsub.f32 %v926, %v934
        %v943 = vsub.f32 %v927, %v935
        %v944 = vand.u32 2147483647, %v900
        %v945 = vand.u32 2147483647, %v901
        %v946 = vand.u32 2147483647, %v902
        %v947 = vand.u32 2147483647, %v903
        %v948 = vand.u32 2147483647, %v904
        %v949 = vand.u32 2147483647, %v905
        %v950 = vand.u32 2147483647, %v906
        %v951 = vand.u32 2147483647, %v907
        %v952 = vsub.f32 0.0, %v944
        %v953 = vsub.f32 0.0, %v945
        %v954 = vsub.f32 0.0, %v946
        %v955 = vsub.f32 0.0, %v947
        %v956 = vsub.f32 0.0, %v948
        %v957 = vsub.f32 0.0, %v949
        %v958 = vsub.f32 0.0, %v950
        %v959 = vsub.f32 0.0, %v951
        %v960 = vmul.f32 %v952, 1.442695
        %v961 = vpow.pop %v960
        %v962 = vmul.f32 %v953, 1.442695
        %v963 = vpow.pop %v962
        %v964 = vmul.f32 %v954, 1.442695
        %v965 = vpow.pop %v964
        %v966 = vmul.f32 %v955, 1.442695
        %v967 = vpow.pop %v966
        %v968 = vmul.f32 %v956, 1.442695
        %v969 = vpow.pop %v968
        %v970 = vmul.f32 %v957, 1.442695
        %v971 = vpow.pop %v970
        %v972 = vmul.f32 %v958, 1.442695
        %v973 = vpow.pop %v972
        %v974 = vmul.f32 %v959, 1.442695
        %v975 = vpow.pop %v974
        %v976 = vadd.f32 %v961, 1.0
        %v977 = vadd.f32 %v963, 1.0
        %v978 = vadd.f32 %v965, 1.0
        %v979 = vadd.f32 %v967, 1.0
        %v980 = vadd.f32 %v969, 1.0
        %v981 = vadd.f32 %v971, 1.0
        %v982 = vadd.f32 %v973, 1.0
        %v983 = vadd.f32 %v975, 1.0
        %v984 = vlog2.pop %v976
        %v985 = vmul.f32 %v984, 0.6931472
        %v986 = vlog2.pop %v977
        %v987 = vmul.f32 %v986, 0.6931472
        %v988 = vlog2.pop %v978
        %v989 = vmul.f32 %v988, 0.6931472
        %v990 = vlog2.pop %v979
        %v991 = vmul.f32 %v990, 0.6931472
        %v992 = vlog2.pop %v980
        %v993 = vmul.f32 %v992, 0.6931472
        %v994 = vlog2.pop %v981
        %v995 = vmul.f32 %v994, 0.6931472
        %v996 = vlog2.pop %v982
        %v997 = vmul.f32 %v996, 0.6931472
        %v998 = vlog2.pop %v983
        %v999 = vmul.f32 %v998, 0.6931472
        %v1000 = vadd.f32 %v936, %v985
        %v1001 = vadd.f32 %v937, %v987
        %v1002 = vadd.f32 %v938, %v989
        %v1003 = vadd.f32 %v939, %v991
        %v1004 = vadd.f32 %v940, %v993
        %v1005 = vadd.f32 %v941, %v995
        %v1006 = vadd.f32 %v942, %v997
        %v1007 = vadd.f32 %v943, %v999
        %v1008 = vadd.f32 %v888, %v1000
        %v1009 = vadd.f32 %v889, %v1001
        %v1010 = vadd.f32 %v890, %v1002
        %v1011 = vadd.f32 %v891, %v1003
        %v1012 = vadd.f32 %v892, %v1004
        %v1013 = vadd.f32 %v893, %v1005
        %v1014 = vadd.f32 %v894, %v1006
        %v1015 = vadd.f32 %v895, %v1007
        %v1016 = vld [vmem:[%s194 + $0x60] sm:$0xff]
        %v1017 = vld [vmem:[%s194 + $0x68] sm:$0xff]
        %v1018 = vld [vmem:[%s194 + $0x70] sm:$0xff]
        %v1019 = vld [vmem:[%s194 + $0x78] sm:$0xff]
        %v1020 = vunpack.c.l.bf16 %v1016
        %v1021 = vunpack.c.h.bf16 %v1016
        %v1022 = vunpack.c.l.bf16 %v1017
        %v1023 = vunpack.c.h.bf16 %v1017
        %v1024 = vunpack.c.l.bf16 %v1018
        %v1025 = vunpack.c.h.bf16 %v1018
        %v1026 = vunpack.c.l.bf16 %v1019
        %v1027 = vunpack.c.h.bf16 %v1019
        %v1028 = vld [vmem:[%s194 + $0x680] sm:$0xff]
        %v1029 = vld [vmem:[%s194 + $0x688] sm:$0xff]
        %v1030 = vld [vmem:[%s194 + $0x690] sm:$0xff]
        %v1031 = vld [vmem:[%s194 + $0x698] sm:$0xff]
        %v1032 = vunpack.c.l.bf16 %v1028
        %v1033 = vunpack.c.h.bf16 %v1028
        %v1034 = vunpack.c.l.bf16 %v1029
        %v1035 = vunpack.c.h.bf16 %v1029
        %v1036 = vunpack.c.l.bf16 %v1030
        %v1037 = vunpack.c.h.bf16 %v1030
        %v1038 = vunpack.c.l.bf16 %v1031
        %v1039 = vunpack.c.h.bf16 %v1031
        %v1040 = vmax.f32 %v1020, 0.0
        %v1041 = vmax.f32 %v1021, 0.0
        %v1042 = vmax.f32 %v1022, 0.0
        %v1043 = vmax.f32 %v1023, 0.0
        %v1044 = vmax.f32 %v1024, 0.0
        %v1045 = vmax.f32 %v1025, 0.0
        %v1046 = vmax.f32 %v1026, 0.0
        %v1047 = vmax.f32 %v1027, 0.0
        %v1048 = vmul.f32 %v1020, %v1032
        %v1049 = vmul.f32 %v1021, %v1033
        %v1050 = vmul.f32 %v1022, %v1034
        %v1051 = vmul.f32 %v1023, %v1035
        %v1052 = vmul.f32 %v1024, %v1036
        %v1053 = vmul.f32 %v1025, %v1037
        %v1054 = vmul.f32 %v1026, %v1038
        %v1055 = vmul.f32 %v1027, %v1039
        %v1056 = vsub.f32 %v1040, %v1048
        %v1057 = vsub.f32 %v1041, %v1049
        %v1058 = vsub.f32 %v1042, %v1050
        %v1059 = vsub.f32 %v1043, %v1051
        %v1060 = vsub.f32 %v1044, %v1052
        %v1061 = vsub.f32 %v1045, %v1053
        %v1062 = vsub.f32 %v1046, %v1054
        %v1063 = vsub.f32 %v1047, %v1055
        %v1064 = vand.u32 2147483647, %v1020
        %v1065 = vand.u32 2147483647, %v1021
        %v1066 = vand.u32 2147483647, %v1022
        %v1067 = vand.u32 2147483647, %v1023
        %v1068 = vand.u32 2147483647, %v1024
        %v1069 = vand.u32 2147483647, %v1025
        %v1070 = vand.u32 2147483647, %v1026
        %v1071 = vand.u32 2147483647, %v1027
        %v1072 = vsub.f32 0.0, %v1064
        %v1073 = vsub.f32 0.0, %v1065
        %v1074 = vsub.f32 0.0, %v1066
        %v1075 = vsub.f32 0.0, %v1067
        %v1076 = vsub.f32 0.0, %v1068
        %v1077 = vsub.f32 0.0, %v1069
        %v1078 = vsub.f32 0.0, %v1070
        %v1079 = vsub.f32 0.0, %v1071
        %v1080 = vmul.f32 %v1072, 1.442695
        %v1081 = vpow.pop %v1080
        %v1082 = vmul.f32 %v1073, 1.442695
        %v1083 = vpow.pop %v1082
        %v1084 = vmul.f32 %v1074, 1.442695
        %v1085 = vpow.pop %v1084
        %v1086 = vmul.f32 %v1075, 1.442695
        %v1087 = vpow.pop %v1086
        %v1088 = vmul.f32 %v1076, 1.442695
        %v1089 = vpow.pop %v1088
        %v1090 = vmul.f32 %v1077, 1.442695
        %v1091 = vpow.pop %v1090
        %v1092 = vmul.f32 %v1078, 1.442695
        %v1093 = vpow.pop %v1092
        %v1094 = vmul.f32 %v1079, 1.442695
        %v1095 = vpow.pop %v1094
        %v1096 = vadd.f32 %v1081, 1.0
        %v1097 = vadd.f32 %v1083, 1.0
        %v1098 = vadd.f32 %v1085, 1.0
        %v1099 = vadd.f32 %v1087, 1.0
        %v1100 = vadd.f32 %v1089, 1.0
        %v1101 = vadd.f32 %v1091, 1.0
        %v1102 = vadd.f32 %v1093, 1.0
        %v1103 = vadd.f32 %v1095, 1.0
        %v1104 = vlog2.pop %v1096
        %v1105 = vmul.f32 %v1104, 0.6931472
        %v1106 = vlog2.pop %v1097
        %v1107 = vmul.f32 %v1106, 0.6931472
        %v1108 = vlog2.pop %v1098
        %v1109 = vmul.f32 %v1108, 0.6931472
        %v1110 = vlog2.pop %v1099
        %v1111 = vmul.f32 %v1110, 0.6931472
        %v1112 = vlog2.pop %v1100
        %v1113 = vmul.f32 %v1112, 0.6931472
        %v1114 = vlog2.pop %v1101
        %v1115 = vmul.f32 %v1114, 0.6931472
        %v1116 = vlog2.pop %v1102
        %v1117 = vmul.f32 %v1116, 0.6931472
        %v1118 = vlog2.pop %v1103
        %v1119 = vmul.f32 %v1118, 0.6931472
        %v1120 = vadd.f32 %v1056, %v1105
        %v1121 = vadd.f32 %v1057, %v1107
        %v1122 = vadd.f32 %v1058, %v1109
        %v1123 = vadd.f32 %v1059, %v1111
        %v1124 = vadd.f32 %v1060, %v1113
        %v1125 = vadd.f32 %v1061, %v1115
        %v1126 = vadd.f32 %v1062, %v1117
        %v1127 = vadd.f32 %v1063, %v1119
        %v1128 = vadd.f32 %v1008, %v1120
        %v1129 = vadd.f32 %v1009, %v1121
        %v1130 = vadd.f32 %v1010, %v1122
        %v1131 = vadd.f32 %v1011, %v1123
        %v1132 = vadd.f32 %v1012, %v1124
        %v1133 = vadd.f32 %v1013, %v1125
        %v1134 = vadd.f32 %v1014, %v1126
        %v1135 = vadd.f32 %v1015, %v1127
        %v1136 = vld [vmem:[%s194 + $0x80] sm:$0xff]
        %v1137 = vld [vmem:[%s194 + $0x88] sm:$0xff]
        %v1138 = vld [vmem:[%s194 + $0x90] sm:$0xff]
        %v1139 = vld [vmem:[%s194 + $0x98] sm:$0xff]
        %v1140 = vunpack.c.l.bf16 %v1136
        %v1141 = vunpack.c.h.bf16 %v1136
        %v1142 = vunpack.c.l.bf16 %v1137
        %v1143 = vunpack.c.h.bf16 %v1137
        %v1144 = vunpack.c.l.bf16 %v1138
        %v1145 = vunpack.c.h.bf16 %v1138
        %v1146 = vunpack.c.l.bf16 %v1139
        %v1147 = vunpack.c.h.bf16 %v1139
        %v1148 = vld [vmem:[%s194 + $0x6a0] sm:$0xff]
        %v1149 = vld [vmem:[%s194 + $0x6a8] sm:$0xff]
        %v1150 = vld [vmem:[%s194 + $0x6b0] sm:$0xff]
        %v1151 = vld [vmem:[%s194 + $0x6b8] sm:$0xff]
        %v1152 = vunpack.c.l.bf16 %v1148
        %v1153 = vunpack.c.h.bf16 %v1148
        %v1154 = vunpack.c.l.bf16 %v1149
        %v1155 = vunpack.c.h.bf16 %v1149
        %v1156 = vunpack.c.l.bf16 %v1150
        %v1157 = vunpack.c.h.bf16 %v1150
        %v1158 = vunpack.c.l.bf16 %v1151
        %v1159 = vunpack.c.h.bf16 %v1151
        %v1160 = vmax.f32 %v1140, 0.0
        %v1161 = vmax.f32 %v1141, 0.0
        %v1162 = vmax.f32 %v1142, 0.0
        %v1163 = vmax.f32 %v1143, 0.0
        %v1164 = vmax.f32 %v1144, 0.0
        %v1165 = vmax.f32 %v1145, 0.0
        %v1166 = vmax.f32 %v1146, 0.0
        %v1167 = vmax.f32 %v1147, 0.0
        %v1168 = vmul.f32 %v1140, %v1152
        %v1169 = vmul.f32 %v1141, %v1153
        %v1170 = vmul.f32 %v1142, %v1154
        %v1171 = vmul.f32 %v1143, %v1155
        %v1172 = vmul.f32 %v1144, %v1156
        %v1173 = vmul.f32 %v1145, %v1157
        %v1174 = vmul.f32 %v1146, %v1158
        %v1175 = vmul.f32 %v1147, %v1159
        %v1176 = vsub.f32 %v1160, %v1168
        %v1177 = vsub.f32 %v1161, %v1169
        %v1178 = vsub.f32 %v1162, %v1170
        %v1179 = vsub.f32 %v1163, %v1171
        %v1180 = vsub.f32 %v1164, %v1172
        %v1181 = vsub.f32 %v1165, %v1173
        %v1182 = vsub.f32 %v1166, %v1174
        %v1183 = vsub.f32 %v1167, %v1175
        %v1184 = vand.u32 2147483647, %v1140
        %v1185 = vand.u32 2147483647, %v1141
        %v1186 = vand.u32 2147483647, %v1142
        %v1187 = vand.u32 2147483647, %v1143
        %v1188 = vand.u32 2147483647, %v1144
        %v1189 = vand.u32 2147483647, %v1145
        %v1190 = vand.u32 2147483647, %v1146
        %v1191 = vand.u32 2147483647, %v1147
        %v1192 = vsub.f32 0.0, %v1184
        %v1193 = vsub.f32 0.0, %v1185
        %v1194 = vsub.f32 0.0, %v1186
        %v1195 = vsub.f32 0.0, %v1187
        %v1196 = vsub.f32 0.0, %v1188
        %v1197 = vsub.f32 0.0, %v1189
        %v1198 = vsub.f32 0.0, %v1190
        %v1199 = vsub.f32 0.0, %v1191
        %v1200 = vmul.f32 %v1192, 1.442695
        %v1201 = vpow.pop %v1200
        %v1202 = vmul.f32 %v1193, 1.442695
        %v1203 = vpow.pop %v1202
        %v1204 = vmul.f32 %v1194, 1.442695
        %v1205 = vpow.pop %v1204
        %v1206 = vmul.f32 %v1195, 1.442695
        %v1207 = vpow.pop %v1206
        %v1208 = vmul.f32 %v1196, 1.442695
        %v1209 = vpow.pop %v1208
        %v1210 = vmul.f32 %v1197, 1.442695
        %v1211 = vpow.pop %v1210
        %v1212 = vmul.f32 %v1198, 1.442695
        %v1213 = vpow.pop %v1212
        %v1214 = vmul.f32 %v1199, 1.442695
        %v1215 = vpow.pop %v1214
        %v1216 = vadd.f32 %v1201, 1.0
        %v1217 = vadd.f32 %v1203, 1.0
        %v1218 = vadd.f32 %v1205, 1.0
        %v1219 = vadd.f32 %v1207, 1.0
        %v1220 = vadd.f32 %v1209, 1.0
        %v1221 = vadd.f32 %v1211, 1.0
        %v1222 = vadd.f32 %v1213, 1.0
        %v1223 = vadd.f32 %v1215, 1.0
        %v1224 = vlog2.pop %v1216
        %v1225 = vmul.f32 %v1224, 0.6931472
        %v1226 = vlog2.pop %v1217
        %v1227 = vmul.f32 %v1226, 0.6931472
        %v1228 = vlog2.pop %v1218
        %v1229 = vmul.f32 %v1228, 0.6931472
        %v1230 = vlog2.pop %v1219
        %v1231 = vmul.f32 %v1230, 0.6931472
        %v1232 = vlog2.pop %v1220
        %v1233 = vmul.f32 %v1232, 0.6931472
        %v1234 = vlog2.pop %v1221
        %v1235 = vmul.f32 %v1234, 0.6931472
        %v1236 = vlog2.pop %v1222
        %v1237 = vmul.f32 %v1236, 0.6931472
        %v1238 = vlog2.pop %v1223
        %v1239 = vmul.f32 %v1238, 0.6931472
        %v1240 = vadd.f32 %v1176, %v1225
        %v1241 = vadd.f32 %v1177, %v1227
        %v1242 = vadd.f32 %v1178, %v1229
        %v1243 = vadd.f32 %v1179, %v1231
        %v1244 = vadd.f32 %v1180, %v1233
        %v1245 = vadd.f32 %v1181, %v1235
        %v1246 = vadd.f32 %v1182, %v1237
        %v1247 = vadd.f32 %v1183, %v1239
        %v1248 = vadd.f32 %v1128, %v1240
        %v1249 = vadd.f32 %v1129, %v1241
        %v1250 = vadd.f32 %v1130, %v1242
        %v1251 = vadd.f32 %v1131, %v1243
        %v1252 = vadd.f32 %v1132, %v1244
        %v1253 = vadd.f32 %v1133, %v1245
        %v1254 = vadd.f32 %v1134, %v1246
        %v1255 = vadd.f32 %v1135, %v1247
        %v1256 = vld [vmem:[%s194 + $0xa0] sm:$0xff]
        %v1257 = vld [vmem:[%s194 + $0xa8] sm:$0xff]
        %v1258 = vld [vmem:[%s194 + $0xb0] sm:$0xff]
        %v1259 = vld [vmem:[%s194 + $0xb8] sm:$0xff]
        %v1260 = vunpack.c.l.bf16 %v1256
        %v1261 = vunpack.c.h.bf16 %v1256
        %v1262 = vunpack.c.l.bf16 %v1257
        %v1263 = vunpack.c.h.bf16 %v1257
        %v1264 = vunpack.c.l.bf16 %v1258
        %v1265 = vunpack.c.h.bf16 %v1258
        %v1266 = vunpack.c.l.bf16 %v1259
        %v1267 = vunpack.c.h.bf16 %v1259
        %v1268 = vld [vmem:[%s194 + $0x6c0] sm:$0xff]
        %v1269 = vld [vmem:[%s194 + $0x6c8] sm:$0xff]
        %v1270 = vld [vmem:[%s194 + $0x6d0] sm:$0xff]
        %v1271 = vld [vmem:[%s194 + $0x6d8] sm:$0xff]
        %v1272 = vunpack.c.l.bf16 %v1268
        %v1273 = vunpack.c.h.bf16 %v1268
        %v1274 = vunpack.c.l.bf16 %v1269
        %v1275 = vunpack.c.h.bf16 %v1269
        %v1276 = vunpack.c.l.bf16 %v1270
        %v1277 = vunpack.c.h.bf16 %v1270
        %v1278 = vunpack.c.l.bf16 %v1271
        %v1279 = vunpack.c.h.bf16 %v1271
        %v1280 = vmax.f32 %v1260, 0.0
        %v1281 = vmax.f32 %v1261, 0.0
        %v1282 = vmax.f32 %v1262, 0.0
        %v1283 = vmax.f32 %v1263, 0.0
        %v1284 = vmax.f32 %v1264, 0.0
        %v1285 = vmax.f32 %v1265, 0.0
        %v1286 = vmax.f32 %v1266, 0.0
        %v1287 = vmax.f32 %v1267, 0.0
        %v1288 = vmul.f32 %v1260, %v1272
        %v1289 = vmul.f32 %v1261, %v1273
        %v1290 = vmul.f32 %v1262, %v1274
        %v1291 = vmul.f32 %v1263, %v1275
        %v1292 = vmul.f32 %v1264, %v1276
        %v1293 = vmul.f32 %v1265, %v1277
        %v1294 = vmul.f32 %v1266, %v1278
        %v1295 = vmul.f32 %v1267, %v1279
        %v1296 = vsub.f32 %v1280, %v1288
        %v1297 = vsub.f32 %v1281, %v1289
        %v1298 = vsub.f32 %v1282, %v1290
        %v1299 = vsub.f32 %v1283, %v1291
        %v1300 = vsub.f32 %v1284, %v1292
        %v1301 = vsub.f32 %v1285, %v1293
        %v1302 = vsub.f32 %v1286, %v1294
        %v1303 = vsub.f32 %v1287, %v1295
        %v1304 = vand.u32 2147483647, %v1260
        %v1305 = vand.u32 2147483647, %v1261
        %v1306 = vand.u32 2147483647, %v1262
        %v1307 = vand.u32 2147483647, %v1263
        %v1308 = vand.u32 2147483647, %v1264
        %v1309 = vand.u32 2147483647, %v1265
        %v1310 = vand.u32 2147483647, %v1266
        %v1311 = vand.u32 2147483647, %v1267
        %v1312 = vsub.f32 0.0, %v1304
        %v1313 = vsub.f32 0.0, %v1305
        %v1314 = vsub.f32 0.0, %v1306
        %v1315 = vsub.f32 0.0, %v1307
        %v1316 = vsub.f32 0.0, %v1308
        %v1317 = vsub.f32 0.0, %v1309
        %v1318 = vsub.f32 0.0, %v1310
        %v1319 = vsub.f32 0.0, %v1311
        %v1320 = vmul.f32 %v1312, 1.442695
        %v1321 = vpow.pop %v1320
        %v1322 = vmul.f32 %v1313, 1.442695
        %v1323 = vpow.pop %v1322
        %v1324 = vmul.f32 %v1314, 1.442695
        %v1325 = vpow.pop %v1324
        %v1326 = vmul.f32 %v1315, 1.442695
        %v1327 = vpow.pop %v1326
        %v1328 = vmul.f32 %v1316, 1.442695
        %v1329 = vpow.pop %v1328
        %v1330 = vmul.f32 %v1317, 1.442695
        %v1331 = vpow.pop %v1330
        %v1332 = vmul.f32 %v1318, 1.442695
        %v1333 = vpow.pop %v1332
        %v1334 = vmul.f32 %v1319, 1.442695
        %v1335 = vpow.pop %v1334
        %v1336 = vadd.f32 %v1321, 1.0
        %v1337 = vadd.f32 %v1323, 1.0
        %v1338 = vadd.f32 %v1325, 1.0
        %v1339 = vadd.f32 %v1327, 1.0
        %v1340 = vadd.f32 %v1329, 1.0
        %v1341 = vadd.f32 %v1331, 1.0
        %v1342 = vadd.f32 %v1333, 1.0
        %v1343 = vadd.f32 %v1335, 1.0
        %v1344 = vlog2.pop %v1336
        %v1345 = vmul.f32 %v1344, 0.6931472
        %v1346 = vlog2.pop %v1337
        %v1347 = vmul.f32 %v1346, 0.6931472
        %v1348 = vlog2.pop %v1338
        %v1349 = vmul.f32 %v1348, 0.6931472
        %v1350 = vlog2.pop %v1339
        %v1351 = vmul.f32 %v1350, 0.6931472
        %v1352 = vlog2.pop %v1340
        %v1353 = vmul.f32 %v1352, 0.6931472
        %v1354 = vlog2.pop %v1341
        %v1355 = vmul.f32 %v1354, 0.6931472
        %v1356 = vlog2.pop %v1342
        %v1357 = vmul.f32 %v1356, 0.6931472
        %v1358 = vlog2.pop %v1343
        %v1359 = vmul.f32 %v1358, 0.6931472
        %v1360 = vadd.f32 %v1296, %v1345
        %v1361 = vadd.f32 %v1297, %v1347
        %v1362 = vadd.f32 %v1298, %v1349
        %v1363 = vadd.f32 %v1299, %v1351
        %v1364 = vadd.f32 %v1300, %v1353
        %v1365 = vadd.f32 %v1301, %v1355
        %v1366 = vadd.f32 %v1302, %v1357
        %v1367 = vadd.f32 %v1303, %v1359
        %v1368 = vadd.f32 %v1248, %v1360
        %v1369 = vadd.f32 %v1249, %v1361
        %v1370 = vadd.f32 %v1250, %v1362
        %v1371 = vadd.f32 %v1251, %v1363
        %v1372 = vadd.f32 %v1252, %v1364
        %v1373 = vadd.f32 %v1253, %v1365
        %v1374 = vadd.f32 %v1254, %v1366
        %v1375 = vadd.f32 %v1255, %v1367
        %v1376 = vld [vmem:[%s194 + $0xc0] sm:$0xff]
        %v1377 = vld [vmem:[%s194 + $0xc8] sm:$0xff]
        %v1378 = vld [vmem:[%s194 + $0xd0] sm:$0xff]
        %v1379 = vld [vmem:[%s194 + $0xd8] sm:$0xff]
        %v1380 = vunpack.c.l.bf16 %v1376
        %v1381 = vunpack.c.h.bf16 %v1376
        %v1382 = vunpack.c.l.bf16 %v1377
        %v1383 = vunpack.c.h.bf16 %v1377
        %v1384 = vunpack.c.l.bf16 %v1378
        %v1385 = vunpack.c.h.bf16 %v1378
        %v1386 = vunpack.c.l.bf16 %v1379
        %v1387 = vunpack.c.h.bf16 %v1379
        %v1388 = vld [vmem:[%s194 + $0x6e0] sm:$0xff]
        %v1389 = vld [vmem:[%s194 + $0x6e8] sm:$0xff]
        %v1390 = vld [vmem:[%s194 + $0x6f0] sm:$0xff]
        %v1391 = vld [vmem:[%s194 + $0x6f8] sm:$0xff]
        %v1392 = vunpack.c.l.bf16 %v1388
        %v1393 = vunpack.c.h.bf16 %v1388
        %v1394 = vunpack.c.l.bf16 %v1389
        %v1395 = vunpack.c.h.bf16 %v1389
        %v1396 = vunpack.c.l.bf16 %v1390
        %v1397 = vunpack.c.h.bf16 %v1390
        %v1398 = vunpack.c.l.bf16 %v1391
        %v1399 = vunpack.c.h.bf16 %v1391
        %v1400 = vmax.f32 %v1380, 0.0
        %v1401 = vmax.f32 %v1381, 0.0
        %v1402 = vmax.f32 %v1382, 0.0
        %v1403 = vmax.f32 %v1383, 0.0
        %v1404 = vmax.f32 %v1384, 0.0
        %v1405 = vmax.f32 %v1385, 0.0
        %v1406 = vmax.f32 %v1386, 0.0
        %v1407 = vmax.f32 %v1387, 0.0
        %v1408 = vmul.f32 %v1380, %v1392
        %v1409 = vmul.f32 %v1381, %v1393
        %v1410 = vmul.f32 %v1382, %v1394
        %v1411 = vmul.f32 %v1383, %v1395
        %v1412 = vmul.f32 %v1384, %v1396
        %v1413 = vmul.f32 %v1385, %v1397
        %v1414 = vmul.f32 %v1386, %v1398
        %v1415 = vmul.f32 %v1387, %v1399
        %v1416 = vsub.f32 %v1400, %v1408
        %v1417 = vsub.f32 %v1401, %v1409
        %v1418 = vsub.f32 %v1402, %v1410
        %v1419 = vsub.f32 %v1403, %v1411
        %v1420 = vsub.f32 %v1404, %v1412
        %v1421 = vsub.f32 %v1405, %v1413
        %v1422 = vsub.f32 %v1406, %v1414
        %v1423 = vsub.f32 %v1407, %v1415
        %v1424 = vand.u32 2147483647, %v1380
        %v1425 = vand.u32 2147483647, %v1381
        %v1426 = vand.u32 2147483647, %v1382
        %v1427 = vand.u32 2147483647, %v1383
        %v1428 = vand.u32 2147483647, %v1384
        %v1429 = vand.u32 2147483647, %v1385
        %v1430 = vand.u32 2147483647, %v1386
        %v1431 = vand.u32 2147483647, %v1387
        %v1432 = vsub.f32 0.0, %v1424
        %v1433 = vsub.f32 0.0, %v1425
        %v1434 = vsub.f32 0.0, %v1426
        %v1435 = vsub.f32 0.0, %v1427
        %v1436 = vsub.f32 0.0, %v1428
        %v1437 = vsub.f32 0.0, %v1429
        %v1438 = vsub.f32 0.0, %v1430
        %v1439 = vsub.f32 0.0, %v1431
        %v1440 = vmul.f32 %v1432, 1.442695
        %v1441 = vpow.pop %v1440
        %v1442 = vmul.f32 %v1433, 1.442695
        %v1443 = vpow.pop %v1442
        %v1444 = vmul.f32 %v1434, 1.442695
        %v1445 = vpow.pop %v1444
        %v1446 = vmul.f32 %v1435, 1.442695
        %v1447 = vpow.pop %v1446
        %v1448 = vmul.f32 %v1436, 1.442695
        %v1449 = vpow.pop %v1448
        %v1450 = vmul.f32 %v1437, 1.442695
        %v1451 = vpow.pop %v1450
        %v1452 = vmul.f32 %v1438, 1.442695
        %v1453 = vpow.pop %v1452
        %v1454 = vmul.f32 %v1439, 1.442695
        %v1455 = vpow.pop %v1454
        %v1456 = vadd.f32 %v1441, 1.0
        %v1457 = vadd.f32 %v1443, 1.0
        %v1458 = vadd.f32 %v1445, 1.0
        %v1459 = vadd.f32 %v1447, 1.0
        %v1460 = vadd.f32 %v1449, 1.0
        %v1461 = vadd.f32 %v1451, 1.0
        %v1462 = vadd.f32 %v1453, 1.0
        %v1463 = vadd.f32 %v1455, 1.0
        %v1464 = vlog2.pop %v1456
        %v1465 = vmul.f32 %v1464, 0.6931472
        %v1466 = vlog2.pop %v1457
        %v1467 = vmul.f32 %v1466, 0.6931472
        %v1468 = vlog2.pop %v1458
        %v1469 = vmul.f32 %v1468, 0.6931472
        %v1470 = vlog2.pop %v1459
        %v1471 = vmul.f32 %v1470, 0.6931472
        %v1472 = vlog2.pop %v1460
        %v1473 = vmul.f32 %v1472, 0.6931472
        %v1474 = vlog2.pop %v1461
        %v1475 = vmul.f32 %v1474, 0.6931472
        %v1476 = vlog2.pop %v1462
        %v1477 = vmul.f32 %v1476, 0.6931472
        %v1478 = vlog2.pop %v1463
        %v1479 = vmul.f32 %v1478, 0.6931472
        %v1480 = vadd.f32 %v1416, %v1465
        %v1481 = vadd.f32 %v1417, %v1467
        %v1482 = vadd.f32 %v1418, %v1469
        %v1483 = vadd.f32 %v1419, %v1471
        %v1484 = vadd.f32 %v1420, %v1473
        %v1485 = vadd.f32 %v1421, %v1475
        %v1486 = vadd.f32 %v1422, %v1477
        %v1487 = vadd.f32 %v1423, %v1479
        %v1488 = vadd.f32 %v1368, %v1480
        %v1489 = vadd.f32 %v1369, %v1481
        %v1490 = vadd.f32 %v1370, %v1482
        %v1491 = vadd.f32 %v1371, %v1483
        %v1492 = vadd.f32 %v1372, %v1484
        %v1493 = vadd.f32 %v1373, %v1485
        %v1494 = vadd.f32 %v1374, %v1486
        %v1495 = vadd.f32 %v1375, %v1487
        %v1496 = vld [vmem:[%s194 + $0xe0] sm:$0xff]
        %v1497 = vld [vmem:[%s194 + $0xe8] sm:$0xff]
        %v1498 = vld [vmem:[%s194 + $0xf0] sm:$0xff]
        %v1499 = vld [vmem:[%s194 + $0xf8] sm:$0xff]
        %v1500 = vunpack.c.l.bf16 %v1496
        %v1501 = vunpack.c.h.bf16 %v1496
        %v1502 = vunpack.c.l.bf16 %v1497
        %v1503 = vunpack.c.h.bf16 %v1497
        %v1504 = vunpack.c.l.bf16 %v1498
        %v1505 = vunpack.c.h.bf16 %v1498
        %v1506 = vunpack.c.l.bf16 %v1499
        %v1507 = vunpack.c.h.bf16 %v1499
        %v1508 = vld [vmem:[%s194 + $0x700] sm:$0xff]
        %v1509 = vld [vmem:[%s194 + $0x708] sm:$0xff]
        %v1510 = vld [vmem:[%s194 + $0x710] sm:$0xff]
        %v1511 = vld [vmem:[%s194 + $0x718] sm:$0xff]
        %v1512 = vunpack.c.l.bf16 %v1508
        %v1513 = vunpack.c.h.bf16 %v1508
        %v1514 = vunpack.c.l.bf16 %v1509
        %v1515 = vunpack.c.h.bf16 %v1509
        %v1516 = vunpack.c.l.bf16 %v1510
        %v1517 = vunpack.c.h.bf16 %v1510
        %v1518 = vunpack.c.l.bf16 %v1511
        %v1519 = vunpack.c.h.bf16 %v1511
        %v1520 = vmax.f32 %v1500, 0.0
        %v1521 = vmax.f32 %v1501, 0.0
        %v1522 = vmax.f32 %v1502, 0.0
        %v1523 = vmax.f32 %v1503, 0.0
        %v1524 = vmax.f32 %v1504, 0.0
        %v1525 = vmax.f32 %v1505, 0.0
        %v1526 = vmax.f32 %v1506, 0.0
        %v1527 = vmax.f32 %v1507, 0.0
        %v1528 = vmul.f32 %v1500, %v1512
        %v1529 = vmul.f32 %v1501, %v1513
        %v1530 = vmul.f32 %v1502, %v1514
        %v1531 = vmul.f32 %v1503, %v1515
        %v1532 = vmul.f32 %v1504, %v1516
        %v1533 = vmul.f32 %v1505, %v1517
        %v1534 = vmul.f32 %v1506, %v1518
        %v1535 = vmul.f32 %v1507, %v1519
        %v1536 = vsub.f32 %v1520, %v1528
        %v1537 = vsub.f32 %v1521, %v1529
        %v1538 = vsub.f32 %v1522, %v1530
        %v1539 = vsub.f32 %v1523, %v1531
        %v1540 = vsub.f32 %v1524, %v1532
        %v1541 = vsub.f32 %v1525, %v1533
        %v1542 = vsub.f32 %v1526, %v1534
        %v1543 = vsub.f32 %v1527, %v1535
        %v1544 = vand.u32 2147483647, %v1500
        %v1545 = vand.u32 2147483647, %v1501
        %v1546 = vand.u32 2147483647, %v1502
        %v1547 = vand.u32 2147483647, %v1503
        %v1548 = vand.u32 2147483647, %v1504
        %v1549 = vand.u32 2147483647, %v1505
        %v1550 = vand.u32 2147483647, %v1506
        %v1551 = vand.u32 2147483647, %v1507
        %v1552 = vsub.f32 0.0, %v1544
        %v1553 = vsub.f32 0.0, %v1545
        %v1554 = vsub.f32 0.0, %v1546
        %v1555 = vsub.f32 0.0, %v1547
        %v1556 = vsub.f32 0.0, %v1548
        %v1557 = vsub.f32 0.0, %v1549
        %v1558 = vsub.f32 0.0, %v1550
        %v1559 = vsub.f32 0.0, %v1551
        %v1560 = vmul.f32 %v1552, 1.442695
        %v1561 = vpow.pop %v1560
        %v1562 = vmul.f32 %v1553, 1.442695
        %v1563 = vpow.pop %v1562
        %v1564 = vmul.f32 %v1554, 1.442695
        %v1565 = vpow.pop %v1564
        %v1566 = vmul.f32 %v1555, 1.442695
        %v1567 = vpow.pop %v1566
        %v1568 = vmul.f32 %v1556, 1.442695
        %v1569 = vpow.pop %v1568
        %v1570 = vmul.f32 %v1557, 1.442695
        %v1571 = vpow.pop %v1570
        %v1572 = vmul.f32 %v1558, 1.442695
        %v1573 = vpow.pop %v1572
        %v1574 = vmul.f32 %v1559, 1.442695
        %v1575 = vpow.pop %v1574
        %v1576 = vadd.f32 %v1561, 1.0
        %v1577 = vadd.f32 %v1563, 1.0
        %v1578 = vadd.f32 %v1565, 1.0
        %v1579 = vadd.f32 %v1567, 1.0
        %v1580 = vadd.f32 %v1569, 1.0
        %v1581 = vadd.f32 %v1571, 1.0
        %v1582 = vadd.f32 %v1573, 1.0
        %v1583 = vadd.f32 %v1575, 1.0
        %v1584 = vlog2.pop %v1576
        %v1585 = vmul.f32 %v1584, 0.6931472
        %v1586 = vlog2.pop %v1577
        %v1587 = vmul.f32 %v1586, 0.6931472
        %v1588 = vlog2.pop %v1578
        %v1589 = vmul.f32 %v1588, 0.6931472
        %v1590 = vlog2.pop %v1579
        %v1591 = vmul.f32 %v1590, 0.6931472
        %v1592 = vlog2.pop %v1580
        %v1593 = vmul.f32 %v1592, 0.6931472
        %v1594 = vlog2.pop %v1581
        %v1595 = vmul.f32 %v1594, 0.6931472
        %v1596 = vlog2.pop %v1582
        %v1597 = vmul.f32 %v1596, 0.6931472
        %v1598 = vlog2.pop %v1583
        %v1599 = vmul.f32 %v1598, 0.6931472
        %v1600 = vadd.f32 %v1536, %v1585
        %v1601 = vadd.f32 %v1537, %v1587
        %v1602 = vadd.f32 %v1538, %v1589
        %v1603 = vadd.f32 %v1539, %v1591
        %v1604 = vadd.f32 %v1540, %v1593
        %v1605 = vadd.f32 %v1541, %v1595
        %v1606 = vadd.f32 %v1542, %v1597
        %v1607 = vadd.f32 %v1543, %v1599
        %v1608 = vadd.f32 %v1488, %v1600
        %v1609 = vadd.f32 %v1489, %v1601
        %v1610 = vadd.f32 %v1490, %v1602
        %v1611 = vadd.f32 %v1491, %v1603
        %v1612 = vadd.f32 %v1492, %v1604
        %v1613 = vadd.f32 %v1493, %v1605
        %v1614 = vadd.f32 %v1494, %v1606
        %v1615 = vadd.f32 %v1495, %v1607
        %v1616 = vld [vmem:[%s194 + $0x100] sm:$0xff]
        %v1617 = vld [vmem:[%s194 + $0x108] sm:$0xff]
        %v1618 = vld [vmem:[%s194 + $0x110] sm:$0xff]
        %v1619 = vld [vmem:[%s194 + $0x118] sm:$0xff]
        %v1620 = vunpack.c.l.bf16 %v1616
        %v1621 = vunpack.c.h.bf16 %v1616
        %v1622 = vunpack.c.l.bf16 %v1617
        %v1623 = vunpack.c.h.bf16 %v1617
        %v1624 = vunpack.c.l.bf16 %v1618
        %v1625 = vunpack.c.h.bf16 %v1618
        %v1626 = vunpack.c.l.bf16 %v1619
        %v1627 = vunpack.c.h.bf16 %v1619
        %v1628 = vld [vmem:[%s194 + $0x720] sm:$0xff]
        %v1629 = vld [vmem:[%s194 + $0x728] sm:$0xff]
        %v1630 = vld [vmem:[%s194 + $0x730] sm:$0xff]
        %v1631 = vld [vmem:[%s194 + $0x738] sm:$0xff]
        %v1632 = vunpack.c.l.bf16 %v1628
        %v1633 = vunpack.c.h.bf16 %v1628
        %v1634 = vunpack.c.l.bf16 %v1629
        %v1635 = vunpack.c.h.bf16 %v1629
        %v1636 = vunpack.c.l.bf16 %v1630
        %v1637 = vunpack.c.h.bf16 %v1630
        %v1638 = vunpack.c.l.bf16 %v1631
        %v1639 = vunpack.c.h.bf16 %v1631
        %v1640 = vmax.f32 %v1620, 0.0
        %v1641 = vmax.f32 %v1621, 0.0
        %v1642 = vmax.f32 %v1622, 0.0
        %v1643 = vmax.f32 %v1623, 0.0
        %v1644 = vmax.f32 %v1624, 0.0
        %v1645 = vmax.f32 %v1625, 0.0
        %v1646 = vmax.f32 %v1626, 0.0
        %v1647 = vmax.f32 %v1627, 0.0
        %v1648 = vmul.f32 %v1620, %v1632
        %v1649 = vmul.f32 %v1621, %v1633
        %v1650 = vmul.f32 %v1622, %v1634
        %v1651 = vmul.f32 %v1623, %v1635
        %v1652 = vmul.f32 %v1624, %v1636
        %v1653 = vmul.f32 %v1625, %v1637
        %v1654 = vmul.f32 %v1626, %v1638
        %v1655 = vmul.f32 %v1627, %v1639
        %v1656 = vsub.f32 %v1640, %v1648
        %v1657 = vsub.f32 %v1641, %v1649
        %v1658 = vsub.f32 %v1642, %v1650
        %v1659 = vsub.f32 %v1643, %v1651
        %v1660 = vsub.f32 %v1644, %v1652
        %v1661 = vsub.f32 %v1645, %v1653
        %v1662 = vsub.f32 %v1646, %v1654
        %v1663 = vsub.f32 %v1647, %v1655
        %v1664 = vand.u32 2147483647, %v1620
        %v1665 = vand.u32 2147483647, %v1621
        %v1666 = vand.u32 2147483647, %v1622
        %v1667 = vand.u32 2147483647, %v1623
        %v1668 = vand.u32 2147483647, %v1624
        %v1669 = vand.u32 2147483647, %v1625
        %v1670 = vand.u32 2147483647, %v1626
        %v1671 = vand.u32 2147483647, %v1627
        %v1672 = vsub.f32 0.0, %v1664
        %v1673 = vsub.f32 0.0, %v1665
        %v1674 = vsub.f32 0.0, %v1666
        %v1675 = vsub.f32 0.0, %v1667
        %v1676 = vsub.f32 0.0, %v1668
        %v1677 = vsub.f32 0.0, %v1669
        %v1678 = vsub.f32 0.0, %v1670
        %v1679 = vsub.f32 0.0, %v1671
        %v1680 = vmul.f32 %v1672, 1.442695
        %v1681 = vpow.pop %v1680
        %v1682 = vmul.f32 %v1673, 1.442695
        %v1683 = vpow.pop %v1682
        %v1684 = vmul.f32 %v1674, 1.442695
        %v1685 = vpow.pop %v1684
        %v1686 = vmul.f32 %v1675, 1.442695
        %v1687 = vpow.pop %v1686
        %v1688 = vmul.f32 %v1676, 1.442695
        %v1689 = vpow.pop %v1688
        %v1690 = vmul.f32 %v1677, 1.442695
        %v1691 = vpow.pop %v1690
        %v1692 = vmul.f32 %v1678, 1.442695
        %v1693 = vpow.pop %v1692
        %v1694 = vmul.f32 %v1679, 1.442695
        %v1695 = vpow.pop %v1694
        %v1696 = vadd.f32 %v1681, 1.0
        %v1697 = vadd.f32 %v1683, 1.0
        %v1698 = vadd.f32 %v1685, 1.0
        %v1699 = vadd.f32 %v1687, 1.0
        %v1700 = vadd.f32 %v1689, 1.0
        %v1701 = vadd.f32 %v1691, 1.0
        %v1702 = vadd.f32 %v1693, 1.0
        %v1703 = vadd.f32 %v1695, 1.0
        %v1704 = vlog2.pop %v1696
        %v1705 = vmul.f32 %v1704, 0.6931472
        %v1706 = vlog2.pop %v1697
        %v1707 = vmul.f32 %v1706, 0.6931472
        %v1708 = vlog2.pop %v1698
        %v1709 = vmul.f32 %v1708, 0.6931472
        %v1710 = vlog2.pop %v1699
        %v1711 = vmul.f32 %v1710, 0.6931472
        %v1712 = vlog2.pop %v1700
        %v1713 = vmul.f32 %v1712, 0.6931472
        %v1714 = vlog2.pop %v1701
        %v1715 = vmul.f32 %v1714, 0.6931472
        %v1716 = vlog2.pop %v1702
        %v1717 = vmul.f32 %v1716, 0.6931472
        %v1718 = vlog2.pop %v1703
        %v1719 = vmul.f32 %v1718, 0.6931472
        %v1720 = vadd.f32 %v1656, %v1705
        %v1721 = vadd.f32 %v1657, %v1707
        %v1722 = vadd.f32 %v1658, %v1709
        %v1723 = vadd.f32 %v1659, %v1711
        %v1724 = vadd.f32 %v1660, %v1713
        %v1725 = vadd.f32 %v1661, %v1715
        %v1726 = vadd.f32 %v1662, %v1717
        %v1727 = vadd.f32 %v1663, %v1719
        %v1728 = vadd.f32 %v1608, %v1720
        %v1729 = vadd.f32 %v1609, %v1721
        %v1730 = vadd.f32 %v1610, %v1722
        %v1731 = vadd.f32 %v1611, %v1723
        %v1732 = vadd.f32 %v1612, %v1724
        %v1733 = vadd.f32 %v1613, %v1725
        %v1734 = vadd.f32 %v1614, %v1726
        %v1735 = vadd.f32 %v1615, %v1727
        %v1736 = vld [vmem:[%s194 + $0x120] sm:$0xff]
        %v1737 = vld [vmem:[%s194 + $0x128] sm:$0xff]
        %v1738 = vld [vmem:[%s194 + $0x130] sm:$0xff]
        %v1739 = vld [vmem:[%s194 + $0x138] sm:$0xff]
        %v1740 = vunpack.c.l.bf16 %v1736
        %v1741 = vunpack.c.h.bf16 %v1736
        %v1742 = vunpack.c.l.bf16 %v1737
        %v1743 = vunpack.c.h.bf16 %v1737
        %v1744 = vunpack.c.l.bf16 %v1738
        %v1745 = vunpack.c.h.bf16 %v1738
        %v1746 = vunpack.c.l.bf16 %v1739
        %v1747 = vunpack.c.h.bf16 %v1739
        %v1748 = vld [vmem:[%s194 + $0x740] sm:$0xff]
        %v1749 = vld [vmem:[%s194 + $0x748] sm:$0xff]
        %v1750 = vld [vmem:[%s194 + $0x750] sm:$0xff]
        %v1751 = vld [vmem:[%s194 + $0x758] sm:$0xff]
        %v1752 = vunpack.c.l.bf16 %v1748
        %v1753 = vunpack.c.h.bf16 %v1748
        %v1754 = vunpack.c.l.bf16 %v1749
        %v1755 = vunpack.c.h.bf16 %v1749
        %v1756 = vunpack.c.l.bf16 %v1750
        %v1757 = vunpack.c.h.bf16 %v1750
        %v1758 = vunpack.c.l.bf16 %v1751
        %v1759 = vunpack.c.h.bf16 %v1751
        %v1760 = vmax.f32 %v1740, 0.0
        %v1761 = vmax.f32 %v1741, 0.0
        %v1762 = vmax.f32 %v1742, 0.0
        %v1763 = vmax.f32 %v1743, 0.0
        %v1764 = vmax.f32 %v1744, 0.0
        %v1765 = vmax.f32 %v1745, 0.0
        %v1766 = vmax.f32 %v1746, 0.0
        %v1767 = vmax.f32 %v1747, 0.0
        %v1768 = vmul.f32 %v1740, %v1752
        %v1769 = vmul.f32 %v1741, %v1753
        %v1770 = vmul.f32 %v1742, %v1754
        %v1771 = vmul.f32 %v1743, %v1755
        %v1772 = vmul.f32 %v1744, %v1756
        %v1773 = vmul.f32 %v1745, %v1757
        %v1774 = vmul.f32 %v1746, %v1758
        %v1775 = vmul.f32 %v1747, %v1759
        %v1776 = vsub.f32 %v1760, %v1768
        %v1777 = vsub.f32 %v1761, %v1769
        %v1778 = vsub.f32 %v1762, %v1770
        %v1779 = vsub.f32 %v1763, %v1771
        %v1780 = vsub.f32 %v1764, %v1772
        %v1781 = vsub.f32 %v1765, %v1773
        %v1782 = vsub.f32 %v1766, %v1774
        %v1783 = vsub.f32 %v1767, %v1775
        %v1784 = vand.u32 2147483647, %v1740
        %v1785 = vand.u32 2147483647, %v1741
        %v1786 = vand.u32 2147483647, %v1742
        %v1787 = vand.u32 2147483647, %v1743
        %v1788 = vand.u32 2147483647, %v1744
        %v1789 = vand.u32 2147483647, %v1745
        %v1790 = vand.u32 2147483647, %v1746
        %v1791 = vand.u32 2147483647, %v1747
        %v1792 = vsub.f32 0.0, %v1784
        %v1793 = vsub.f32 0.0, %v1785
        %v1794 = vsub.f32 0.0, %v1786
        %v1795 = vsub.f32 0.0, %v1787
        %v1796 = vsub.f32 0.0, %v1788
        %v1797 = vsub.f32 0.0, %v1789
        %v1798 = vsub.f32 0.0, %v1790
        %v1799 = vsub.f32 0.0, %v1791
        %v1800 = vmul.f32 %v1792, 1.442695
        %v1801 = vpow.pop %v1800
        %v1802 = vmul.f32 %v1793, 1.442695
        %v1803 = vpow.pop %v1802
        %v1804 = vmul.f32 %v1794, 1.442695
        %v1805 = vpow.pop %v1804
        %v1806 = vmul.f32 %v1795, 1.442695
        %v1807 = vpow.pop %v1806
        %v1808 = vmul.f32 %v1796, 1.442695
        %v1809 = vpow.pop %v1808
        %v1810 = vmul.f32 %v1797, 1.442695
        %v1811 = vpow.pop %v1810
        %v1812 = vmul.f32 %v1798, 1.442695
        %v1813 = vpow.pop %v1812
        %v1814 = vmul.f32 %v1799, 1.442695
        %v1815 = vpow.pop %v1814
        %v1816 = vadd.f32 %v1801, 1.0
        %v1817 = vadd.f32 %v1803, 1.0
        %v1818 = vadd.f32 %v1805, 1.0
        %v1819 = vadd.f32 %v1807, 1.0
        %v1820 = vadd.f32 %v1809, 1.0
        %v1821 = vadd.f32 %v1811, 1.0
        %v1822 = vadd.f32 %v1813, 1.0
        %v1823 = vadd.f32 %v1815, 1.0
        %v1824 = vlog2.pop %v1816
        %v1825 = vmul.f32 %v1824, 0.6931472
        %v1826 = vlog2.pop %v1817
        %v1827 = vmul.f32 %v1826, 0.6931472
        %v1828 = vlog2.pop %v1818
        %v1829 = vmul.f32 %v1828, 0.6931472
        %v1830 = vlog2.pop %v1819
        %v1831 = vmul.f32 %v1830, 0.6931472
        %v1832 = vlog2.pop %v1820
        %v1833 = vmul.f32 %v1832, 0.6931472
        %v1834 = vlog2.pop %v1821
        %v1835 = vmul.f32 %v1834, 0.6931472
        %v1836 = vlog2.pop %v1822
        %v1837 = vmul.f32 %v1836, 0.6931472
        %v1838 = vlog2.pop %v1823
        %v1839 = vmul.f32 %v1838, 0.6931472
        %v1840 = vadd.f32 %v1776, %v1825
        %v1841 = vadd.f32 %v1777, %v1827
        %v1842 = vadd.f32 %v1778, %v1829
        %v1843 = vadd.f32 %v1779, %v1831
        %v1844 = vadd.f32 %v1780, %v1833
        %v1845 = vadd.f32 %v1781, %v1835
        %v1846 = vadd.f32 %v1782, %v1837
        %v1847 = vadd.f32 %v1783, %v1839
        %v1848 = vadd.f32 %v1728, %v1840
        %v1849 = vadd.f32 %v1729, %v1841
        %v1850 = vadd.f32 %v1730, %v1842
        %v1851 = vadd.f32 %v1731, %v1843
        %v1852 = vadd.f32 %v1732, %v1844
        %v1853 = vadd.f32 %v1733, %v1845
        %v1854 = vadd.f32 %v1734, %v1846
        %v1855 = vadd.f32 %v1735, %v1847
        %v1856 = vld [vmem:[%s194 + $0x140] sm:$0xff]
        %v1857 = vld [vmem:[%s194 + $0x148] sm:$0xff]
        %v1858 = vld [vmem:[%s194 + $0x150] sm:$0xff]
        %v1859 = vld [vmem:[%s194 + $0x158] sm:$0xff]
        %v1860 = vunpack.c.l.bf16 %v1856
        %v1861 = vunpack.c.h.bf16 %v1856
        %v1862 = vunpack.c.l.bf16 %v1857
        %v1863 = vunpack.c.h.bf16 %v1857
        %v1864 = vunpack.c.l.bf16 %v1858
        %v1865 = vunpack.c.h.bf16 %v1858
        %v1866 = vunpack.c.l.bf16 %v1859
        %v1867 = vunpack.c.h.bf16 %v1859
        %v1868 = vld [vmem:[%s194 + $0x760] sm:$0xff]
        %v1869 = vld [vmem:[%s194 + $0x768] sm:$0xff]
        %v1870 = vld [vmem:[%s194 + $0x770] sm:$0xff]
        %v1871 = vld [vmem:[%s194 + $0x778] sm:$0xff]
        %v1872 = vunpack.c.l.bf16 %v1868
        %v1873 = vunpack.c.h.bf16 %v1868
        %v1874 = vunpack.c.l.bf16 %v1869
        %v1875 = vunpack.c.h.bf16 %v1869
        %v1876 = vunpack.c.l.bf16 %v1870
        %v1877 = vunpack.c.h.bf16 %v1870
        %v1878 = vunpack.c.l.bf16 %v1871
        %v1879 = vunpack.c.h.bf16 %v1871
        %v1880 = vmax.f32 %v1860, 0.0
        %v1881 = vmax.f32 %v1861, 0.0
        %v1882 = vmax.f32 %v1862, 0.0
        %v1883 = vmax.f32 %v1863, 0.0
        %v1884 = vmax.f32 %v1864, 0.0
        %v1885 = vmax.f32 %v1865, 0.0
        %v1886 = vmax.f32 %v1866, 0.0
        %v1887 = vmax.f32 %v1867, 0.0
        %v1888 = vmul.f32 %v1860, %v1872
        %v1889 = vmul.f32 %v1861, %v1873
        %v1890 = vmul.f32 %v1862, %v1874
        %v1891 = vmul.f32 %v1863, %v1875
        %v1892 = vmul.f32 %v1864, %v1876
        %v1893 = vmul.f32 %v1865, %v1877
        %v1894 = vmul.f32 %v1866, %v1878
        %v1895 = vmul.f32 %v1867, %v1879
        %v1896 = vsub.f32 %v1880, %v1888
        %v1897 = vsub.f32 %v1881, %v1889
        %v1898 = vsub.f32 %v1882, %v1890
        %v1899 = vsub.f32 %v1883, %v1891
        %v1900 = vsub.f32 %v1884, %v1892
        %v1901 = vsub.f32 %v1885, %v1893
        %v1902 = vsub.f32 %v1886, %v1894
        %v1903 = vsub.f32 %v1887, %v1895
        %v1904 = vand.u32 2147483647, %v1860
        %v1905 = vand.u32 2147483647, %v1861
        %v1906 = vand.u32 2147483647, %v1862
        %v1907 = vand.u32 2147483647, %v1863
        %v1908 = vand.u32 2147483647, %v1864
        %v1909 = vand.u32 2147483647, %v1865
        %v1910 = vand.u32 2147483647, %v1866
        %v1911 = vand.u32 2147483647, %v1867
        %v1912 = vsub.f32 0.0, %v1904
        %v1913 = vsub.f32 0.0, %v1905
        %v1914 = vsub.f32 0.0, %v1906
        %v1915 = vsub.f32 0.0, %v1907
        %v1916 = vsub.f32 0.0, %v1908
        %v1917 = vsub.f32 0.0, %v1909
        %v1918 = vsub.f32 0.0, %v1910
        %v1919 = vsub.f32 0.0, %v1911
        %v1920 = vmul.f32 %v1912, 1.442695
        %v1921 = vpow.pop %v1920
        %v1922 = vmul.f32 %v1913, 1.442695
        %v1923 = vpow.pop %v1922
        %v1924 = vmul.f32 %v1914, 1.442695
        %v1925 = vpow.pop %v1924
        %v1926 = vmul.f32 %v1915, 1.442695
        %v1927 = vpow.pop %v1926
        %v1928 = vmul.f32 %v1916, 1.442695
        %v1929 = vpow.pop %v1928
        %v1930 = vmul.f32 %v1917, 1.442695
        %v1931 = vpow.pop %v1930
        %v1932 = vmul.f32 %v1918, 1.442695
        %v1933 = vpow.pop %v1932
        %v1934 = vmul.f32 %v1919, 1.442695
        %v1935 = vpow.pop %v1934
        %v1936 = vadd.f32 %v1921, 1.0
        %v1937 = vadd.f32 %v1923, 1.0
        %v1938 = vadd.f32 %v1925, 1.0
        %v1939 = vadd.f32 %v1927, 1.0
        %v1940 = vadd.f32 %v1929, 1.0
        %v1941 = vadd.f32 %v1931, 1.0
        %v1942 = vadd.f32 %v1933, 1.0
        %v1943 = vadd.f32 %v1935, 1.0
        %v1944 = vlog2.pop %v1936
        %v1945 = vmul.f32 %v1944, 0.6931472
        %v1946 = vlog2.pop %v1937
        %v1947 = vmul.f32 %v1946, 0.6931472
        %v1948 = vlog2.pop %v1938
        %v1949 = vmul.f32 %v1948, 0.6931472
        %v1950 = vlog2.pop %v1939
        %v1951 = vmul.f32 %v1950, 0.6931472
        %v1952 = vlog2.pop %v1940
        %v1953 = vmul.f32 %v1952, 0.6931472
        %v1954 = vlog2.pop %v1941
        %v1955 = vmul.f32 %v1954, 0.6931472
        %v1956 = vlog2.pop %v1942
        %v1957 = vmul.f32 %v1956, 0.6931472
        %v1958 = vlog2.pop %v1943
        %v1959 = vmul.f32 %v1958, 0.6931472
        %v1960 = vadd.f32 %v1896, %v1945
        %v1961 = vadd.f32 %v1897, %v1947
        %v1962 = vadd.f32 %v1898, %v1949
        %v1963 = vadd.f32 %v1899, %v1951
        %v1964 = vadd.f32 %v1900, %v1953
        %v1965 = vadd.f32 %v1901, %v1955
        %v1966 = vadd.f32 %v1902, %v1957
        %v1967 = vadd.f32 %v1903, %v1959
        %v1968 = vadd.f32 %v1848, %v1960
        %v1969 = vadd.f32 %v1849, %v1961
        %v1970 = vadd.f32 %v1850, %v1962
        %v1971 = vadd.f32 %v1851, %v1963
        %v1972 = vadd.f32 %v1852, %v1964
        %v1973 = vadd.f32 %v1853, %v1965
        %v1974 = vadd.f32 %v1854, %v1966
        %v1975 = vadd.f32 %v1855, %v1967
        %v1976 = vld [vmem:[%s194 + $0x160] sm:$0xff]
        %v1977 = vld [vmem:[%s194 + $0x168] sm:$0xff]
        %v1978 = vld [vmem:[%s194 + $0x170] sm:$0xff]
        %v1979 = vld [vmem:[%s194 + $0x178] sm:$0xff]
        %v1980 = vunpack.c.l.bf16 %v1976
        %v1981 = vunpack.c.h.bf16 %v1976
        %v1982 = vunpack.c.l.bf16 %v1977
        %v1983 = vunpack.c.h.bf16 %v1977
        %v1984 = vunpack.c.l.bf16 %v1978
        %v1985 = vunpack.c.h.bf16 %v1978
        %v1986 = vunpack.c.l.bf16 %v1979
        %v1987 = vunpack.c.h.bf16 %v1979
        %v1988 = vld [vmem:[%s194 + $0x780] sm:$0xff]
        %v1989 = vld [vmem:[%s194 + $0x788] sm:$0xff]
        %v1990 = vld [vmem:[%s194 + $0x790] sm:$0xff]
        %v1991 = vld [vmem:[%s194 + $0x798] sm:$0xff]
        %v1992 = vunpack.c.l.bf16 %v1988
        %v1993 = vunpack.c.h.bf16 %v1988
        %v1994 = vunpack.c.l.bf16 %v1989
        %v1995 = vunpack.c.h.bf16 %v1989
        %v1996 = vunpack.c.l.bf16 %v1990
        %v1997 = vunpack.c.h.bf16 %v1990
        %v1998 = vunpack.c.l.bf16 %v1991
        %v1999 = vunpack.c.h.bf16 %v1991
        %v2000 = vmax.f32 %v1980, 0.0
        %v2001 = vmax.f32 %v1981, 0.0
        %v2002 = vmax.f32 %v1982, 0.0
        %v2003 = vmax.f32 %v1983, 0.0
        %v2004 = vmax.f32 %v1984, 0.0
        %v2005 = vmax.f32 %v1985, 0.0
        %v2006 = vmax.f32 %v1986, 0.0
        %v2007 = vmax.f32 %v1987, 0.0
        %v2008 = vmul.f32 %v1980, %v1992
        %v2009 = vmul.f32 %v1981, %v1993
        %v2010 = vmul.f32 %v1982, %v1994
        %v2011 = vmul.f32 %v1983, %v1995
        %v2012 = vmul.f32 %v1984, %v1996
        %v2013 = vmul.f32 %v1985, %v1997
        %v2014 = vmul.f32 %v1986, %v1998
        %v2015 = vmul.f32 %v1987, %v1999
        %v2016 = vsub.f32 %v2000, %v2008
        %v2017 = vsub.f32 %v2001, %v2009
        %v2018 = vsub.f32 %v2002, %v2010
        %v2019 = vsub.f32 %v2003, %v2011
        %v2020 = vsub.f32 %v2004, %v2012
        %v2021 = vsub.f32 %v2005, %v2013
        %v2022 = vsub.f32 %v2006, %v2014
        %v2023 = vsub.f32 %v2007, %v2015
        %v2024 = vand.u32 2147483647, %v1980
        %v2025 = vand.u32 2147483647, %v1981
        %v2026 = vand.u32 2147483647, %v1982
        %v2027 = vand.u32 2147483647, %v1983
        %v2028 = vand.u32 2147483647, %v1984
        %v2029 = vand.u32 2147483647, %v1985
        %v2030 = vand.u32 2147483647, %v1986
        %v2031 = vand.u32 2147483647, %v1987
        %v2032 = vsub.f32 0.0, %v2024
        %v2033 = vsub.f32 0.0, %v2025
        %v2034 = vsub.f32 0.0, %v2026
        %v2035 = vsub.f32 0.0, %v2027
        %v2036 = vsub.f32 0.0, %v2028
        %v2037 = vsub.f32 0.0, %v2029
        %v2038 = vsub.f32 0.0, %v2030
        %v2039 = vsub.f32 0.0, %v2031
        %v2040 = vmul.f32 %v2032, 1.442695
        %v2041 = vpow.pop %v2040
        %v2042 = vmul.f32 %v2033, 1.442695
        %v2043 = vpow.pop %v2042
        %v2044 = vmul.f32 %v2034, 1.442695
        %v2045 = vpow.pop %v2044
        %v2046 = vmul.f32 %v2035, 1.442695
        %v2047 = vpow.pop %v2046
        %v2048 = vmul.f32 %v2036, 1.442695
        %v2049 = vpow.pop %v2048
        %v2050 = vmul.f32 %v2037, 1.442695
        %v2051 = vpow.pop %v2050
        %v2052 = vmul.f32 %v2038, 1.442695
        %v2053 = vpow.pop %v2052
        %v2054 = vmul.f32 %v2039, 1.442695
        %v2055 = vpow.pop %v2054
        %v2056 = vadd.f32 %v2041, 1.0
        %v2057 = vadd.f32 %v2043, 1.0
        %v2058 = vadd.f32 %v2045, 1.0
        %v2059 = vadd.f32 %v2047, 1.0
        %v2060 = vadd.f32 %v2049, 1.0
        %v2061 = vadd.f32 %v2051, 1.0
        %v2062 = vadd.f32 %v2053, 1.0
        %v2063 = vadd.f32 %v2055, 1.0
        %v2064 = vlog2.pop %v2056
        %v2065 = vmul.f32 %v2064, 0.6931472
        %v2066 = vlog2.pop %v2057
        %v2067 = vmul.f32 %v2066, 0.6931472
        %v2068 = vlog2.pop %v2058
        %v2069 = vmul.f32 %v2068, 0.6931472
        %v2070 = vlog2.pop %v2059
        %v2071 = vmul.f32 %v2070, 0.6931472
        %v2072 = vlog2.pop %v2060
        %v2073 = vmul.f32 %v2072, 0.6931472
        %v2074 = vlog2.pop %v2061
        %v2075 = vmul.f32 %v2074, 0.6931472
        %v2076 = vlog2.pop %v2062
        %v2077 = vmul.f32 %v2076, 0.6931472
        %v2078 = vlog2.pop %v2063
        %v2079 = vmul.f32 %v2078, 0.6931472
        %v2080 = vadd.f32 %v2016, %v2065
        %v2081 = vadd.f32 %v2017, %v2067
        %v2082 = vadd.f32 %v2018, %v2069
        %v2083 = vadd.f32 %v2019, %v2071
        %v2084 = vadd.f32 %v2020, %v2073
        %v2085 = vadd.f32 %v2021, %v2075
        %v2086 = vadd.f32 %v2022, %v2077
        %v2087 = vadd.f32 %v2023, %v2079
        %v2088 = vadd.f32 %v1968, %v2080
        %v2089 = vadd.f32 %v1969, %v2081
        %v2090 = vadd.f32 %v1970, %v2082
        %v2091 = vadd.f32 %v1971, %v2083
        %v2092 = vadd.f32 %v1972, %v2084
        %v2093 = vadd.f32 %v1973, %v2085
        %v2094 = vadd.f32 %v1974, %v2086
        %v2095 = vadd.f32 %v1975, %v2087
        %v2096 = vld [vmem:[%s194 + $0x180] sm:$0xff]
        %v2097 = vld [vmem:[%s194 + $0x188] sm:$0xff]
        %v2098 = vld [vmem:[%s194 + $0x190] sm:$0xff]
        %v2099 = vld [vmem:[%s194 + $0x198] sm:$0xff]
        %v2100 = vunpack.c.l.bf16 %v2096
        %v2101 = vunpack.c.h.bf16 %v2096
        %v2102 = vunpack.c.l.bf16 %v2097
        %v2103 = vunpack.c.h.bf16 %v2097
        %v2104 = vunpack.c.l.bf16 %v2098
        %v2105 = vunpack.c.h.bf16 %v2098
        %v2106 = vunpack.c.l.bf16 %v2099
        %v2107 = vunpack.c.h.bf16 %v2099
        %v2108 = vld [vmem:[%s194 + $0x7a0] sm:$0xff]
        %v2109 = vld [vmem:[%s194 + $0x7a8] sm:$0xff]
        %v2110 = vld [vmem:[%s194 + $0x7b0] sm:$0xff]
        %v2111 = vld [vmem:[%s194 + $0x7b8] sm:$0xff]
        %v2112 = vunpack.c.l.bf16 %v2108
        %v2113 = vunpack.c.h.bf16 %v2108
        %v2114 = vunpack.c.l.bf16 %v2109
        %v2115 = vunpack.c.h.bf16 %v2109
        %v2116 = vunpack.c.l.bf16 %v2110
        %v2117 = vunpack.c.h.bf16 %v2110
        %v2118 = vunpack.c.l.bf16 %v2111
        %v2119 = vunpack.c.h.bf16 %v2111
        %v2120 = vmax.f32 %v2100, 0.0
        %v2121 = vmax.f32 %v2101, 0.0
        %v2122 = vmax.f32 %v2102, 0.0
        %v2123 = vmax.f32 %v2103, 0.0
        %v2124 = vmax.f32 %v2104, 0.0
        %v2125 = vmax.f32 %v2105, 0.0
        %v2126 = vmax.f32 %v2106, 0.0
        %v2127 = vmax.f32 %v2107, 0.0
        %v2128 = vmul.f32 %v2100, %v2112
        %v2129 = vmul.f32 %v2101, %v2113
        %v2130 = vmul.f32 %v2102, %v2114
        %v2131 = vmul.f32 %v2103, %v2115
        %v2132 = vmul.f32 %v2104, %v2116
        %v2133 = vmul.f32 %v2105, %v2117
        %v2134 = vmul.f32 %v2106, %v2118
        %v2135 = vmul.f32 %v2107, %v2119
        %v2136 = vsub.f32 %v2120, %v2128
        %v2137 = vsub.f32 %v2121, %v2129
        %v2138 = vsub.f32 %v2122, %v2130
        %v2139 = vsub.f32 %v2123, %v2131
        %v2140 = vsub.f32 %v2124, %v2132
        %v2141 = vsub.f32 %v2125, %v2133
        %v2142 = vsub.f32 %v2126, %v2134
        %v2143 = vsub.f32 %v2127, %v2135
        %v2144 = vand.u32 2147483647, %v2100
        %v2145 = vand.u32 2147483647, %v2101
        %v2146 = vand.u32 2147483647, %v2102
        %v2147 = vand.u32 2147483647, %v2103
        %v2148 = vand.u32 2147483647, %v2104
        %v2149 = vand.u32 2147483647, %v2105
        %v2150 = vand.u32 2147483647, %v2106
        %v2151 = vand.u32 2147483647, %v2107
        %v2152 = vsub.f32 0.0, %v2144
        %v2153 = vsub.f32 0.0, %v2145
        %v2154 = vsub.f32 0.0, %v2146
        %v2155 = vsub.f32 0.0, %v2147
        %v2156 = vsub.f32 0.0, %v2148
        %v2157 = vsub.f32 0.0, %v2149
        %v2158 = vsub.f32 0.0, %v2150
        %v2159 = vsub.f32 0.0, %v2151
        %v2160 = vmul.f32 %v2152, 1.442695
        %v2161 = vpow.pop %v2160
        %v2162 = vmul.f32 %v2153, 1.442695
        %v2163 = vpow.pop %v2162
        %v2164 = vmul.f32 %v2154, 1.442695
        %v2165 = vpow.pop %v2164
        %v2166 = vmul.f32 %v2155, 1.442695
        %v2167 = vpow.pop %v2166
        %v2168 = vmul.f32 %v2156, 1.442695
        %v2169 = vpow.pop %v2168
        %v2170 = vmul.f32 %v2157, 1.442695
        %v2171 = vpow.pop %v2170
        %v2172 = vmul.f32 %v2158, 1.442695
        %v2173 = vpow.pop %v2172
        %v2174 = vmul.f32 %v2159, 1.442695
        %v2175 = vpow.pop %v2174
        %v2176 = vadd.f32 %v2161, 1.0
        %v2177 = vadd.f32 %v2163, 1.0
        %v2178 = vadd.f32 %v2165, 1.0
        %v2179 = vadd.f32 %v2167, 1.0
        %v2180 = vadd.f32 %v2169, 1.0
        %v2181 = vadd.f32 %v2171, 1.0
        %v2182 = vadd.f32 %v2173, 1.0
        %v2183 = vadd.f32 %v2175, 1.0
        %v2184 = vlog2.pop %v2176
        %v2185 = vmul.f32 %v2184, 0.6931472
        %v2186 = vlog2.pop %v2177
        %v2187 = vmul.f32 %v2186, 0.6931472
        %v2188 = vlog2.pop %v2178
        %v2189 = vmul.f32 %v2188, 0.6931472
        %v2190 = vlog2.pop %v2179
        %v2191 = vmul.f32 %v2190, 0.6931472
        %v2192 = vlog2.pop %v2180
        %v2193 = vmul.f32 %v2192, 0.6931472
        %v2194 = vlog2.pop %v2181
        %v2195 = vmul.f32 %v2194, 0.6931472
        %v2196 = vlog2.pop %v2182
        %v2197 = vmul.f32 %v2196, 0.6931472
        %v2198 = vlog2.pop %v2183
        %v2199 = vmul.f32 %v2198, 0.6931472
        %v2200 = vadd.f32 %v2136, %v2185
        %v2201 = vadd.f32 %v2137, %v2187
        %v2202 = vadd.f32 %v2138, %v2189
        %v2203 = vadd.f32 %v2139, %v2191
        %v2204 = vadd.f32 %v2140, %v2193
        %v2205 = vadd.f32 %v2141, %v2195
        %v2206 = vadd.f32 %v2142, %v2197
        %v2207 = vadd.f32 %v2143, %v2199
        %v2208 = vadd.f32 %v2088, %v2200
        %v2209 = vadd.f32 %v2089, %v2201
        %v2210 = vadd.f32 %v2090, %v2202
        %v2211 = vadd.f32 %v2091, %v2203
        %v2212 = vadd.f32 %v2092, %v2204
        %v2213 = vadd.f32 %v2093, %v2205
        %v2214 = vadd.f32 %v2094, %v2206
        %v2215 = vadd.f32 %v2095, %v2207
        %v2216 = vld [vmem:[%s194 + $0x1a0] sm:$0xff]
        %v2217 = vld [vmem:[%s194 + $0x1a8] sm:$0xff]
        %v2218 = vld [vmem:[%s194 + $0x1b0] sm:$0xff]
        %v2219 = vld [vmem:[%s194 + $0x1b8] sm:$0xff]
        %v2220 = vunpack.c.l.bf16 %v2216
        %v2221 = vunpack.c.h.bf16 %v2216
        %v2222 = vunpack.c.l.bf16 %v2217
        %v2223 = vunpack.c.h.bf16 %v2217
        %v2224 = vunpack.c.l.bf16 %v2218
        %v2225 = vunpack.c.h.bf16 %v2218
        %v2226 = vunpack.c.l.bf16 %v2219
        %v2227 = vunpack.c.h.bf16 %v2219
        %v2228 = vld [vmem:[%s194 + $0x7c0] sm:$0xff]
        %v2229 = vld [vmem:[%s194 + $0x7c8] sm:$0xff]
        %v2230 = vld [vmem:[%s194 + $0x7d0] sm:$0xff]
        %v2231 = vld [vmem:[%s194 + $0x7d8] sm:$0xff]
        %v2232 = vunpack.c.l.bf16 %v2228
        %v2233 = vunpack.c.h.bf16 %v2228
        %v2234 = vunpack.c.l.bf16 %v2229
        %v2235 = vunpack.c.h.bf16 %v2229
        %v2236 = vunpack.c.l.bf16 %v2230
        %v2237 = vunpack.c.h.bf16 %v2230
        %v2238 = vunpack.c.l.bf16 %v2231
        %v2239 = vunpack.c.h.bf16 %v2231
        %v2240 = vmax.f32 %v2220, 0.0
        %v2241 = vmax.f32 %v2221, 0.0
        %v2242 = vmax.f32 %v2222, 0.0
        %v2243 = vmax.f32 %v2223, 0.0
        %v2244 = vmax.f32 %v2224, 0.0
        %v2245 = vmax.f32 %v2225, 0.0
        %v2246 = vmax.f32 %v2226, 0.0
        %v2247 = vmax.f32 %v2227, 0.0
        %v2248 = vmul.f32 %v2220, %v2232
        %v2249 = vmul.f32 %v2221, %v2233
        %v2250 = vmul.f32 %v2222, %v2234
        %v2251 = vmul.f32 %v2223, %v2235
        %v2252 = vmul.f32 %v2224, %v2236
        %v2253 = vmul.f32 %v2225, %v2237
        %v2254 = vmul.f32 %v2226, %v2238
        %v2255 = vmul.f32 %v2227, %v2239
        %v2256 = vsub.f32 %v2240, %v2248
        %v2257 = vsub.f32 %v2241, %v2249
        %v2258 = vsub.f32 %v2242, %v2250
        %v2259 = vsub.f32 %v2243, %v2251
        %v2260 = vsub.f32 %v2244, %v2252
        %v2261 = vsub.f32 %v2245, %v2253
        %v2262 = vsub.f32 %v2246, %v2254
        %v2263 = vsub.f32 %v2247, %v2255
        %v2264 = vand.u32 2147483647, %v2220
        %v2265 = vand.u32 2147483647, %v2221
        %v2266 = vand.u32 2147483647, %v2222
        %v2267 = vand.u32 2147483647, %v2223
        %v2268 = vand.u32 2147483647, %v2224
        %v2269 = vand.u32 2147483647, %v2225
        %v2270 = vand.u32 2147483647, %v2226
        %v2271 = vand.u32 2147483647, %v2227
        %v2272 = vsub.f32 0.0, %v2264
        %v2273 = vsub.f32 0.0, %v2265
        %v2274 = vsub.f32 0.0, %v2266
        %v2275 = vsub.f32 0.0, %v2267
        %v2276 = vsub.f32 0.0, %v2268
        %v2277 = vsub.f32 0.0, %v2269
        %v2278 = vsub.f32 0.0, %v2270
        %v2279 = vsub.f32 0.0, %v2271
        %v2280 = vmul.f32 %v2272, 1.442695
        %v2281 = vpow.pop %v2280
        %v2282 = vmul.f32 %v2273, 1.442695
        %v2283 = vpow.pop %v2282
        %v2284 = vmul.f32 %v2274, 1.442695
        %v2285 = vpow.pop %v2284
        %v2286 = vmul.f32 %v2275, 1.442695
        %v2287 = vpow.pop %v2286
        %v2288 = vmul.f32 %v2276, 1.442695
        %v2289 = vpow.pop %v2288
        %v2290 = vmul.f32 %v2277, 1.442695
        %v2291 = vpow.pop %v2290
        %v2292 = vmul.f32 %v2278, 1.442695
        %v2293 = vpow.pop %v2292
        %v2294 = vmul.f32 %v2279, 1.442695
        %v2295 = vpow.pop %v2294
        %v2296 = vadd.f32 %v2281, 1.0
        %v2297 = vadd.f32 %v2283, 1.0
        %v2298 = vadd.f32 %v2285, 1.0
        %v2299 = vadd.f32 %v2287, 1.0
        %v2300 = vadd.f32 %v2289, 1.0
        %v2301 = vadd.f32 %v2291, 1.0
        %v2302 = vadd.f32 %v2293, 1.0
        %v2303 = vadd.f32 %v2295, 1.0
        %v2304 = vlog2.pop %v2296
        %v2305 = vmul.f32 %v2304, 0.6931472
        %v2306 = vlog2.pop %v2297
        %v2307 = vmul.f32 %v2306, 0.6931472
        %v2308 = vlog2.pop %v2298
        %v2309 = vmul.f32 %v2308, 0.6931472
        %v2310 = vlog2.pop %v2299
        %v2311 = vmul.f32 %v2310, 0.6931472
        %v2312 = vlog2.pop %v2300
        %v2313 = vmul.f32 %v2312, 0.6931472
        %v2314 = vlog2.pop %v2301
        %v2315 = vmul.f32 %v2314, 0.6931472
        %v2316 = vlog2.pop %v2302
        %v2317 = vmul.f32 %v2316, 0.6931472
        %v2318 = vlog2.pop %v2303
        %v2319 = vmul.f32 %v2318, 0.6931472
        %v2320 = vadd.f32 %v2256, %v2305
        %v2321 = vadd.f32 %v2257, %v2307
        %v2322 = vadd.f32 %v2258, %v2309
        %v2323 = vadd.f32 %v2259, %v2311
        %v2324 = vadd.f32 %v2260, %v2313
        %v2325 = vadd.f32 %v2261, %v2315
        %v2326 = vadd.f32 %v2262, %v2317
        %v2327 = vadd.f32 %v2263, %v2319
        %v2328 = vadd.f32 %v2208, %v2320
        %v2329 = vadd.f32 %v2209, %v2321
        %v2330 = vadd.f32 %v2210, %v2322
        %v2331 = vadd.f32 %v2211, %v2323
        %v2332 = vadd.f32 %v2212, %v2324
        %v2333 = vadd.f32 %v2213, %v2325
        %v2334 = vadd.f32 %v2214, %v2326
        %v2335 = vadd.f32 %v2215, %v2327
        %v2336 = vld [vmem:[%s194 + $0x1c0] sm:$0xff]
        %v2337 = vld [vmem:[%s194 + $0x1c8] sm:$0xff]
        %v2338 = vld [vmem:[%s194 + $0x1d0] sm:$0xff]
        %v2339 = vld [vmem:[%s194 + $0x1d8] sm:$0xff]
        %v2340 = vunpack.c.l.bf16 %v2336
        %v2341 = vunpack.c.h.bf16 %v2336
        %v2342 = vunpack.c.l.bf16 %v2337
        %v2343 = vunpack.c.h.bf16 %v2337
        %v2344 = vunpack.c.l.bf16 %v2338
        %v2345 = vunpack.c.h.bf16 %v2338
        %v2346 = vunpack.c.l.bf16 %v2339
        %v2347 = vunpack.c.h.bf16 %v2339
        %v2348 = vld [vmem:[%s194 + $0x7e0] sm:$0xff]
        %v2349 = vld [vmem:[%s194 + $0x7e8] sm:$0xff]
        %v2350 = vld [vmem:[%s194 + $0x7f0] sm:$0xff]
        %v2351 = vld [vmem:[%s194 + $0x7f8] sm:$0xff]
        %v2352 = vunpack.c.l.bf16 %v2348
        %v2353 = vunpack.c.h.bf16 %v2348
        %v2354 = vunpack.c.l.bf16 %v2349
        %v2355 = vunpack.c.h.bf16 %v2349
        %v2356 = vunpack.c.l.bf16 %v2350
        %v2357 = vunpack.c.h.bf16 %v2350
        %v2358 = vunpack.c.l.bf16 %v2351
        %v2359 = vunpack.c.h.bf16 %v2351
        %v2360 = vmax.f32 %v2340, 0.0
        %v2361 = vmax.f32 %v2341, 0.0
        %v2362 = vmax.f32 %v2342, 0.0
        %v2363 = vmax.f32 %v2343, 0.0
        %v2364 = vmax.f32 %v2344, 0.0
        %v2365 = vmax.f32 %v2345, 0.0
        %v2366 = vmax.f32 %v2346, 0.0
        %v2367 = vmax.f32 %v2347, 0.0
        %v2368 = vmul.f32 %v2340, %v2352
        %v2369 = vmul.f32 %v2341, %v2353
        %v2370 = vmul.f32 %v2342, %v2354
        %v2371 = vmul.f32 %v2343, %v2355
        %v2372 = vmul.f32 %v2344, %v2356
        %v2373 = vmul.f32 %v2345, %v2357
        %v2374 = vmul.f32 %v2346, %v2358
        %v2375 = vmul.f32 %v2347, %v2359
        %v2376 = vsub.f32 %v2360, %v2368
        %v2377 = vsub.f32 %v2361, %v2369
        %v2378 = vsub.f32 %v2362, %v2370
        %v2379 = vsub.f32 %v2363, %v2371
        %v2380 = vsub.f32 %v2364, %v2372
        %v2381 = vsub.f32 %v2365, %v2373
        %v2382 = vsub.f32 %v2366, %v2374
        %v2383 = vsub.f32 %v2367, %v2375
        %v2384 = vand.u32 2147483647, %v2340
        %v2385 = vand.u32 2147483647, %v2341
        %v2386 = vand.u32 2147483647, %v2342
        %v2387 = vand.u32 2147483647, %v2343
        %v2388 = vand.u32 2147483647, %v2344
        %v2389 = vand.u32 2147483647, %v2345
        %v2390 = vand.u32 2147483647, %v2346
        %v2391 = vand.u32 2147483647, %v2347
        %v2392 = vsub.f32 0.0, %v2384
        %v2393 = vsub.f32 0.0, %v2385
        %v2394 = vsub.f32 0.0, %v2386
        %v2395 = vsub.f32 0.0, %v2387
        %v2396 = vsub.f32 0.0, %v2388
        %v2397 = vsub.f32 0.0, %v2389
        %v2398 = vsub.f32 0.0, %v2390
        %v2399 = vsub.f32 0.0, %v2391
        %v2400 = vmul.f32 %v2392, 1.442695
        %v2401 = vpow.pop %v2400
        %v2402 = vmul.f32 %v2393, 1.442695
        %v2403 = vpow.pop %v2402
        %v2404 = vmul.f32 %v2394, 1.442695
        %v2405 = vpow.pop %v2404
        %v2406 = vmul.f32 %v2395, 1.442695
        %v2407 = vpow.pop %v2406
        %v2408 = vmul.f32 %v2396, 1.442695
        %v2409 = vpow.pop %v2408
        %v2410 = vmul.f32 %v2397, 1.442695
        %v2411 = vpow.pop %v2410
        %v2412 = vmul.f32 %v2398, 1.442695
        %v2413 = vpow.pop %v2412
        %v2414 = vmul.f32 %v2399, 1.442695
        %v2415 = vpow.pop %v2414
        %v2416 = vadd.f32 %v2401, 1.0
        %v2417 = vadd.f32 %v2403, 1.0
        %v2418 = vadd.f32 %v2405, 1.0
        %v2419 = vadd.f32 %v2407, 1.0
        %v2420 = vadd.f32 %v2409, 1.0
        %v2421 = vadd.f32 %v2411, 1.0
        %v2422 = vadd.f32 %v2413, 1.0
        %v2423 = vadd.f32 %v2415, 1.0
        %v2424 = vlog2.pop %v2416
        %v2425 = vmul.f32 %v2424, 0.6931472
        %v2426 = vlog2.pop %v2417
        %v2427 = vmul.f32 %v2426, 0.6931472
        %v2428 = vlog2.pop %v2418
        %v2429 = vmul.f32 %v2428, 0.6931472
        %v2430 = vlog2.pop %v2419
        %v2431 = vmul.f32 %v2430, 0.6931472
        %v2432 = vlog2.pop %v2420
        %v2433 = vmul.f32 %v2432, 0.6931472
        %v2434 = vlog2.pop %v2421
        %v2435 = vmul.f32 %v2434, 0.6931472
        %v2436 = vlog2.pop %v2422
        %v2437 = vmul.f32 %v2436, 0.6931472
        %v2438 = vlog2.pop %v2423
        %v2439 = vmul.f32 %v2438, 0.6931472
        %v2440 = vadd.f32 %v2376, %v2425
        %v2441 = vadd.f32 %v2377, %v2427
        %v2442 = vadd.f32 %v2378, %v2429
        %v2443 = vadd.f32 %v2379, %v2431
        %v2444 = vadd.f32 %v2380, %v2433
        %v2445 = vadd.f32 %v2381, %v2435
        %v2446 = vadd.f32 %v2382, %v2437
        %v2447 = vadd.f32 %v2383, %v2439
        %v2448 = vadd.f32 %v2328, %v2440
        %v2449 = vadd.f32 %v2329, %v2441
        %v2450 = vadd.f32 %v2330, %v2442
        %v2451 = vadd.f32 %v2331, %v2443
        %v2452 = vadd.f32 %v2332, %v2444
        %v2453 = vadd.f32 %v2333, %v2445
        %v2454 = vadd.f32 %v2334, %v2446
        %v2455 = vadd.f32 %v2335, %v2447
        %v2456 = vld [vmem:[%s194 + $0x1e0] sm:$0xff]
        %v2457 = vld [vmem:[%s194 + $0x1e8] sm:$0xff]
        %v2458 = vld [vmem:[%s194 + $0x1f0] sm:$0xff]
        %v2459 = vld [vmem:[%s194 + $0x1f8] sm:$0xff]
        %v2460 = vunpack.c.l.bf16 %v2456
        %v2461 = vunpack.c.h.bf16 %v2456
        %v2462 = vunpack.c.l.bf16 %v2457
        %v2463 = vunpack.c.h.bf16 %v2457
        %v2464 = vunpack.c.l.bf16 %v2458
        %v2465 = vunpack.c.h.bf16 %v2458
        %v2466 = vunpack.c.l.bf16 %v2459
        %v2467 = vunpack.c.h.bf16 %v2459
        %v2468 = vld [vmem:[%s194 + $0x800] sm:$0xff]
        %v2469 = vld [vmem:[%s194 + $0x808] sm:$0xff]
        %v2470 = vld [vmem:[%s194 + $0x810] sm:$0xff]
        %v2471 = vld [vmem:[%s194 + $0x818] sm:$0xff]
        %v2472 = vunpack.c.l.bf16 %v2468
        %v2473 = vunpack.c.h.bf16 %v2468
        %v2474 = vunpack.c.l.bf16 %v2469
        %v2475 = vunpack.c.h.bf16 %v2469
        %v2476 = vunpack.c.l.bf16 %v2470
        %v2477 = vunpack.c.h.bf16 %v2470
        %v2478 = vunpack.c.l.bf16 %v2471
        %v2479 = vunpack.c.h.bf16 %v2471
        %v2480 = vmax.f32 %v2460, 0.0
        %v2481 = vmax.f32 %v2461, 0.0
        %v2482 = vmax.f32 %v2462, 0.0
        %v2483 = vmax.f32 %v2463, 0.0
        %v2484 = vmax.f32 %v2464, 0.0
        %v2485 = vmax.f32 %v2465, 0.0
        %v2486 = vmax.f32 %v2466, 0.0
        %v2487 = vmax.f32 %v2467, 0.0
        %v2488 = vmul.f32 %v2460, %v2472
        %v2489 = vmul.f32 %v2461, %v2473
        %v2490 = vmul.f32 %v2462, %v2474
        %v2491 = vmul.f32 %v2463, %v2475
        %v2492 = vmul.f32 %v2464, %v2476
        %v2493 = vmul.f32 %v2465, %v2477
        %v2494 = vmul.f32 %v2466, %v2478
        %v2495 = vmul.f32 %v2467, %v2479
        %v2496 = vsub.f32 %v2480, %v2488
        %v2497 = vsub.f32 %v2481, %v2489
        %v2498 = vsub.f32 %v2482, %v2490
        %v2499 = vsub.f32 %v2483, %v2491
        %v2500 = vsub.f32 %v2484, %v2492
        %v2501 = vsub.f32 %v2485, %v2493
        %v2502 = vsub.f32 %v2486, %v2494
        %v2503 = vsub.f32 %v2487, %v2495
        %v2504 = vand.u32 2147483647, %v2460
        %v2505 = vand.u32 2147483647, %v2461
        %v2506 = vand.u32 2147483647, %v2462
        %v2507 = vand.u32 2147483647, %v2463
        %v2508 = vand.u32 2147483647, %v2464
        %v2509 = vand.u32 2147483647, %v2465
        %v2510 = vand.u32 2147483647, %v2466
        %v2511 = vand.u32 2147483647, %v2467
        %v2512 = vsub.f32 0.0, %v2504
        %v2513 = vsub.f32 0.0, %v2505
        %v2514 = vsub.f32 0.0, %v2506
        %v2515 = vsub.f32 0.0, %v2507
        %v2516 = vsub.f32 0.0, %v2508
        %v2517 = vsub.f32 0.0, %v2509
        %v2518 = vsub.f32 0.0, %v2510
        %v2519 = vsub.f32 0.0, %v2511
        %v2520 = vmul.f32 %v2512, 1.442695
        %v2521 = vpow.pop %v2520
        %v2522 = vmul.f32 %v2513, 1.442695
        %v2523 = vpow.pop %v2522
        %v2524 = vmul.f32 %v2514, 1.442695
        %v2525 = vpow.pop %v2524
        %v2526 = vmul.f32 %v2515, 1.442695
        %v2527 = vpow.pop %v2526
        %v2528 = vmul.f32 %v2516, 1.442695
        %v2529 = vpow.pop %v2528
        %v2530 = vmul.f32 %v2517, 1.442695
        %v2531 = vpow.pop %v2530
        %v2532 = vmul.f32 %v2518, 1.442695
        %v2533 = vpow.pop %v2532
        %v2534 = vmul.f32 %v2519, 1.442695
        %v2535 = vpow.pop %v2534
        %v2536 = vadd.f32 %v2521, 1.0
        %v2537 = vadd.f32 %v2523, 1.0
        %v2538 = vadd.f32 %v2525, 1.0
        %v2539 = vadd.f32 %v2527, 1.0
        %v2540 = vadd.f32 %v2529, 1.0
        %v2541 = vadd.f32 %v2531, 1.0
        %v2542 = vadd.f32 %v2533, 1.0
        %v2543 = vadd.f32 %v2535, 1.0
        %v2544 = vlog2.pop %v2536
        %v2545 = vmul.f32 %v2544, 0.6931472
        %v2546 = vlog2.pop %v2537
        %v2547 = vmul.f32 %v2546, 0.6931472
        %v2548 = vlog2.pop %v2538
        %v2549 = vmul.f32 %v2548, 0.6931472
        %v2550 = vlog2.pop %v2539
        %v2551 = vmul.f32 %v2550, 0.6931472
        %v2552 = vlog2.pop %v2540
        %v2553 = vmul.f32 %v2552, 0.6931472
        %v2554 = vlog2.pop %v2541
        %v2555 = vmul.f32 %v2554, 0.6931472
        %v2556 = vlog2.pop %v2542
        %v2557 = vmul.f32 %v2556, 0.6931472
        %v2558 = vlog2.pop %v2543
        %v2559 = vmul.f32 %v2558, 0.6931472
        %v2560 = vadd.f32 %v2496, %v2545
        %v2561 = vadd.f32 %v2497, %v2547
        %v2562 = vadd.f32 %v2498, %v2549
        %v2563 = vadd.f32 %v2499, %v2551
        %v2564 = vadd.f32 %v2500, %v2553
        %v2565 = vadd.f32 %v2501, %v2555
        %v2566 = vadd.f32 %v2502, %v2557
        %v2567 = vadd.f32 %v2503, %v2559
        %v2568 = vadd.f32 %v2448, %v2560
        %v2569 = vadd.f32 %v2449, %v2561
        %v2570 = vadd.f32 %v2450, %v2562
        %v2571 = vadd.f32 %v2451, %v2563
        %v2572 = vadd.f32 %v2452, %v2564
        %v2573 = vadd.f32 %v2453, %v2565
        %v2574 = vadd.f32 %v2454, %v2566
        %v2575 = vadd.f32 %v2455, %v2567
        %v2576 = vld [vmem:[%s194 + $0x200] sm:$0xff]
        %v2577 = vld [vmem:[%s194 + $0x208] sm:$0xff]
        %v2578 = vld [vmem:[%s194 + $0x210] sm:$0xff]
        %v2579 = vld [vmem:[%s194 + $0x218] sm:$0xff]
        %v2580 = vunpack.c.l.bf16 %v2576
        %v2581 = vunpack.c.h.bf16 %v2576
        %v2582 = vunpack.c.l.bf16 %v2577
        %v2583 = vunpack.c.h.bf16 %v2577
        %v2584 = vunpack.c.l.bf16 %v2578
        %v2585 = vunpack.c.h.bf16 %v2578
        %v2586 = vunpack.c.l.bf16 %v2579
        %v2587 = vunpack.c.h.bf16 %v2579
        %v2588 = vld [vmem:[%s194 + $0x820] sm:$0xff]
        %v2589 = vld [vmem:[%s194 + $0x828] sm:$0xff]
        %v2590 = vld [vmem:[%s194 + $0x830] sm:$0xff]
        %v2591 = vld [vmem:[%s194 + $0x838] sm:$0xff]
        %v2592 = vunpack.c.l.bf16 %v2588
        %v2593 = vunpack.c.h.bf16 %v2588
        %v2594 = vunpack.c.l.bf16 %v2589
        %v2595 = vunpack.c.h.bf16 %v2589
        %v2596 = vunpack.c.l.bf16 %v2590
        %v2597 = vunpack.c.h.bf16 %v2590
        %v2598 = vunpack.c.l.bf16 %v2591
        %v2599 = vunpack.c.h.bf16 %v2591
        %v2600 = vmax.f32 %v2580, 0.0
        %v2601 = vmax.f32 %v2581, 0.0
        %v2602 = vmax.f32 %v2582, 0.0
        %v2603 = vmax.f32 %v2583, 0.0
        %v2604 = vmax.f32 %v2584, 0.0
        %v2605 = vmax.f32 %v2585, 0.0
        %v2606 = vmax.f32 %v2586, 0.0
        %v2607 = vmax.f32 %v2587, 0.0
        %v2608 = vmul.f32 %v2580, %v2592
        %v2609 = vmul.f32 %v2581, %v2593
        %v2610 = vmul.f32 %v2582, %v2594
        %v2611 = vmul.f32 %v2583, %v2595
        %v2612 = vmul.f32 %v2584, %v2596
        %v2613 = vmul.f32 %v2585, %v2597
        %v2614 = vmul.f32 %v2586, %v2598
        %v2615 = vmul.f32 %v2587, %v2599
        %v2616 = vsub.f32 %v2600, %v2608
        %v2617 = vsub.f32 %v2601, %v2609
        %v2618 = vsub.f32 %v2602, %v2610
        %v2619 = vsub.f32 %v2603, %v2611
        %v2620 = vsub.f32 %v2604, %v2612
        %v2621 = vsub.f32 %v2605, %v2613
        %v2622 = vsub.f32 %v2606, %v2614
        %v2623 = vsub.f32 %v2607, %v2615
        %v2624 = vand.u32 2147483647, %v2580
        %v2625 = vand.u32 2147483647, %v2581
        %v2626 = vand.u32 2147483647, %v2582
        %v2627 = vand.u32 2147483647, %v2583
        %v2628 = vand.u32 2147483647, %v2584
        %v2629 = vand.u32 2147483647, %v2585
        %v2630 = vand.u32 2147483647, %v2586
        %v2631 = vand.u32 2147483647, %v2587
        %v2632 = vsub.f32 0.0, %v2624
        %v2633 = vsub.f32 0.0, %v2625
        %v2634 = vsub.f32 0.0, %v2626
        %v2635 = vsub.f32 0.0, %v2627
        %v2636 = vsub.f32 0.0, %v2628
        %v2637 = vsub.f32 0.0, %v2629
        %v2638 = vsub.f32 0.0, %v2630
        %v2639 = vsub.f32 0.0, %v2631
        %v2640 = vmul.f32 %v2632, 1.442695
        %v2641 = vpow.pop %v2640
        %v2642 = vmul.f32 %v2633, 1.442695
        %v2643 = vpow.pop %v2642
        %v2644 = vmul.f32 %v2634, 1.442695
        %v2645 = vpow.pop %v2644
        %v2646 = vmul.f32 %v2635, 1.442695
        %v2647 = vpow.pop %v2646
        %v2648 = vmul.f32 %v2636, 1.442695
        %v2649 = vpow.pop %v2648
        %v2650 = vmul.f32 %v2637, 1.442695
        %v2651 = vpow.pop %v2650
        %v2652 = vmul.f32 %v2638, 1.442695
        %v2653 = vpow.pop %v2652
        %v2654 = vmul.f32 %v2639, 1.442695
        %v2655 = vpow.pop %v2654
        %v2656 = vadd.f32 %v2641, 1.0
        %v2657 = vadd.f32 %v2643, 1.0
        %v2658 = vadd.f32 %v2645, 1.0
        %v2659 = vadd.f32 %v2647, 1.0
        %v2660 = vadd.f32 %v2649, 1.0
        %v2661 = vadd.f32 %v2651, 1.0
        %v2662 = vadd.f32 %v2653, 1.0
        %v2663 = vadd.f32 %v2655, 1.0
        %v2664 = vlog2.pop %v2656
        %v2665 = vmul.f32 %v2664, 0.6931472
        %v2666 = vlog2.pop %v2657
        %v2667 = vmul.f32 %v2666, 0.6931472
        %v2668 = vlog2.pop %v2658
        %v2669 = vmul.f32 %v2668, 0.6931472
        %v2670 = vlog2.pop %v2659
        %v2671 = vmul.f32 %v2670, 0.6931472
        %v2672 = vlog2.pop %v2660
        %v2673 = vmul.f32 %v2672, 0.6931472
        %v2674 = vlog2.pop %v2661
        %v2675 = vmul.f32 %v2674, 0.6931472
        %v2676 = vlog2.pop %v2662
        %v2677 = vmul.f32 %v2676, 0.6931472
        %v2678 = vlog2.pop %v2663
        %v2679 = vmul.f32 %v2678, 0.6931472
        %v2680 = vadd.f32 %v2616, %v2665
        %v2681 = vadd.f32 %v2617, %v2667
        %v2682 = vadd.f32 %v2618, %v2669
        %v2683 = vadd.f32 %v2619, %v2671
        %v2684 = vadd.f32 %v2620, %v2673
        %v2685 = vadd.f32 %v2621, %v2675
        %v2686 = vadd.f32 %v2622, %v2677
        %v2687 = vadd.f32 %v2623, %v2679
        %v2688 = vadd.f32 %v2568, %v2680
        %v2689 = vadd.f32 %v2569, %v2681
        %v2690 = vadd.f32 %v2570, %v2682
        %v2691 = vadd.f32 %v2571, %v2683
        %v2692 = vadd.f32 %v2572, %v2684
        %v2693 = vadd.f32 %v2573, %v2685
        %v2694 = vadd.f32 %v2574, %v2686
        %v2695 = vadd.f32 %v2575, %v2687
        %v2696 = vld [vmem:[%s194 + $0x220] sm:$0xff]
        %v2697 = vld [vmem:[%s194 + $0x228] sm:$0xff]
        %v2698 = vld [vmem:[%s194 + $0x230] sm:$0xff]
        %v2699 = vld [vmem:[%s194 + $0x238] sm:$0xff]
        %v2700 = vunpack.c.l.bf16 %v2696
        %v2701 = vunpack.c.h.bf16 %v2696
        %v2702 = vunpack.c.l.bf16 %v2697
        %v2703 = vunpack.c.h.bf16 %v2697
        %v2704 = vunpack.c.l.bf16 %v2698
        %v2705 = vunpack.c.h.bf16 %v2698
        %v2706 = vunpack.c.l.bf16 %v2699
        %v2707 = vunpack.c.h.bf16 %v2699
        %v2708 = vld [vmem:[%s194 + $0x840] sm:$0xff]
        %v2709 = vld [vmem:[%s194 + $0x848] sm:$0xff]
        %v2710 = vld [vmem:[%s194 + $0x850] sm:$0xff]
        %v2711 = vld [vmem:[%s194 + $0x858] sm:$0xff]
        %v2712 = vunpack.c.l.bf16 %v2708
        %v2713 = vunpack.c.h.bf16 %v2708
        %v2714 = vunpack.c.l.bf16 %v2709
        %v2715 = vunpack.c.h.bf16 %v2709
        %v2716 = vunpack.c.l.bf16 %v2710
        %v2717 = vunpack.c.h.bf16 %v2710
        %v2718 = vunpack.c.l.bf16 %v2711
        %v2719 = vunpack.c.h.bf16 %v2711
        %v2720 = vmax.f32 %v2700, 0.0
        %v2721 = vmax.f32 %v2701, 0.0
        %v2722 = vmax.f32 %v2702, 0.0
        %v2723 = vmax.f32 %v2703, 0.0
        %v2724 = vmax.f32 %v2704, 0.0
        %v2725 = vmax.f32 %v2705, 0.0
        %v2726 = vmax.f32 %v2706, 0.0
        %v2727 = vmax.f32 %v2707, 0.0
        %v2728 = vmul.f32 %v2700, %v2712
        %v2729 = vmul.f32 %v2701, %v2713
        %v2730 = vmul.f32 %v2702, %v2714
        %v2731 = vmul.f32 %v2703, %v2715
        %v2732 = vmul.f32 %v2704, %v2716
        %v2733 = vmul.f32 %v2705, %v2717
        %v2734 = vmul.f32 %v2706, %v2718
        %v2735 = vmul.f32 %v2707, %v2719
        %v2736 = vsub.f32 %v2720, %v2728
        %v2737 = vsub.f32 %v2721, %v2729
        %v2738 = vsub.f32 %v2722, %v2730
        %v2739 = vsub.f32 %v2723, %v2731
        %v2740 = vsub.f32 %v2724, %v2732
        %v2741 = vsub.f32 %v2725, %v2733
        %v2742 = vsub.f32 %v2726, %v2734
        %v2743 = vsub.f32 %v2727, %v2735
        %v2744 = vand.u32 2147483647, %v2700
        %v2745 = vand.u32 2147483647, %v2701
        %v2746 = vand.u32 2147483647, %v2702
        %v2747 = vand.u32 2147483647, %v2703
        %v2748 = vand.u32 2147483647, %v2704
        %v2749 = vand.u32 2147483647, %v2705
        %v2750 = vand.u32 2147483647, %v2706
        %v2751 = vand.u32 2147483647, %v2707
        %v2752 = vsub.f32 0.0, %v2744
        %v2753 = vsub.f32 0.0, %v2745
        %v2754 = vsub.f32 0.0, %v2746
        %v2755 = vsub.f32 0.0, %v2747
        %v2756 = vsub.f32 0.0, %v2748
        %v2757 = vsub.f32 0.0, %v2749
        %v2758 = vsub.f32 0.0, %v2750
        %v2759 = vsub.f32 0.0, %v2751
        %v2760 = vmul.f32 %v2752, 1.442695
        %v2761 = vpow.pop %v2760
        %v2762 = vmul.f32 %v2753, 1.442695
        %v2763 = vpow.pop %v2762
        %v2764 = vmul.f32 %v2754, 1.442695
        %v2765 = vpow.pop %v2764
        %v2766 = vmul.f32 %v2755, 1.442695
        %v2767 = vpow.pop %v2766
        %v2768 = vmul.f32 %v2756, 1.442695
        %v2769 = vpow.pop %v2768
        %v2770 = vmul.f32 %v2757, 1.442695
        %v2771 = vpow.pop %v2770
        %v2772 = vmul.f32 %v2758, 1.442695
        %v2773 = vpow.pop %v2772
        %v2774 = vmul.f32 %v2759, 1.442695
        %v2775 = vpow.pop %v2774
        %v2776 = vadd.f32 %v2761, 1.0
        %v2777 = vadd.f32 %v2763, 1.0
        %v2778 = vadd.f32 %v2765, 1.0
        %v2779 = vadd.f32 %v2767, 1.0
        %v2780 = vadd.f32 %v2769, 1.0
        %v2781 = vadd.f32 %v2771, 1.0
        %v2782 = vadd.f32 %v2773, 1.0
        %v2783 = vadd.f32 %v2775, 1.0
        %v2784 = vlog2.pop %v2776
        %v2785 = vmul.f32 %v2784, 0.6931472
        %v2786 = vlog2.pop %v2777
        %v2787 = vmul.f32 %v2786, 0.6931472
        %v2788 = vlog2.pop %v2778
        %v2789 = vmul.f32 %v2788, 0.6931472
        %v2790 = vlog2.pop %v2779
        %v2791 = vmul.f32 %v2790, 0.6931472
        %v2792 = vlog2.pop %v2780
        %v2793 = vmul.f32 %v2792, 0.6931472
        %v2794 = vlog2.pop %v2781
        %v2795 = vmul.f32 %v2794, 0.6931472
        %v2796 = vlog2.pop %v2782
        %v2797 = vmul.f32 %v2796, 0.6931472
        %v2798 = vlog2.pop %v2783
        %v2799 = vmul.f32 %v2798, 0.6931472
        %v2800 = vadd.f32 %v2736, %v2785
        %v2801 = vadd.f32 %v2737, %v2787
        %v2802 = vadd.f32 %v2738, %v2789
        %v2803 = vadd.f32 %v2739, %v2791
        %v2804 = vadd.f32 %v2740, %v2793
        %v2805 = vadd.f32 %v2741, %v2795
        %v2806 = vadd.f32 %v2742, %v2797
        %v2807 = vadd.f32 %v2743, %v2799
        %v2808 = vadd.f32 %v2688, %v2800
        %v2809 = vadd.f32 %v2689, %v2801
        %v2810 = vadd.f32 %v2690, %v2802
        %v2811 = vadd.f32 %v2691, %v2803
        %v2812 = vadd.f32 %v2692, %v2804
        %v2813 = vadd.f32 %v2693, %v2805
        %v2814 = vadd.f32 %v2694, %v2806
        %v2815 = vadd.f32 %v2695, %v2807
        %v2816 = vld [vmem:[%s194 + $0x240] sm:$0xff]
        %v2817 = vld [vmem:[%s194 + $0x248] sm:$0xff]
        %v2818 = vld [vmem:[%s194 + $0x250] sm:$0xff]
        %v2819 = vld [vmem:[%s194 + $0x258] sm:$0xff]
        %v2820 = vunpack.c.l.bf16 %v2816
        %v2821 = vunpack.c.h.bf16 %v2816
        %v2822 = vunpack.c.l.bf16 %v2817
        %v2823 = vunpack.c.h.bf16 %v2817
        %v2824 = vunpack.c.l.bf16 %v2818
        %v2825 = vunpack.c.h.bf16 %v2818
        %v2826 = vunpack.c.l.bf16 %v2819
        %v2827 = vunpack.c.h.bf16 %v2819
        %v2828 = vld [vmem:[%s194 + $0x860] sm:$0xff]
        %v2829 = vld [vmem:[%s194 + $0x868] sm:$0xff]
        %v2830 = vld [vmem:[%s194 + $0x870] sm:$0xff]
        %v2831 = vld [vmem:[%s194 + $0x878] sm:$0xff]
        %v2832 = vunpack.c.l.bf16 %v2828
        %v2833 = vunpack.c.h.bf16 %v2828
        %v2834 = vunpack.c.l.bf16 %v2829
        %v2835 = vunpack.c.h.bf16 %v2829
        %v2836 = vunpack.c.l.bf16 %v2830
        %v2837 = vunpack.c.h.bf16 %v2830
        %v2838 = vunpack.c.l.bf16 %v2831
        %v2839 = vunpack.c.h.bf16 %v2831
        %v2840 = vmax.f32 %v2820, 0.0
        %v2841 = vmax.f32 %v2821, 0.0
        %v2842 = vmax.f32 %v2822, 0.0
        %v2843 = vmax.f32 %v2823, 0.0
        %v2844 = vmax.f32 %v2824, 0.0
        %v2845 = vmax.f32 %v2825, 0.0
        %v2846 = vmax.f32 %v2826, 0.0
        %v2847 = vmax.f32 %v2827, 0.0
        %v2848 = vmul.f32 %v2820, %v2832
        %v2849 = vmul.f32 %v2821, %v2833
        %v2850 = vmul.f32 %v2822, %v2834
        %v2851 = vmul.f32 %v2823, %v2835
        %v2852 = vmul.f32 %v2824, %v2836
        %v2853 = vmul.f32 %v2825, %v2837
        %v2854 = vmul.f32 %v2826, %v2838
        %v2855 = vmul.f32 %v2827, %v2839
        %v2856 = vsub.f32 %v2840, %v2848
        %v2857 = vsub.f32 %v2841, %v2849
        %v2858 = vsub.f32 %v2842, %v2850
        %v2859 = vsub.f32 %v2843, %v2851
        %v2860 = vsub.f32 %v2844, %v2852
        %v2861 = vsub.f32 %v2845, %v2853
        %v2862 = vsub.f32 %v2846, %v2854
        %v2863 = vsub.f32 %v2847, %v2855
        %v2864 = vand.u32 2147483647, %v2820
        %v2865 = vand.u32 2147483647, %v2821
        %v2866 = vand.u32 2147483647, %v2822
        %v2867 = vand.u32 2147483647, %v2823
        %v2868 = vand.u32 2147483647, %v2824
        %v2869 = vand.u32 2147483647, %v2825
        %v2870 = vand.u32 2147483647, %v2826
        %v2871 = vand.u32 2147483647, %v2827
        %v2872 = vsub.f32 0.0, %v2864
        %v2873 = vsub.f32 0.0, %v2865
        %v2874 = vsub.f32 0.0, %v2866
        %v2875 = vsub.f32 0.0, %v2867
        %v2876 = vsub.f32 0.0, %v2868
        %v2877 = vsub.f32 0.0, %v2869
        %v2878 = vsub.f32 0.0, %v2870
        %v2879 = vsub.f32 0.0, %v2871
        %v2880 = vmul.f32 %v2872, 1.442695
        %v2881 = vpow.pop %v2880
        %v2882 = vmul.f32 %v2873, 1.442695
        %v2883 = vpow.pop %v2882
        %v2884 = vmul.f32 %v2874, 1.442695
        %v2885 = vpow.pop %v2884
        %v2886 = vmul.f32 %v2875, 1.442695
        %v2887 = vpow.pop %v2886
        %v2888 = vmul.f32 %v2876, 1.442695
        %v2889 = vpow.pop %v2888
        %v2890 = vmul.f32 %v2877, 1.442695
        %v2891 = vpow.pop %v2890
        %v2892 = vmul.f32 %v2878, 1.442695
        %v2893 = vpow.pop %v2892
        %v2894 = vmul.f32 %v2879, 1.442695
        %v2895 = vpow.pop %v2894
        %v2896 = vadd.f32 %v2881, 1.0
        %v2897 = vadd.f32 %v2883, 1.0
        %v2898 = vadd.f32 %v2885, 1.0
        %v2899 = vadd.f32 %v2887, 1.0
        %v2900 = vadd.f32 %v2889, 1.0
        %v2901 = vadd.f32 %v2891, 1.0
        %v2902 = vadd.f32 %v2893, 1.0
        %v2903 = vadd.f32 %v2895, 1.0
        %v2904 = vlog2.pop %v2896
        %v2905 = vmul.f32 %v2904, 0.6931472
        %v2906 = vlog2.pop %v2897
        %v2907 = vmul.f32 %v2906, 0.6931472
        %v2908 = vlog2.pop %v2898
        %v2909 = vmul.f32 %v2908, 0.6931472
        %v2910 = vlog2.pop %v2899
        %v2911 = vmul.f32 %v2910, 0.6931472
        %v2912 = vlog2.pop %v2900
        %v2913 = vmul.f32 %v2912, 0.6931472
        %v2914 = vlog2.pop %v2901
        %v2915 = vmul.f32 %v2914, 0.6931472
        %v2916 = vlog2.pop %v2902
        %v2917 = vmul.f32 %v2916, 0.6931472
        %v2918 = vlog2.pop %v2903
        %v2919 = vmul.f32 %v2918, 0.6931472
        %v2920 = vadd.f32 %v2856, %v2905
        %v2921 = vadd.f32 %v2857, %v2907
        %v2922 = vadd.f32 %v2858, %v2909
        %v2923 = vadd.f32 %v2859, %v2911
        %v2924 = vadd.f32 %v2860, %v2913
        %v2925 = vadd.f32 %v2861, %v2915
        %v2926 = vadd.f32 %v2862, %v2917
        %v2927 = vadd.f32 %v2863, %v2919
        %v2928 = vadd.f32 %v2808, %v2920
        %v2929 = vadd.f32 %v2809, %v2921
        %v2930 = vadd.f32 %v2810, %v2922
        %v2931 = vadd.f32 %v2811, %v2923
        %v2932 = vadd.f32 %v2812, %v2924
        %v2933 = vadd.f32 %v2813, %v2925
        %v2934 = vadd.f32 %v2814, %v2926
        %v2935 = vadd.f32 %v2815, %v2927
        %v2936 = vld [vmem:[%s194 + $0x260] sm:$0xff]
        %v2937 = vld [vmem:[%s194 + $0x268] sm:$0xff]
        %v2938 = vld [vmem:[%s194 + $0x270] sm:$0xff]
        %v2939 = vld [vmem:[%s194 + $0x278] sm:$0xff]
        %v2940 = vunpack.c.l.bf16 %v2936
        %v2941 = vunpack.c.h.bf16 %v2936
        %v2942 = vunpack.c.l.bf16 %v2937
        %v2943 = vunpack.c.h.bf16 %v2937
        %v2944 = vunpack.c.l.bf16 %v2938
        %v2945 = vunpack.c.h.bf16 %v2938
        %v2946 = vunpack.c.l.bf16 %v2939
        %v2947 = vunpack.c.h.bf16 %v2939
        %v2948 = vld [vmem:[%s194 + $0x880] sm:$0xff]
        %v2949 = vld [vmem:[%s194 + $0x888] sm:$0xff]
        %v2950 = vld [vmem:[%s194 + $0x890] sm:$0xff]
        %v2951 = vld [vmem:[%s194 + $0x898] sm:$0xff]
        %v2952 = vunpack.c.l.bf16 %v2948
        %v2953 = vunpack.c.h.bf16 %v2948
        %v2954 = vunpack.c.l.bf16 %v2949
        %v2955 = vunpack.c.h.bf16 %v2949
        %v2956 = vunpack.c.l.bf16 %v2950
        %v2957 = vunpack.c.h.bf16 %v2950
        %v2958 = vunpack.c.l.bf16 %v2951
        %v2959 = vunpack.c.h.bf16 %v2951
        %v2960 = vmax.f32 %v2940, 0.0
        %v2961 = vmax.f32 %v2941, 0.0
        %v2962 = vmax.f32 %v2942, 0.0
        %v2963 = vmax.f32 %v2943, 0.0
        %v2964 = vmax.f32 %v2944, 0.0
        %v2965 = vmax.f32 %v2945, 0.0
        %v2966 = vmax.f32 %v2946, 0.0
        %v2967 = vmax.f32 %v2947, 0.0
        %v2968 = vmul.f32 %v2940, %v2952
        %v2969 = vmul.f32 %v2941, %v2953
        %v2970 = vmul.f32 %v2942, %v2954
        %v2971 = vmul.f32 %v2943, %v2955
        %v2972 = vmul.f32 %v2944, %v2956
        %v2973 = vmul.f32 %v2945, %v2957
        %v2974 = vmul.f32 %v2946, %v2958
        %v2975 = vmul.f32 %v2947, %v2959
        %v2976 = vsub.f32 %v2960, %v2968
        %v2977 = vsub.f32 %v2961, %v2969
        %v2978 = vsub.f32 %v2962, %v2970
        %v2979 = vsub.f32 %v2963, %v2971
        %v2980 = vsub.f32 %v2964, %v2972
        %v2981 = vsub.f32 %v2965, %v2973
        %v2982 = vsub.f32 %v2966, %v2974
        %v2983 = vsub.f32 %v2967, %v2975
        %v2984 = vand.u32 2147483647, %v2940
        %v2985 = vand.u32 2147483647, %v2941
        %v2986 = vand.u32 2147483647, %v2942
        %v2987 = vand.u32 2147483647, %v2943
        %v2988 = vand.u32 2147483647, %v2944
        %v2989 = vand.u32 2147483647, %v2945
        %v2990 = vand.u32 2147483647, %v2946
        %v2991 = vand.u32 2147483647, %v2947
        %v2992 = vsub.f32 0.0, %v2984
        %v2993 = vsub.f32 0.0, %v2985
        %v2994 = vsub.f32 0.0, %v2986
        %v2995 = vsub.f32 0.0, %v2987
        %v2996 = vsub.f32 0.0, %v2988
        %v2997 = vsub.f32 0.0, %v2989
        %v2998 = vsub.f32 0.0, %v2990
        %v2999 = vsub.f32 0.0, %v2991
        %v3000 = vmul.f32 %v2992, 1.442695
        %v3001 = vpow.pop %v3000
        %v3002 = vmul.f32 %v2993, 1.442695
        %v3003 = vpow.pop %v3002
        %v3004 = vmul.f32 %v2994, 1.442695
        %v3005 = vpow.pop %v3004
        %v3006 = vmul.f32 %v2995, 1.442695
        %v3007 = vpow.pop %v3006
        %v3008 = vmul.f32 %v2996, 1.442695
        %v3009 = vpow.pop %v3008
        %v3010 = vmul.f32 %v2997, 1.442695
        %v3011 = vpow.pop %v3010
        %v3012 = vmul.f32 %v2998, 1.442695
        %v3013 = vpow.pop %v3012
        %v3014 = vmul.f32 %v2999, 1.442695
        %v3015 = vpow.pop %v3014
        %v3016 = vadd.f32 %v3001, 1.0
        %v3017 = vadd.f32 %v3003, 1.0
        %v3018 = vadd.f32 %v3005, 1.0
        %v3019 = vadd.f32 %v3007, 1.0
        %v3020 = vadd.f32 %v3009, 1.0
        %v3021 = vadd.f32 %v3011, 1.0
        %v3022 = vadd.f32 %v3013, 1.0
        %v3023 = vadd.f32 %v3015, 1.0
        %v3024 = vlog2.pop %v3016
        %v3025 = vmul.f32 %v3024, 0.6931472
        %v3026 = vlog2.pop %v3017
        %v3027 = vmul.f32 %v3026, 0.6931472
        %v3028 = vlog2.pop %v3018
        %v3029 = vmul.f32 %v3028, 0.6931472
        %v3030 = vlog2.pop %v3019
        %v3031 = vmul.f32 %v3030, 0.6931472
        %v3032 = vlog2.pop %v3020
        %v3033 = vmul.f32 %v3032, 0.6931472
        %v3034 = vlog2.pop %v3021
        %v3035 = vmul.f32 %v3034, 0.6931472
        %v3036 = vlog2.pop %v3022
        %v3037 = vmul.f32 %v3036, 0.6931472
        %v3038 = vlog2.pop %v3023
        %v3039 = vmul.f32 %v3038, 0.6931472
        %v3040 = vadd.f32 %v2976, %v3025
        %v3041 = vadd.f32 %v2977, %v3027
        %v3042 = vadd.f32 %v2978, %v3029
        %v3043 = vadd.f32 %v2979, %v3031
        %v3044 = vadd.f32 %v2980, %v3033
        %v3045 = vadd.f32 %v2981, %v3035
        %v3046 = vadd.f32 %v2982, %v3037
        %v3047 = vadd.f32 %v2983, %v3039
        %v3048 = vadd.f32 %v2928, %v3040
        %v3049 = vadd.f32 %v2929, %v3041
        %v3050 = vadd.f32 %v2930, %v3042
        %v3051 = vadd.f32 %v2931, %v3043
        %v3052 = vadd.f32 %v2932, %v3044
        %v3053 = vadd.f32 %v2933, %v3045
        %v3054 = vadd.f32 %v2934, %v3046
        %v3055 = vadd.f32 %v2935, %v3047
        %v3056 = vld [vmem:[%s194 + $0x280] sm:$0xff]
        %v3057 = vld [vmem:[%s194 + $0x288] sm:$0xff]
        %v3058 = vld [vmem:[%s194 + $0x290] sm:$0xff]
        %v3059 = vld [vmem:[%s194 + $0x298] sm:$0xff]
        %v3060 = vunpack.c.l.bf16 %v3056
        %v3061 = vunpack.c.h.bf16 %v3056
        %v3062 = vunpack.c.l.bf16 %v3057
        %v3063 = vunpack.c.h.bf16 %v3057
        %v3064 = vunpack.c.l.bf16 %v3058
        %v3065 = vunpack.c.h.bf16 %v3058
        %v3066 = vunpack.c.l.bf16 %v3059
        %v3067 = vunpack.c.h.bf16 %v3059
        %v3068 = vld [vmem:[%s194 + $0x8a0] sm:$0xff]
        %v3069 = vld [vmem:[%s194 + $0x8a8] sm:$0xff]
        %v3070 = vld [vmem:[%s194 + $0x8b0] sm:$0xff]
        %v3071 = vld [vmem:[%s194 + $0x8b8] sm:$0xff]
        %v3072 = vunpack.c.l.bf16 %v3068
        %v3073 = vunpack.c.h.bf16 %v3068
        %v3074 = vunpack.c.l.bf16 %v3069
        %v3075 = vunpack.c.h.bf16 %v3069
        %v3076 = vunpack.c.l.bf16 %v3070
        %v3077 = vunpack.c.h.bf16 %v3070
        %v3078 = vunpack.c.l.bf16 %v3071
        %v3079 = vunpack.c.h.bf16 %v3071
        %v3080 = vmax.f32 %v3060, 0.0
        %v3081 = vmax.f32 %v3061, 0.0
        %v3082 = vmax.f32 %v3062, 0.0
        %v3083 = vmax.f32 %v3063, 0.0
        %v3084 = vmax.f32 %v3064, 0.0
        %v3085 = vmax.f32 %v3065, 0.0
        %v3086 = vmax.f32 %v3066, 0.0
        %v3087 = vmax.f32 %v3067, 0.0
        %v3088 = vmul.f32 %v3060, %v3072
        %v3089 = vmul.f32 %v3061, %v3073
        %v3090 = vmul.f32 %v3062, %v3074
        %v3091 = vmul.f32 %v3063, %v3075
        %v3092 = vmul.f32 %v3064, %v3076
        %v3093 = vmul.f32 %v3065, %v3077
        %v3094 = vmul.f32 %v3066, %v3078
        %v3095 = vmul.f32 %v3067, %v3079
        %v3096 = vsub.f32 %v3080, %v3088
        %v3097 = vsub.f32 %v3081, %v3089
        %v3098 = vsub.f32 %v3082, %v3090
        %v3099 = vsub.f32 %v3083, %v3091
        %v3100 = vsub.f32 %v3084, %v3092
        %v3101 = vsub.f32 %v3085, %v3093
        %v3102 = vsub.f32 %v3086, %v3094
        %v3103 = vsub.f32 %v3087, %v3095
        %v3104 = vand.u32 2147483647, %v3060
        %v3105 = vand.u32 2147483647, %v3061
        %v3106 = vand.u32 2147483647, %v3062
        %v3107 = vand.u32 2147483647, %v3063
        %v3108 = vand.u32 2147483647, %v3064
        %v3109 = vand.u32 2147483647, %v3065
        %v3110 = vand.u32 2147483647, %v3066
        %v3111 = vand.u32 2147483647, %v3067
        %v3112 = vsub.f32 0.0, %v3104
        %v3113 = vsub.f32 0.0, %v3105
        %v3114 = vsub.f32 0.0, %v3106
        %v3115 = vsub.f32 0.0, %v3107
        %v3116 = vsub.f32 0.0, %v3108
        %v3117 = vsub.f32 0.0, %v3109
        %v3118 = vsub.f32 0.0, %v3110
        %v3119 = vsub.f32 0.0, %v3111
        %v3120 = vmul.f32 %v3112, 1.442695
        %v3121 = vpow.pop %v3120
        %v3122 = vmul.f32 %v3113, 1.442695
        %v3123 = vpow.pop %v3122
        %v3124 = vmul.f32 %v3114, 1.442695
        %v3125 = vpow.pop %v3124
        %v3126 = vmul.f32 %v3115, 1.442695
        %v3127 = vpow.pop %v3126
        %v3128 = vmul.f32 %v3116, 1.442695
        %v3129 = vpow.pop %v3128
        %v3130 = vmul.f32 %v3117, 1.442695
        %v3131 = vpow.pop %v3130
        %v3132 = vmul.f32 %v3118, 1.442695
        %v3133 = vpow.pop %v3132
        %v3134 = vmul.f32 %v3119, 1.442695
        %v3135 = vpow.pop %v3134
        %v3136 = vadd.f32 %v3121, 1.0
        %v3137 = vadd.f32 %v3123, 1.0
        %v3138 = vadd.f32 %v3125, 1.0
        %v3139 = vadd.f32 %v3127, 1.0
        %v3140 = vadd.f32 %v3129, 1.0
        %v3141 = vadd.f32 %v3131, 1.0
        %v3142 = vadd.f32 %v3133, 1.0
        %v3143 = vadd.f32 %v3135, 1.0
        %v3144 = vlog2.pop %v3136
        %v3145 = vmul.f32 %v3144, 0.6931472
        %v3146 = vlog2.pop %v3137
        %v3147 = vmul.f32 %v3146, 0.6931472
        %v3148 = vlog2.pop %v3138
        %v3149 = vmul.f32 %v3148, 0.6931472
        %v3150 = vlog2.pop %v3139
        %v3151 = vmul.f32 %v3150, 0.6931472
        %v3152 = vlog2.pop %v3140
        %v3153 = vmul.f32 %v3152, 0.6931472
        %v3154 = vlog2.pop %v3141
        %v3155 = vmul.f32 %v3154, 0.6931472
        %v3156 = vlog2.pop %v3142
        %v3157 = vmul.f32 %v3156, 0.6931472
        %v3158 = vlog2.pop %v3143
        %v3159 = vmul.f32 %v3158, 0.6931472
        %v3160 = vadd.f32 %v3096, %v3145
        %v3161 = vadd.f32 %v3097, %v3147
        %v3162 = vadd.f32 %v3098, %v3149
        %v3163 = vadd.f32 %v3099, %v3151
        %v3164 = vadd.f32 %v3100, %v3153
        %v3165 = vadd.f32 %v3101, %v3155
        %v3166 = vadd.f32 %v3102, %v3157
        %v3167 = vadd.f32 %v3103, %v3159
        %v3168 = vadd.f32 %v3048, %v3160
        %v3169 = vadd.f32 %v3049, %v3161
        %v3170 = vadd.f32 %v3050, %v3162
        %v3171 = vadd.f32 %v3051, %v3163
        %v3172 = vadd.f32 %v3052, %v3164
        %v3173 = vadd.f32 %v3053, %v3165
        %v3174 = vadd.f32 %v3054, %v3166
        %v3175 = vadd.f32 %v3055, %v3167
        %v3176 = vld [vmem:[%s194 + $0x2a0] sm:$0xff]
        %v3177 = vld [vmem:[%s194 + $0x2a8] sm:$0xff]
        %v3178 = vld [vmem:[%s194 + $0x2b0] sm:$0xff]
        %v3179 = vld [vmem:[%s194 + $0x2b8] sm:$0xff]
        %v3180 = vunpack.c.l.bf16 %v3176
        %v3181 = vunpack.c.h.bf16 %v3176
        %v3182 = vunpack.c.l.bf16 %v3177
        %v3183 = vunpack.c.h.bf16 %v3177
        %v3184 = vunpack.c.l.bf16 %v3178
        %v3185 = vunpack.c.h.bf16 %v3178
        %v3186 = vunpack.c.l.bf16 %v3179
        %v3187 = vunpack.c.h.bf16 %v3179
        %v3188 = vld [vmem:[%s194 + $0x8c0] sm:$0xff]
        %v3189 = vld [vmem:[%s194 + $0x8c8] sm:$0xff]
        %v3190 = vld [vmem:[%s194 + $0x8d0] sm:$0xff]
        %v3191 = vld [vmem:[%s194 + $0x8d8] sm:$0xff]
        %v3192 = vunpack.c.l.bf16 %v3188
        %v3193 = vunpack.c.h.bf16 %v3188
        %v3194 = vunpack.c.l.bf16 %v3189
        %v3195 = vunpack.c.h.bf16 %v3189
        %v3196 = vunpack.c.l.bf16 %v3190
        %v3197 = vunpack.c.h.bf16 %v3190
        %v3198 = vunpack.c.l.bf16 %v3191
        %v3199 = vunpack.c.h.bf16 %v3191
        %v3200 = vmax.f32 %v3180, 0.0
        %v3201 = vmax.f32 %v3181, 0.0
        %v3202 = vmax.f32 %v3182, 0.0
        %v3203 = vmax.f32 %v3183, 0.0
        %v3204 = vmax.f32 %v3184, 0.0
        %v3205 = vmax.f32 %v3185, 0.0
        %v3206 = vmax.f32 %v3186, 0.0
        %v3207 = vmax.f32 %v3187, 0.0
        %v3208 = vmul.f32 %v3180, %v3192
        %v3209 = vmul.f32 %v3181, %v3193
        %v3210 = vmul.f32 %v3182, %v3194
        %v3211 = vmul.f32 %v3183, %v3195
        %v3212 = vmul.f32 %v3184, %v3196
        %v3213 = vmul.f32 %v3185, %v3197
        %v3214 = vmul.f32 %v3186, %v3198
        %v3215 = vmul.f32 %v3187, %v3199
        %v3216 = vsub.f32 %v3200, %v3208
        %v3217 = vsub.f32 %v3201, %v3209
        %v3218 = vsub.f32 %v3202, %v3210
        %v3219 = vsub.f32 %v3203, %v3211
        %v3220 = vsub.f32 %v3204, %v3212
        %v3221 = vsub.f32 %v3205, %v3213
        %v3222 = vsub.f32 %v3206, %v3214
        %v3223 = vsub.f32 %v3207, %v3215
        %v3224 = vand.u32 2147483647, %v3180
        %v3225 = vand.u32 2147483647, %v3181
        %v3226 = vand.u32 2147483647, %v3182
        %v3227 = vand.u32 2147483647, %v3183
        %v3228 = vand.u32 2147483647, %v3184
        %v3229 = vand.u32 2147483647, %v3185
        %v3230 = vand.u32 2147483647, %v3186
        %v3231 = vand.u32 2147483647, %v3187
        %v3232 = vsub.f32 0.0, %v3224
        %v3233 = vsub.f32 0.0, %v3225
        %v3234 = vsub.f32 0.0, %v3226
        %v3235 = vsub.f32 0.0, %v3227
        %v3236 = vsub.f32 0.0, %v3228
        %v3237 = vsub.f32 0.0, %v3229
        %v3238 = vsub.f32 0.0, %v3230
        %v3239 = vsub.f32 0.0, %v3231
        %v3240 = vmul.f32 %v3232, 1.442695
        %v3241 = vpow.pop %v3240
        %v3242 = vmul.f32 %v3233, 1.442695
        %v3243 = vpow.pop %v3242
        %v3244 = vmul.f32 %v3234, 1.442695
        %v3245 = vpow.pop %v3244
        %v3246 = vmul.f32 %v3235, 1.442695
        %v3247 = vpow.pop %v3246
        %v3248 = vmul.f32 %v3236, 1.442695
        %v3249 = vpow.pop %v3248
        %v3250 = vmul.f32 %v3237, 1.442695
        %v3251 = vpow.pop %v3250
        %v3252 = vmul.f32 %v3238, 1.442695
        %v3253 = vpow.pop %v3252
        %v3254 = vmul.f32 %v3239, 1.442695
        %v3255 = vpow.pop %v3254
        %v3256 = vadd.f32 %v3241, 1.0
        %v3257 = vadd.f32 %v3243, 1.0
        %v3258 = vadd.f32 %v3245, 1.0
        %v3259 = vadd.f32 %v3247, 1.0
        %v3260 = vadd.f32 %v3249, 1.0
        %v3261 = vadd.f32 %v3251, 1.0
        %v3262 = vadd.f32 %v3253, 1.0
        %v3263 = vadd.f32 %v3255, 1.0
        %v3264 = vlog2.pop %v3256
        %v3265 = vmul.f32 %v3264, 0.6931472
        %v3266 = vlog2.pop %v3257
        %v3267 = vmul.f32 %v3266, 0.6931472
        %v3268 = vlog2.pop %v3258
        %v3269 = vmul.f32 %v3268, 0.6931472
        %v3270 = vlog2.pop %v3259
        %v3271 = vmul.f32 %v3270, 0.6931472
        %v3272 = vlog2.pop %v3260
        %v3273 = vmul.f32 %v3272, 0.6931472
        %v3274 = vlog2.pop %v3261
        %v3275 = vmul.f32 %v3274, 0.6931472
        %v3276 = vlog2.pop %v3262
        %v3277 = vmul.f32 %v3276, 0.6931472
        %v3278 = vlog2.pop %v3263
        %v3279 = vmul.f32 %v3278, 0.6931472
        %v3280 = vadd.f32 %v3216, %v3265
        %v3281 = vadd.f32 %v3217, %v3267
        %v3282 = vadd.f32 %v3218, %v3269
        %v3283 = vadd.f32 %v3219, %v3271
        %v3284 = vadd.f32 %v3220, %v3273
        %v3285 = vadd.f32 %v3221, %v3275
        %v3286 = vadd.f32 %v3222, %v3277
        %v3287 = vadd.f32 %v3223, %v3279
        %v3288 = vadd.f32 %v3168, %v3280
        %v3289 = vadd.f32 %v3169, %v3281
        %v3290 = vadd.f32 %v3170, %v3282
        %v3291 = vadd.f32 %v3171, %v3283
        %v3292 = vadd.f32 %v3172, %v3284
        %v3293 = vadd.f32 %v3173, %v3285
        %v3294 = vadd.f32 %v3174, %v3286
        %v3295 = vadd.f32 %v3175, %v3287
        %v3296 = vld [vmem:[%s194 + $0x2c0] sm:$0xff]
        %v3297 = vld [vmem:[%s194 + $0x2c8] sm:$0xff]
        %v3298 = vld [vmem:[%s194 + $0x2d0] sm:$0xff]
        %v3299 = vld [vmem:[%s194 + $0x2d8] sm:$0xff]
        %v3300 = vunpack.c.l.bf16 %v3296
        %v3301 = vunpack.c.h.bf16 %v3296
        %v3302 = vunpack.c.l.bf16 %v3297
        %v3303 = vunpack.c.h.bf16 %v3297
        %v3304 = vunpack.c.l.bf16 %v3298
        %v3305 = vunpack.c.h.bf16 %v3298
        %v3306 = vunpack.c.l.bf16 %v3299
        %v3307 = vunpack.c.h.bf16 %v3299
        %v3308 = vld [vmem:[%s194 + $0x8e0] sm:$0xff]
        %v3309 = vld [vmem:[%s194 + $0x8e8] sm:$0xff]
        %v3310 = vld [vmem:[%s194 + $0x8f0] sm:$0xff]
        %v3311 = vld [vmem:[%s194 + $0x8f8] sm:$0xff]
        %v3312 = vunpack.c.l.bf16 %v3308
        %v3313 = vunpack.c.h.bf16 %v3308
        %v3314 = vunpack.c.l.bf16 %v3309
        %v3315 = vunpack.c.h.bf16 %v3309
        %v3316 = vunpack.c.l.bf16 %v3310
        %v3317 = vunpack.c.h.bf16 %v3310
        %v3318 = vunpack.c.l.bf16 %v3311
        %v3319 = vunpack.c.h.bf16 %v3311
        %v3320 = vmax.f32 %v3300, 0.0
        %v3321 = vmax.f32 %v3301, 0.0
        %v3322 = vmax.f32 %v3302, 0.0
        %v3323 = vmax.f32 %v3303, 0.0
        %v3324 = vmax.f32 %v3304, 0.0
        %v3325 = vmax.f32 %v3305, 0.0
        %v3326 = vmax.f32 %v3306, 0.0
        %v3327 = vmax.f32 %v3307, 0.0
        %v3328 = vmul.f32 %v3300, %v3312
        %v3329 = vmul.f32 %v3301, %v3313
        %v3330 = vmul.f32 %v3302, %v3314
        %v3331 = vmul.f32 %v3303, %v3315
        %v3332 = vmul.f32 %v3304, %v3316
        %v3333 = vmul.f32 %v3305, %v3317
        %v3334 = vmul.f32 %v3306, %v3318
        %v3335 = vmul.f32 %v3307, %v3319
        %v3336 = vsub.f32 %v3320, %v3328
        %v3337 = vsub.f32 %v3321, %v3329
        %v3338 = vsub.f32 %v3322, %v3330
        %v3339 = vsub.f32 %v3323, %v3331
        %v3340 = vsub.f32 %v3324, %v3332
        %v3341 = vsub.f32 %v3325, %v3333
        %v3342 = vsub.f32 %v3326, %v3334
        %v3343 = vsub.f32 %v3327, %v3335
        %v3344 = vand.u32 2147483647, %v3300
        %v3345 = vand.u32 2147483647, %v3301
        %v3346 = vand.u32 2147483647, %v3302
        %v3347 = vand.u32 2147483647, %v3303
        %v3348 = vand.u32 2147483647, %v3304
        %v3349 = vand.u32 2147483647, %v3305
        %v3350 = vand.u32 2147483647, %v3306
        %v3351 = vand.u32 2147483647, %v3307
        %v3352 = vsub.f32 0.0, %v3344
        %v3353 = vsub.f32 0.0, %v3345
        %v3354 = vsub.f32 0.0, %v3346
        %v3355 = vsub.f32 0.0, %v3347
        %v3356 = vsub.f32 0.0, %v3348
        %v3357 = vsub.f32 0.0, %v3349
        %v3358 = vsub.f32 0.0, %v3350
        %v3359 = vsub.f32 0.0, %v3351
        %v3360 = vmul.f32 %v3352, 1.442695
        %v3361 = vpow.pop %v3360
        %v3362 = vmul.f32 %v3353, 1.442695
        %v3363 = vpow.pop %v3362
        %v3364 = vmul.f32 %v3354, 1.442695
        %v3365 = vpow.pop %v3364
        %v3366 = vmul.f32 %v3355, 1.442695
        %v3367 = vpow.pop %v3366
        %v3368 = vmul.f32 %v3356, 1.442695
        %v3369 = vpow.pop %v3368
        %v3370 = vmul.f32 %v3357, 1.442695
        %v3371 = vpow.pop %v3370
        %v3372 = vmul.f32 %v3358, 1.442695
        %v3373 = vpow.pop %v3372
        %v3374 = vmul.f32 %v3359, 1.442695
        %v3375 = vpow.pop %v3374
        %v3376 = vadd.f32 %v3361, 1.0
        %v3377 = vadd.f32 %v3363, 1.0
        %v3378 = vadd.f32 %v3365, 1.0
        %v3379 = vadd.f32 %v3367, 1.0
        %v3380 = vadd.f32 %v3369, 1.0
        %v3381 = vadd.f32 %v3371, 1.0
        %v3382 = vadd.f32 %v3373, 1.0
        %v3383 = vadd.f32 %v3375, 1.0
        %v3384 = vlog2.pop %v3376
        %v3385 = vmul.f32 %v3384, 0.6931472
        %v3386 = vlog2.pop %v3377
        %v3387 = vmul.f32 %v3386, 0.6931472
        %v3388 = vlog2.pop %v3378
        %v3389 = vmul.f32 %v3388, 0.6931472
        %v3390 = vlog2.pop %v3379
        %v3391 = vmul.f32 %v3390, 0.6931472
        %v3392 = vlog2.pop %v3380
        %v3393 = vmul.f32 %v3392, 0.6931472
        %v3394 = vlog2.pop %v3381
        %v3395 = vmul.f32 %v3394, 0.6931472
        %v3396 = vlog2.pop %v3382
        %v3397 = vmul.f32 %v3396, 0.6931472
        %v3398 = vlog2.pop %v3383
        %v3399 = vmul.f32 %v3398, 0.6931472
        %v3400 = vadd.f32 %v3336, %v3385
        %v3401 = vadd.f32 %v3337, %v3387
        %v3402 = vadd.f32 %v3338, %v3389
        %v3403 = vadd.f32 %v3339, %v3391
        %v3404 = vadd.f32 %v3340, %v3393
        %v3405 = vadd.f32 %v3341, %v3395
        %v3406 = vadd.f32 %v3342, %v3397
        %v3407 = vadd.f32 %v3343, %v3399
        %v3408 = vadd.f32 %v3288, %v3400
        %v3409 = vadd.f32 %v3289, %v3401
        %v3410 = vadd.f32 %v3290, %v3402
        %v3411 = vadd.f32 %v3291, %v3403
        %v3412 = vadd.f32 %v3292, %v3404
        %v3413 = vadd.f32 %v3293, %v3405
        %v3414 = vadd.f32 %v3294, %v3406
        %v3415 = vadd.f32 %v3295, %v3407
        %v3416 = vld [vmem:[%s194 + $0x2e0] sm:$0xff]
        %v3417 = vld [vmem:[%s194 + $0x2e8] sm:$0xff]
        %v3418 = vld [vmem:[%s194 + $0x2f0] sm:$0xff]
        %v3419 = vld [vmem:[%s194 + $0x2f8] sm:$0xff]
        %v3420 = vunpack.c.l.bf16 %v3416
        %v3421 = vunpack.c.h.bf16 %v3416
        %v3422 = vunpack.c.l.bf16 %v3417
        %v3423 = vunpack.c.h.bf16 %v3417
        %v3424 = vunpack.c.l.bf16 %v3418
        %v3425 = vunpack.c.h.bf16 %v3418
        %v3426 = vunpack.c.l.bf16 %v3419
        %v3427 = vunpack.c.h.bf16 %v3419
        %v3428 = vld [vmem:[%s194 + $0x900] sm:$0xff]
        %v3429 = vld [vmem:[%s194 + $0x908] sm:$0xff]
        %v3430 = vld [vmem:[%s194 + $0x910] sm:$0xff]
        %v3431 = vld [vmem:[%s194 + $0x918] sm:$0xff]
        %v3432 = vunpack.c.l.bf16 %v3428
        %v3433 = vunpack.c.h.bf16 %v3428
        %v3434 = vunpack.c.l.bf16 %v3429
        %v3435 = vunpack.c.h.bf16 %v3429
        %v3436 = vunpack.c.l.bf16 %v3430
        %v3437 = vunpack.c.h.bf16 %v3430
        %v3438 = vunpack.c.l.bf16 %v3431
        %v3439 = vunpack.c.h.bf16 %v3431
        %v3440 = vmax.f32 %v3420, 0.0
        %v3441 = vmax.f32 %v3421, 0.0
        %v3442 = vmax.f32 %v3422, 0.0
        %v3443 = vmax.f32 %v3423, 0.0
        %v3444 = vmax.f32 %v3424, 0.0
        %v3445 = vmax.f32 %v3425, 0.0
        %v3446 = vmax.f32 %v3426, 0.0
        %v3447 = vmax.f32 %v3427, 0.0
        %v3448 = vmul.f32 %v3420, %v3432
        %v3449 = vmul.f32 %v3421, %v3433
        %v3450 = vmul.f32 %v3422, %v3434
        %v3451 = vmul.f32 %v3423, %v3435
        %v3452 = vmul.f32 %v3424, %v3436
        %v3453 = vmul.f32 %v3425, %v3437
        %v3454 = vmul.f32 %v3426, %v3438
        %v3455 = vmul.f32 %v3427, %v3439
        %v3456 = vsub.f32 %v3440, %v3448
        %v3457 = vsub.f32 %v3441, %v3449
        %v3458 = vsub.f32 %v3442, %v3450
        %v3459 = vsub.f32 %v3443, %v3451
        %v3460 = vsub.f32 %v3444, %v3452
        %v3461 = vsub.f32 %v3445, %v3453
        %v3462 = vsub.f32 %v3446, %v3454
        %v3463 = vsub.f32 %v3447, %v3455
        %v3464 = vand.u32 2147483647, %v3420
        %v3465 = vand.u32 2147483647, %v3421
        %v3466 = vand.u32 2147483647, %v3422
        %v3467 = vand.u32 2147483647, %v3423
        %v3468 = vand.u32 2147483647, %v3424
        %v3469 = vand.u32 2147483647, %v3425
        %v3470 = vand.u32 2147483647, %v3426
        %v3471 = vand.u32 2147483647, %v3427
        %v3472 = vsub.f32 0.0, %v3464
        %v3473 = vsub.f32 0.0, %v3465
        %v3474 = vsub.f32 0.0, %v3466
        %v3475 = vsub.f32 0.0, %v3467
        %v3476 = vsub.f32 0.0, %v3468
        %v3477 = vsub.f32 0.0, %v3469
        %v3478 = vsub.f32 0.0, %v3470
        %v3479 = vsub.f32 0.0, %v3471
        %v3480 = vmul.f32 %v3472, 1.442695
        %v3481 = vpow.pop %v3480
        %v3482 = vmul.f32 %v3473, 1.442695
        %v3483 = vpow.pop %v3482
        %v3484 = vmul.f32 %v3474, 1.442695
        %v3485 = vpow.pop %v3484
        %v3486 = vmul.f32 %v3475, 1.442695
        %v3487 = vpow.pop %v3486
        %v3488 = vmul.f32 %v3476, 1.442695
        %v3489 = vpow.pop %v3488
        %v3490 = vmul.f32 %v3477, 1.442695
        %v3491 = vpow.pop %v3490
        %v3492 = vmul.f32 %v3478, 1.442695
        %v3493 = vpow.pop %v3492
        %v3494 = vmul.f32 %v3479, 1.442695
        %v3495 = vpow.pop %v3494
        %v3496 = vadd.f32 %v3481, 1.0
        %v3497 = vadd.f32 %v3483, 1.0
        %v3498 = vadd.f32 %v3485, 1.0
        %v3499 = vadd.f32 %v3487, 1.0
        %v3500 = vadd.f32 %v3489, 1.0
        %v3501 = vadd.f32 %v3491, 1.0
        %v3502 = vadd.f32 %v3493, 1.0
        %v3503 = vadd.f32 %v3495, 1.0
        %v3504 = vlog2.pop %v3496
        %v3505 = vmul.f32 %v3504, 0.6931472
        %v3506 = vlog2.pop %v3497
        %v3507 = vmul.f32 %v3506, 0.6931472
        %v3508 = vlog2.pop %v3498
        %v3509 = vmul.f32 %v3508, 0.6931472
        %v3510 = vlog2.pop %v3499
        %v3511 = vmul.f32 %v3510, 0.6931472
        %v3512 = vlog2.pop %v3500
        %v3513 = vmul.f32 %v3512, 0.6931472
        %v3514 = vlog2.pop %v3501
        %v3515 = vmul.f32 %v3514, 0.6931472
        %v3516 = vlog2.pop %v3502
        %v3517 = vmul.f32 %v3516, 0.6931472
        %v3518 = vlog2.pop %v3503
        %v3519 = vmul.f32 %v3518, 0.6931472
        %v3520 = vadd.f32 %v3456, %v3505
        %v3521 = vadd.f32 %v3457, %v3507
        %v3522 = vadd.f32 %v3458, %v3509
        %v3523 = vadd.f32 %v3459, %v3511
        %v3524 = vadd.f32 %v3460, %v3513
        %v3525 = vadd.f32 %v3461, %v3515
        %v3526 = vadd.f32 %v3462, %v3517
        %v3527 = vadd.f32 %v3463, %v3519
        %v3528 = vadd.f32 %v3408, %v3520
        %v3529 = vadd.f32 %v3409, %v3521
        %v3530 = vadd.f32 %v3410, %v3522
        %v3531 = vadd.f32 %v3411, %v3523
        %v3532 = vadd.f32 %v3412, %v3524
        %v3533 = vadd.f32 %v3413, %v3525
        %v3534 = vadd.f32 %v3414, %v3526
        %v3535 = vadd.f32 %v3415, %v3527
        %v3536 = vld [vmem:[%s194 + $0x300] sm:$0xff]
        %v3537 = vld [vmem:[%s194 + $0x308] sm:$0xff]
        %v3538 = vld [vmem:[%s194 + $0x310] sm:$0xff]
        %v3539 = vld [vmem:[%s194 + $0x318] sm:$0xff]
        %v3540 = vunpack.c.l.bf16 %v3536
        %v3541 = vunpack.c.h.bf16 %v3536
        %v3542 = vunpack.c.l.bf16 %v3537
        %v3543 = vunpack.c.h.bf16 %v3537
        %v3544 = vunpack.c.l.bf16 %v3538
        %v3545 = vunpack.c.h.bf16 %v3538
        %v3546 = vunpack.c.l.bf16 %v3539
        %v3547 = vunpack.c.h.bf16 %v3539
        %v3548 = vld [vmem:[%s194 + $0x920] sm:$0xff]
        %v3549 = vld [vmem:[%s194 + $0x928] sm:$0xff]
        %v3550 = vld [vmem:[%s194 + $0x930] sm:$0xff]
        %v3551 = vld [vmem:[%s194 + $0x938] sm:$0xff]
        %v3552 = vunpack.c.l.bf16 %v3548
        %v3553 = vunpack.c.h.bf16 %v3548
        %v3554 = vunpack.c.l.bf16 %v3549
        %v3555 = vunpack.c.h.bf16 %v3549
        %v3556 = vunpack.c.l.bf16 %v3550
        %v3557 = vunpack.c.h.bf16 %v3550
        %v3558 = vunpack.c.l.bf16 %v3551
        %v3559 = vunpack.c.h.bf16 %v3551
        %v3560 = vmax.f32 %v3540, 0.0
        %v3561 = vmax.f32 %v3541, 0.0
        %v3562 = vmax.f32 %v3542, 0.0
        %v3563 = vmax.f32 %v3543, 0.0
        %v3564 = vmax.f32 %v3544, 0.0
        %v3565 = vmax.f32 %v3545, 0.0
        %v3566 = vmax.f32 %v3546, 0.0
        %v3567 = vmax.f32 %v3547, 0.0
        %v3568 = vmul.f32 %v3540, %v3552
        %v3569 = vmul.f32 %v3541, %v3553
        %v3570 = vmul.f32 %v3542, %v3554
        %v3571 = vmul.f32 %v3543, %v3555
        %v3572 = vmul.f32 %v3544, %v3556
        %v3573 = vmul.f32 %v3545, %v3557
        %v3574 = vmul.f32 %v3546, %v3558
        %v3575 = vmul.f32 %v3547, %v3559
        %v3576 = vsub.f32 %v3560, %v3568
        %v3577 = vsub.f32 %v3561, %v3569
        %v3578 = vsub.f32 %v3562, %v3570
        %v3579 = vsub.f32 %v3563, %v3571
        %v3580 = vsub.f32 %v3564, %v3572
        %v3581 = vsub.f32 %v3565, %v3573
        %v3582 = vsub.f32 %v3566, %v3574
        %v3583 = vsub.f32 %v3567, %v3575
        %v3584 = vand.u32 2147483647, %v3540
        %v3585 = vand.u32 2147483647, %v3541
        %v3586 = vand.u32 2147483647, %v3542
        %v3587 = vand.u32 2147483647, %v3543
        %v3588 = vand.u32 2147483647, %v3544
        %v3589 = vand.u32 2147483647, %v3545
        %v3590 = vand.u32 2147483647, %v3546
        %v3591 = vand.u32 2147483647, %v3547
        %v3592 = vsub.f32 0.0, %v3584
        %v3593 = vsub.f32 0.0, %v3585
        %v3594 = vsub.f32 0.0, %v3586
        %v3595 = vsub.f32 0.0, %v3587
        %v3596 = vsub.f32 0.0, %v3588
        %v3597 = vsub.f32 0.0, %v3589
        %v3598 = vsub.f32 0.0, %v3590
        %v3599 = vsub.f32 0.0, %v3591
        %v3600 = vmul.f32 %v3592, 1.442695
        %v3601 = vpow.pop %v3600
        %v3602 = vmul.f32 %v3593, 1.442695
        %v3603 = vpow.pop %v3602
        %v3604 = vmul.f32 %v3594, 1.442695
        %v3605 = vpow.pop %v3604
        %v3606 = vmul.f32 %v3595, 1.442695
        %v3607 = vpow.pop %v3606
        %v3608 = vmul.f32 %v3596, 1.442695
        %v3609 = vpow.pop %v3608
        %v3610 = vmul.f32 %v3597, 1.442695
        %v3611 = vpow.pop %v3610
        %v3612 = vmul.f32 %v3598, 1.442695
        %v3613 = vpow.pop %v3612
        %v3614 = vmul.f32 %v3599, 1.442695
        %v3615 = vpow.pop %v3614
        %v3616 = vadd.f32 %v3601, 1.0
        %v3617 = vadd.f32 %v3603, 1.0
        %v3618 = vadd.f32 %v3605, 1.0
        %v3619 = vadd.f32 %v3607, 1.0
        %v3620 = vadd.f32 %v3609, 1.0
        %v3621 = vadd.f32 %v3611, 1.0
        %v3622 = vadd.f32 %v3613, 1.0
        %v3623 = vadd.f32 %v3615, 1.0
        %v3624 = vlog2.pop %v3616
        %v3625 = vmul.f32 %v3624, 0.6931472
        %v3626 = vlog2.pop %v3617
        %v3627 = vmul.f32 %v3626, 0.6931472
        %v3628 = vlog2.pop %v3618
        %v3629 = vmul.f32 %v3628, 0.6931472
        %v3630 = vlog2.pop %v3619
        %v3631 = vmul.f32 %v3630, 0.6931472
        %v3632 = vlog2.pop %v3620
        %v3633 = vmul.f32 %v3632, 0.6931472
        %v3634 = vlog2.pop %v3621
        %v3635 = vmul.f32 %v3634, 0.6931472
        %v3636 = vlog2.pop %v3622
        %v3637 = vmul.f32 %v3636, 0.6931472
        %v3638 = vlog2.pop %v3623
        %v3639 = vmul.f32 %v3638, 0.6931472
        %v3640 = vadd.f32 %v3576, %v3625
        %v3641 = vadd.f32 %v3577, %v3627
        %v3642 = vadd.f32 %v3578, %v3629
        %v3643 = vadd.f32 %v3579, %v3631
        %v3644 = vadd.f32 %v3580, %v3633
        %v3645 = vadd.f32 %v3581, %v3635
        %v3646 = vadd.f32 %v3582, %v3637
        %v3647 = vadd.f32 %v3583, %v3639
        %v3648 = vadd.f32 %v3528, %v3640
        %v3649 = vadd.f32 %v3529, %v3641
        %v3650 = vadd.f32 %v3530, %v3642
        %v3651 = vadd.f32 %v3531, %v3643
        %v3652 = vadd.f32 %v3532, %v3644
        %v3653 = vadd.f32 %v3533, %v3645
        %v3654 = vadd.f32 %v3534, %v3646
        %v3655 = vadd.f32 %v3535, %v3647
        %v3656 = vld [vmem:[%s194 + $0x320] sm:$0xff]
        %v3657 = vld [vmem:[%s194 + $0x328] sm:$0xff]
        %v3658 = vld [vmem:[%s194 + $0x330] sm:$0xff]
        %v3659 = vld [vmem:[%s194 + $0x338] sm:$0xff]
        %v3660 = vunpack.c.l.bf16 %v3656
        %v3661 = vunpack.c.h.bf16 %v3656
        %v3662 = vunpack.c.l.bf16 %v3657
        %v3663 = vunpack.c.h.bf16 %v3657
        %v3664 = vunpack.c.l.bf16 %v3658
        %v3665 = vunpack.c.h.bf16 %v3658
        %v3666 = vunpack.c.l.bf16 %v3659
        %v3667 = vunpack.c.h.bf16 %v3659
        %v3668 = vld [vmem:[%s194 + $0x940] sm:$0xff]
        %v3669 = vld [vmem:[%s194 + $0x948] sm:$0xff]
        %v3670 = vld [vmem:[%s194 + $0x950] sm:$0xff]
        %v3671 = vld [vmem:[%s194 + $0x958] sm:$0xff]
        %v3672 = vunpack.c.l.bf16 %v3668
        %v3673 = vunpack.c.h.bf16 %v3668
        %v3674 = vunpack.c.l.bf16 %v3669
        %v3675 = vunpack.c.h.bf16 %v3669
        %v3676 = vunpack.c.l.bf16 %v3670
        %v3677 = vunpack.c.h.bf16 %v3670
        %v3678 = vunpack.c.l.bf16 %v3671
        %v3679 = vunpack.c.h.bf16 %v3671
        %v3680 = vmax.f32 %v3660, 0.0
        %v3681 = vmax.f32 %v3661, 0.0
        %v3682 = vmax.f32 %v3662, 0.0
        %v3683 = vmax.f32 %v3663, 0.0
        %v3684 = vmax.f32 %v3664, 0.0
        %v3685 = vmax.f32 %v3665, 0.0
        %v3686 = vmax.f32 %v3666, 0.0
        %v3687 = vmax.f32 %v3667, 0.0
        %v3688 = vmul.f32 %v3660, %v3672
        %v3689 = vmul.f32 %v3661, %v3673
        %v3690 = vmul.f32 %v3662, %v3674
        %v3691 = vmul.f32 %v3663, %v3675
        %v3692 = vmul.f32 %v3664, %v3676
        %v3693 = vmul.f32 %v3665, %v3677
        %v3694 = vmul.f32 %v3666, %v3678
        %v3695 = vmul.f32 %v3667, %v3679
        %v3696 = vsub.f32 %v3680, %v3688
        %v3697 = vsub.f32 %v3681, %v3689
        %v3698 = vsub.f32 %v3682, %v3690
        %v3699 = vsub.f32 %v3683, %v3691
        %v3700 = vsub.f32 %v3684, %v3692
        %v3701 = vsub.f32 %v3685, %v3693
        %v3702 = vsub.f32 %v3686, %v3694
        %v3703 = vsub.f32 %v3687, %v3695
        %v3704 = vand.u32 2147483647, %v3660
        %v3705 = vand.u32 2147483647, %v3661
        %v3706 = vand.u32 2147483647, %v3662
        %v3707 = vand.u32 2147483647, %v3663
        %v3708 = vand.u32 2147483647, %v3664
        %v3709 = vand.u32 2147483647, %v3665
        %v3710 = vand.u32 2147483647, %v3666
        %v3711 = vand.u32 2147483647, %v3667
        %v3712 = vsub.f32 0.0, %v3704
        %v3713 = vsub.f32 0.0, %v3705
        %v3714 = vsub.f32 0.0, %v3706
        %v3715 = vsub.f32 0.0, %v3707
        %v3716 = vsub.f32 0.0, %v3708
        %v3717 = vsub.f32 0.0, %v3709
        %v3718 = vsub.f32 0.0, %v3710
        %v3719 = vsub.f32 0.0, %v3711
        %v3720 = vmul.f32 %v3712, 1.442695
        %v3721 = vpow.pop %v3720
        %v3722 = vmul.f32 %v3713, 1.442695
        %v3723 = vpow.pop %v3722
        %v3724 = vmul.f32 %v3714, 1.442695
        %v3725 = vpow.pop %v3724
        %v3726 = vmul.f32 %v3715, 1.442695
        %v3727 = vpow.pop %v3726
        %v3728 = vmul.f32 %v3716, 1.442695
        %v3729 = vpow.pop %v3728
        %v3730 = vmul.f32 %v3717, 1.442695
        %v3731 = vpow.pop %v3730
        %v3732 = vmul.f32 %v3718, 1.442695
        %v3733 = vpow.pop %v3732
        %v3734 = vmul.f32 %v3719, 1.442695
        %v3735 = vpow.pop %v3734
        %v3736 = vadd.f32 %v3721, 1.0
        %v3737 = vadd.f32 %v3723, 1.0
        %v3738 = vadd.f32 %v3725, 1.0
        %v3739 = vadd.f32 %v3727, 1.0
        %v3740 = vadd.f32 %v3729, 1.0
        %v3741 = vadd.f32 %v3731, 1.0
        %v3742 = vadd.f32 %v3733, 1.0
        %v3743 = vadd.f32 %v3735, 1.0
        %v3744 = vlog2.pop %v3736
        %v3745 = vmul.f32 %v3744, 0.6931472
        %v3746 = vlog2.pop %v3737
        %v3747 = vmul.f32 %v3746, 0.6931472
        %v3748 = vlog2.pop %v3738
        %v3749 = vmul.f32 %v3748, 0.6931472
        %v3750 = vlog2.pop %v3739
        %v3751 = vmul.f32 %v3750, 0.6931472
        %v3752 = vlog2.pop %v3740
        %v3753 = vmul.f32 %v3752, 0.6931472
        %v3754 = vlog2.pop %v3741
        %v3755 = vmul.f32 %v3754, 0.6931472
        %v3756 = vlog2.pop %v3742
        %v3757 = vmul.f32 %v3756, 0.6931472
        %v3758 = vlog2.pop %v3743
        %v3759 = vmul.f32 %v3758, 0.6931472
        %v3760 = vadd.f32 %v3696, %v3745
        %v3761 = vadd.f32 %v3697, %v3747
        %v3762 = vadd.f32 %v3698, %v3749
        %v3763 = vadd.f32 %v3699, %v3751
        %v3764 = vadd.f32 %v3700, %v3753
        %v3765 = vadd.f32 %v3701, %v3755
        %v3766 = vadd.f32 %v3702, %v3757
        %v3767 = vadd.f32 %v3703, %v3759
        %v3768 = vadd.f32 %v3648, %v3760
        %v3769 = vadd.f32 %v3649, %v3761
        %v3770 = vadd.f32 %v3650, %v3762
        %v3771 = vadd.f32 %v3651, %v3763
        %v3772 = vadd.f32 %v3652, %v3764
        %v3773 = vadd.f32 %v3653, %v3765
        %v3774 = vadd.f32 %v3654, %v3766
        %v3775 = vadd.f32 %v3655, %v3767
        %v3776 = vld [vmem:[%s194 + $0x340] sm:$0xff]
        %v3777 = vld [vmem:[%s194 + $0x348] sm:$0xff]
        %v3778 = vld [vmem:[%s194 + $0x350] sm:$0xff]
        %v3779 = vld [vmem:[%s194 + $0x358] sm:$0xff]
        %v3780 = vunpack.c.l.bf16 %v3776
        %v3781 = vunpack.c.h.bf16 %v3776
        %v3782 = vunpack.c.l.bf16 %v3777
        %v3783 = vunpack.c.h.bf16 %v3777
        %v3784 = vunpack.c.l.bf16 %v3778
        %v3785 = vunpack.c.h.bf16 %v3778
        %v3786 = vunpack.c.l.bf16 %v3779
        %v3787 = vunpack.c.h.bf16 %v3779
        %v3788 = vld [vmem:[%s194 + $0x960] sm:$0xff]
        %v3789 = vld [vmem:[%s194 + $0x968] sm:$0xff]
        %v3790 = vld [vmem:[%s194 + $0x970] sm:$0xff]
        %v3791 = vld [vmem:[%s194 + $0x978] sm:$0xff]
        %v3792 = vunpack.c.l.bf16 %v3788
        %v3793 = vunpack.c.h.bf16 %v3788
        %v3794 = vunpack.c.l.bf16 %v3789
        %v3795 = vunpack.c.h.bf16 %v3789
        %v3796 = vunpack.c.l.bf16 %v3790
        %v3797 = vunpack.c.h.bf16 %v3790
        %v3798 = vunpack.c.l.bf16 %v3791
        %v3799 = vunpack.c.h.bf16 %v3791
        %v3800 = vmax.f32 %v3780, 0.0
        %v3801 = vmax.f32 %v3781, 0.0
        %v3802 = vmax.f32 %v3782, 0.0
        %v3803 = vmax.f32 %v3783, 0.0
        %v3804 = vmax.f32 %v3784, 0.0
        %v3805 = vmax.f32 %v3785, 0.0
        %v3806 = vmax.f32 %v3786, 0.0
        %v3807 = vmax.f32 %v3787, 0.0
        %v3808 = vmul.f32 %v3780, %v3792
        %v3809 = vmul.f32 %v3781, %v3793
        %v3810 = vmul.f32 %v3782, %v3794
        %v3811 = vmul.f32 %v3783, %v3795
        %v3812 = vmul.f32 %v3784, %v3796
        %v3813 = vmul.f32 %v3785, %v3797
        %v3814 = vmul.f32 %v3786, %v3798
        %v3815 = vmul.f32 %v3787, %v3799
        %v3816 = vsub.f32 %v3800, %v3808
        %v3817 = vsub.f32 %v3801, %v3809
        %v3818 = vsub.f32 %v3802, %v3810
        %v3819 = vsub.f32 %v3803, %v3811
        %v3820 = vsub.f32 %v3804, %v3812
        %v3821 = vsub.f32 %v3805, %v3813
        %v3822 = vsub.f32 %v3806, %v3814
        %v3823 = vsub.f32 %v3807, %v3815
        %v3824 = vand.u32 2147483647, %v3780
        %v3825 = vand.u32 2147483647, %v3781
        %v3826 = vand.u32 2147483647, %v3782
        %v3827 = vand.u32 2147483647, %v3783
        %v3828 = vand.u32 2147483647, %v3784
        %v3829 = vand.u32 2147483647, %v3785
        %v3830 = vand.u32 2147483647, %v3786
        %v3831 = vand.u32 2147483647, %v3787
        %v3832 = vsub.f32 0.0, %v3824
        %v3833 = vsub.f32 0.0, %v3825
        %v3834 = vsub.f32 0.0, %v3826
        %v3835 = vsub.f32 0.0, %v3827
        %v3836 = vsub.f32 0.0, %v3828
        %v3837 = vsub.f32 0.0, %v3829
        %v3838 = vsub.f32 0.0, %v3830
        %v3839 = vsub.f32 0.0, %v3831
        %v3840 = vmul.f32 %v3832, 1.442695
        %v3841 = vpow.pop %v3840
        %v3842 = vmul.f32 %v3833, 1.442695
        %v3843 = vpow.pop %v3842
        %v3844 = vmul.f32 %v3834, 1.442695
        %v3845 = vpow.pop %v3844
        %v3846 = vmul.f32 %v3835, 1.442695
        %v3847 = vpow.pop %v3846
        %v3848 = vmul.f32 %v3836, 1.442695
        %v3849 = vpow.pop %v3848
        %v3850 = vmul.f32 %v3837, 1.442695
        %v3851 = vpow.pop %v3850
        %v3852 = vmul.f32 %v3838, 1.442695
        %v3853 = vpow.pop %v3852
        %v3854 = vmul.f32 %v3839, 1.442695
        %v3855 = vpow.pop %v3854
        %v3856 = vadd.f32 %v3841, 1.0
        %v3857 = vadd.f32 %v3843, 1.0
        %v3858 = vadd.f32 %v3845, 1.0
        %v3859 = vadd.f32 %v3847, 1.0
        %v3860 = vadd.f32 %v3849, 1.0
        %v3861 = vadd.f32 %v3851, 1.0
        %v3862 = vadd.f32 %v3853, 1.0
        %v3863 = vadd.f32 %v3855, 1.0
        %v3864 = vlog2.pop %v3856
        %v3865 = vmul.f32 %v3864, 0.6931472
        %v3866 = vlog2.pop %v3857
        %v3867 = vmul.f32 %v3866, 0.6931472
        %v3868 = vlog2.pop %v3858
        %v3869 = vmul.f32 %v3868, 0.6931472
        %v3870 = vlog2.pop %v3859
        %v3871 = vmul.f32 %v3870, 0.6931472
        %v3872 = vlog2.pop %v3860
        %v3873 = vmul.f32 %v3872, 0.6931472
        %v3874 = vlog2.pop %v3861
        %v3875 = vmul.f32 %v3874, 0.6931472
        %v3876 = vlog2.pop %v3862
        %v3877 = vmul.f32 %v3876, 0.6931472
        %v3878 = vlog2.pop %v3863
        %v3879 = vmul.f32 %v3878, 0.6931472
        %v3880 = vadd.f32 %v3816, %v3865
        %v3881 = vadd.f32 %v3817, %v3867
        %v3882 = vadd.f32 %v3818, %v3869
        %v3883 = vadd.f32 %v3819, %v3871
        %v3884 = vadd.f32 %v3820, %v3873
        %v3885 = vadd.f32 %v3821, %v3875
        %v3886 = vadd.f32 %v3822, %v3877
        %v3887 = vadd.f32 %v3823, %v3879
        %v3888 = vadd.f32 %v3768, %v3880
        %v3889 = vadd.f32 %v3769, %v3881
        %v3890 = vadd.f32 %v3770, %v3882
        %v3891 = vadd.f32 %v3771, %v3883
        %v3892 = vadd.f32 %v3772, %v3884
        %v3893 = vadd.f32 %v3773, %v3885
        %v3894 = vadd.f32 %v3774, %v3886
        %v3895 = vadd.f32 %v3775, %v3887
        %v3896 = vld [vmem:[%s194 + $0x360] sm:$0xff]
        %v3897 = vld [vmem:[%s194 + $0x368] sm:$0xff]
        %v3898 = vld [vmem:[%s194 + $0x370] sm:$0xff]
        %v3899 = vld [vmem:[%s194 + $0x378] sm:$0xff]
        %v3900 = vunpack.c.l.bf16 %v3896
        %v3901 = vunpack.c.h.bf16 %v3896
        %v3902 = vunpack.c.l.bf16 %v3897
        %v3903 = vunpack.c.h.bf16 %v3897
        %v3904 = vunpack.c.l.bf16 %v3898
        %v3905 = vunpack.c.h.bf16 %v3898
        %v3906 = vunpack.c.l.bf16 %v3899
        %v3907 = vunpack.c.h.bf16 %v3899
        %v3908 = vld [vmem:[%s194 + $0x980] sm:$0xff]
        %v3909 = vld [vmem:[%s194 + $0x988] sm:$0xff]
        %v3910 = vld [vmem:[%s194 + $0x990] sm:$0xff]
        %v3911 = vld [vmem:[%s194 + $0x998] sm:$0xff]
        %v3912 = vunpack.c.l.bf16 %v3908
        %v3913 = vunpack.c.h.bf16 %v3908
        %v3914 = vunpack.c.l.bf16 %v3909
        %v3915 = vunpack.c.h.bf16 %v3909
        %v3916 = vunpack.c.l.bf16 %v3910
        %v3917 = vunpack.c.h.bf16 %v3910
        %v3918 = vunpack.c.l.bf16 %v3911
        %v3919 = vunpack.c.h.bf16 %v3911
        %v3920 = vmax.f32 %v3900, 0.0
        %v3921 = vmax.f32 %v3901, 0.0
        %v3922 = vmax.f32 %v3902, 0.0
        %v3923 = vmax.f32 %v3903, 0.0
        %v3924 = vmax.f32 %v3904, 0.0
        %v3925 = vmax.f32 %v3905, 0.0
        %v3926 = vmax.f32 %v3906, 0.0
        %v3927 = vmax.f32 %v3907, 0.0
        %v3928 = vmul.f32 %v3900, %v3912
        %v3929 = vmul.f32 %v3901, %v3913
        %v3930 = vmul.f32 %v3902, %v3914
        %v3931 = vmul.f32 %v3903, %v3915
        %v3932 = vmul.f32 %v3904, %v3916
        %v3933 = vmul.f32 %v3905, %v3917
        %v3934 = vmul.f32 %v3906, %v3918
        %v3935 = vmul.f32 %v3907, %v3919
        %v3936 = vsub.f32 %v3920, %v3928
        %v3937 = vsub.f32 %v3921, %v3929
        %v3938 = vsub.f32 %v3922, %v3930
        %v3939 = vsub.f32 %v3923, %v3931
        %v3940 = vsub.f32 %v3924, %v3932
        %v3941 = vsub.f32 %v3925, %v3933
        %v3942 = vsub.f32 %v3926, %v3934
        %v3943 = vsub.f32 %v3927, %v3935
        %v3944 = vand.u32 2147483647, %v3900
        %v3945 = vand.u32 2147483647, %v3901
        %v3946 = vand.u32 2147483647, %v3902
        %v3947 = vand.u32 2147483647, %v3903
        %v3948 = vand.u32 2147483647, %v3904
        %v3949 = vand.u32 2147483647, %v3905
        %v3950 = vand.u32 2147483647, %v3906
        %v3951 = vand.u32 2147483647, %v3907
        %v3952 = vsub.f32 0.0, %v3944
        %v3953 = vsub.f32 0.0, %v3945
        %v3954 = vsub.f32 0.0, %v3946
        %v3955 = vsub.f32 0.0, %v3947
        %v3956 = vsub.f32 0.0, %v3948
        %v3957 = vsub.f32 0.0, %v3949
        %v3958 = vsub.f32 0.0, %v3950
        %v3959 = vsub.f32 0.0, %v3951
        %v3960 = vmul.f32 %v3952, 1.442695
        %v3961 = vpow.pop %v3960
        %v3962 = vmul.f32 %v3953, 1.442695
        %v3963 = vpow.pop %v3962
        %v3964 = vmul.f32 %v3954, 1.442695
        %v3965 = vpow.pop %v3964
        %v3966 = vmul.f32 %v3955, 1.442695
        %v3967 = vpow.pop %v3966
        %v3968 = vmul.f32 %v3956, 1.442695
        %v3969 = vpow.pop %v3968
        %v3970 = vmul.f32 %v3957, 1.442695
        %v3971 = vpow.pop %v3970
        %v3972 = vmul.f32 %v3958, 1.442695
        %v3973 = vpow.pop %v3972
        %v3974 = vmul.f32 %v3959, 1.442695
        %v3975 = vpow.pop %v3974
        %v3976 = vadd.f32 %v3961, 1.0
        %v3977 = vadd.f32 %v3963, 1.0
        %v3978 = vadd.f32 %v3965, 1.0
        %v3979 = vadd.f32 %v3967, 1.0
        %v3980 = vadd.f32 %v3969, 1.0
        %v3981 = vadd.f32 %v3971, 1.0
        %v3982 = vadd.f32 %v3973, 1.0
        %v3983 = vadd.f32 %v3975, 1.0
        %v3984 = vlog2.pop %v3976
        %v3985 = vmul.f32 %v3984, 0.6931472
        %v3986 = vlog2.pop %v3977
        %v3987 = vmul.f32 %v3986, 0.6931472
        %v3988 = vlog2.pop %v3978
        %v3989 = vmul.f32 %v3988, 0.6931472
        %v3990 = vlog2.pop %v3979
        %v3991 = vmul.f32 %v3990, 0.6931472
        %v3992 = vlog2.pop %v3980
        %v3993 = vmul.f32 %v3992, 0.6931472
        %v3994 = vlog2.pop %v3981
        %v3995 = vmul.f32 %v3994, 0.6931472
        %v3996 = vlog2.pop %v3982
        %v3997 = vmul.f32 %v3996, 0.6931472
        %v3998 = vlog2.pop %v3983
        %v3999 = vmul.f32 %v3998, 0.6931472
        %v4000 = vadd.f32 %v3936, %v3985
        %v4001 = vadd.f32 %v3937, %v3987
        %v4002 = vadd.f32 %v3938, %v3989
        %v4003 = vadd.f32 %v3939, %v3991
        %v4004 = vadd.f32 %v3940, %v3993
        %v4005 = vadd.f32 %v3941, %v3995
        %v4006 = vadd.f32 %v3942, %v3997
        %v4007 = vadd.f32 %v3943, %v3999
        %v4008 = vadd.f32 %v3888, %v4000
        %v4009 = vadd.f32 %v3889, %v4001
        %v4010 = vadd.f32 %v3890, %v4002
        %v4011 = vadd.f32 %v3891, %v4003
        %v4012 = vadd.f32 %v3892, %v4004
        %v4013 = vadd.f32 %v3893, %v4005
        %v4014 = vadd.f32 %v3894, %v4006
        %v4015 = vadd.f32 %v3895, %v4007
        %v4016 = vld [vmem:[%s194 + $0x380] sm:$0xff]
        %v4017 = vld [vmem:[%s194 + $0x388] sm:$0xff]
        %v4018 = vld [vmem:[%s194 + $0x390] sm:$0xff]
        %v4019 = vld [vmem:[%s194 + $0x398] sm:$0xff]
        %v4020 = vunpack.c.l.bf16 %v4016
        %v4021 = vunpack.c.h.bf16 %v4016
        %v4022 = vunpack.c.l.bf16 %v4017
        %v4023 = vunpack.c.h.bf16 %v4017
        %v4024 = vunpack.c.l.bf16 %v4018
        %v4025 = vunpack.c.h.bf16 %v4018
        %v4026 = vunpack.c.l.bf16 %v4019
        %v4027 = vunpack.c.h.bf16 %v4019
        %v4028 = vld [vmem:[%s194 + $0x9a0] sm:$0xff]
        %v4029 = vld [vmem:[%s194 + $0x9a8] sm:$0xff]
        %v4030 = vld [vmem:[%s194 + $0x9b0] sm:$0xff]
        %v4031 = vld [vmem:[%s194 + $0x9b8] sm:$0xff]
        %v4032 = vunpack.c.l.bf16 %v4028
        %v4033 = vunpack.c.h.bf16 %v4028
        %v4034 = vunpack.c.l.bf16 %v4029
        %v4035 = vunpack.c.h.bf16 %v4029
        %v4036 = vunpack.c.l.bf16 %v4030
        %v4037 = vunpack.c.h.bf16 %v4030
        %v4038 = vunpack.c.l.bf16 %v4031
        %v4039 = vunpack.c.h.bf16 %v4031
        %v4040 = vmax.f32 %v4020, 0.0
        %v4041 = vmax.f32 %v4021, 0.0
        %v4042 = vmax.f32 %v4022, 0.0
        %v4043 = vmax.f32 %v4023, 0.0
        %v4044 = vmax.f32 %v4024, 0.0
        %v4045 = vmax.f32 %v4025, 0.0
        %v4046 = vmax.f32 %v4026, 0.0
        %v4047 = vmax.f32 %v4027, 0.0
        %v4048 = vmul.f32 %v4020, %v4032
        %v4049 = vmul.f32 %v4021, %v4033
        %v4050 = vmul.f32 %v4022, %v4034
        %v4051 = vmul.f32 %v4023, %v4035
        %v4052 = vmul.f32 %v4024, %v4036
        %v4053 = vmul.f32 %v4025, %v4037
        %v4054 = vmul.f32 %v4026, %v4038
        %v4055 = vmul.f32 %v4027, %v4039
        %v4056 = vsub.f32 %v4040, %v4048
        %v4057 = vsub.f32 %v4041, %v4049
        %v4058 = vsub.f32 %v4042, %v4050
        %v4059 = vsub.f32 %v4043, %v4051
        %v4060 = vsub.f32 %v4044, %v4052
        %v4061 = vsub.f32 %v4045, %v4053
        %v4062 = vsub.f32 %v4046, %v4054
        %v4063 = vsub.f32 %v4047, %v4055
        %v4064 = vand.u32 2147483647, %v4020
        %v4065 = vand.u32 2147483647, %v4021
        %v4066 = vand.u32 2147483647, %v4022
        %v4067 = vand.u32 2147483647, %v4023
        %v4068 = vand.u32 2147483647, %v4024
        %v4069 = vand.u32 2147483647, %v4025
        %v4070 = vand.u32 2147483647, %v4026
        %v4071 = vand.u32 2147483647, %v4027
        %v4072 = vsub.f32 0.0, %v4064
        %v4073 = vsub.f32 0.0, %v4065
        %v4074 = vsub.f32 0.0, %v4066
        %v4075 = vsub.f32 0.0, %v4067
        %v4076 = vsub.f32 0.0, %v4068
        %v4077 = vsub.f32 0.0, %v4069
        %v4078 = vsub.f32 0.0, %v4070
        %v4079 = vsub.f32 0.0, %v4071
        %v4080 = vmul.f32 %v4072, 1.442695
        %v4081 = vpow.pop %v4080
        %v4082 = vmul.f32 %v4073, 1.442695
        %v4083 = vpow.pop %v4082
        %v4084 = vmul.f32 %v4074, 1.442695
        %v4085 = vpow.pop %v4084
        %v4086 = vmul.f32 %v4075, 1.442695
        %v4087 = vpow.pop %v4086
        %v4088 = vmul.f32 %v4076, 1.442695
        %v4089 = vpow.pop %v4088
        %v4090 = vmul.f32 %v4077, 1.442695
        %v4091 = vpow.pop %v4090
        %v4092 = vmul.f32 %v4078, 1.442695
        %v4093 = vpow.pop %v4092
        %v4094 = vmul.f32 %v4079, 1.442695
        %v4095 = vpow.pop %v4094
        %v4096 = vadd.f32 %v4081, 1.0
        %v4097 = vadd.f32 %v4083, 1.0
        %v4098 = vadd.f32 %v4085, 1.0
        %v4099 = vadd.f32 %v4087, 1.0
        %v4100 = vadd.f32 %v4089, 1.0
        %v4101 = vadd.f32 %v4091, 1.0
        %v4102 = vadd.f32 %v4093, 1.0
        %v4103 = vadd.f32 %v4095, 1.0
        %v4104 = vlog2.pop %v4096
        %v4105 = vmul.f32 %v4104, 0.6931472
        %v4106 = vlog2.pop %v4097
        %v4107 = vmul.f32 %v4106, 0.6931472
        %v4108 = vlog2.pop %v4098
        %v4109 = vmul.f32 %v4108, 0.6931472
        %v4110 = vlog2.pop %v4099
        %v4111 = vmul.f32 %v4110, 0.6931472
        %v4112 = vlog2.pop %v4100
        %v4113 = vmul.f32 %v4112, 0.6931472
        %v4114 = vlog2.pop %v4101
        %v4115 = vmul.f32 %v4114, 0.6931472
        %v4116 = vlog2.pop %v4102
        %v4117 = vmul.f32 %v4116, 0.6931472
        %v4118 = vlog2.pop %v4103
        %v4119 = vmul.f32 %v4118, 0.6931472
        %v4120 = vadd.f32 %v4056, %v4105
        %v4121 = vadd.f32 %v4057, %v4107
        %v4122 = vadd.f32 %v4058, %v4109
        %v4123 = vadd.f32 %v4059, %v4111
        %v4124 = vadd.f32 %v4060, %v4113
        %v4125 = vadd.f32 %v4061, %v4115
        %v4126 = vadd.f32 %v4062, %v4117
        %v4127 = vadd.f32 %v4063, %v4119
        %v4128 = vadd.f32 %v4008, %v4120
        %v4129 = vadd.f32 %v4009, %v4121
        %v4130 = vadd.f32 %v4010, %v4122
        %v4131 = vadd.f32 %v4011, %v4123
        %v4132 = vadd.f32 %v4012, %v4124
        %v4133 = vadd.f32 %v4013, %v4125
        %v4134 = vadd.f32 %v4014, %v4126
        %v4135 = vadd.f32 %v4015, %v4127
        %v4136 = vld [vmem:[%s194 + $0x3a0] sm:$0xff]
        %v4137 = vld [vmem:[%s194 + $0x3a8] sm:$0xff]
        %v4138 = vld [vmem:[%s194 + $0x3b0] sm:$0xff]
        %v4139 = vld [vmem:[%s194 + $0x3b8] sm:$0xff]
        %v4140 = vunpack.c.l.bf16 %v4136
        %v4141 = vunpack.c.h.bf16 %v4136
        %v4142 = vunpack.c.l.bf16 %v4137
        %v4143 = vunpack.c.h.bf16 %v4137
        %v4144 = vunpack.c.l.bf16 %v4138
        %v4145 = vunpack.c.h.bf16 %v4138
        %v4146 = vunpack.c.l.bf16 %v4139
        %v4147 = vunpack.c.h.bf16 %v4139
        %v4148 = vld [vmem:[%s194 + $0x9c0] sm:$0xff]
        %v4149 = vld [vmem:[%s194 + $0x9c8] sm:$0xff]
        %v4150 = vld [vmem:[%s194 + $0x9d0] sm:$0xff]
        %v4151 = vld [vmem:[%s194 + $0x9d8] sm:$0xff]
        %v4152 = vunpack.c.l.bf16 %v4148
        %v4153 = vunpack.c.h.bf16 %v4148
        %v4154 = vunpack.c.l.bf16 %v4149
        %v4155 = vunpack.c.h.bf16 %v4149
        %v4156 = vunpack.c.l.bf16 %v4150
        %v4157 = vunpack.c.h.bf16 %v4150
        %v4158 = vunpack.c.l.bf16 %v4151
        %v4159 = vunpack.c.h.bf16 %v4151
        %v4160 = vmax.f32 %v4140, 0.0
        %v4161 = vmax.f32 %v4141, 0.0
        %v4162 = vmax.f32 %v4142, 0.0
        %v4163 = vmax.f32 %v4143, 0.0
        %v4164 = vmax.f32 %v4144, 0.0
        %v4165 = vmax.f32 %v4145, 0.0
        %v4166 = vmax.f32 %v4146, 0.0
        %v4167 = vmax.f32 %v4147, 0.0
        %v4168 = vmul.f32 %v4140, %v4152
        %v4169 = vmul.f32 %v4141, %v4153
        %v4170 = vmul.f32 %v4142, %v4154
        %v4171 = vmul.f32 %v4143, %v4155
        %v4172 = vmul.f32 %v4144, %v4156
        %v4173 = vmul.f32 %v4145, %v4157
        %v4174 = vmul.f32 %v4146, %v4158
        %v4175 = vmul.f32 %v4147, %v4159
        %v4176 = vsub.f32 %v4160, %v4168
        %v4177 = vsub.f32 %v4161, %v4169
        %v4178 = vsub.f32 %v4162, %v4170
        %v4179 = vsub.f32 %v4163, %v4171
        %v4180 = vsub.f32 %v4164, %v4172
        %v4181 = vsub.f32 %v4165, %v4173
        %v4182 = vsub.f32 %v4166, %v4174
        %v4183 = vsub.f32 %v4167, %v4175
        %v4184 = vand.u32 2147483647, %v4140
        %v4185 = vand.u32 2147483647, %v4141
        %v4186 = vand.u32 2147483647, %v4142
        %v4187 = vand.u32 2147483647, %v4143
        %v4188 = vand.u32 2147483647, %v4144
        %v4189 = vand.u32 2147483647, %v4145
        %v4190 = vand.u32 2147483647, %v4146
        %v4191 = vand.u32 2147483647, %v4147
        %v4192 = vsub.f32 0.0, %v4184
        %v4193 = vsub.f32 0.0, %v4185
        %v4194 = vsub.f32 0.0, %v4186
        %v4195 = vsub.f32 0.0, %v4187
        %v4196 = vsub.f32 0.0, %v4188
        %v4197 = vsub.f32 0.0, %v4189
        %v4198 = vsub.f32 0.0, %v4190
        %v4199 = vsub.f32 0.0, %v4191
        %v4200 = vmul.f32 %v4192, 1.442695
        %v4201 = vpow.pop %v4200
        %v4202 = vmul.f32 %v4193, 1.442695
        %v4203 = vpow.pop %v4202
        %v4204 = vmul.f32 %v4194, 1.442695
        %v4205 = vpow.pop %v4204
        %v4206 = vmul.f32 %v4195, 1.442695
        %v4207 = vpow.pop %v4206
        %v4208 = vmul.f32 %v4196, 1.442695
        %v4209 = vpow.pop %v4208
        %v4210 = vmul.f32 %v4197, 1.442695
        %v4211 = vpow.pop %v4210
        %v4212 = vmul.f32 %v4198, 1.442695
        %v4213 = vpow.pop %v4212
        %v4214 = vmul.f32 %v4199, 1.442695
        %v4215 = vpow.pop %v4214
        %v4216 = vadd.f32 %v4201, 1.0
        %v4217 = vadd.f32 %v4203, 1.0
        %v4218 = vadd.f32 %v4205, 1.0
        %v4219 = vadd.f32 %v4207, 1.0
        %v4220 = vadd.f32 %v4209, 1.0
        %v4221 = vadd.f32 %v4211, 1.0
        %v4222 = vadd.f32 %v4213, 1.0
        %v4223 = vadd.f32 %v4215, 1.0
        %v4224 = vlog2.pop %v4216
        %v4225 = vmul.f32 %v4224, 0.6931472
        %v4226 = vlog2.pop %v4217
        %v4227 = vmul.f32 %v4226, 0.6931472
        %v4228 = vlog2.pop %v4218
        %v4229 = vmul.f32 %v4228, 0.6931472
        %v4230 = vlog2.pop %v4219
        %v4231 = vmul.f32 %v4230, 0.6931472
        %v4232 = vlog2.pop %v4220
        %v4233 = vmul.f32 %v4232, 0.6931472
        %v4234 = vlog2.pop %v4221
        %v4235 = vmul.f32 %v4234, 0.6931472
        %v4236 = vlog2.pop %v4222
        %v4237 = vmul.f32 %v4236, 0.6931472
        %v4238 = vlog2.pop %v4223
        %v4239 = vmul.f32 %v4238, 0.6931472
        %v4240 = vadd.f32 %v4176, %v4225
        %v4241 = vadd.f32 %v4177, %v4227
        %v4242 = vadd.f32 %v4178, %v4229
        %v4243 = vadd.f32 %v4179, %v4231
        %v4244 = vadd.f32 %v4180, %v4233
        %v4245 = vadd.f32 %v4181, %v4235
        %v4246 = vadd.f32 %v4182, %v4237
        %v4247 = vadd.f32 %v4183, %v4239
        %v4248 = vadd.f32 %v4128, %v4240
        %v4249 = vadd.f32 %v4129, %v4241
        %v4250 = vadd.f32 %v4130, %v4242
        %v4251 = vadd.f32 %v4131, %v4243
        %v4252 = vadd.f32 %v4132, %v4244
        %v4253 = vadd.f32 %v4133, %v4245
        %v4254 = vadd.f32 %v4134, %v4246
        %v4255 = vadd.f32 %v4135, %v4247
        %v4256 = vld [vmem:[%s194 + $0x3c0] sm:$0xff]
        %v4257 = vld [vmem:[%s194 + $0x3c8] sm:$0xff]
        %v4258 = vld [vmem:[%s194 + $0x3d0] sm:$0xff]
        %v4259 = vld [vmem:[%s194 + $0x3d8] sm:$0xff]
        %v4260 = vunpack.c.l.bf16 %v4256
        %v4261 = vunpack.c.h.bf16 %v4256
        %v4262 = vunpack.c.l.bf16 %v4257
        %v4263 = vunpack.c.h.bf16 %v4257
        %v4264 = vunpack.c.l.bf16 %v4258
        %v4265 = vunpack.c.h.bf16 %v4258
        %v4266 = vunpack.c.l.bf16 %v4259
        %v4267 = vunpack.c.h.bf16 %v4259
        %v4268 = vld [vmem:[%s194 + $0x9e0] sm:$0xff]
        %v4269 = vld [vmem:[%s194 + $0x9e8] sm:$0xff]
        %v4270 = vld [vmem:[%s194 + $0x9f0] sm:$0xff]
        %v4271 = vld [vmem:[%s194 + $0x9f8] sm:$0xff]
        %v4272 = vunpack.c.l.bf16 %v4268
        %v4273 = vunpack.c.h.bf16 %v4268
        %v4274 = vunpack.c.l.bf16 %v4269
        %v4275 = vunpack.c.h.bf16 %v4269
        %v4276 = vunpack.c.l.bf16 %v4270
        %v4277 = vunpack.c.h.bf16 %v4270
        %v4278 = vunpack.c.l.bf16 %v4271
        %v4279 = vunpack.c.h.bf16 %v4271
        %v4280 = vmax.f32 %v4260, 0.0
        %v4281 = vmax.f32 %v4261, 0.0
        %v4282 = vmax.f32 %v4262, 0.0
        %v4283 = vmax.f32 %v4263, 0.0
        %v4284 = vmax.f32 %v4264, 0.0
        %v4285 = vmax.f32 %v4265, 0.0
        %v4286 = vmax.f32 %v4266, 0.0
        %v4287 = vmax.f32 %v4267, 0.0
        %v4288 = vmul.f32 %v4260, %v4272
        %v4289 = vmul.f32 %v4261, %v4273
        %v4290 = vmul.f32 %v4262, %v4274
        %v4291 = vmul.f32 %v4263, %v4275
        %v4292 = vmul.f32 %v4264, %v4276
        %v4293 = vmul.f32 %v4265, %v4277
        %v4294 = vmul.f32 %v4266, %v4278
        %v4295 = vmul.f32 %v4267, %v4279
        %v4296 = vsub.f32 %v4280, %v4288
        %v4297 = vsub.f32 %v4281, %v4289
        %v4298 = vsub.f32 %v4282, %v4290
        %v4299 = vsub.f32 %v4283, %v4291
        %v4300 = vsub.f32 %v4284, %v4292
        %v4301 = vsub.f32 %v4285, %v4293
        %v4302 = vsub.f32 %v4286, %v4294
        %v4303 = vsub.f32 %v4287, %v4295
        %v4304 = vand.u32 2147483647, %v4260
        %v4305 = vand.u32 2147483647, %v4261
        %v4306 = vand.u32 2147483647, %v4262
        %v4307 = vand.u32 2147483647, %v4263
        %v4308 = vand.u32 2147483647, %v4264
        %v4309 = vand.u32 2147483647, %v4265
        %v4310 = vand.u32 2147483647, %v4266
        %v4311 = vand.u32 2147483647, %v4267
        %v4312 = vsub.f32 0.0, %v4304
        %v4313 = vsub.f32 0.0, %v4305
        %v4314 = vsub.f32 0.0, %v4306
        %v4315 = vsub.f32 0.0, %v4307
        %v4316 = vsub.f32 0.0, %v4308
        %v4317 = vsub.f32 0.0, %v4309
        %v4318 = vsub.f32 0.0, %v4310
        %v4319 = vsub.f32 0.0, %v4311
        %v4320 = vmul.f32 %v4312, 1.442695
        %v4321 = vpow.pop %v4320
        %v4322 = vmul.f32 %v4313, 1.442695
        %v4323 = vpow.pop %v4322
        %v4324 = vmul.f32 %v4314, 1.442695
        %v4325 = vpow.pop %v4324
        %v4326 = vmul.f32 %v4315, 1.442695
        %v4327 = vpow.pop %v4326
        %v4328 = vmul.f32 %v4316, 1.442695
        %v4329 = vpow.pop %v4328
        %v4330 = vmul.f32 %v4317, 1.442695
        %v4331 = vpow.pop %v4330
        %v4332 = vmul.f32 %v4318, 1.442695
        %v4333 = vpow.pop %v4332
        %v4334 = vmul.f32 %v4319, 1.442695
        %v4335 = vpow.pop %v4334
        %v4336 = vadd.f32 %v4321, 1.0
        %v4337 = vadd.f32 %v4323, 1.0
        %v4338 = vadd.f32 %v4325, 1.0
        %v4339 = vadd.f32 %v4327, 1.0
        %v4340 = vadd.f32 %v4329, 1.0
        %v4341 = vadd.f32 %v4331, 1.0
        %v4342 = vadd.f32 %v4333, 1.0
        %v4343 = vadd.f32 %v4335, 1.0
        %v4344 = vlog2.pop %v4336
        %v4345 = vmul.f32 %v4344, 0.6931472
        %v4346 = vlog2.pop %v4337
        %v4347 = vmul.f32 %v4346, 0.6931472
        %v4348 = vlog2.pop %v4338
        %v4349 = vmul.f32 %v4348, 0.6931472
        %v4350 = vlog2.pop %v4339
        %v4351 = vmul.f32 %v4350, 0.6931472
        %v4352 = vlog2.pop %v4340
        %v4353 = vmul.f32 %v4352, 0.6931472
        %v4354 = vlog2.pop %v4341
        %v4355 = vmul.f32 %v4354, 0.6931472
        %v4356 = vlog2.pop %v4342
        %v4357 = vmul.f32 %v4356, 0.6931472
        %v4358 = vlog2.pop %v4343
        %v4359 = vmul.f32 %v4358, 0.6931472
        %v4360 = vadd.f32 %v4296, %v4345
        %v4361 = vadd.f32 %v4297, %v4347
        %v4362 = vadd.f32 %v4298, %v4349
        %v4363 = vadd.f32 %v4299, %v4351
        %v4364 = vadd.f32 %v4300, %v4353
        %v4365 = vadd.f32 %v4301, %v4355
        %v4366 = vadd.f32 %v4302, %v4357
        %v4367 = vadd.f32 %v4303, %v4359
        %v4368 = vadd.f32 %v4248, %v4360
        %v4369 = vadd.f32 %v4249, %v4361
        %v4370 = vadd.f32 %v4250, %v4362
        %v4371 = vadd.f32 %v4251, %v4363
        %v4372 = vadd.f32 %v4252, %v4364
        %v4373 = vadd.f32 %v4253, %v4365
        %v4374 = vadd.f32 %v4254, %v4366
        %v4375 = vadd.f32 %v4255, %v4367
        %v4376 = vld [vmem:[%s194 + $0x3e0] sm:$0xff]
        %v4377 = vld [vmem:[%s194 + $0x3e8] sm:$0xff]
        %v4378 = vld [vmem:[%s194 + $0x3f0] sm:$0xff]
        %v4379 = vld [vmem:[%s194 + $0x3f8] sm:$0xff]
        %v4380 = vunpack.c.l.bf16 %v4376
        %v4381 = vunpack.c.h.bf16 %v4376
        %v4382 = vunpack.c.l.bf16 %v4377
        %v4383 = vunpack.c.h.bf16 %v4377
        %v4384 = vunpack.c.l.bf16 %v4378
        %v4385 = vunpack.c.h.bf16 %v4378
        %v4386 = vunpack.c.l.bf16 %v4379
        %v4387 = vunpack.c.h.bf16 %v4379
        %v4388 = vld [vmem:[%s194 + $0xa00] sm:$0xff]
        %v4389 = vld [vmem:[%s194 + $0xa08] sm:$0xff]
        %v4390 = vld [vmem:[%s194 + $0xa10] sm:$0xff]
        %v4391 = vld [vmem:[%s194 + $0xa18] sm:$0xff]
        %v4392 = vunpack.c.l.bf16 %v4388
        %v4393 = vunpack.c.h.bf16 %v4388
        %v4394 = vunpack.c.l.bf16 %v4389
        %v4395 = vunpack.c.h.bf16 %v4389
        %v4396 = vunpack.c.l.bf16 %v4390
        %v4397 = vunpack.c.h.bf16 %v4390
        %v4398 = vunpack.c.l.bf16 %v4391
        %v4399 = vunpack.c.h.bf16 %v4391
        %v4400 = vmax.f32 %v4380, 0.0
        %v4401 = vmax.f32 %v4381, 0.0
        %v4402 = vmax.f32 %v4382, 0.0
        %v4403 = vmax.f32 %v4383, 0.0
        %v4404 = vmax.f32 %v4384, 0.0
        %v4405 = vmax.f32 %v4385, 0.0
        %v4406 = vmax.f32 %v4386, 0.0
        %v4407 = vmax.f32 %v4387, 0.0
        %v4408 = vmul.f32 %v4380, %v4392
        %v4409 = vmul.f32 %v4381, %v4393
        %v4410 = vmul.f32 %v4382, %v4394
        %v4411 = vmul.f32 %v4383, %v4395
        %v4412 = vmul.f32 %v4384, %v4396
        %v4413 = vmul.f32 %v4385, %v4397
        %v4414 = vmul.f32 %v4386, %v4398
        %v4415 = vmul.f32 %v4387, %v4399
        %v4416 = vsub.f32 %v4400, %v4408
        %v4417 = vsub.f32 %v4401, %v4409
        %v4418 = vsub.f32 %v4402, %v4410
        %v4419 = vsub.f32 %v4403, %v4411
        %v4420 = vsub.f32 %v4404, %v4412
        %v4421 = vsub.f32 %v4405, %v4413
        %v4422 = vsub.f32 %v4406, %v4414
        %v4423 = vsub.f32 %v4407, %v4415
        %v4424 = vand.u32 2147483647, %v4380
        %v4425 = vand.u32 2147483647, %v4381
        %v4426 = vand.u32 2147483647, %v4382
        %v4427 = vand.u32 2147483647, %v4383
        %v4428 = vand.u32 2147483647, %v4384
        %v4429 = vand.u32 2147483647, %v4385
        %v4430 = vand.u32 2147483647, %v4386
        %v4431 = vand.u32 2147483647, %v4387
        %v4432 = vsub.f32 0.0, %v4424
        %v4433 = vsub.f32 0.0, %v4425
        %v4434 = vsub.f32 0.0, %v4426
        %v4435 = vsub.f32 0.0, %v4427
        %v4436 = vsub.f32 0.0, %v4428
        %v4437 = vsub.f32 0.0, %v4429
        %v4438 = vsub.f32 0.0, %v4430
        %v4439 = vsub.f32 0.0, %v4431
        %v4440 = vmul.f32 %v4432, 1.442695
        %v4441 = vpow.pop %v4440
        %v4442 = vmul.f32 %v4433, 1.442695
        %v4443 = vpow.pop %v4442
        %v4444 = vmul.f32 %v4434, 1.442695
        %v4445 = vpow.pop %v4444
        %v4446 = vmul.f32 %v4435, 1.442695
        %v4447 = vpow.pop %v4446
        %v4448 = vmul.f32 %v4436, 1.442695
        %v4449 = vpow.pop %v4448
        %v4450 = vmul.f32 %v4437, 1.442695
        %v4451 = vpow.pop %v4450
        %v4452 = vmul.f32 %v4438, 1.442695
        %v4453 = vpow.pop %v4452
        %v4454 = vmul.f32 %v4439, 1.442695
        %v4455 = vpow.pop %v4454
        %v4456 = vadd.f32 %v4441, 1.0
        %v4457 = vadd.f32 %v4443, 1.0
        %v4458 = vadd.f32 %v4445, 1.0
        %v4459 = vadd.f32 %v4447, 1.0
        %v4460 = vadd.f32 %v4449, 1.0
        %v4461 = vadd.f32 %v4451, 1.0
        %v4462 = vadd.f32 %v4453, 1.0
        %v4463 = vadd.f32 %v4455, 1.0
        %v4464 = vlog2.pop %v4456
        %v4465 = vmul.f32 %v4464, 0.6931472
        %v4466 = vlog2.pop %v4457
        %v4467 = vmul.f32 %v4466, 0.6931472
        %v4468 = vlog2.pop %v4458
        %v4469 = vmul.f32 %v4468, 0.6931472
        %v4470 = vlog2.pop %v4459
        %v4471 = vmul.f32 %v4470, 0.6931472
        %v4472 = vlog2.pop %v4460
        %v4473 = vmul.f32 %v4472, 0.6931472
        %v4474 = vlog2.pop %v4461
        %v4475 = vmul.f32 %v4474, 0.6931472
        %v4476 = vlog2.pop %v4462
        %v4477 = vmul.f32 %v4476, 0.6931472
        %v4478 = vlog2.pop %v4463
        %v4479 = vmul.f32 %v4478, 0.6931472
        %v4480 = vadd.f32 %v4416, %v4465
        %v4481 = vadd.f32 %v4417, %v4467
        %v4482 = vadd.f32 %v4418, %v4469
        %v4483 = vadd.f32 %v4419, %v4471
        %v4484 = vadd.f32 %v4420, %v4473
        %v4485 = vadd.f32 %v4421, %v4475
        %v4486 = vadd.f32 %v4422, %v4477
        %v4487 = vadd.f32 %v4423, %v4479
        %v4488 = vadd.f32 %v4368, %v4480
        %v4489 = vadd.f32 %v4369, %v4481
        %v4490 = vadd.f32 %v4370, %v4482
        %v4491 = vadd.f32 %v4371, %v4483
        %v4492 = vadd.f32 %v4372, %v4484
        %v4493 = vadd.f32 %v4373, %v4485
        %v4494 = vadd.f32 %v4374, %v4486
        %v4495 = vadd.f32 %v4375, %v4487
        %v4496 = vld [vmem:[%s194 + $0x400] sm:$0xff]
        %v4497 = vld [vmem:[%s194 + $0x408] sm:$0xff]
        %v4498 = vld [vmem:[%s194 + $0x410] sm:$0xff]
        %v4499 = vld [vmem:[%s194 + $0x418] sm:$0xff]
        %v4500 = vunpack.c.l.bf16 %v4496
        %v4501 = vunpack.c.h.bf16 %v4496
        %v4502 = vunpack.c.l.bf16 %v4497
        %v4503 = vunpack.c.h.bf16 %v4497
        %v4504 = vunpack.c.l.bf16 %v4498
        %v4505 = vunpack.c.h.bf16 %v4498
        %v4506 = vunpack.c.l.bf16 %v4499
        %v4507 = vunpack.c.h.bf16 %v4499
        %v4508 = vld [vmem:[%s194 + $0xa20] sm:$0xff]
        %v4509 = vld [vmem:[%s194 + $0xa28] sm:$0xff]
        %v4510 = vld [vmem:[%s194 + $0xa30] sm:$0xff]
        %v4511 = vld [vmem:[%s194 + $0xa38] sm:$0xff]
        %v4512 = vunpack.c.l.bf16 %v4508
        %v4513 = vunpack.c.h.bf16 %v4508
        %v4514 = vunpack.c.l.bf16 %v4509
        %v4515 = vunpack.c.h.bf16 %v4509
        %v4516 = vunpack.c.l.bf16 %v4510
        %v4517 = vunpack.c.h.bf16 %v4510
        %v4518 = vunpack.c.l.bf16 %v4511
        %v4519 = vunpack.c.h.bf16 %v4511
        %v4520 = vmax.f32 %v4500, 0.0
        %v4521 = vmax.f32 %v4501, 0.0
        %v4522 = vmax.f32 %v4502, 0.0
        %v4523 = vmax.f32 %v4503, 0.0
        %v4524 = vmax.f32 %v4504, 0.0
        %v4525 = vmax.f32 %v4505, 0.0
        %v4526 = vmax.f32 %v4506, 0.0
        %v4527 = vmax.f32 %v4507, 0.0
        %v4528 = vmul.f32 %v4500, %v4512
        %v4529 = vmul.f32 %v4501, %v4513
        %v4530 = vmul.f32 %v4502, %v4514
        %v4531 = vmul.f32 %v4503, %v4515
        %v4532 = vmul.f32 %v4504, %v4516
        %v4533 = vmul.f32 %v4505, %v4517
        %v4534 = vmul.f32 %v4506, %v4518
        %v4535 = vmul.f32 %v4507, %v4519
        %v4536 = vsub.f32 %v4520, %v4528
        %v4537 = vsub.f32 %v4521, %v4529
        %v4538 = vsub.f32 %v4522, %v4530
        %v4539 = vsub.f32 %v4523, %v4531
        %v4540 = vsub.f32 %v4524, %v4532
        %v4541 = vsub.f32 %v4525, %v4533
        %v4542 = vsub.f32 %v4526, %v4534
        %v4543 = vsub.f32 %v4527, %v4535
        %v4544 = vand.u32 2147483647, %v4500
        %v4545 = vand.u32 2147483647, %v4501
        %v4546 = vand.u32 2147483647, %v4502
        %v4547 = vand.u32 2147483647, %v4503
        %v4548 = vand.u32 2147483647, %v4504
        %v4549 = vand.u32 2147483647, %v4505
        %v4550 = vand.u32 2147483647, %v4506
        %v4551 = vand.u32 2147483647, %v4507
        %v4552 = vsub.f32 0.0, %v4544
        %v4553 = vsub.f32 0.0, %v4545
        %v4554 = vsub.f32 0.0, %v4546
        %v4555 = vsub.f32 0.0, %v4547
        %v4556 = vsub.f32 0.0, %v4548
        %v4557 = vsub.f32 0.0, %v4549
        %v4558 = vsub.f32 0.0, %v4550
        %v4559 = vsub.f32 0.0, %v4551
        %v4560 = vmul.f32 %v4552, 1.442695
        %v4561 = vpow.pop %v4560
        %v4562 = vmul.f32 %v4553, 1.442695
        %v4563 = vpow.pop %v4562
        %v4564 = vmul.f32 %v4554, 1.442695
        %v4565 = vpow.pop %v4564
        %v4566 = vmul.f32 %v4555, 1.442695
        %v4567 = vpow.pop %v4566
        %v4568 = vmul.f32 %v4556, 1.442695
        %v4569 = vpow.pop %v4568
        %v4570 = vmul.f32 %v4557, 1.442695
        %v4571 = vpow.pop %v4570
        %v4572 = vmul.f32 %v4558, 1.442695
        %v4573 = vpow.pop %v4572
        %v4574 = vmul.f32 %v4559, 1.442695
        %v4575 = vpow.pop %v4574
        %v4576 = vadd.f32 %v4561, 1.0
        %v4577 = vadd.f32 %v4563, 1.0
        %v4578 = vadd.f32 %v4565, 1.0
        %v4579 = vadd.f32 %v4567, 1.0
        %v4580 = vadd.f32 %v4569, 1.0
        %v4581 = vadd.f32 %v4571, 1.0
        %v4582 = vadd.f32 %v4573, 1.0
        %v4583 = vadd.f32 %v4575, 1.0
        %v4584 = vlog2.pop %v4576
        %v4585 = vmul.f32 %v4584, 0.6931472
        %v4586 = vlog2.pop %v4577
        %v4587 = vmul.f32 %v4586, 0.6931472
        %v4588 = vlog2.pop %v4578
        %v4589 = vmul.f32 %v4588, 0.6931472
        %v4590 = vlog2.pop %v4579
        %v4591 = vmul.f32 %v4590, 0.6931472
        %v4592 = vlog2.pop %v4580
        %v4593 = vmul.f32 %v4592, 0.6931472
        %v4594 = vlog2.pop %v4581
        %v4595 = vmul.f32 %v4594, 0.6931472
        %v4596 = vlog2.pop %v4582
        %v4597 = vmul.f32 %v4596, 0.6931472
        %v4598 = vlog2.pop %v4583
        %v4599 = vmul.f32 %v4598, 0.6931472
        %v4600 = vadd.f32 %v4536, %v4585
        %v4601 = vadd.f32 %v4537, %v4587
        %v4602 = vadd.f32 %v4538, %v4589
        %v4603 = vadd.f32 %v4539, %v4591
        %v4604 = vadd.f32 %v4540, %v4593
        %v4605 = vadd.f32 %v4541, %v4595
        %v4606 = vadd.f32 %v4542, %v4597
        %v4607 = vadd.f32 %v4543, %v4599
        %v4608 = vadd.f32 %v4488, %v4600
        %v4609 = vadd.f32 %v4489, %v4601
        %v4610 = vadd.f32 %v4490, %v4602
        %v4611 = vadd.f32 %v4491, %v4603
        %v4612 = vadd.f32 %v4492, %v4604
        %v4613 = vadd.f32 %v4493, %v4605
        %v4614 = vadd.f32 %v4494, %v4606
        %v4615 = vadd.f32 %v4495, %v4607
        %v4616 = vld [vmem:[%s194 + $0x420] sm:$0xff]
        %v4617 = vld [vmem:[%s194 + $0x428] sm:$0xff]
        %v4618 = vld [vmem:[%s194 + $0x430] sm:$0xff]
        %v4619 = vld [vmem:[%s194 + $0x438] sm:$0xff]
        %v4620 = vunpack.c.l.bf16 %v4616
        %v4621 = vunpack.c.h.bf16 %v4616
        %v4622 = vunpack.c.l.bf16 %v4617
        %v4623 = vunpack.c.h.bf16 %v4617
        %v4624 = vunpack.c.l.bf16 %v4618
        %v4625 = vunpack.c.h.bf16 %v4618
        %v4626 = vunpack.c.l.bf16 %v4619
        %v4627 = vunpack.c.h.bf16 %v4619
        %v4628 = vld [vmem:[%s194 + $0xa40] sm:$0xff]
        %v4629 = vld [vmem:[%s194 + $0xa48] sm:$0xff]
        %v4630 = vld [vmem:[%s194 + $0xa50] sm:$0xff]
        %v4631 = vld [vmem:[%s194 + $0xa58] sm:$0xff]
        %v4632 = vunpack.c.l.bf16 %v4628
        %v4633 = vunpack.c.h.bf16 %v4628
        %v4634 = vunpack.c.l.bf16 %v4629
        %v4635 = vunpack.c.h.bf16 %v4629
        %v4636 = vunpack.c.l.bf16 %v4630
        %v4637 = vunpack.c.h.bf16 %v4630
        %v4638 = vunpack.c.l.bf16 %v4631
        %v4639 = vunpack.c.h.bf16 %v4631
        %v4640 = vmax.f32 %v4620, 0.0
        %v4641 = vmax.f32 %v4621, 0.0
        %v4642 = vmax.f32 %v4622, 0.0
        %v4643 = vmax.f32 %v4623, 0.0
        %v4644 = vmax.f32 %v4624, 0.0
        %v4645 = vmax.f32 %v4625, 0.0
        %v4646 = vmax.f32 %v4626, 0.0
        %v4647 = vmax.f32 %v4627, 0.0
        %v4648 = vmul.f32 %v4620, %v4632
        %v4649 = vmul.f32 %v4621, %v4633
        %v4650 = vmul.f32 %v4622, %v4634
        %v4651 = vmul.f32 %v4623, %v4635
        %v4652 = vmul.f32 %v4624, %v4636
        %v4653 = vmul.f32 %v4625, %v4637
        %v4654 = vmul.f32 %v4626, %v4638
        %v4655 = vmul.f32 %v4627, %v4639
        %v4656 = vsub.f32 %v4640, %v4648
        %v4657 = vsub.f32 %v4641, %v4649
        %v4658 = vsub.f32 %v4642, %v4650
        %v4659 = vsub.f32 %v4643, %v4651
        %v4660 = vsub.f32 %v4644, %v4652
        %v4661 = vsub.f32 %v4645, %v4653
        %v4662 = vsub.f32 %v4646, %v4654
        %v4663 = vsub.f32 %v4647, %v4655
        %v4664 = vand.u32 2147483647, %v4620
        %v4665 = vand.u32 2147483647, %v4621
        %v4666 = vand.u32 2147483647, %v4622
        %v4667 = vand.u32 2147483647, %v4623
        %v4668 = vand.u32 2147483647, %v4624
        %v4669 = vand.u32 2147483647, %v4625
        %v4670 = vand.u32 2147483647, %v4626
        %v4671 = vand.u32 2147483647, %v4627
        %v4672 = vsub.f32 0.0, %v4664
        %v4673 = vsub.f32 0.0, %v4665
        %v4674 = vsub.f32 0.0, %v4666
        %v4675 = vsub.f32 0.0, %v4667
        %v4676 = vsub.f32 0.0, %v4668
        %v4677 = vsub.f32 0.0, %v4669
        %v4678 = vsub.f32 0.0, %v4670
        %v4679 = vsub.f32 0.0, %v4671
        %v4680 = vmul.f32 %v4672, 1.442695
        %v4681 = vpow.pop %v4680
        %v4682 = vmul.f32 %v4673, 1.442695
        %v4683 = vpow.pop %v4682
        %v4684 = vmul.f32 %v4674, 1.442695
        %v4685 = vpow.pop %v4684
        %v4686 = vmul.f32 %v4675, 1.442695
        %v4687 = vpow.pop %v4686
        %v4688 = vmul.f32 %v4676, 1.442695
        %v4689 = vpow.pop %v4688
        %v4690 = vmul.f32 %v4677, 1.442695
        %v4691 = vpow.pop %v4690
        %v4692 = vmul.f32 %v4678, 1.442695
        %v4693 = vpow.pop %v4692
        %v4694 = vmul.f32 %v4679, 1.442695
        %v4695 = vpow.pop %v4694
        %v4696 = vadd.f32 %v4681, 1.0
        %v4697 = vadd.f32 %v4683, 1.0
        %v4698 = vadd.f32 %v4685, 1.0
        %v4699 = vadd.f32 %v4687, 1.0
        %v4700 = vadd.f32 %v4689, 1.0
        %v4701 = vadd.f32 %v4691, 1.0
        %v4702 = vadd.f32 %v4693, 1.0
        %v4703 = vadd.f32 %v4695, 1.0
        %v4704 = vlog2.pop %v4696
        %v4705 = vmul.f32 %v4704, 0.6931472
        %v4706 = vlog2.pop %v4697
        %v4707 = vmul.f32 %v4706, 0.6931472
        %v4708 = vlog2.pop %v4698
        %v4709 = vmul.f32 %v4708, 0.6931472
        %v4710 = vlog2.pop %v4699
        %v4711 = vmul.f32 %v4710, 0.6931472
        %v4712 = vlog2.pop %v4700
        %v4713 = vmul.f32 %v4712, 0.6931472
        %v4714 = vlog2.pop %v4701
        %v4715 = vmul.f32 %v4714, 0.6931472
        %v4716 = vlog2.pop %v4702
        %v4717 = vmul.f32 %v4716, 0.6931472
        %v4718 = vlog2.pop %v4703
        %v4719 = vmul.f32 %v4718, 0.6931472
        %v4720 = vadd.f32 %v4656, %v4705
        %v4721 = vadd.f32 %v4657, %v4707
        %v4722 = vadd.f32 %v4658, %v4709
        %v4723 = vadd.f32 %v4659, %v4711
        %v4724 = vadd.f32 %v4660, %v4713
        %v4725 = vadd.f32 %v4661, %v4715
        %v4726 = vadd.f32 %v4662, %v4717
        %v4727 = vadd.f32 %v4663, %v4719
        %v4728 = vadd.f32 %v4608, %v4720
        %v4729 = vadd.f32 %v4609, %v4721
        %v4730 = vadd.f32 %v4610, %v4722
        %v4731 = vadd.f32 %v4611, %v4723
        %v4732 = vadd.f32 %v4612, %v4724
        %v4733 = vadd.f32 %v4613, %v4725
        %v4734 = vadd.f32 %v4614, %v4726
        %v4735 = vadd.f32 %v4615, %v4727
        %v4736 = vld [vmem:[%s194 + $0x440] sm:$0xff]
        %v4737 = vld [vmem:[%s194 + $0x448] sm:$0xff]
        %v4738 = vld [vmem:[%s194 + $0x450] sm:$0xff]
        %v4739 = vld [vmem:[%s194 + $0x458] sm:$0xff]
        %v4740 = vunpack.c.l.bf16 %v4736
        %v4741 = vunpack.c.h.bf16 %v4736
        %v4742 = vunpack.c.l.bf16 %v4737
        %v4743 = vunpack.c.h.bf16 %v4737
        %v4744 = vunpack.c.l.bf16 %v4738
        %v4745 = vunpack.c.h.bf16 %v4738
        %v4746 = vunpack.c.l.bf16 %v4739
        %v4747 = vunpack.c.h.bf16 %v4739
        %v4748 = vld [vmem:[%s194 + $0xa60] sm:$0xff]
        %v4749 = vld [vmem:[%s194 + $0xa68] sm:$0xff]
        %v4750 = vld [vmem:[%s194 + $0xa70] sm:$0xff]
        %v4751 = vld [vmem:[%s194 + $0xa78] sm:$0xff]
        %v4752 = vunpack.c.l.bf16 %v4748
        %v4753 = vunpack.c.h.bf16 %v4748
        %v4754 = vunpack.c.l.bf16 %v4749
        %v4755 = vunpack.c.h.bf16 %v4749
        %v4756 = vunpack.c.l.bf16 %v4750
        %v4757 = vunpack.c.h.bf16 %v4750
        %v4758 = vunpack.c.l.bf16 %v4751
        %v4759 = vunpack.c.h.bf16 %v4751
        %v4760 = vmax.f32 %v4740, 0.0
        %v4761 = vmax.f32 %v4741, 0.0
        %v4762 = vmax.f32 %v4742, 0.0
        %v4763 = vmax.f32 %v4743, 0.0
        %v4764 = vmax.f32 %v4744, 0.0
        %v4765 = vmax.f32 %v4745, 0.0
        %v4766 = vmax.f32 %v4746, 0.0
        %v4767 = vmax.f32 %v4747, 0.0
        %v4768 = vmul.f32 %v4740, %v4752
        %v4769 = vmul.f32 %v4741, %v4753
        %v4770 = vmul.f32 %v4742, %v4754
        %v4771 = vmul.f32 %v4743, %v4755
        %v4772 = vmul.f32 %v4744, %v4756
        %v4773 = vmul.f32 %v4745, %v4757
        %v4774 = vmul.f32 %v4746, %v4758
        %v4775 = vmul.f32 %v4747, %v4759
        %v4776 = vsub.f32 %v4760, %v4768
        %v4777 = vsub.f32 %v4761, %v4769
        %v4778 = vsub.f32 %v4762, %v4770
        %v4779 = vsub.f32 %v4763, %v4771
        %v4780 = vsub.f32 %v4764, %v4772
        %v4781 = vsub.f32 %v4765, %v4773
        %v4782 = vsub.f32 %v4766, %v4774
        %v4783 = vsub.f32 %v4767, %v4775
        %v4784 = vand.u32 2147483647, %v4740
        %v4785 = vand.u32 2147483647, %v4741
        %v4786 = vand.u32 2147483647, %v4742
        %v4787 = vand.u32 2147483647, %v4743
        %v4788 = vand.u32 2147483647, %v4744
        %v4789 = vand.u32 2147483647, %v4745
        %v4790 = vand.u32 2147483647, %v4746
        %v4791 = vand.u32 2147483647, %v4747
        %v4792 = vsub.f32 0.0, %v4784
        %v4793 = vsub.f32 0.0, %v4785
        %v4794 = vsub.f32 0.0, %v4786
        %v4795 = vsub.f32 0.0, %v4787
        %v4796 = vsub.f32 0.0, %v4788
        %v4797 = vsub.f32 0.0, %v4789
        %v4798 = vsub.f32 0.0, %v4790
        %v4799 = vsub.f32 0.0, %v4791
        %v4800 = vmul.f32 %v4792, 1.442695
        %v4801 = vpow.pop %v4800
        %v4802 = vmul.f32 %v4793, 1.442695
        %v4803 = vpow.pop %v4802
        %v4804 = vmul.f32 %v4794, 1.442695
        %v4805 = vpow.pop %v4804
        %v4806 = vmul.f32 %v4795, 1.442695
        %v4807 = vpow.pop %v4806
        %v4808 = vmul.f32 %v4796, 1.442695
        %v4809 = vpow.pop %v4808
        %v4810 = vmul.f32 %v4797, 1.442695
        %v4811 = vpow.pop %v4810
        %v4812 = vmul.f32 %v4798, 1.442695
        %v4813 = vpow.pop %v4812
        %v4814 = vmul.f32 %v4799, 1.442695
        %v4815 = vpow.pop %v4814
        %v4816 = vadd.f32 %v4801, 1.0
        %v4817 = vadd.f32 %v4803, 1.0
        %v4818 = vadd.f32 %v4805, 1.0
        %v4819 = vadd.f32 %v4807, 1.0
        %v4820 = vadd.f32 %v4809, 1.0
        %v4821 = vadd.f32 %v4811, 1.0
        %v4822 = vadd.f32 %v4813, 1.0
        %v4823 = vadd.f32 %v4815, 1.0
        %v4824 = vlog2.pop %v4816
        %v4825 = vmul.f32 %v4824, 0.6931472
        %v4826 = vlog2.pop %v4817
        %v4827 = vmul.f32 %v4826, 0.6931472
        %v4828 = vlog2.pop %v4818
        %v4829 = vmul.f32 %v4828, 0.6931472
        %v4830 = vlog2.pop %v4819
        %v4831 = vmul.f32 %v4830, 0.6931472
        %v4832 = vlog2.pop %v4820
        %v4833 = vmul.f32 %v4832, 0.6931472
        %v4834 = vlog2.pop %v4821
        %v4835 = vmul.f32 %v4834, 0.6931472
        %v4836 = vlog2.pop %v4822
        %v4837 = vmul.f32 %v4836, 0.6931472
        %v4838 = vlog2.pop %v4823
        %v4839 = vmul.f32 %v4838, 0.6931472
        %v4840 = vadd.f32 %v4776, %v4825
        %v4841 = vadd.f32 %v4777, %v4827
        %v4842 = vadd.f32 %v4778, %v4829
        %v4843 = vadd.f32 %v4779, %v4831
        %v4844 = vadd.f32 %v4780, %v4833
        %v4845 = vadd.f32 %v4781, %v4835
        %v4846 = vadd.f32 %v4782, %v4837
        %v4847 = vadd.f32 %v4783, %v4839
        %v4848 = vadd.f32 %v4728, %v4840
        %v4849 = vadd.f32 %v4729, %v4841
        %v4850 = vadd.f32 %v4730, %v4842
        %v4851 = vadd.f32 %v4731, %v4843
        %v4852 = vadd.f32 %v4732, %v4844
        %v4853 = vadd.f32 %v4733, %v4845
        %v4854 = vadd.f32 %v4734, %v4846
        %v4855 = vadd.f32 %v4735, %v4847
        %v4856 = vld [vmem:[%s194 + $0x460] sm:$0xff]
        %v4857 = vld [vmem:[%s194 + $0x468] sm:$0xff]
        %v4858 = vld [vmem:[%s194 + $0x470] sm:$0xff]
        %v4859 = vld [vmem:[%s194 + $0x478] sm:$0xff]
        %v4860 = vunpack.c.l.bf16 %v4856
        %v4861 = vunpack.c.h.bf16 %v4856
        %v4862 = vunpack.c.l.bf16 %v4857
        %v4863 = vunpack.c.h.bf16 %v4857
        %v4864 = vunpack.c.l.bf16 %v4858
        %v4865 = vunpack.c.h.bf16 %v4858
        %v4866 = vunpack.c.l.bf16 %v4859
        %v4867 = vunpack.c.h.bf16 %v4859
        %v4868 = vld [vmem:[%s194 + $0xa80] sm:$0xff]
        %v4869 = vld [vmem:[%s194 + $0xa88] sm:$0xff]
        %v4870 = vld [vmem:[%s194 + $0xa90] sm:$0xff]
        %v4871 = vld [vmem:[%s194 + $0xa98] sm:$0xff]
        %v4872 = vunpack.c.l.bf16 %v4868
        %v4873 = vunpack.c.h.bf16 %v4868
        %v4874 = vunpack.c.l.bf16 %v4869
        %v4875 = vunpack.c.h.bf16 %v4869
        %v4876 = vunpack.c.l.bf16 %v4870
        %v4877 = vunpack.c.h.bf16 %v4870
        %v4878 = vunpack.c.l.bf16 %v4871
        %v4879 = vunpack.c.h.bf16 %v4871
        %v4880 = vmax.f32 %v4860, 0.0
        %v4881 = vmax.f32 %v4861, 0.0
        %v4882 = vmax.f32 %v4862, 0.0
        %v4883 = vmax.f32 %v4863, 0.0
        %v4884 = vmax.f32 %v4864, 0.0
        %v4885 = vmax.f32 %v4865, 0.0
        %v4886 = vmax.f32 %v4866, 0.0
        %v4887 = vmax.f32 %v4867, 0.0
        %v4888 = vmul.f32 %v4860, %v4872
        %v4889 = vmul.f32 %v4861, %v4873
        %v4890 = vmul.f32 %v4862, %v4874
        %v4891 = vmul.f32 %v4863, %v4875
        %v4892 = vmul.f32 %v4864, %v4876
        %v4893 = vmul.f32 %v4865, %v4877
        %v4894 = vmul.f32 %v4866, %v4878
        %v4895 = vmul.f32 %v4867, %v4879
        %v4896 = vsub.f32 %v4880, %v4888
        %v4897 = vsub.f32 %v4881, %v4889
        %v4898 = vsub.f32 %v4882, %v4890
        %v4899 = vsub.f32 %v4883, %v4891
        %v4900 = vsub.f32 %v4884, %v4892
        %v4901 = vsub.f32 %v4885, %v4893
        %v4902 = vsub.f32 %v4886, %v4894
        %v4903 = vsub.f32 %v4887, %v4895
        %v4904 = vand.u32 2147483647, %v4860
        %v4905 = vand.u32 2147483647, %v4861
        %v4906 = vand.u32 2147483647, %v4862
        %v4907 = vand.u32 2147483647, %v4863
        %v4908 = vand.u32 2147483647, %v4864
        %v4909 = vand.u32 2147483647, %v4865
        %v4910 = vand.u32 2147483647, %v4866
        %v4911 = vand.u32 2147483647, %v4867
        %v4912 = vsub.f32 0.0, %v4904
        %v4913 = vsub.f32 0.0, %v4905
        %v4914 = vsub.f32 0.0, %v4906
        %v4915 = vsub.f32 0.0, %v4907
        %v4916 = vsub.f32 0.0, %v4908
        %v4917 = vsub.f32 0.0, %v4909
        %v4918 = vsub.f32 0.0, %v4910
        %v4919 = vsub.f32 0.0, %v4911
        %v4920 = vmul.f32 %v4912, 1.442695
        %v4921 = vpow.pop %v4920
        %v4922 = vmul.f32 %v4913, 1.442695
        %v4923 = vpow.pop %v4922
        %v4924 = vmul.f32 %v4914, 1.442695
        %v4925 = vpow.pop %v4924
        %v4926 = vmul.f32 %v4915, 1.442695
        %v4927 = vpow.pop %v4926
        %v4928 = vmul.f32 %v4916, 1.442695
        %v4929 = vpow.pop %v4928
        %v4930 = vmul.f32 %v4917, 1.442695
        %v4931 = vpow.pop %v4930
        %v4932 = vmul.f32 %v4918, 1.442695
        %v4933 = vpow.pop %v4932
        %v4934 = vmul.f32 %v4919, 1.442695
        %v4935 = vpow.pop %v4934
        %v4936 = vadd.f32 %v4921, 1.0
        %v4937 = vadd.f32 %v4923, 1.0
        %v4938 = vadd.f32 %v4925, 1.0
        %v4939 = vadd.f32 %v4927, 1.0
        %v4940 = vadd.f32 %v4929, 1.0
        %v4941 = vadd.f32 %v4931, 1.0
        %v4942 = vadd.f32 %v4933, 1.0
        %v4943 = vadd.f32 %v4935, 1.0
        %v4944 = vlog2.pop %v4936
        %v4945 = vmul.f32 %v4944, 0.6931472
        %v4946 = vlog2.pop %v4937
        %v4947 = vmul.f32 %v4946, 0.6931472
        %v4948 = vlog2.pop %v4938
        %v4949 = vmul.f32 %v4948, 0.6931472
        %v4950 = vlog2.pop %v4939
        %v4951 = vmul.f32 %v4950, 0.6931472
        %v4952 = vlog2.pop %v4940
        %v4953 = vmul.f32 %v4952, 0.6931472
        %v4954 = vlog2.pop %v4941
        %v4955 = vmul.f32 %v4954, 0.6931472
        %v4956 = vlog2.pop %v4942
        %v4957 = vmul.f32 %v4956, 0.6931472
        %v4958 = vlog2.pop %v4943
        %v4959 = vmul.f32 %v4958, 0.6931472
        %v4960 = vadd.f32 %v4896, %v4945
        %v4961 = vadd.f32 %v4897, %v4947
        %v4962 = vadd.f32 %v4898, %v4949
        %v4963 = vadd.f32 %v4899, %v4951
        %v4964 = vadd.f32 %v4900, %v4953
        %v4965 = vadd.f32 %v4901, %v4955
        %v4966 = vadd.f32 %v4902, %v4957
        %v4967 = vadd.f32 %v4903, %v4959
        %v4968 = vadd.f32 %v4848, %v4960
        %v4969 = vadd.f32 %v4849, %v4961
        %v4970 = vadd.f32 %v4850, %v4962
        %v4971 = vadd.f32 %v4851, %v4963
        %v4972 = vadd.f32 %v4852, %v4964
        %v4973 = vadd.f32 %v4853, %v4965
        %v4974 = vadd.f32 %v4854, %v4966
        %v4975 = vadd.f32 %v4855, %v4967
        %v4976 = vld [vmem:[%s194 + $0x480] sm:$0xff]
        %v4977 = vld [vmem:[%s194 + $0x488] sm:$0xff]
        %v4978 = vld [vmem:[%s194 + $0x490] sm:$0xff]
        %v4979 = vld [vmem:[%s194 + $0x498] sm:$0xff]
        %v4980 = vunpack.c.l.bf16 %v4976
        %v4981 = vunpack.c.h.bf16 %v4976
        %v4982 = vunpack.c.l.bf16 %v4977
        %v4983 = vunpack.c.h.bf16 %v4977
        %v4984 = vunpack.c.l.bf16 %v4978
        %v4985 = vunpack.c.h.bf16 %v4978
        %v4986 = vunpack.c.l.bf16 %v4979
        %v4987 = vunpack.c.h.bf16 %v4979
        %v4988 = vld [vmem:[%s194 + $0xaa0] sm:$0xff]
        %v4989 = vld [vmem:[%s194 + $0xaa8] sm:$0xff]
        %v4990 = vld [vmem:[%s194 + $0xab0] sm:$0xff]
        %v4991 = vld [vmem:[%s194 + $0xab8] sm:$0xff]
        %v4992 = vunpack.c.l.bf16 %v4988
        %v4993 = vunpack.c.h.bf16 %v4988
        %v4994 = vunpack.c.l.bf16 %v4989
        %v4995 = vunpack.c.h.bf16 %v4989
        %v4996 = vunpack.c.l.bf16 %v4990
        %v4997 = vunpack.c.h.bf16 %v4990
        %v4998 = vunpack.c.l.bf16 %v4991
        %v4999 = vunpack.c.h.bf16 %v4991
        %v5000 = vmax.f32 %v4980, 0.0
        %v5001 = vmax.f32 %v4981, 0.0
        %v5002 = vmax.f32 %v4982, 0.0
        %v5003 = vmax.f32 %v4983, 0.0
        %v5004 = vmax.f32 %v4984, 0.0
        %v5005 = vmax.f32 %v4985, 0.0
        %v5006 = vmax.f32 %v4986, 0.0
        %v5007 = vmax.f32 %v4987, 0.0
        %v5008 = vmul.f32 %v4980, %v4992
        %v5009 = vmul.f32 %v4981, %v4993
        %v5010 = vmul.f32 %v4982, %v4994
        %v5011 = vmul.f32 %v4983, %v4995
        %v5012 = vmul.f32 %v4984, %v4996
        %v5013 = vmul.f32 %v4985, %v4997
        %v5014 = vmul.f32 %v4986, %v4998
        %v5015 = vmul.f32 %v4987, %v4999
        %v5016 = vsub.f32 %v5000, %v5008
        %v5017 = vsub.f32 %v5001, %v5009
        %v5018 = vsub.f32 %v5002, %v5010
        %v5019 = vsub.f32 %v5003, %v5011
        %v5020 = vsub.f32 %v5004, %v5012
        %v5021 = vsub.f32 %v5005, %v5013
        %v5022 = vsub.f32 %v5006, %v5014
        %v5023 = vsub.f32 %v5007, %v5015
        %v5024 = vand.u32 2147483647, %v4980
        %v5025 = vand.u32 2147483647, %v4981
        %v5026 = vand.u32 2147483647, %v4982
        %v5027 = vand.u32 2147483647, %v4983
        %v5028 = vand.u32 2147483647, %v4984
        %v5029 = vand.u32 2147483647, %v4985
        %v5030 = vand.u32 2147483647, %v4986
        %v5031 = vand.u32 2147483647, %v4987
        %v5032 = vsub.f32 0.0, %v5024
        %v5033 = vsub.f32 0.0, %v5025
        %v5034 = vsub.f32 0.0, %v5026
        %v5035 = vsub.f32 0.0, %v5027
        %v5036 = vsub.f32 0.0, %v5028
        %v5037 = vsub.f32 0.0, %v5029
        %v5038 = vsub.f32 0.0, %v5030
        %v5039 = vsub.f32 0.0, %v5031
        %v5040 = vmul.f32 %v5032, 1.442695
        %v5041 = vpow.pop %v5040
        %v5042 = vmul.f32 %v5033, 1.442695
        %v5043 = vpow.pop %v5042
        %v5044 = vmul.f32 %v5034, 1.442695
        %v5045 = vpow.pop %v5044
        %v5046 = vmul.f32 %v5035, 1.442695
        %v5047 = vpow.pop %v5046
        %v5048 = vmul.f32 %v5036, 1.442695
        %v5049 = vpow.pop %v5048
        %v5050 = vmul.f32 %v5037, 1.442695
        %v5051 = vpow.pop %v5050
        %v5052 = vmul.f32 %v5038, 1.442695
        %v5053 = vpow.pop %v5052
        %v5054 = vmul.f32 %v5039, 1.442695
        %v5055 = vpow.pop %v5054
        %v5056 = vadd.f32 %v5041, 1.0
        %v5057 = vadd.f32 %v5043, 1.0
        %v5058 = vadd.f32 %v5045, 1.0
        %v5059 = vadd.f32 %v5047, 1.0
        %v5060 = vadd.f32 %v5049, 1.0
        %v5061 = vadd.f32 %v5051, 1.0
        %v5062 = vadd.f32 %v5053, 1.0
        %v5063 = vadd.f32 %v5055, 1.0
        %v5064 = vlog2.pop %v5056
        %v5065 = vmul.f32 %v5064, 0.6931472
        %v5066 = vlog2.pop %v5057
        %v5067 = vmul.f32 %v5066, 0.6931472
        %v5068 = vlog2.pop %v5058
        %v5069 = vmul.f32 %v5068, 0.6931472
        %v5070 = vlog2.pop %v5059
        %v5071 = vmul.f32 %v5070, 0.6931472
        %v5072 = vlog2.pop %v5060
        %v5073 = vmul.f32 %v5072, 0.6931472
        %v5074 = vlog2.pop %v5061
        %v5075 = vmul.f32 %v5074, 0.6931472
        %v5076 = vlog2.pop %v5062
        %v5077 = vmul.f32 %v5076, 0.6931472
        %v5078 = vlog2.pop %v5063
        %v5079 = vmul.f32 %v5078, 0.6931472
        %v5080 = vadd.f32 %v5016, %v5065
        %v5081 = vadd.f32 %v5017, %v5067
        %v5082 = vadd.f32 %v5018, %v5069
        %v5083 = vadd.f32 %v5019, %v5071
        %v5084 = vadd.f32 %v5020, %v5073
        %v5085 = vadd.f32 %v5021, %v5075
        %v5086 = vadd.f32 %v5022, %v5077
        %v5087 = vadd.f32 %v5023, %v5079
        %v5088 = vadd.f32 %v4968, %v5080
        %v5089 = vadd.f32 %v4969, %v5081
        %v5090 = vadd.f32 %v4970, %v5082
        %v5091 = vadd.f32 %v4971, %v5083
        %v5092 = vadd.f32 %v4972, %v5084
        %v5093 = vadd.f32 %v4973, %v5085
        %v5094 = vadd.f32 %v4974, %v5086
        %v5095 = vadd.f32 %v4975, %v5087
        %v5096 = vld [vmem:[%s194 + $0x4a0] sm:$0xff]
        %v5097 = vld [vmem:[%s194 + $0x4a8] sm:$0xff]
        %v5098 = vld [vmem:[%s194 + $0x4b0] sm:$0xff]
        %v5099 = vld [vmem:[%s194 + $0x4b8] sm:$0xff]
        %v5100 = vunpack.c.l.bf16 %v5096
        %v5101 = vunpack.c.h.bf16 %v5096
        %v5102 = vunpack.c.l.bf16 %v5097
        %v5103 = vunpack.c.h.bf16 %v5097
        %v5104 = vunpack.c.l.bf16 %v5098
        %v5105 = vunpack.c.h.bf16 %v5098
        %v5106 = vunpack.c.l.bf16 %v5099
        %v5107 = vunpack.c.h.bf16 %v5099
        %v5108 = vld [vmem:[%s194 + $0xac0] sm:$0xff]
        %v5109 = vld [vmem:[%s194 + $0xac8] sm:$0xff]
        %v5110 = vld [vmem:[%s194 + $0xad0] sm:$0xff]
        %v5111 = vld [vmem:[%s194 + $0xad8] sm:$0xff]
        %v5112 = vunpack.c.l.bf16 %v5108
        %v5113 = vunpack.c.h.bf16 %v5108
        %v5114 = vunpack.c.l.bf16 %v5109
        %v5115 = vunpack.c.h.bf16 %v5109
        %v5116 = vunpack.c.l.bf16 %v5110
        %v5117 = vunpack.c.h.bf16 %v5110
        %v5118 = vunpack.c.l.bf16 %v5111
        %v5119 = vunpack.c.h.bf16 %v5111
        %v5120 = vmax.f32 %v5100, 0.0
        %v5121 = vmax.f32 %v5101, 0.0
        %v5122 = vmax.f32 %v5102, 0.0
        %v5123 = vmax.f32 %v5103, 0.0
        %v5124 = vmax.f32 %v5104, 0.0
        %v5125 = vmax.f32 %v5105, 0.0
        %v5126 = vmax.f32 %v5106, 0.0
        %v5127 = vmax.f32 %v5107, 0.0
        %v5128 = vmul.f32 %v5100, %v5112
        %v5129 = vmul.f32 %v5101, %v5113
        %v5130 = vmul.f32 %v5102, %v5114
        %v5131 = vmul.f32 %v5103, %v5115
        %v5132 = vmul.f32 %v5104, %v5116
        %v5133 = vmul.f32 %v5105, %v5117
        %v5134 = vmul.f32 %v5106, %v5118
        %v5135 = vmul.f32 %v5107, %v5119
        %v5136 = vsub.f32 %v5120, %v5128
        %v5137 = vsub.f32 %v5121, %v5129
        %v5138 = vsub.f32 %v5122, %v5130
        %v5139 = vsub.f32 %v5123, %v5131
        %v5140 = vsub.f32 %v5124, %v5132
        %v5141 = vsub.f32 %v5125, %v5133
        %v5142 = vsub.f32 %v5126, %v5134
        %v5143 = vsub.f32 %v5127, %v5135
        %v5144 = vand.u32 2147483647, %v5100
        %v5145 = vand.u32 2147483647, %v5101
        %v5146 = vand.u32 2147483647, %v5102
        %v5147 = vand.u32 2147483647, %v5103
        %v5148 = vand.u32 2147483647, %v5104
        %v5149 = vand.u32 2147483647, %v5105
        %v5150 = vand.u32 2147483647, %v5106
        %v5151 = vand.u32 2147483647, %v5107
        %v5152 = vsub.f32 0.0, %v5144
        %v5153 = vsub.f32 0.0, %v5145
        %v5154 = vsub.f32 0.0, %v5146
        %v5155 = vsub.f32 0.0, %v5147
        %v5156 = vsub.f32 0.0, %v5148
        %v5157 = vsub.f32 0.0, %v5149
        %v5158 = vsub.f32 0.0, %v5150
        %v5159 = vsub.f32 0.0, %v5151
        %v5160 = vmul.f32 %v5152, 1.442695
        %v5161 = vpow.pop %v5160
        %v5162 = vmul.f32 %v5153, 1.442695
        %v5163 = vpow.pop %v5162
        %v5164 = vmul.f32 %v5154, 1.442695
        %v5165 = vpow.pop %v5164
        %v5166 = vmul.f32 %v5155, 1.442695
        %v5167 = vpow.pop %v5166
        %v5168 = vmul.f32 %v5156, 1.442695
        %v5169 = vpow.pop %v5168
        %v5170 = vmul.f32 %v5157, 1.442695
        %v5171 = vpow.pop %v5170
        %v5172 = vmul.f32 %v5158, 1.442695
        %v5173 = vpow.pop %v5172
        %v5174 = vmul.f32 %v5159, 1.442695
        %v5175 = vpow.pop %v5174
        %v5176 = vadd.f32 %v5161, 1.0
        %v5177 = vadd.f32 %v5163, 1.0
        %v5178 = vadd.f32 %v5165, 1.0
        %v5179 = vadd.f32 %v5167, 1.0
        %v5180 = vadd.f32 %v5169, 1.0
        %v5181 = vadd.f32 %v5171, 1.0
        %v5182 = vadd.f32 %v5173, 1.0
        %v5183 = vadd.f32 %v5175, 1.0
        %v5184 = vlog2.pop %v5176
        %v5185 = vmul.f32 %v5184, 0.6931472
        %v5186 = vlog2.pop %v5177
        %v5187 = vmul.f32 %v5186, 0.6931472
        %v5188 = vlog2.pop %v5178
        %v5189 = vmul.f32 %v5188, 0.6931472
        %v5190 = vlog2.pop %v5179
        %v5191 = vmul.f32 %v5190, 0.6931472
        %v5192 = vlog2.pop %v5180
        %v5193 = vmul.f32 %v5192, 0.6931472
        %v5194 = vlog2.pop %v5181
        %v5195 = vmul.f32 %v5194, 0.6931472
        %v5196 = vlog2.pop %v5182
        %v5197 = vmul.f32 %v5196, 0.6931472
        %v5198 = vlog2.pop %v5183
        %v5199 = vmul.f32 %v5198, 0.6931472
        %v5200 = vadd.f32 %v5136, %v5185
        %v5201 = vadd.f32 %v5137, %v5187
        %v5202 = vadd.f32 %v5138, %v5189
        %v5203 = vadd.f32 %v5139, %v5191
        %v5204 = vadd.f32 %v5140, %v5193
        %v5205 = vadd.f32 %v5141, %v5195
        %v5206 = vadd.f32 %v5142, %v5197
        %v5207 = vadd.f32 %v5143, %v5199
        %v5208 = vadd.f32 %v5088, %v5200
        %v5209 = vadd.f32 %v5089, %v5201
        %v5210 = vadd.f32 %v5090, %v5202
        %v5211 = vadd.f32 %v5091, %v5203
        %v5212 = vadd.f32 %v5092, %v5204
        %v5213 = vadd.f32 %v5093, %v5205
        %v5214 = vadd.f32 %v5094, %v5206
        %v5215 = vadd.f32 %v5095, %v5207
        %v5216 = vld [vmem:[%s194 + $0x4c0] sm:$0xff]
        %v5217 = vld [vmem:[%s194 + $0x4c8] sm:$0xff]
        %v5218 = vld [vmem:[%s194 + $0x4d0] sm:$0xff]
        %v5219 = vld [vmem:[%s194 + $0x4d8] sm:$0xff]
        %v5220 = vunpack.c.l.bf16 %v5216
        %v5221 = vunpack.c.h.bf16 %v5216
        %v5222 = vunpack.c.l.bf16 %v5217
        %v5223 = vunpack.c.h.bf16 %v5217
        %v5224 = vunpack.c.l.bf16 %v5218
        %v5225 = vunpack.c.h.bf16 %v5218
        %v5226 = vunpack.c.l.bf16 %v5219
        %v5227 = vunpack.c.h.bf16 %v5219
        %v5228 = vld [vmem:[%s194 + $0xae0] sm:$0xff]
        %v5229 = vld [vmem:[%s194 + $0xae8] sm:$0xff]
        %v5230 = vld [vmem:[%s194 + $0xaf0] sm:$0xff]
        %v5231 = vld [vmem:[%s194 + $0xaf8] sm:$0xff]
        %v5232 = vunpack.c.l.bf16 %v5228
        %v5233 = vunpack.c.h.bf16 %v5228
        %v5234 = vunpack.c.l.bf16 %v5229
        %v5235 = vunpack.c.h.bf16 %v5229
        %v5236 = vunpack.c.l.bf16 %v5230
        %v5237 = vunpack.c.h.bf16 %v5230
        %v5238 = vunpack.c.l.bf16 %v5231
        %v5239 = vunpack.c.h.bf16 %v5231
        %v5240 = vmax.f32 %v5220, 0.0
        %v5241 = vmax.f32 %v5221, 0.0
        %v5242 = vmax.f32 %v5222, 0.0
        %v5243 = vmax.f32 %v5223, 0.0
        %v5244 = vmax.f32 %v5224, 0.0
        %v5245 = vmax.f32 %v5225, 0.0
        %v5246 = vmax.f32 %v5226, 0.0
        %v5247 = vmax.f32 %v5227, 0.0
        %v5248 = vmul.f32 %v5220, %v5232
        %v5249 = vmul.f32 %v5221, %v5233
        %v5250 = vmul.f32 %v5222, %v5234
        %v5251 = vmul.f32 %v5223, %v5235
        %v5252 = vmul.f32 %v5224, %v5236
        %v5253 = vmul.f32 %v5225, %v5237
        %v5254 = vmul.f32 %v5226, %v5238
        %v5255 = vmul.f32 %v5227, %v5239
        %v5256 = vsub.f32 %v5240, %v5248
        %v5257 = vsub.f32 %v5241, %v5249
        %v5258 = vsub.f32 %v5242, %v5250
        %v5259 = vsub.f32 %v5243, %v5251
        %v5260 = vsub.f32 %v5244, %v5252
        %v5261 = vsub.f32 %v5245, %v5253
        %v5262 = vsub.f32 %v5246, %v5254
        %v5263 = vsub.f32 %v5247, %v5255
        %v5264 = vand.u32 2147483647, %v5220
        %v5265 = vand.u32 2147483647, %v5221
        %v5266 = vand.u32 2147483647, %v5222
        %v5267 = vand.u32 2147483647, %v5223
        %v5268 = vand.u32 2147483647, %v5224
        %v5269 = vand.u32 2147483647, %v5225
        %v5270 = vand.u32 2147483647, %v5226
        %v5271 = vand.u32 2147483647, %v5227
        %v5272 = vsub.f32 0.0, %v5264
        %v5273 = vsub.f32 0.0, %v5265
        %v5274 = vsub.f32 0.0, %v5266
        %v5275 = vsub.f32 0.0, %v5267
        %v5276 = vsub.f32 0.0, %v5268
        %v5277 = vsub.f32 0.0, %v5269
        %v5278 = vsub.f32 0.0, %v5270
        %v5279 = vsub.f32 0.0, %v5271
        %v5280 = vmul.f32 %v5272, 1.442695
        %v5281 = vpow.pop %v5280
        %v5282 = vmul.f32 %v5273, 1.442695
        %v5283 = vpow.pop %v5282
        %v5284 = vmul.f32 %v5274, 1.442695
        %v5285 = vpow.pop %v5284
        %v5286 = vmul.f32 %v5275, 1.442695
        %v5287 = vpow.pop %v5286
        %v5288 = vmul.f32 %v5276, 1.442695
        %v5289 = vpow.pop %v5288
        %v5290 = vmul.f32 %v5277, 1.442695
        %v5291 = vpow.pop %v5290
        %v5292 = vmul.f32 %v5278, 1.442695
        %v5293 = vpow.pop %v5292
        %v5294 = vmul.f32 %v5279, 1.442695
        %v5295 = vpow.pop %v5294
        %v5296 = vadd.f32 %v5281, 1.0
        %v5297 = vadd.f32 %v5283, 1.0
        %v5298 = vadd.f32 %v5285, 1.0
        %v5299 = vadd.f32 %v5287, 1.0
        %v5300 = vadd.f32 %v5289, 1.0
        %v5301 = vadd.f32 %v5291, 1.0
        %v5302 = vadd.f32 %v5293, 1.0
        %v5303 = vadd.f32 %v5295, 1.0
        %v5304 = vlog2.pop %v5296
        %v5305 = vmul.f32 %v5304, 0.6931472
        %v5306 = vlog2.pop %v5297
        %v5307 = vmul.f32 %v5306, 0.6931472
        %v5308 = vlog2.pop %v5298
        %v5309 = vmul.f32 %v5308, 0.6931472
        %v5310 = vlog2.pop %v5299
        %v5311 = vmul.f32 %v5310, 0.6931472
        %v5312 = vlog2.pop %v5300
        %v5313 = vmul.f32 %v5312, 0.6931472
        %v5314 = vlog2.pop %v5301
        %v5315 = vmul.f32 %v5314, 0.6931472
        %v5316 = vlog2.pop %v5302
        %v5317 = vmul.f32 %v5316, 0.6931472
        %v5318 = vlog2.pop %v5303
        %v5319 = vmul.f32 %v5318, 0.6931472
        %v5320 = vadd.f32 %v5256, %v5305
        %v5321 = vadd.f32 %v5257, %v5307
        %v5322 = vadd.f32 %v5258, %v5309
        %v5323 = vadd.f32 %v5259, %v5311
        %v5324 = vadd.f32 %v5260, %v5313
        %v5325 = vadd.f32 %v5261, %v5315
        %v5326 = vadd.f32 %v5262, %v5317
        %v5327 = vadd.f32 %v5263, %v5319
        %v5328 = vadd.f32 %v5208, %v5320
        %v5329 = vadd.f32 %v5209, %v5321
        %v5330 = vadd.f32 %v5210, %v5322
        %v5331 = vadd.f32 %v5211, %v5323
        %v5332 = vadd.f32 %v5212, %v5324
        %v5333 = vadd.f32 %v5213, %v5325
        %v5334 = vadd.f32 %v5214, %v5326
        %v5335 = vadd.f32 %v5215, %v5327
        %v5336 = vld [vmem:[%s194 + $0x4e0] sm:$0xff]
        %v5337 = vld [vmem:[%s194 + $0x4e8] sm:$0xff]
        %v5338 = vld [vmem:[%s194 + $0x4f0] sm:$0xff]
        %v5339 = vld [vmem:[%s194 + $0x4f8] sm:$0xff]
        %v5340 = vunpack.c.l.bf16 %v5336
        %v5341 = vunpack.c.h.bf16 %v5336
        %v5342 = vunpack.c.l.bf16 %v5337
        %v5343 = vunpack.c.h.bf16 %v5337
        %v5344 = vunpack.c.l.bf16 %v5338
        %v5345 = vunpack.c.h.bf16 %v5338
        %v5346 = vunpack.c.l.bf16 %v5339
        %v5347 = vunpack.c.h.bf16 %v5339
        %v5348 = vld [vmem:[%s194 + $0xb00] sm:$0xff]
        %v5349 = vld [vmem:[%s194 + $0xb08] sm:$0xff]
        %v5350 = vld [vmem:[%s194 + $0xb10] sm:$0xff]
        %v5351 = vld [vmem:[%s194 + $0xb18] sm:$0xff]
        %v5352 = vunpack.c.l.bf16 %v5348
        %v5353 = vunpack.c.h.bf16 %v5348
        %v5354 = vunpack.c.l.bf16 %v5349
        %v5355 = vunpack.c.h.bf16 %v5349
        %v5356 = vunpack.c.l.bf16 %v5350
        %v5357 = vunpack.c.h.bf16 %v5350
        %v5358 = vunpack.c.l.bf16 %v5351
        %v5359 = vunpack.c.h.bf16 %v5351
        %v5360 = vmax.f32 %v5340, 0.0
        %v5361 = vmax.f32 %v5341, 0.0
        %v5362 = vmax.f32 %v5342, 0.0
        %v5363 = vmax.f32 %v5343, 0.0
        %v5364 = vmax.f32 %v5344, 0.0
        %v5365 = vmax.f32 %v5345, 0.0
        %v5366 = vmax.f32 %v5346, 0.0
        %v5367 = vmax.f32 %v5347, 0.0
        %v5368 = vmul.f32 %v5340, %v5352
        %v5369 = vmul.f32 %v5341, %v5353
        %v5370 = vmul.f32 %v5342, %v5354
        %v5371 = vmul.f32 %v5343, %v5355
        %v5372 = vmul.f32 %v5344, %v5356
        %v5373 = vmul.f32 %v5345, %v5357
        %v5374 = vmul.f32 %v5346, %v5358
        %v5375 = vmul.f32 %v5347, %v5359
        %v5376 = vsub.f32 %v5360, %v5368
        %v5377 = vsub.f32 %v5361, %v5369
        %v5378 = vsub.f32 %v5362, %v5370
        %v5379 = vsub.f32 %v5363, %v5371
        %v5380 = vsub.f32 %v5364, %v5372
        %v5381 = vsub.f32 %v5365, %v5373
        %v5382 = vsub.f32 %v5366, %v5374
        %v5383 = vsub.f32 %v5367, %v5375
        %v5384 = vand.u32 2147483647, %v5340
        %v5385 = vand.u32 2147483647, %v5341
        %v5386 = vand.u32 2147483647, %v5342
        %v5387 = vand.u32 2147483647, %v5343
        %v5388 = vand.u32 2147483647, %v5344
        %v5389 = vand.u32 2147483647, %v5345
        %v5390 = vand.u32 2147483647, %v5346
        %v5391 = vand.u32 2147483647, %v5347
        %v5392 = vsub.f32 0.0, %v5384
        %v5393 = vsub.f32 0.0, %v5385
        %v5394 = vsub.f32 0.0, %v5386
        %v5395 = vsub.f32 0.0, %v5387
        %v5396 = vsub.f32 0.0, %v5388
        %v5397 = vsub.f32 0.0, %v5389
        %v5398 = vsub.f32 0.0, %v5390
        %v5399 = vsub.f32 0.0, %v5391
        %v5400 = vmul.f32 %v5392, 1.442695
        %v5401 = vpow.pop %v5400
        %v5402 = vmul.f32 %v5393, 1.442695
        %v5403 = vpow.pop %v5402
        %v5404 = vmul.f32 %v5394, 1.442695
        %v5405 = vpow.pop %v5404
        %v5406 = vmul.f32 %v5395, 1.442695
        %v5407 = vpow.pop %v5406
        %v5408 = vmul.f32 %v5396, 1.442695
        %v5409 = vpow.pop %v5408
        %v5410 = vmul.f32 %v5397, 1.442695
        %v5411 = vpow.pop %v5410
        %v5412 = vmul.f32 %v5398, 1.442695
        %v5413 = vpow.pop %v5412
        %v5414 = vmul.f32 %v5399, 1.442695
        %v5415 = vpow.pop %v5414
        %v5416 = vadd.f32 %v5401, 1.0
        %v5417 = vadd.f32 %v5403, 1.0
        %v5418 = vadd.f32 %v5405, 1.0
        %v5419 = vadd.f32 %v5407, 1.0
        %v5420 = vadd.f32 %v5409, 1.0
        %v5421 = vadd.f32 %v5411, 1.0
        %v5422 = vadd.f32 %v5413, 1.0
        %v5423 = vadd.f32 %v5415, 1.0
        %v5424 = vlog2.pop %v5416
        %v5425 = vmul.f32 %v5424, 0.6931472
        %v5426 = vlog2.pop %v5417
        %v5427 = vmul.f32 %v5426, 0.6931472
        %v5428 = vlog2.pop %v5418
        %v5429 = vmul.f32 %v5428, 0.6931472
        %v5430 = vlog2.pop %v5419
        %v5431 = vmul.f32 %v5430, 0.6931472
        %v5432 = vlog2.pop %v5420
        %v5433 = vmul.f32 %v5432, 0.6931472
        %v5434 = vlog2.pop %v5421
        %v5435 = vmul.f32 %v5434, 0.6931472
        %v5436 = vlog2.pop %v5422
        %v5437 = vmul.f32 %v5436, 0.6931472
        %v5438 = vlog2.pop %v5423
        %v5439 = vmul.f32 %v5438, 0.6931472
        %v5440 = vadd.f32 %v5376, %v5425
        %v5441 = vadd.f32 %v5377, %v5427
        %v5442 = vadd.f32 %v5378, %v5429
        %v5443 = vadd.f32 %v5379, %v5431
        %v5444 = vadd.f32 %v5380, %v5433
        %v5445 = vadd.f32 %v5381, %v5435
        %v5446 = vadd.f32 %v5382, %v5437
        %v5447 = vadd.f32 %v5383, %v5439
        %v5448 = vadd.f32 %v5328, %v5440
        %v5449 = vadd.f32 %v5329, %v5441
        %v5450 = vadd.f32 %v5330, %v5442
        %v5451 = vadd.f32 %v5331, %v5443
        %v5452 = vadd.f32 %v5332, %v5444
        %v5453 = vadd.f32 %v5333, %v5445
        %v5454 = vadd.f32 %v5334, %v5446
        %v5455 = vadd.f32 %v5335, %v5447
        %v5456 = vld [vmem:[%s194 + $0x500] sm:$0xff]
        %v5457 = vld [vmem:[%s194 + $0x508] sm:$0xff]
        %v5458 = vld [vmem:[%s194 + $0x510] sm:$0xff]
        %v5459 = vld [vmem:[%s194 + $0x518] sm:$0xff]
        %v5460 = vunpack.c.l.bf16 %v5456
        %v5461 = vunpack.c.h.bf16 %v5456
        %v5462 = vunpack.c.l.bf16 %v5457
        %v5463 = vunpack.c.h.bf16 %v5457
        %v5464 = vunpack.c.l.bf16 %v5458
        %v5465 = vunpack.c.h.bf16 %v5458
        %v5466 = vunpack.c.l.bf16 %v5459
        %v5467 = vunpack.c.h.bf16 %v5459
        %v5468 = vld [vmem:[%s194 + $0xb20] sm:$0xff]
        %v5469 = vld [vmem:[%s194 + $0xb28] sm:$0xff]
        %v5470 = vld [vmem:[%s194 + $0xb30] sm:$0xff]
        %v5471 = vld [vmem:[%s194 + $0xb38] sm:$0xff]
        %v5472 = vunpack.c.l.bf16 %v5468
        %v5473 = vunpack.c.h.bf16 %v5468
        %v5474 = vunpack.c.l.bf16 %v5469
        %v5475 = vunpack.c.h.bf16 %v5469
        %v5476 = vunpack.c.l.bf16 %v5470
        %v5477 = vunpack.c.h.bf16 %v5470
        %v5478 = vunpack.c.l.bf16 %v5471
        %v5479 = vunpack.c.h.bf16 %v5471
        %v5480 = vmax.f32 %v5460, 0.0
        %v5481 = vmax.f32 %v5461, 0.0
        %v5482 = vmax.f32 %v5462, 0.0
        %v5483 = vmax.f32 %v5463, 0.0
        %v5484 = vmax.f32 %v5464, 0.0
        %v5485 = vmax.f32 %v5465, 0.0
        %v5486 = vmax.f32 %v5466, 0.0
        %v5487 = vmax.f32 %v5467, 0.0
        %v5488 = vmul.f32 %v5460, %v5472
        %v5489 = vmul.f32 %v5461, %v5473
        %v5490 = vmul.f32 %v5462, %v5474
        %v5491 = vmul.f32 %v5463, %v5475
        %v5492 = vmul.f32 %v5464, %v5476
        %v5493 = vmul.f32 %v5465, %v5477
        %v5494 = vmul.f32 %v5466, %v5478
        %v5495 = vmul.f32 %v5467, %v5479
        %v5496 = vsub.f32 %v5480, %v5488
        %v5497 = vsub.f32 %v5481, %v5489
        %v5498 = vsub.f32 %v5482, %v5490
        %v5499 = vsub.f32 %v5483, %v5491
        %v5500 = vsub.f32 %v5484, %v5492
        %v5501 = vsub.f32 %v5485, %v5493
        %v5502 = vsub.f32 %v5486, %v5494
        %v5503 = vsub.f32 %v5487, %v5495
        %v5504 = vand.u32 2147483647, %v5460
        %v5505 = vand.u32 2147483647, %v5461
        %v5506 = vand.u32 2147483647, %v5462
        %v5507 = vand.u32 2147483647, %v5463
        %v5508 = vand.u32 2147483647, %v5464
        %v5509 = vand.u32 2147483647, %v5465
        %v5510 = vand.u32 2147483647, %v5466
        %v5511 = vand.u32 2147483647, %v5467
        %v5512 = vsub.f32 0.0, %v5504
        %v5513 = vsub.f32 0.0, %v5505
        %v5514 = vsub.f32 0.0, %v5506
        %v5515 = vsub.f32 0.0, %v5507
        %v5516 = vsub.f32 0.0, %v5508
        %v5517 = vsub.f32 0.0, %v5509
        %v5518 = vsub.f32 0.0, %v5510
        %v5519 = vsub.f32 0.0, %v5511
        %v5520 = vmul.f32 %v5512, 1.442695
        %v5521 = vpow.pop %v5520
        %v5522 = vmul.f32 %v5513, 1.442695
        %v5523 = vpow.pop %v5522
        %v5524 = vmul.f32 %v5514, 1.442695
        %v5525 = vpow.pop %v5524
        %v5526 = vmul.f32 %v5515, 1.442695
        %v5527 = vpow.pop %v5526
        %v5528 = vmul.f32 %v5516, 1.442695
        %v5529 = vpow.pop %v5528
        %v5530 = vmul.f32 %v5517, 1.442695
        %v5531 = vpow.pop %v5530
        %v5532 = vmul.f32 %v5518, 1.442695
        %v5533 = vpow.pop %v5532
        %v5534 = vmul.f32 %v5519, 1.442695
        %v5535 = vpow.pop %v5534
        %v5536 = vadd.f32 %v5521, 1.0
        %v5537 = vadd.f32 %v5523, 1.0
        %v5538 = vadd.f32 %v5525, 1.0
        %v5539 = vadd.f32 %v5527, 1.0
        %v5540 = vadd.f32 %v5529, 1.0
        %v5541 = vadd.f32 %v5531, 1.0
        %v5542 = vadd.f32 %v5533, 1.0
        %v5543 = vadd.f32 %v5535, 1.0
        %v5544 = vlog2.pop %v5536
        %v5545 = vmul.f32 %v5544, 0.6931472
        %v5546 = vlog2.pop %v5537
        %v5547 = vmul.f32 %v5546, 0.6931472
        %v5548 = vlog2.pop %v5538
        %v5549 = vmul.f32 %v5548, 0.6931472
        %v5550 = vlog2.pop %v5539
        %v5551 = vmul.f32 %v5550, 0.6931472
        %v5552 = vlog2.pop %v5540
        %v5553 = vmul.f32 %v5552, 0.6931472
        %v5554 = vlog2.pop %v5541
        %v5555 = vmul.f32 %v5554, 0.6931472
        %v5556 = vlog2.pop %v5542
        %v5557 = vmul.f32 %v5556, 0.6931472
        %v5558 = vlog2.pop %v5543
        %v5559 = vmul.f32 %v5558, 0.6931472
        %v5560 = vadd.f32 %v5496, %v5545
        %v5561 = vadd.f32 %v5497, %v5547
        %v5562 = vadd.f32 %v5498, %v5549
        %v5563 = vadd.f32 %v5499, %v5551
        %v5564 = vadd.f32 %v5500, %v5553
        %v5565 = vadd.f32 %v5501, %v5555
        %v5566 = vadd.f32 %v5502, %v5557
        %v5567 = vadd.f32 %v5503, %v5559
        %v5568 = vadd.f32 %v5448, %v5560
        %v5569 = vadd.f32 %v5449, %v5561
        %v5570 = vadd.f32 %v5450, %v5562
        %v5571 = vadd.f32 %v5451, %v5563
        %v5572 = vadd.f32 %v5452, %v5564
        %v5573 = vadd.f32 %v5453, %v5565
        %v5574 = vadd.f32 %v5454, %v5566
        %v5575 = vadd.f32 %v5455, %v5567
        %v5576 = vld [vmem:[%s194 + $0x520] sm:$0xff]
        %v5577 = vld [vmem:[%s194 + $0x528] sm:$0xff]
        %v5578 = vld [vmem:[%s194 + $0x530] sm:$0xff]
        %v5579 = vld [vmem:[%s194 + $0x538] sm:$0xff]
        %v5580 = vunpack.c.l.bf16 %v5576
        %v5581 = vunpack.c.h.bf16 %v5576
        %v5582 = vunpack.c.l.bf16 %v5577
        %v5583 = vunpack.c.h.bf16 %v5577
        %v5584 = vunpack.c.l.bf16 %v5578
        %v5585 = vunpack.c.h.bf16 %v5578
        %v5586 = vunpack.c.l.bf16 %v5579
        %v5587 = vunpack.c.h.bf16 %v5579
        %v5588 = vld [vmem:[%s194 + $0xb40] sm:$0xff]
        %v5589 = vld [vmem:[%s194 + $0xb48] sm:$0xff]
        %v5590 = vld [vmem:[%s194 + $0xb50] sm:$0xff]
        %v5591 = vld [vmem:[%s194 + $0xb58] sm:$0xff]
        %v5592 = vunpack.c.l.bf16 %v5588
        %v5593 = vunpack.c.h.bf16 %v5588
        %v5594 = vunpack.c.l.bf16 %v5589
        %v5595 = vunpack.c.h.bf16 %v5589
        %v5596 = vunpack.c.l.bf16 %v5590
        %v5597 = vunpack.c.h.bf16 %v5590
        %v5598 = vunpack.c.l.bf16 %v5591
        %v5599 = vunpack.c.h.bf16 %v5591
        %v5600 = vmax.f32 %v5580, 0.0
        %v5601 = vmax.f32 %v5581, 0.0
        %v5602 = vmax.f32 %v5582, 0.0
        %v5603 = vmax.f32 %v5583, 0.0
        %v5604 = vmax.f32 %v5584, 0.0
        %v5605 = vmax.f32 %v5585, 0.0
        %v5606 = vmax.f32 %v5586, 0.0
        %v5607 = vmax.f32 %v5587, 0.0
        %v5608 = vmul.f32 %v5580, %v5592
        %v5609 = vmul.f32 %v5581, %v5593
        %v5610 = vmul.f32 %v5582, %v5594
        %v5611 = vmul.f32 %v5583, %v5595
        %v5612 = vmul.f32 %v5584, %v5596
        %v5613 = vmul.f32 %v5585, %v5597
        %v5614 = vmul.f32 %v5586, %v5598
        %v5615 = vmul.f32 %v5587, %v5599
        %v5616 = vsub.f32 %v5600, %v5608
        %v5617 = vsub.f32 %v5601, %v5609
        %v5618 = vsub.f32 %v5602, %v5610
        %v5619 = vsub.f32 %v5603, %v5611
        %v5620 = vsub.f32 %v5604, %v5612
        %v5621 = vsub.f32 %v5605, %v5613
        %v5622 = vsub.f32 %v5606, %v5614
        %v5623 = vsub.f32 %v5607, %v5615
        %v5624 = vand.u32 2147483647, %v5580
        %v5625 = vand.u32 2147483647, %v5581
        %v5626 = vand.u32 2147483647, %v5582
        %v5627 = vand.u32 2147483647, %v5583
        %v5628 = vand.u32 2147483647, %v5584
        %v5629 = vand.u32 2147483647, %v5585
        %v5630 = vand.u32 2147483647, %v5586
        %v5631 = vand.u32 2147483647, %v5587
        %v5632 = vsub.f32 0.0, %v5624
        %v5633 = vsub.f32 0.0, %v5625
        %v5634 = vsub.f32 0.0, %v5626
        %v5635 = vsub.f32 0.0, %v5627
        %v5636 = vsub.f32 0.0, %v5628
        %v5637 = vsub.f32 0.0, %v5629
        %v5638 = vsub.f32 0.0, %v5630
        %v5639 = vsub.f32 0.0, %v5631
        %v5640 = vmul.f32 %v5632, 1.442695
        %v5641 = vpow.pop %v5640
        %v5642 = vmul.f32 %v5633, 1.442695
        %v5643 = vpow.pop %v5642
        %v5644 = vmul.f32 %v5634, 1.442695
        %v5645 = vpow.pop %v5644
        %v5646 = vmul.f32 %v5635, 1.442695
        %v5647 = vpow.pop %v5646
        %v5648 = vmul.f32 %v5636, 1.442695
        %v5649 = vpow.pop %v5648
        %v5650 = vmul.f32 %v5637, 1.442695
        %v5651 = vpow.pop %v5650
        %v5652 = vmul.f32 %v5638, 1.442695
        %v5653 = vpow.pop %v5652
        %v5654 = vmul.f32 %v5639, 1.442695
        %v5655 = vpow.pop %v5654
        %v5656 = vadd.f32 %v5641, 1.0
        %v5657 = vadd.f32 %v5643, 1.0
        %v5658 = vadd.f32 %v5645, 1.0
        %v5659 = vadd.f32 %v5647, 1.0
        %v5660 = vadd.f32 %v5649, 1.0
        %v5661 = vadd.f32 %v5651, 1.0
        %v5662 = vadd.f32 %v5653, 1.0
        %v5663 = vadd.f32 %v5655, 1.0
        %v5664 = vlog2.pop %v5656
        %v5665 = vmul.f32 %v5664, 0.6931472
        %v5666 = vlog2.pop %v5657
        %v5667 = vmul.f32 %v5666, 0.6931472
        %v5668 = vlog2.pop %v5658
        %v5669 = vmul.f32 %v5668, 0.6931472
        %v5670 = vlog2.pop %v5659
        %v5671 = vmul.f32 %v5670, 0.6931472
        %v5672 = vlog2.pop %v5660
        %v5673 = vmul.f32 %v5672, 0.6931472
        %v5674 = vlog2.pop %v5661
        %v5675 = vmul.f32 %v5674, 0.6931472
        %v5676 = vlog2.pop %v5662
        %v5677 = vmul.f32 %v5676, 0.6931472
        %v5678 = vlog2.pop %v5663
        %v5679 = vmul.f32 %v5678, 0.6931472
        %v5680 = vadd.f32 %v5616, %v5665
        %v5681 = vadd.f32 %v5617, %v5667
        %v5682 = vadd.f32 %v5618, %v5669
        %v5683 = vadd.f32 %v5619, %v5671
        %v5684 = vadd.f32 %v5620, %v5673
        %v5685 = vadd.f32 %v5621, %v5675
        %v5686 = vadd.f32 %v5622, %v5677
        %v5687 = vadd.f32 %v5623, %v5679
        %v5688 = vadd.f32 %v5568, %v5680
        %v5689 = vadd.f32 %v5569, %v5681
        %v5690 = vadd.f32 %v5570, %v5682
        %v5691 = vadd.f32 %v5571, %v5683
        %v5692 = vadd.f32 %v5572, %v5684
        %v5693 = vadd.f32 %v5573, %v5685
        %v5694 = vadd.f32 %v5574, %v5686
        %v5695 = vadd.f32 %v5575, %v5687
        %v5696 = vld [vmem:[%s194 + $0x540] sm:$0xff]
        %v5697 = vld [vmem:[%s194 + $0x548] sm:$0xff]
        %v5698 = vld [vmem:[%s194 + $0x550] sm:$0xff]
        %v5699 = vld [vmem:[%s194 + $0x558] sm:$0xff]
        %v5700 = vunpack.c.l.bf16 %v5696
        %v5701 = vunpack.c.h.bf16 %v5696
        %v5702 = vunpack.c.l.bf16 %v5697
        %v5703 = vunpack.c.h.bf16 %v5697
        %v5704 = vunpack.c.l.bf16 %v5698
        %v5705 = vunpack.c.h.bf16 %v5698
        %v5706 = vunpack.c.l.bf16 %v5699
        %v5707 = vunpack.c.h.bf16 %v5699
        %v5708 = vld [vmem:[%s194 + $0xb60] sm:$0xff]
        %v5709 = vld [vmem:[%s194 + $0xb68] sm:$0xff]
        %v5710 = vld [vmem:[%s194 + $0xb70] sm:$0xff]
        %v5711 = vld [vmem:[%s194 + $0xb78] sm:$0xff]
        %v5712 = vunpack.c.l.bf16 %v5708
        %v5713 = vunpack.c.h.bf16 %v5708
        %v5714 = vunpack.c.l.bf16 %v5709
        %v5715 = vunpack.c.h.bf16 %v5709
        %v5716 = vunpack.c.l.bf16 %v5710
        %v5717 = vunpack.c.h.bf16 %v5710
        %v5718 = vunpack.c.l.bf16 %v5711
        %v5719 = vunpack.c.h.bf16 %v5711
        %v5720 = vmax.f32 %v5700, 0.0
        %v5721 = vmax.f32 %v5701, 0.0
        %v5722 = vmax.f32 %v5702, 0.0
        %v5723 = vmax.f32 %v5703, 0.0
        %v5724 = vmax.f32 %v5704, 0.0
        %v5725 = vmax.f32 %v5705, 0.0
        %v5726 = vmax.f32 %v5706, 0.0
        %v5727 = vmax.f32 %v5707, 0.0
        %v5728 = vmul.f32 %v5700, %v5712
        %v5729 = vmul.f32 %v5701, %v5713
        %v5730 = vmul.f32 %v5702, %v5714
        %v5731 = vmul.f32 %v5703, %v5715
        %v5732 = vmul.f32 %v5704, %v5716
        %v5733 = vmul.f32 %v5705, %v5717
        %v5734 = vmul.f32 %v5706, %v5718
        %v5735 = vmul.f32 %v5707, %v5719
        %v5736 = vsub.f32 %v5720, %v5728
        %v5737 = vsub.f32 %v5721, %v5729
        %v5738 = vsub.f32 %v5722, %v5730
        %v5739 = vsub.f32 %v5723, %v5731
        %v5740 = vsub.f32 %v5724, %v5732
        %v5741 = vsub.f32 %v5725, %v5733
        %v5742 = vsub.f32 %v5726, %v5734
        %v5743 = vsub.f32 %v5727, %v5735
        %v5744 = vand.u32 2147483647, %v5700
        %v5745 = vand.u32 2147483647, %v5701
        %v5746 = vand.u32 2147483647, %v5702
        %v5747 = vand.u32 2147483647, %v5703
        %v5748 = vand.u32 2147483647, %v5704
        %v5749 = vand.u32 2147483647, %v5705
        %v5750 = vand.u32 2147483647, %v5706
        %v5751 = vand.u32 2147483647, %v5707
        %v5752 = vsub.f32 0.0, %v5744
        %v5753 = vsub.f32 0.0, %v5745
        %v5754 = vsub.f32 0.0, %v5746
        %v5755 = vsub.f32 0.0, %v5747
        %v5756 = vsub.f32 0.0, %v5748
        %v5757 = vsub.f32 0.0, %v5749
        %v5758 = vsub.f32 0.0, %v5750
        %v5759 = vsub.f32 0.0, %v5751
        %v5760 = vmul.f32 %v5752, 1.442695
        %v5761 = vpow.pop %v5760
        %v5762 = vmul.f32 %v5753, 1.442695
        %v5763 = vpow.pop %v5762
        %v5764 = vmul.f32 %v5754, 1.442695
        %v5765 = vpow.pop %v5764
        %v5766 = vmul.f32 %v5755, 1.442695
        %v5767 = vpow.pop %v5766
        %v5768 = vmul.f32 %v5756, 1.442695
        %v5769 = vpow.pop %v5768
        %v5770 = vmul.f32 %v5757, 1.442695
        %v5771 = vpow.pop %v5770
        %v5772 = vmul.f32 %v5758, 1.442695
        %v5773 = vpow.pop %v5772
        %v5774 = vmul.f32 %v5759, 1.442695
        %v5775 = vpow.pop %v5774
        %v5776 = vadd.f32 %v5761, 1.0
        %v5777 = vadd.f32 %v5763, 1.0
        %v5778 = vadd.f32 %v5765, 1.0
        %v5779 = vadd.f32 %v5767, 1.0
        %v5780 = vadd.f32 %v5769, 1.0
        %v5781 = vadd.f32 %v5771, 1.0
        %v5782 = vadd.f32 %v5773, 1.0
        %v5783 = vadd.f32 %v5775, 1.0
        %v5784 = vlog2.pop %v5776
        %v5785 = vmul.f32 %v5784, 0.6931472
        %v5786 = vlog2.pop %v5777
        %v5787 = vmul.f32 %v5786, 0.6931472
        %v5788 = vlog2.pop %v5778
        %v5789 = vmul.f32 %v5788, 0.6931472
        %v5790 = vlog2.pop %v5779
        %v5791 = vmul.f32 %v5790, 0.6931472
        %v5792 = vlog2.pop %v5780
        %v5793 = vmul.f32 %v5792, 0.6931472
        %v5794 = vlog2.pop %v5781
        %v5795 = vmul.f32 %v5794, 0.6931472
        %v5796 = vlog2.pop %v5782
        %v5797 = vmul.f32 %v5796, 0.6931472
        %v5798 = vlog2.pop %v5783
        %v5799 = vmul.f32 %v5798, 0.6931472
        %v5800 = vadd.f32 %v5736, %v5785
        %v5801 = vadd.f32 %v5737, %v5787
        %v5802 = vadd.f32 %v5738, %v5789
        %v5803 = vadd.f32 %v5739, %v5791
        %v5804 = vadd.f32 %v5740, %v5793
        %v5805 = vadd.f32 %v5741, %v5795
        %v5806 = vadd.f32 %v5742, %v5797
        %v5807 = vadd.f32 %v5743, %v5799
        %v5808 = vadd.f32 %v5688, %v5800
        %v5809 = vadd.f32 %v5689, %v5801
        %v5810 = vadd.f32 %v5690, %v5802
        %v5811 = vadd.f32 %v5691, %v5803
        %v5812 = vadd.f32 %v5692, %v5804
        %v5813 = vadd.f32 %v5693, %v5805
        %v5814 = vadd.f32 %v5694, %v5806
        %v5815 = vadd.f32 %v5695, %v5807
        %v5816 = vld [vmem:[%s194 + $0x560] sm:$0xff]
        %v5817 = vld [vmem:[%s194 + $0x568] sm:$0xff]
        %v5818 = vld [vmem:[%s194 + $0x570] sm:$0xff]
        %v5819 = vld [vmem:[%s194 + $0x578] sm:$0xff]
        %v5820 = vunpack.c.l.bf16 %v5816
        %v5821 = vunpack.c.h.bf16 %v5816
        %v5822 = vunpack.c.l.bf16 %v5817
        %v5823 = vunpack.c.h.bf16 %v5817
        %v5824 = vunpack.c.l.bf16 %v5818
        %v5825 = vunpack.c.h.bf16 %v5818
        %v5826 = vunpack.c.l.bf16 %v5819
        %v5827 = vunpack.c.h.bf16 %v5819
        %v5828 = vld [vmem:[%s194 + $0xb80] sm:$0xff]
        %v5829 = vld [vmem:[%s194 + $0xb88] sm:$0xff]
        %v5830 = vld [vmem:[%s194 + $0xb90] sm:$0xff]
        %v5831 = vld [vmem:[%s194 + $0xb98] sm:$0xff]
        %v5832 = vunpack.c.l.bf16 %v5828
        %v5833 = vunpack.c.h.bf16 %v5828
        %v5834 = vunpack.c.l.bf16 %v5829
        %v5835 = vunpack.c.h.bf16 %v5829
        %v5836 = vunpack.c.l.bf16 %v5830
        %v5837 = vunpack.c.h.bf16 %v5830
        %v5838 = vunpack.c.l.bf16 %v5831
        %v5839 = vunpack.c.h.bf16 %v5831
        %v5840 = vmax.f32 %v5820, 0.0
        %v5841 = vmax.f32 %v5821, 0.0
        %v5842 = vmax.f32 %v5822, 0.0
        %v5843 = vmax.f32 %v5823, 0.0
        %v5844 = vmax.f32 %v5824, 0.0
        %v5845 = vmax.f32 %v5825, 0.0
        %v5846 = vmax.f32 %v5826, 0.0
        %v5847 = vmax.f32 %v5827, 0.0
        %v5848 = vmul.f32 %v5820, %v5832
        %v5849 = vmul.f32 %v5821, %v5833
        %v5850 = vmul.f32 %v5822, %v5834
        %v5851 = vmul.f32 %v5823, %v5835
        %v5852 = vmul.f32 %v5824, %v5836
        %v5853 = vmul.f32 %v5825, %v5837
        %v5854 = vmul.f32 %v5826, %v5838
        %v5855 = vmul.f32 %v5827, %v5839
        %v5856 = vsub.f32 %v5840, %v5848
        %v5857 = vsub.f32 %v5841, %v5849
        %v5858 = vsub.f32 %v5842, %v5850
        %v5859 = vsub.f32 %v5843, %v5851
        %v5860 = vsub.f32 %v5844, %v5852
        %v5861 = vsub.f32 %v5845, %v5853
        %v5862 = vsub.f32 %v5846, %v5854
        %v5863 = vsub.f32 %v5847, %v5855
        %v5864 = vand.u32 2147483647, %v5820
        %v5865 = vand.u32 2147483647, %v5821
        %v5866 = vand.u32 2147483647, %v5822
        %v5867 = vand.u32 2147483647, %v5823
        %v5868 = vand.u32 2147483647, %v5824
        %v5869 = vand.u32 2147483647, %v5825
        %v5870 = vand.u32 2147483647, %v5826
        %v5871 = vand.u32 2147483647, %v5827
        %v5872 = vsub.f32 0.0, %v5864
        %v5873 = vsub.f32 0.0, %v5865
        %v5874 = vsub.f32 0.0, %v5866
        %v5875 = vsub.f32 0.0, %v5867
        %v5876 = vsub.f32 0.0, %v5868
        %v5877 = vsub.f32 0.0, %v5869
        %v5878 = vsub.f32 0.0, %v5870
        %v5879 = vsub.f32 0.0, %v5871
        %v5880 = vmul.f32 %v5872, 1.442695
        %v5881 = vpow.pop %v5880
        %v5882 = vmul.f32 %v5873, 1.442695
        %v5883 = vpow.pop %v5882
        %v5884 = vmul.f32 %v5874, 1.442695
        %v5885 = vpow.pop %v5884
        %v5886 = vmul.f32 %v5875, 1.442695
        %v5887 = vpow.pop %v5886
        %v5888 = vmul.f32 %v5876, 1.442695
        %v5889 = vpow.pop %v5888
        %v5890 = vmul.f32 %v5877, 1.442695
        %v5891 = vpow.pop %v5890
        %v5892 = vmul.f32 %v5878, 1.442695
        %v5893 = vpow.pop %v5892
        %v5894 = vmul.f32 %v5879, 1.442695
        %v5895 = vpow.pop %v5894
        %v5896 = vadd.f32 %v5881, 1.0
        %v5897 = vadd.f32 %v5883, 1.0
        %v5898 = vadd.f32 %v5885, 1.0
        %v5899 = vadd.f32 %v5887, 1.0
        %v5900 = vadd.f32 %v5889, 1.0
        %v5901 = vadd.f32 %v5891, 1.0
        %v5902 = vadd.f32 %v5893, 1.0
        %v5903 = vadd.f32 %v5895, 1.0
        %v5904 = vlog2.pop %v5896
        %v5905 = vmul.f32 %v5904, 0.6931472
        %v5906 = vlog2.pop %v5897
        %v5907 = vmul.f32 %v5906, 0.6931472
        %v5908 = vlog2.pop %v5898
        %v5909 = vmul.f32 %v5908, 0.6931472
        %v5910 = vlog2.pop %v5899
        %v5911 = vmul.f32 %v5910, 0.6931472
        %v5912 = vlog2.pop %v5900
        %v5913 = vmul.f32 %v5912, 0.6931472
        %v5914 = vlog2.pop %v5901
        %v5915 = vmul.f32 %v5914, 0.6931472
        %v5916 = vlog2.pop %v5902
        %v5917 = vmul.f32 %v5916, 0.6931472
        %v5918 = vlog2.pop %v5903
        %v5919 = vmul.f32 %v5918, 0.6931472
        %v5920 = vadd.f32 %v5856, %v5905
        %v5921 = vadd.f32 %v5857, %v5907
        %v5922 = vadd.f32 %v5858, %v5909
        %v5923 = vadd.f32 %v5859, %v5911
        %v5924 = vadd.f32 %v5860, %v5913
        %v5925 = vadd.f32 %v5861, %v5915
        %v5926 = vadd.f32 %v5862, %v5917
        %v5927 = vadd.f32 %v5863, %v5919
        %v5928 = vadd.f32 %v5808, %v5920
        %v5929 = vadd.f32 %v5809, %v5921
        %v5930 = vadd.f32 %v5810, %v5922
        %v5931 = vadd.f32 %v5811, %v5923
        %v5932 = vadd.f32 %v5812, %v5924
        %v5933 = vadd.f32 %v5813, %v5925
        %v5934 = vadd.f32 %v5814, %v5926
        %v5935 = vadd.f32 %v5815, %v5927
        %v5936 = vld [vmem:[%s194 + $0x580] sm:$0xff]
        %v5937 = vld [vmem:[%s194 + $0x588] sm:$0xff]
        %v5938 = vld [vmem:[%s194 + $0x590] sm:$0xff]
        %v5939 = vld [vmem:[%s194 + $0x598] sm:$0xff]
        %v5940 = vunpack.c.l.bf16 %v5936
        %v5941 = vunpack.c.h.bf16 %v5936
        %v5942 = vunpack.c.l.bf16 %v5937
        %v5943 = vunpack.c.h.bf16 %v5937
        %v5944 = vunpack.c.l.bf16 %v5938
        %v5945 = vunpack.c.h.bf16 %v5938
        %v5946 = vunpack.c.l.bf16 %v5939
        %v5947 = vunpack.c.h.bf16 %v5939
        %v5948 = vld [vmem:[%s194 + $0xba0] sm:$0xff]
        %v5949 = vld [vmem:[%s194 + $0xba8] sm:$0xff]
        %v5950 = vld [vmem:[%s194 + $0xbb0] sm:$0xff]
        %v5951 = vld [vmem:[%s194 + $0xbb8] sm:$0xff]
        %v5952 = vunpack.c.l.bf16 %v5948
        %v5953 = vunpack.c.h.bf16 %v5948
        %v5954 = vunpack.c.l.bf16 %v5949
        %v5955 = vunpack.c.h.bf16 %v5949
        %v5956 = vunpack.c.l.bf16 %v5950
        %v5957 = vunpack.c.h.bf16 %v5950
        %v5958 = vunpack.c.l.bf16 %v5951
        %v5959 = vunpack.c.h.bf16 %v5951
        %v5960 = vmax.f32 %v5940, 0.0
        %v5961 = vmax.f32 %v5941, 0.0
        %v5962 = vmax.f32 %v5942, 0.0
        %v5963 = vmax.f32 %v5943, 0.0
        %v5964 = vmax.f32 %v5944, 0.0
        %v5965 = vmax.f32 %v5945, 0.0
        %v5966 = vmax.f32 %v5946, 0.0
        %v5967 = vmax.f32 %v5947, 0.0
        %v5968 = vmul.f32 %v5940, %v5952
        %v5969 = vmul.f32 %v5941, %v5953
        %v5970 = vmul.f32 %v5942, %v5954
        %v5971 = vmul.f32 %v5943, %v5955
        %v5972 = vmul.f32 %v5944, %v5956
        %v5973 = vmul.f32 %v5945, %v5957
        %v5974 = vmul.f32 %v5946, %v5958
        %v5975 = vmul.f32 %v5947, %v5959
        %v5976 = vsub.f32 %v5960, %v5968
        %v5977 = vsub.f32 %v5961, %v5969
        %v5978 = vsub.f32 %v5962, %v5970
        %v5979 = vsub.f32 %v5963, %v5971
        %v5980 = vsub.f32 %v5964, %v5972
        %v5981 = vsub.f32 %v5965, %v5973
        %v5982 = vsub.f32 %v5966, %v5974
        %v5983 = vsub.f32 %v5967, %v5975
        %v5984 = vand.u32 2147483647, %v5940
        %v5985 = vand.u32 2147483647, %v5941
        %v5986 = vand.u32 2147483647, %v5942
        %v5987 = vand.u32 2147483647, %v5943
        %v5988 = vand.u32 2147483647, %v5944
        %v5989 = vand.u32 2147483647, %v5945
        %v5990 = vand.u32 2147483647, %v5946
        %v5991 = vand.u32 2147483647, %v5947
        %v5992 = vsub.f32 0.0, %v5984
        %v5993 = vsub.f32 0.0, %v5985
        %v5994 = vsub.f32 0.0, %v5986
        %v5995 = vsub.f32 0.0, %v5987
        %v5996 = vsub.f32 0.0, %v5988
        %v5997 = vsub.f32 0.0, %v5989
        %v5998 = vsub.f32 0.0, %v5990
        %v5999 = vsub.f32 0.0, %v5991
        %v6000 = vmul.f32 %v5992, 1.442695
        %v6001 = vpow.pop %v6000
        %v6002 = vmul.f32 %v5993, 1.442695
        %v6003 = vpow.pop %v6002
        %v6004 = vmul.f32 %v5994, 1.442695
        %v6005 = vpow.pop %v6004
        %v6006 = vmul.f32 %v5995, 1.442695
        %v6007 = vpow.pop %v6006
        %v6008 = vmul.f32 %v5996, 1.442695
        %v6009 = vpow.pop %v6008
        %v6010 = vmul.f32 %v5997, 1.442695
        %v6011 = vpow.pop %v6010
        %v6012 = vmul.f32 %v5998, 1.442695
        %v6013 = vpow.pop %v6012
        %v6014 = vmul.f32 %v5999, 1.442695
        %v6015 = vpow.pop %v6014
        %v6016 = vadd.f32 %v6001, 1.0
        %v6017 = vadd.f32 %v6003, 1.0
        %v6018 = vadd.f32 %v6005, 1.0
        %v6019 = vadd.f32 %v6007, 1.0
        %v6020 = vadd.f32 %v6009, 1.0
        %v6021 = vadd.f32 %v6011, 1.0
        %v6022 = vadd.f32 %v6013, 1.0
        %v6023 = vadd.f32 %v6015, 1.0
        %v6024 = vlog2.pop %v6016
        %v6025 = vmul.f32 %v6024, 0.6931472
        %v6026 = vlog2.pop %v6017
        %v6027 = vmul.f32 %v6026, 0.6931472
        %v6028 = vlog2.pop %v6018
        %v6029 = vmul.f32 %v6028, 0.6931472
        %v6030 = vlog2.pop %v6019
        %v6031 = vmul.f32 %v6030, 0.6931472
        %v6032 = vlog2.pop %v6020
        %v6033 = vmul.f32 %v6032, 0.6931472
        %v6034 = vlog2.pop %v6021
        %v6035 = vmul.f32 %v6034, 0.6931472
        %v6036 = vlog2.pop %v6022
        %v6037 = vmul.f32 %v6036, 0.6931472
        %v6038 = vlog2.pop %v6023
        %v6039 = vmul.f32 %v6038, 0.6931472
        %v6040 = vadd.f32 %v5976, %v6025
        %v6041 = vadd.f32 %v5977, %v6027
        %v6042 = vadd.f32 %v5978, %v6029
        %v6043 = vadd.f32 %v5979, %v6031
        %v6044 = vadd.f32 %v5980, %v6033
        %v6045 = vadd.f32 %v5981, %v6035
        %v6046 = vadd.f32 %v5982, %v6037
        %v6047 = vadd.f32 %v5983, %v6039
        %v6048 = vadd.f32 %v5928, %v6040
        %v6049 = vadd.f32 %v5929, %v6041
        %v6050 = vadd.f32 %v5930, %v6042
        %v6051 = vadd.f32 %v5931, %v6043
        %v6052 = vadd.f32 %v5932, %v6044
        %v6053 = vadd.f32 %v5933, %v6045
        %v6054 = vadd.f32 %v5934, %v6046
        %v6055 = vadd.f32 %v5935, %v6047
        %v6056 = vld [vmem:[%s194 + $0x5a0] sm:$0xff]
        %v6057 = vld [vmem:[%s194 + $0x5a8] sm:$0xff]
        %v6058 = vld [vmem:[%s194 + $0x5b0] sm:$0xff]
        %v6059 = vld [vmem:[%s194 + $0x5b8] sm:$0xff]
        %v6060 = vunpack.c.l.bf16 %v6056
        %v6061 = vunpack.c.h.bf16 %v6056
        %v6062 = vunpack.c.l.bf16 %v6057
        %v6063 = vunpack.c.h.bf16 %v6057
        %v6064 = vunpack.c.l.bf16 %v6058
        %v6065 = vunpack.c.h.bf16 %v6058
        %v6066 = vunpack.c.l.bf16 %v6059
        %v6067 = vunpack.c.h.bf16 %v6059
        %v6068 = vld [vmem:[%s194 + $0xbc0] sm:$0xff]
        %v6069 = vld [vmem:[%s194 + $0xbc8] sm:$0xff]
        %v6070 = vld [vmem:[%s194 + $0xbd0] sm:$0xff]
        %v6071 = vld [vmem:[%s194 + $0xbd8] sm:$0xff]
        %v6072 = vunpack.c.l.bf16 %v6068
        %v6073 = vunpack.c.h.bf16 %v6068
        %v6074 = vunpack.c.l.bf16 %v6069
        %v6075 = vunpack.c.h.bf16 %v6069
        %v6076 = vunpack.c.l.bf16 %v6070
        %v6077 = vunpack.c.h.bf16 %v6070
        %v6078 = vunpack.c.l.bf16 %v6071
        %v6079 = vunpack.c.h.bf16 %v6071
        %v6080 = vmax.f32 %v6060, 0.0
        %v6081 = vmax.f32 %v6061, 0.0
        %v6082 = vmax.f32 %v6062, 0.0
        %v6083 = vmax.f32 %v6063, 0.0
        %v6084 = vmax.f32 %v6064, 0.0
        %v6085 = vmax.f32 %v6065, 0.0
        %v6086 = vmax.f32 %v6066, 0.0
        %v6087 = vmax.f32 %v6067, 0.0
        %v6088 = vmul.f32 %v6060, %v6072
        %v6089 = vmul.f32 %v6061, %v6073
        %v6090 = vmul.f32 %v6062, %v6074
        %v6091 = vmul.f32 %v6063, %v6075
        %v6092 = vmul.f32 %v6064, %v6076
        %v6093 = vmul.f32 %v6065, %v6077
        %v6094 = vmul.f32 %v6066, %v6078
        %v6095 = vmul.f32 %v6067, %v6079
        %v6096 = vsub.f32 %v6080, %v6088
        %v6097 = vsub.f32 %v6081, %v6089
        %v6098 = vsub.f32 %v6082, %v6090
        %v6099 = vsub.f32 %v6083, %v6091
        %v6100 = vsub.f32 %v6084, %v6092
        %v6101 = vsub.f32 %v6085, %v6093
        %v6102 = vsub.f32 %v6086, %v6094
        %v6103 = vsub.f32 %v6087, %v6095
        %v6104 = vand.u32 2147483647, %v6060
        %v6105 = vand.u32 2147483647, %v6061
        %v6106 = vand.u32 2147483647, %v6062
        %v6107 = vand.u32 2147483647, %v6063
        %v6108 = vand.u32 2147483647, %v6064
        %v6109 = vand.u32 2147483647, %v6065
        %v6110 = vand.u32 2147483647, %v6066
        %v6111 = vand.u32 2147483647, %v6067
        %v6112 = vsub.f32 0.0, %v6104
        %v6113 = vsub.f32 0.0, %v6105
        %v6114 = vsub.f32 0.0, %v6106
        %v6115 = vsub.f32 0.0, %v6107
        %v6116 = vsub.f32 0.0, %v6108
        %v6117 = vsub.f32 0.0, %v6109
        %v6118 = vsub.f32 0.0, %v6110
        %v6119 = vsub.f32 0.0, %v6111
        %v6120 = vmul.f32 %v6112, 1.442695
        %v6121 = vpow.pop %v6120
        %v6122 = vmul.f32 %v6113, 1.442695
        %v6123 = vpow.pop %v6122
        %v6124 = vmul.f32 %v6114, 1.442695
        %v6125 = vpow.pop %v6124
        %v6126 = vmul.f32 %v6115, 1.442695
        %v6127 = vpow.pop %v6126
        %v6128 = vmul.f32 %v6116, 1.442695
        %v6129 = vpow.pop %v6128
        %v6130 = vmul.f32 %v6117, 1.442695
        %v6131 = vpow.pop %v6130
        %v6132 = vmul.f32 %v6118, 1.442695
        %v6133 = vpow.pop %v6132
        %v6134 = vmul.f32 %v6119, 1.442695
        %v6135 = vpow.pop %v6134
        %v6136 = vadd.f32 %v6121, 1.0
        %v6137 = vadd.f32 %v6123, 1.0
        %v6138 = vadd.f32 %v6125, 1.0
        %v6139 = vadd.f32 %v6127, 1.0
        %v6140 = vadd.f32 %v6129, 1.0
        %v6141 = vadd.f32 %v6131, 1.0
        %v6142 = vadd.f32 %v6133, 1.0
        %v6143 = vadd.f32 %v6135, 1.0
        %v6144 = vlog2.pop %v6136
        %v6145 = vmul.f32 %v6144, 0.6931472
        %v6146 = vlog2.pop %v6137
        %v6147 = vmul.f32 %v6146, 0.6931472
        %v6148 = vlog2.pop %v6138
        %v6149 = vmul.f32 %v6148, 0.6931472
        %v6150 = vlog2.pop %v6139
        %v6151 = vmul.f32 %v6150, 0.6931472
        %v6152 = vlog2.pop %v6140
        %v6153 = vmul.f32 %v6152, 0.6931472
        %v6154 = vlog2.pop %v6141
        %v6155 = vmul.f32 %v6154, 0.6931472
        %v6156 = vlog2.pop %v6142
        %v6157 = vmul.f32 %v6156, 0.6931472
        %v6158 = vlog2.pop %v6143
        %v6159 = vmul.f32 %v6158, 0.6931472
        %v6160 = vadd.f32 %v6096, %v6145
        %v6161 = vadd.f32 %v6097, %v6147
        %v6162 = vadd.f32 %v6098, %v6149
        %v6163 = vadd.f32 %v6099, %v6151
        %v6164 = vadd.f32 %v6100, %v6153
        %v6165 = vadd.f32 %v6101, %v6155
        %v6166 = vadd.f32 %v6102, %v6157
        %v6167 = vadd.f32 %v6103, %v6159
        %v6168 = vadd.f32 %v6048, %v6160
        %v6169 = vadd.f32 %v6049, %v6161
        %v6170 = vadd.f32 %v6050, %v6162
        %v6171 = vadd.f32 %v6051, %v6163
        %v6172 = vadd.f32 %v6052, %v6164
        %v6173 = vadd.f32 %v6053, %v6165
        %v6174 = vadd.f32 %v6054, %v6166
        %v6175 = vadd.f32 %v6055, %v6167
        %v6176 = vld [vmem:[%s194 + $0x5c0] sm:$0xff]
        %v6177 = vld [vmem:[%s194 + $0x5c8] sm:$0xff]
        %v6178 = vld [vmem:[%s194 + $0x5d0] sm:$0xff]
        %v6179 = vld [vmem:[%s194 + $0x5d8] sm:$0xff]
        %v6180 = vunpack.c.l.bf16 %v6176
        %v6181 = vunpack.c.h.bf16 %v6176
        %v6182 = vunpack.c.l.bf16 %v6177
        %v6183 = vunpack.c.h.bf16 %v6177
        %v6184 = vunpack.c.l.bf16 %v6178
        %v6185 = vunpack.c.h.bf16 %v6178
        %v6186 = vunpack.c.l.bf16 %v6179
        %v6187 = vunpack.c.h.bf16 %v6179
        %v6188 = vld [vmem:[%s194 + $0xbe0] sm:$0xff]
        %v6189 = vld [vmem:[%s194 + $0xbe8] sm:$0xff]
        %v6190 = vld [vmem:[%s194 + $0xbf0] sm:$0xff]
        %v6191 = vld [vmem:[%s194 + $0xbf8] sm:$0xff]
        %v6192 = vunpack.c.l.bf16 %v6188
        %v6193 = vunpack.c.h.bf16 %v6188
        %v6194 = vunpack.c.l.bf16 %v6189
        %v6195 = vunpack.c.h.bf16 %v6189
        %v6196 = vunpack.c.l.bf16 %v6190
        %v6197 = vunpack.c.h.bf16 %v6190
        %v6198 = vunpack.c.l.bf16 %v6191
        %v6199 = vunpack.c.h.bf16 %v6191
        %v6200 = vmax.f32 %v6180, 0.0
        %v6201 = vmax.f32 %v6181, 0.0
        %v6202 = vmax.f32 %v6182, 0.0
        %v6203 = vmax.f32 %v6183, 0.0
        %v6204 = vmax.f32 %v6184, 0.0
        %v6205 = vmax.f32 %v6185, 0.0
        %v6206 = vmax.f32 %v6186, 0.0
        %v6207 = vmax.f32 %v6187, 0.0
        %v6208 = vmul.f32 %v6180, %v6192
        %v6209 = vmul.f32 %v6181, %v6193
        %v6210 = vmul.f32 %v6182, %v6194
        %v6211 = vmul.f32 %v6183, %v6195
        %v6212 = vmul.f32 %v6184, %v6196
        %v6213 = vmul.f32 %v6185, %v6197
        %v6214 = vmul.f32 %v6186, %v6198
        %v6215 = vmul.f32 %v6187, %v6199
        %v6216 = vsub.f32 %v6200, %v6208
        %v6217 = vsub.f32 %v6201, %v6209
        %v6218 = vsub.f32 %v6202, %v6210
        %v6219 = vsub.f32 %v6203, %v6211
        %v6220 = vsub.f32 %v6204, %v6212
        %v6221 = vsub.f32 %v6205, %v6213
        %v6222 = vsub.f32 %v6206, %v6214
        %v6223 = vsub.f32 %v6207, %v6215
        %v6224 = vand.u32 2147483647, %v6180
        %v6225 = vand.u32 2147483647, %v6181
        %v6226 = vand.u32 2147483647, %v6182
        %v6227 = vand.u32 2147483647, %v6183
        %v6228 = vand.u32 2147483647, %v6184
        %v6229 = vand.u32 2147483647, %v6185
        %v6230 = vand.u32 2147483647, %v6186
        %v6231 = vand.u32 2147483647, %v6187
        %v6232 = vsub.f32 0.0, %v6224
        %v6233 = vsub.f32 0.0, %v6225
        %v6234 = vsub.f32 0.0, %v6226
        %v6235 = vsub.f32 0.0, %v6227
        %v6236 = vsub.f32 0.0, %v6228
        %v6237 = vsub.f32 0.0, %v6229
        %v6238 = vsub.f32 0.0, %v6230
        %v6239 = vsub.f32 0.0, %v6231
        %v6240 = vmul.f32 %v6232, 1.442695
        %v6241 = vpow.pop %v6240
        %v6242 = vmul.f32 %v6233, 1.442695
        %v6243 = vpow.pop %v6242
        %v6244 = vmul.f32 %v6234, 1.442695
        %v6245 = vpow.pop %v6244
        %v6246 = vmul.f32 %v6235, 1.442695
        %v6247 = vpow.pop %v6246
        %v6248 = vmul.f32 %v6236, 1.442695
        %v6249 = vpow.pop %v6248
        %v6250 = vmul.f32 %v6237, 1.442695
        %v6251 = vpow.pop %v6250
        %v6252 = vmul.f32 %v6238, 1.442695
        %v6253 = vpow.pop %v6252
        %v6254 = vmul.f32 %v6239, 1.442695
        %v6255 = vpow.pop %v6254
        %v6256 = vadd.f32 %v6241, 1.0
        %v6257 = vadd.f32 %v6243, 1.0
        %v6258 = vadd.f32 %v6245, 1.0
        %v6259 = vadd.f32 %v6247, 1.0
        %v6260 = vadd.f32 %v6249, 1.0
        %v6261 = vadd.f32 %v6251, 1.0
        %v6262 = vadd.f32 %v6253, 1.0
        %v6263 = vadd.f32 %v6255, 1.0
        %v6264 = vlog2.pop %v6256
        %v6265 = vmul.f32 %v6264, 0.6931472
        %v6266 = vlog2.pop %v6257
        %v6267 = vmul.f32 %v6266, 0.6931472
        %v6268 = vlog2.pop %v6258
        %v6269 = vmul.f32 %v6268, 0.6931472
        %v6270 = vlog2.pop %v6259
        %v6271 = vmul.f32 %v6270, 0.6931472
        %v6272 = vlog2.pop %v6260
        %v6273 = vmul.f32 %v6272, 0.6931472
        %v6274 = vlog2.pop %v6261
        %v6275 = vmul.f32 %v6274, 0.6931472
        %v6276 = vlog2.pop %v6262
        %v6277 = vmul.f32 %v6276, 0.6931472
        %v6278 = vlog2.pop %v6263
        %v6279 = vmul.f32 %v6278, 0.6931472
        %v6280 = vadd.f32 %v6216, %v6265
        %v6281 = vadd.f32 %v6217, %v6267
        %v6282 = vadd.f32 %v6218, %v6269
        %v6283 = vadd.f32 %v6219, %v6271
        %v6284 = vadd.f32 %v6220, %v6273
        %v6285 = vadd.f32 %v6221, %v6275
        %v6286 = vadd.f32 %v6222, %v6277
        %v6287 = vadd.f32 %v6223, %v6279
        %v6288 = vadd.f32 %v6168, %v6280
        %v6289 = vadd.f32 %v6169, %v6281
        %v6290 = vadd.f32 %v6170, %v6282
        %v6291 = vadd.f32 %v6171, %v6283
        %v6292 = vadd.f32 %v6172, %v6284
        %v6293 = vadd.f32 %v6173, %v6285
        %v6294 = vadd.f32 %v6174, %v6286
        %v6295 = vadd.f32 %v6175, %v6287
        %v6296 = vld [vmem:[%s194 + $0x5e0] sm:$0xff]
        %v6297 = vld [vmem:[%s194 + $0x5e8] sm:$0xff]
        %v6298 = vld [vmem:[%s194 + $0x5f0] sm:$0xff]
        %v6299 = vld [vmem:[%s194 + $0x5f8] sm:$0xff]
        %v6300 = vunpack.c.l.bf16 %v6296
        %v6301 = vunpack.c.h.bf16 %v6296
        %v6302 = vunpack.c.l.bf16 %v6297
        %v6303 = vunpack.c.h.bf16 %v6297
        %v6304 = vunpack.c.l.bf16 %v6298
        %v6305 = vunpack.c.h.bf16 %v6298
        %v6306 = vunpack.c.l.bf16 %v6299
        %v6307 = vunpack.c.h.bf16 %v6299
        %v6308 = vld [vmem:[%s194 + $0xc00] sm:$0xff]
        %v6309 = vld [vmem:[%s194 + $0xc08] sm:$0xff]
        %v6310 = vld [vmem:[%s194 + $0xc10] sm:$0xff]
        %v6311 = vld [vmem:[%s194 + $0xc18] sm:$0xff]
        %v6312 = vunpack.c.l.bf16 %v6308
        %v6313 = vunpack.c.h.bf16 %v6308
        %v6314 = vunpack.c.l.bf16 %v6309
        %v6315 = vunpack.c.h.bf16 %v6309
        %v6316 = vunpack.c.l.bf16 %v6310
        %v6317 = vunpack.c.h.bf16 %v6310
        %v6318 = vunpack.c.l.bf16 %v6311
        %v6319 = vunpack.c.h.bf16 %v6311
        %v6320 = vmax.f32 %v6300, 0.0
        %v6321 = vmax.f32 %v6301, 0.0
        %v6322 = vmax.f32 %v6302, 0.0
        %v6323 = vmax.f32 %v6303, 0.0
        %v6324 = vmax.f32 %v6304, 0.0
        %v6325 = vmax.f32 %v6305, 0.0
        %v6326 = vmax.f32 %v6306, 0.0
        %v6327 = vmax.f32 %v6307, 0.0
        %v6328 = vmul.f32 %v6300, %v6312
        %v6329 = vmul.f32 %v6301, %v6313
        %v6330 = vmul.f32 %v6302, %v6314
        %v6331 = vmul.f32 %v6303, %v6315
        %v6332 = vmul.f32 %v6304, %v6316
        %v6333 = vmul.f32 %v6305, %v6317
        %v6334 = vmul.f32 %v6306, %v6318
        %v6335 = vmul.f32 %v6307, %v6319
        %v6336 = vsub.f32 %v6320, %v6328
        %v6337 = vsub.f32 %v6321, %v6329
        %v6338 = vsub.f32 %v6322, %v6330
        %v6339 = vsub.f32 %v6323, %v6331
        %v6340 = vsub.f32 %v6324, %v6332
        %v6341 = vsub.f32 %v6325, %v6333
        %v6342 = vsub.f32 %v6326, %v6334
        %v6343 = vsub.f32 %v6327, %v6335
        %v6344 = vand.u32 2147483647, %v6300
        %v6345 = vand.u32 2147483647, %v6301
        %v6346 = vand.u32 2147483647, %v6302
        %v6347 = vand.u32 2147483647, %v6303
        %v6348 = vand.u32 2147483647, %v6304
        %v6349 = vand.u32 2147483647, %v6305
        %v6350 = vand.u32 2147483647, %v6306
        %v6351 = vand.u32 2147483647, %v6307
        %v6352 = vsub.f32 0.0, %v6344
        %v6353 = vsub.f32 0.0, %v6345
        %v6354 = vsub.f32 0.0, %v6346
        %v6355 = vsub.f32 0.0, %v6347
        %v6356 = vsub.f32 0.0, %v6348
        %v6357 = vsub.f32 0.0, %v6349
        %v6358 = vsub.f32 0.0, %v6350
        %v6359 = vsub.f32 0.0, %v6351
        %v6360 = vmul.f32 %v6352, 1.442695
        %v6361 = vpow.pop %v6360
        %v6362 = vmul.f32 %v6353, 1.442695
        %v6363 = vpow.pop %v6362
        %v6364 = vmul.f32 %v6354, 1.442695
        %v6365 = vpow.pop %v6364
        %v6366 = vmul.f32 %v6355, 1.442695
        %v6367 = vpow.pop %v6366
        %v6368 = vmul.f32 %v6356, 1.442695
        %v6369 = vpow.pop %v6368
        %v6370 = vmul.f32 %v6357, 1.442695
        %v6371 = vpow.pop %v6370
        %v6372 = vmul.f32 %v6358, 1.442695
        %v6373 = vpow.pop %v6372
        %v6374 = vmul.f32 %v6359, 1.442695
        %v6375 = vpow.pop %v6374
        %v6376 = vadd.f32 %v6361, 1.0
        %v6377 = vadd.f32 %v6363, 1.0
        %v6378 = vadd.f32 %v6365, 1.0
        %v6379 = vadd.f32 %v6367, 1.0
        %v6380 = vadd.f32 %v6369, 1.0
        %v6381 = vadd.f32 %v6371, 1.0
        %v6382 = vadd.f32 %v6373, 1.0
        %v6383 = vadd.f32 %v6375, 1.0
        %v6384 = vlog2.pop %v6376
        %v6385 = vmul.f32 %v6384, 0.6931472
        %v6386 = vlog2.pop %v6377
        %v6387 = vmul.f32 %v6386, 0.6931472
        %v6388 = vlog2.pop %v6378
        %v6389 = vmul.f32 %v6388, 0.6931472
        %v6390 = vlog2.pop %v6379
        %v6391 = vmul.f32 %v6390, 0.6931472
        %v6392 = vlog2.pop %v6380
        %v6393 = vmul.f32 %v6392, 0.6931472
        %v6394 = vlog2.pop %v6381
        %v6395 = vmul.f32 %v6394, 0.6931472
        %v6396 = vlog2.pop %v6382
        %v6397 = vmul.f32 %v6396, 0.6931472
        %v6398 = vlog2.pop %v6383
        %v6399 = vmul.f32 %v6398, 0.6931472
        %v6400 = vadd.f32 %v6336, %v6385
        %v6401 = vadd.f32 %v6337, %v6387
        %v6402 = vadd.f32 %v6338, %v6389
        %v6403 = vadd.f32 %v6339, %v6391
        %v6404 = vadd.f32 %v6340, %v6393
        %v6405 = vadd.f32 %v6341, %v6395
        %v6406 = vadd.f32 %v6342, %v6397
        %v6407 = vadd.f32 %v6343, %v6399
        %v6408 = vadd.f32 %v6288, %v6400
        %v6409 = vadd.f32 %v6289, %v6401
        %v6410 = vadd.f32 %v6290, %v6402
        %v6411 = vadd.f32 %v6291, %v6403
        %v6412 = vadd.f32 %v6292, %v6404
        %v6413 = vadd.f32 %v6293, %v6405
        %v6414 = vadd.f32 %v6294, %v6406
        %v6415 = vadd.f32 %v6295, %v6407
        %v6416 = vld [vmem:[%s194 + $0x600] sm:$0xff]
        %v6417 = vld [vmem:[%s194 + $0x608] sm:$0xff]
        %v6418 = vld [vmem:[%s194 + $0x610] sm:$0xff]
        %v6419 = vld [vmem:[%s194 + $0x618] sm:$0xff]
        %v6420 = vunpack.c.l.bf16 %v6416
        %v6421 = vunpack.c.h.bf16 %v6416
        %v6422 = vunpack.c.l.bf16 %v6417
        %v6423 = vunpack.c.h.bf16 %v6417
        %v6424 = vunpack.c.l.bf16 %v6418
        %v6425 = vunpack.c.h.bf16 %v6418
        %v6426 = vunpack.c.l.bf16 %v6419
        %v6427 = vunpack.c.h.bf16 %v6419
        %v6428 = vld [vmem:[%s194 + $0xc20] sm:$0xff]
        %v6429 = vld [vmem:[%s194 + $0xc28] sm:$0xff]
        %v6430 = vld [vmem:[%s194 + $0xc30] sm:$0xff]
        %v6431 = vld [vmem:[%s194 + $0xc38] sm:$0xff]
        %v6432 = vunpack.c.l.bf16 %v6428
        %v6433 = vunpack.c.h.bf16 %v6428
        %v6434 = vunpack.c.l.bf16 %v6429
        %v6435 = vunpack.c.h.bf16 %v6429
        %v6436 = vunpack.c.l.bf16 %v6430
        %v6437 = vunpack.c.h.bf16 %v6430
        %v6438 = vunpack.c.l.bf16 %v6431
        %v6439 = vunpack.c.h.bf16 %v6431
        %v6440 = vmax.f32 %v6420, 0.0
        %v6441 = vmax.f32 %v6421, 0.0
        %v6442 = vmax.f32 %v6422, 0.0
        %v6443 = vmax.f32 %v6423, 0.0
        %v6444 = vmax.f32 %v6424, 0.0
        %v6445 = vmax.f32 %v6425, 0.0
        %v6446 = vmax.f32 %v6426, 0.0
        %v6447 = vmax.f32 %v6427, 0.0
        %v6448 = vmul.f32 %v6420, %v6432
        %v6449 = vmul.f32 %v6421, %v6433
        %v6450 = vmul.f32 %v6422, %v6434
        %v6451 = vmul.f32 %v6423, %v6435
        %v6452 = vmul.f32 %v6424, %v6436
        %v6453 = vmul.f32 %v6425, %v6437
        %v6454 = vmul.f32 %v6426, %v6438
        %v6455 = vmul.f32 %v6427, %v6439
        %v6456 = vsub.f32 %v6440, %v6448
        %v6457 = vsub.f32 %v6441, %v6449
        %v6458 = vsub.f32 %v6442, %v6450
        %v6459 = vsub.f32 %v6443, %v6451
        %v6460 = vsub.f32 %v6444, %v6452
        %v6461 = vsub.f32 %v6445, %v6453
        %v6462 = vsub.f32 %v6446, %v6454
        %v6463 = vsub.f32 %v6447, %v6455
        %v6464 = vand.u32 2147483647, %v6420
        %v6465 = vand.u32 2147483647, %v6421
        %v6466 = vand.u32 2147483647, %v6422
        %v6467 = vand.u32 2147483647, %v6423
        %v6468 = vand.u32 2147483647, %v6424
        %v6469 = vand.u32 2147483647, %v6425
        %v6470 = vand.u32 2147483647, %v6426
        %v6471 = vand.u32 2147483647, %v6427
        %v6472 = vsub.f32 0.0, %v6464
        %v6473 = vsub.f32 0.0, %v6465
        %v6474 = vsub.f32 0.0, %v6466
        %v6475 = vsub.f32 0.0, %v6467
        %v6476 = vsub.f32 0.0, %v6468
        %v6477 = vsub.f32 0.0, %v6469
        %v6478 = vsub.f32 0.0, %v6470
        %v6479 = vsub.f32 0.0, %v6471
        %v6480 = vmul.f32 %v6472, 1.442695
        %v6481 = vpow.pop %v6480
        %v6482 = vmul.f32 %v6473, 1.442695
        %v6483 = vpow.pop %v6482
        %v6484 = vmul.f32 %v6474, 1.442695
        %v6485 = vpow.pop %v6484
        %v6486 = vmul.f32 %v6475, 1.442695
        %v6487 = vpow.pop %v6486
        %v6488 = vmul.f32 %v6476, 1.442695
        %v6489 = vpow.pop %v6488
        %v6490 = vmul.f32 %v6477, 1.442695
        %v6491 = vpow.pop %v6490
        %v6492 = vmul.f32 %v6478, 1.442695
        %v6493 = vpow.pop %v6492
        %v6494 = vmul.f32 %v6479, 1.442695
        %v6495 = vpow.pop %v6494
        %v6496 = vadd.f32 %v6481, 1.0
        %v6497 = vadd.f32 %v6483, 1.0
        %v6498 = vadd.f32 %v6485, 1.0
        %v6499 = vadd.f32 %v6487, 1.0
        %v6500 = vadd.f32 %v6489, 1.0
        %v6501 = vadd.f32 %v6491, 1.0
        %v6502 = vadd.f32 %v6493, 1.0
        %v6503 = vadd.f32 %v6495, 1.0
        %v6504 = vlog2.pop %v6496
        %v6505 = vmul.f32 %v6504, 0.6931472
        %v6506 = vlog2.pop %v6497
        %v6507 = vmul.f32 %v6506, 0.6931472
        %v6508 = vlog2.pop %v6498
        %v6509 = vmul.f32 %v6508, 0.6931472
        %v6510 = vlog2.pop %v6499
        %v6511 = vmul.f32 %v6510, 0.6931472
        %v6512 = vlog2.pop %v6500
        %v6513 = vmul.f32 %v6512, 0.6931472
        %v6514 = vlog2.pop %v6501
        %v6515 = vmul.f32 %v6514, 0.6931472
        %v6516 = vlog2.pop %v6502
        %v6517 = vmul.f32 %v6516, 0.6931472
        %v6518 = vlog2.pop %v6503
        %v6519 = vmul.f32 %v6518, 0.6931472
        %v6520 = vadd.f32 %v6456, %v6505
        %v6521 = vadd.f32 %v6457, %v6507
        %v6522 = vadd.f32 %v6458, %v6509
        %v6523 = vadd.f32 %v6459, %v6511
        %v6524 = vadd.f32 %v6460, %v6513
        %v6525 = vadd.f32 %v6461, %v6515
        %v6526 = vadd.f32 %v6462, %v6517
        %v6527 = vadd.f32 %v6463, %v6519
        %v6528 = vadd.f32 %v6408, %v6520
        %v6529 = vadd.f32 %v6409, %v6521
        %v6530 = vadd.f32 %v6410, %v6522
        %v6531 = vadd.f32 %v6411, %v6523
        %v6532 = vadd.f32 %v6412, %v6524
        %v6533 = vadd.f32 %v6413, %v6525
        %v6534 = vadd.f32 %v6414, %v6526
        %v6535 = vadd.f32 %v6415, %v6527
        %v6536 = vadd.f32 %v6528, %v6532
        %v6537 = vrot.slane %v6536, 4
        %v6538 = vadd.f32 %v6536, %v6537
        %v6539 = vrot.slane %v6538, 2
        %v6540 = vadd.f32 %v6538, %v6539
        %v6541 = vrot.slane %v6540, 1
        %v6542 = vadd.f32 %v6540, %v6541
        %v6543 = vadd.f32 %v6529, %v6533
        %v6544 = vrot.slane %v6543, 4
        %v6545 = vadd.f32 %v6543, %v6544
        %v6546 = vrot.slane %v6545, 2
        %v6547 = vadd.f32 %v6545, %v6546
        %v6548 = vrot.slane %v6547, 1
        %v6549 = vadd.f32 %v6547, %v6548
        %v6550 = vadd.f32 %v6530, %v6534
        %v6551 = vrot.slane %v6550, 4
        %v6552 = vadd.f32 %v6550, %v6551
        %v6553 = vrot.slane %v6552, 2
        %v6554 = vadd.f32 %v6552, %v6553
        %v6555 = vrot.slane %v6554, 1
        %v6556 = vadd.f32 %v6554, %v6555
        %v6557 = vadd.f32 %v6531, %v6535
        %v6558 = vrot.slane %v6557, 4
        %v6559 = vadd.f32 %v6557, %v6558
        %v6560 = vrot.slane %v6559, 2
        %v6561 = vadd.f32 %v6559, %v6560
        %v6562 = vrot.slane %v6561, 1
        %v6563 = vadd.f32 %v6561, %v6562
        %v6564 = vmul.f32 %v6542, 0.0012755102
        %v6565 = vmul.f32 %v6549, 0.0012755102
        %v6566 = vmul.f32 %v6556, 0.0012755102
        %v6567 = vmul.f32 %v6563, 0.0012755102
        %v6572 = vrot.slane %v572, 7
        %v6573 = vrot.slane %v573, 7
        %v6574 = vrot.slane %v574, 7
        %v6575 = vrot.slane %v575, 7
        %vm6580 = vcmask 1040384
        %v6581 = vsel %vm6580, %v532, %v6572
        %v6582 = vsel %vm6580, %v533, %v6573
        %v6583 = vsel %vm6580, %v534, %v6574
        %v6584 = vsel %vm6580, %v535, %v6575
        %vm6585 = vcmask 1041408
        %v6586 = vsel %vm6585, %v6581, %v652
        %v6587 = vsel %vm6585, %v6582, %v653
        %v6588 = vsel %vm6585, %v6583, %v654
        %v6589 = vsel %vm6585, %v6584, %v655
        %vm6590 = vcmask 1042432
        %v6591 = vsel %vm6590, %v6586, %v6564
        %v6592 = vsel %vm6590, %v6587, %v6565
        %v6593 = vsel %vm6590, %v6588, %v6566
        %v6594 = vsel %vm6590, %v6589, %v6567
        %vm6595 = vcmask 1043456
        %v6596 = vsel %vm6595, %v6591, 0.0
        %v6597 = vsel %vm6595, %v6592, 0.0
        %v6598 = vsel %vm6595, %v6593, 0.0
        %v6599 = vsel %vm6595, %v6594, 0.0
        %v6600 = vld [vmem:[%s219] sm:$0xff]
        %v6601 = vld [vmem:[%s219 + $0x8] sm:$0xff]
        %v6602 = vld [vmem:[%s219 + $0x10] sm:$0xff]
        %v6603 = vld [vmem:[%s219 + $0x18] sm:$0xff]
        %v6604 = vlaneseq
        %v6605 = vshrl.u32 %v6604, 7
        %v6606 = vsub.s32 2, %v6605
        %v6607 = vrot.slane %v236, %v6606
        %v6608 = vlaneseq
        %v6609 = vshrl.u32 %v6608, 7
        %v6610 = vsub.s32 2, %v6609
        %v6611 = vrot.slane %v237, %v6610
        %v6612 = vlaneseq
        %v6613 = vshrl.u32 %v6612, 7
        %v6614 = vsub.s32 2, %v6613
        %v6615 = vrot.slane %v238, %v6614
        %v6616 = vlaneseq
        %v6617 = vshrl.u32 %v6616, 7
        %v6618 = vsub.s32 2, %v6617
        %v6619 = vrot.slane %v239, %v6618
        %v6620 = vmul.f32 %v6596, %v6607
        %v6621 = vmul.f32 %v6597, %v6611
        %v6622 = vmul.f32 %v6598, %v6615
        %v6623 = vmul.f32 %v6599, %v6619
        %v6624 = vadd.f32 %v6600, %v6620
        %v6625 = vadd.f32 %v6601, %v6621
        %v6626 = vadd.f32 %v6602, %v6622
        %v6627 = vadd.f32 %v6603, %v6623
        %6628 = vst [vmem:[%s219] sm:$0xff] %v6624
        %6629 = vst [vmem:[%s219 + $0x8] sm:$0xff] %v6625
        %6630 = vst [vmem:[%s219 + $0x10] sm:$0xff] %v6626
        %6631 = vst [vmem:[%s219 + $0x18] sm:$0xff] %v6627
        %s6632 = sand.u32 %s98, 1
        %s6633 = scalar_lea.sflag [#allocation4], %s6632
        %s6634 = sand.u32 %s98, 1
        %s6635 = smul.addr %s6634, 32
        %s6636 = scalar_lea.vmem [#allocation7], %s6635
        // Predicated region
        $region41: #{tpu_custom_call.1} parent=27 // pred_check
          %p6637 = pneg %p108
        $region42: #{tpu_custom_call.1} parent=27 // pred_check_branch
          %6639 = sbr.rel (%p6637) target = $region44
        $region43: #{tpu_custom_call.1} parent=27 // pred_region
          %s6641 = ssub.s32 512, 512
          %6642 = vsyncadd %s6633, %s6641
          %s6643 = smul.addr %s26, 4
          %s6644 = smul.addr %s6643, 128
          %s6645 = scalar_lea.hbm %s2, %s6644
          %s6647 = sshll.u32 %s6636, 4
          %s6648 = int_to_ptr.vmem [resolvable:$true] %s6647
          %6650 = dma.vmem_to_hbm [thread:$0]  %s6648, 512, %s6645, %s6633
        $region44: #{tpu_custom_call.1} parent=27 // pred_fallthru
          _
      $region28: #{tpu_custom_call.1} parent=5 // pred_fallthru
        _
      %p6651 = scmp.le.s32.totalorder 2, %s17
      // Predicated region
      $region45: #{tpu_custom_call.1} parent=5 // pred_check
        %p6652 = pneg %p6651
      $region46: #{tpu_custom_call.1} parent=5 // pred_check_branch
        %6654 = sbr.rel (%p6652) target = $region48
      $region47: #{tpu_custom_call.1} parent=5 // pred_region
        %s6655 = ssub.s32 %s17, 2
        // Predicated region
        $region49: #{tpu_custom_call.1} parent=47 // pred_check
          %p6656 = pneg %p114
        $region50: #{tpu_custom_call.1} parent=47 // pred_check_branch
          %6658 = sbr.rel (%p6656) target = $region52
        $region51: #{tpu_custom_call.1} parent=47 // pred_region
          %s6659 = sand.u32 %s99, 1
          %s6660 = scalar_lea.sflag [#allocation4], %s6659
          %s6661 = sand.u32 %s99, 1
          %s6662 = smul.addr %s6661, 32
          %s6663 = scalar_lea.vmem [#allocation7], %s6662
          %6664 = dma.done %s6660, 512
        $region52: #{tpu_custom_call.1} parent=47 // pred_fallthru
          _
      $region48: #{tpu_custom_call.1} parent=5 // pred_fallthru
        _
    $region6: #{tpu_custom_call.1} parent=1 // loop_footer
      %s21 = sadd.s32 1, %s17
    $region7: #{tpu_custom_call.1} parent=1 // loop_footer_branch
      %16 = sbr.rel target = $region3
    $region8: #{tpu_custom_call.1} parent=1 // loop_exit
      _
    %6665 = vsyncpa [#allocation3], 1
    %s6666 = scalar_lea.sflag [#allocation3], 1
    %6667 = vsyncpa %s6666, 1
    %6668 = vsyncpa [#allocation6], 1
    %s6669 = scalar_lea.sflag [#allocation6], 1
    %6670 = vsyncpa %s6669, 1
    %6671 = vsyncpa [#allocation4], 1
    %s6672 = scalar_lea.sflag [#allocation4], 1
    %6673 = vsyncpa %s6672, 1

</llo_original>
